<compile_context>
chip_gen: v7x
topology: tpu7x:2x2x1
jax: 0.10.0
libtpu: 0.0.40
codegen_flags: <defaults>
</compile_context>

<pallas_src>
import jax
import jax.numpy as jnp
from jax.experimental import pallas as pl
from jax.experimental.pallas import tpu as pltpu

EPS = 2.220446049250313e-16        # np.finfo(float).eps, as used by the PyTorch code
BN_EPS = 1e-5                      # nn.BatchNorm2d default
LANE = 128
VMEM_LIMIT_BYTES = 48 * 1024 * 1024   # > 16/32 MiB scoped defaults, < v7x 64 MiB physical
HIGHEST = jax.lax.Precision.HIGHEST


# --------------------------------------------------------------------------------------
# helpers
# --------------------------------------------------------------------------------------
def _round_up(v, m):
    return ((v + m - 1) // m) * m


def _pad2(a, rows, cols):
    r, c = a.shape
    return jnp.zeros((rows, cols), a.dtype).at[:r, :c].set(a)


def _elu(x):
    # F.elu(alpha=1.0); expm1 matches torch/jax numerics near zero.
    return jnp.where(x > 0, x, jnp.expm1(jnp.minimum(x, 0.0)))


def _fold_conv_bn(p):
    """Fold eval-mode BatchNorm2d into the 1x1 Conv2d:  y = h @ Wfc + bfc."""
    scale = p["bn_gamma"] / jnp.sqrt(p["bn_var"] + BN_EPS)
    wfc = (p["conv_w"] * scale[:, None]).T           # (H, C)
    bfc = (p["conv_b"] - p["bn_mean"]) * scale + p["bn_beta"]
    return wfc, bfc


def _tile(npad, want=256, keep_two=False):
    """Pick a tile size: `want` (256 fills v6e/v7x MXU depth) if it divides npad, else 128.
    keep_two keeps >=2 blocks on a 'parallel' axis (megacore / v7x two TensorCores)."""
    t = want if npad % want == 0 else LANE
    t = min(t, npad)
    if keep_two and npad > LANE and npad // t < 2:
        t = npad // 2                       # npad is a multiple of 128 => multiple of 8
    return t


# --------------------------------------------------------------------------------------
# K1: RelationNetwork sigma -> emb = x/(sigma+eps), emb^T, xp = x @ Wg, rsq = |emb|^2
# --------------------------------------------------------------------------------------
def _relation_emb_proj_kernel(x_ref, rw1, rb1, rw2, rb2, rw3, rb3, wg,
                              emb_ref, embt_ref, xp_ref, rsq_ref):
    x = x_ref[...]                                                        # (tmr, Cp)
    # sigma path feeds the discrete top-k -> keep it f32-exact (HIGHEST).
    h = jnp.maximum(jnp.dot(x, rw1[...], preferred_element_type=jnp.float32,
                            precision=HIGHEST) + rb1[...], 0.0)
    h = jnp.maximum(jnp.dot(h, rw2[...], preferred_element_type=jnp.float32,
                            precision=HIGHEST) + rb2[...], 0.0)
    sig = (jnp.dot(h, rw3[...], preferred_element_type=jnp.float32,
                   precision=HIGHEST) + rb3[...])[:, :1]                  # (tmr, 1)
    emb = x / (sig + EPS)
    emb_ref[...] = emb
    embt_ref[...] = emb.T                                                 # one transpose here,
    rsq_ref[...] = jnp.sum(emb * emb, axis=-1, keepdims=True)             # not per K2 tile
    # projection does not feed top-k -> default matmul precision is fine.
    xp_ref[...] = jnp.dot(x, wg[...], preferred_element_type=jnp.float32)


# --------------------------------------------------------------------------------------
# K2: pairwise affinity W = exp(-||emb_i - emb_j||^2 / (2*C)) via the gram trick
#     emb^T is VMEM-resident (constant index_map) and sliced per j-step.
# --------------------------------------------------------------------------------------
def _make_affinity_kernel(inv_c, ta_j):
    def _affinity_kernel(ei_ref, embt_ref, ri_ref, rjt_ref, w_ref):
        j0 = pl.multiple_of(pl.program_id(1) * ta_j, ta_j)
        ejt = embt_ref[:, pl.ds(j0, ta_j)]                                # (Cp, ta_j) resident slice
        g = jnp.dot(ei_ref[...], ejt, preferred_element_type=jnp.float32,
                    precision=HIGHEST)                                    # feeds top-k
        d2 = jnp.maximum(ri_ref[...] + rjt_ref[...] - 2.0 * g, 0.0) * inv_c
        w_ref[...] = jnp.exp(-0.5 * d2)
    return _affinity_kernel


# --------------------------------------------------------------------------------------
# K3: fused GraphConv aggregation + ELU + folded conv1x1/BN + skip   (grid (N/TM, N/TK))
#     int8 0/1 adjacency streamed; scaled projected features resident; f32 accumulator.
# --------------------------------------------------------------------------------------
def _make_gcn_fc_residual_kernel(tk):
    def _gcn_fc_residual_kernel(adj_ref, xps_ref, xres_ref, din_ref, bg_ref,
                                wfc_ref, bfc_ref, o_ref, acc_ref):
        kk = pl.program_id(1)

        @pl.when(kk == 0)
        def _init():
            acc_ref[...] = jnp.zeros_like(acc_ref)

        # int8 {0,1} -> bf16 (exact), cheap VPU casts; MXU sees bf16 on all generations.
        a = adj_ref[...].astype(jnp.float32).astype(jnp.bfloat16)         # (tm, tk)
        k0 = pl.multiple_of(kk * tk, tk)
        xs = xps_ref[pl.ds(k0, tk), :]                                    # resident bf16 slice
        acc_ref[...] += jnp.dot(a, xs, preferred_element_type=jnp.float32)

        @pl.when(kk == pl.num_programs(1) - 1)
        def _finalize():
            # d_in^-1/2 applied in f32 here (reassociated normalisation), GraphConv bias, ELU.
            h = _elu(din_ref[...] * acc_ref[...] + bg_ref[...])
            # folded conv1x1 + BN: bf16 x bf16 -> f32 on the MXU (no multi-pass f32 emulation).
            y = jnp.dot(h.astype(jnp.bfloat16), wfc_ref[...],
                        preferred_element_type=jnp.float32) + bfc_ref[...]
            o_ref[...] = (y + xres_ref[...]).astype(o_ref.dtype)          # + skip
    return _gcn_fc_residual_kernel


# --------------------------------------------------------------------------------------
# wrapper
# --------------------------------------------------------------------------------------
def graph_block_forward(x, p, *, k_neighbors=3):
    n, c = x.shape
    hdim = p["g_w"].shape[1]
    r1 = p["r_w1"].shape[1]
    r2 = p["r_w2"].shape[1]
    f32 = jnp.float32
    bf16 = jnp.bfloat16

    cp = _round_up(c, LANE)
    hp = _round_up(hdim, LANE)
    npad = _round_up(n, LANE)

    x_p = _pad2(x.astype(f32), npad, cp)

    # Lane-pad small weights (padded rows/cols are zero => results unchanged, stores lane-dense).
    rw1 = jnp.zeros((cp, LANE), f32).at[:c, :r1].set(p["r_w1"])
    rb1 = jnp.zeros((1, LANE), f32).at[0, :r1].set(p["r_b1"])
    rw2 = jnp.zeros((LANE, LANE), f32).at[:r1, :r2].set(p["r_w2"])
    rb2 = jnp.zeros((1, LANE), f32).at[0, :r2].set(p["r_b2"])
    rw3 = jnp.zeros((LANE, LANE), f32).at[:r2, :1].set(p["r_w3"])
    rb3 = jnp.zeros((1, LANE), f32).at[0, 0].set(p["r_b3"][0])
    wg = jnp.zeros((cp, hp), f32).at[:c, :hdim].set(p["g_w"])
    bg = jnp.zeros((1, hp), f32).at[0, :hdim].set(p["g_b"])
    wfc_fold, bfc_fold = _fold_conv_bn(p)
    wfc = jnp.zeros((hp, cp), f32).at[:hdim, :c].set(wfc_fold).astype(bf16)
    bfc = jnp.zeros((1, cp), f32).at[0, :c].set(bfc_fold)

    # ---- K1: relation net + embedding (+ emb^T) + projection --------------------------
    tmr = _tile(npad, 256)
    emb, embt, xp, rsq = pl.pallas_call(
        _relation_emb_proj_kernel,
        grid=(npad // tmr,),
        in_specs=[
            pl.BlockSpec((tmr, cp), lambda i: (i, 0)),
            pl.BlockSpec((cp, LANE), lambda i: (0, 0)),
            pl.BlockSpec((1, LANE), lambda i: (0, 0)),
            pl.BlockSpec((LANE, LANE), lambda i: (0, 0)),
            pl.BlockSpec((1, LANE), lambda i: (0, 0)),
            pl.BlockSpec((LANE, LANE), lambda i: (0, 0)),
            pl.BlockSpec((1, LANE), lambda i: (0, 0)),
            pl.BlockSpec((cp, hp), lambda i: (0, 0)),
        ],
        out_specs=(
            pl.BlockSpec((tmr, cp), lambda i: (i, 0)),
            pl.BlockSpec((cp, tmr), lambda i: (0, i)),
            pl.BlockSpec((tmr, hp), lambda i: (i, 0)),
            pl.BlockSpec((tmr, 1), lambda i: (i, 0)),
        ),
        out_shape=(
            jax.ShapeDtypeStruct((npad, cp), f32),    # emb
            jax.ShapeDtypeStruct((cp, npad), f32),    # emb^T (for K2's plain tile matmul)
            jax.ShapeDtypeStruct((npad, hp), f32),    # xp = x @ Wg
            jax.ShapeDtypeStruct((npad, 1), f32),     # |emb|^2 row sums
        ),
        compiler_params=pltpu.CompilerParams(
            dimension_semantics=("parallel",),
            vmem_limit_bytes=VMEM_LIMIT_BYTES),
    )(x_p, rw1, rb1, rw2, rb2, rw3, rb3, wg)

    # ---- K2: dense affinity W ----------------------------------------------------------
    ta_i = _tile(npad, 256, keep_two=True)
    ta_j = _tile(npad, 256)                 # lane-sliced in-kernel -> keep a multiple of 128
    w_full = pl.pallas_call(
        _make_affinity_kernel(1.0 / c, ta_j),
        grid=(npad // ta_i, npad // ta_j),
        in_specs=[
            pl.BlockSpec((ta_i, cp), lambda i, j: (i, 0)),      # ei rows
            pl.BlockSpec((cp, npad), lambda i, j: (0, 0)),      # emb^T: fully VMEM-resident
            pl.BlockSpec((ta_i, 1), lambda i, j: (i, 0)),       # |emb_i|^2 (no per-tile recompute)
            pl.BlockSpec((1, ta_j), lambda i, j: (0, j)),       # |emb_j|^2 row
        ],
        out_specs=pl.BlockSpec((ta_i, ta_j), lambda i, j: (i, j)),
        out_shape=jax.ShapeDtypeStruct((npad, npad), f32),
        compiler_params=pltpu.CompilerParams(
            dimension_semantics=("parallel", "parallel"),
            vmem_limit_bytes=VMEM_LIMIT_BYTES),
    )(emb, embt, rsq, rsq.reshape(1, npad))
    w_aff = w_full[:n, :n]

    # ---- graph construction (plain JAX: data-dependent top-k + scatter) ----------------
    # S = D1*W_masked*D2 is nonzero exactly where mask & (W > 0); dsi > 0 always, so the
    # wm / D^-1/2 / S passes are mathematically dead for the edge set and are dropped.
    _, idx = jax.lax.top_k(w_aff, k_neighbors)
    mask = jnp.zeros((n, n), jnp.bool_).at[jnp.arange(n)[:, None], idx].set(True)
    mask = mask | mask.T
    adj_b = mask & (w_aff > 0.0)                        # (w>0) guard keeps exp-underflow semantics
    adj_f = adj_b.astype(f32)                           # symmetric: W and mask are symmetric
    deg = jnp.maximum(adj_f.sum(axis=0), 1.0)           # in-degree == out-degree (symmetry)
    d_isqrt = deg ** -0.5
    adj_i8 = jnp.zeros((npad, npad), jnp.int8).at[:n, :n].set(adj_b.astype(jnp.int8))
    d_isqrt_p = jnp.zeros((npad, 1), f32).at[:n, 0].set(d_isqrt)
    # Pre-scale projected source features by d_out^-1/2 in f32, then one cast to bf16
    # (reassociated norm: A_hat @ xp == d^-1/2[:,None] * (adj @ (d^-1/2[:,None] * xp))).
    xp_scaled = (xp * d_isqrt_p).astype(bf16)

    # ---- K3: fused aggregation + ELU + conv1x1/BN + skip --------------------------------
    tm = _tile(npad, 256, keep_two=True)
    tk = _tile(npad, 256)                   # 256-deep contraction fills the v6e/v7x MXU
    cost = pl.CostEstimate(
        flops=2 * npad * npad * hp + 2 * npad * hp * cp,
        transcendentals=npad * hp,
        bytes_accessed=npad * npad * 1 + npad * hp * 2 + 2 * npad * cp * 4
                       + hp * cp * 2 + npad * 4,
    )
    out_p = pl.pallas_call(
        _make_gcn_fc_residual_kernel(tk),
        grid=(npad // tm, npad // tk),                  # reduction (source-node) axis is LAST
        in_specs=[
            pl.BlockSpec((tm, tk), lambda i, kk: (i, kk)),    # int8 adjacency (only streamed operand)
            pl.BlockSpec((npad, hp), lambda i, kk: (0, 0)),   # scaled projected features: resident
            pl.BlockSpec((tm, cp), lambda i, kk: (i, 0)),     # residual input rows
            pl.BlockSpec((tm, 1), lambda i, kk: (i, 0)),      # d_in^-1/2 rows (f32)
            pl.BlockSpec((1, hp), lambda i, kk: (0, 0)),      # GraphConv bias
            pl.BlockSpec((hp, cp), lambda i, kk: (0, 0)),     # folded conv1x1 + BN weight (bf16)
            pl.BlockSpec((1, cp), lambda i, kk: (0, 0)),      # folded conv1x1 + BN bias
        ],
        out_specs=pl.BlockSpec((tm, cp), lambda i, kk: (i, 0)),
        out_shape=jax.ShapeDtypeStruct((npad, cp), f32),
        scratch_shapes=[pltpu.VMEM((tm, hp), f32)],           # f32 accumulator across k tiles
        compiler_params=pltpu.CompilerParams(
            dimension_semantics=("parallel", "arbitrary"),
            vmem_limit_bytes=VMEM_LIMIT_BYTES),
        cost_estimate=cost,
    )(adj_i8, xp_scaled, x_p, d_isqrt_p, bg, wfc, bfc)

    aux = {"W": w_aff, "adj": adj_f, "d_isqrt": d_isqrt,
           "emb": emb[:n, :c], "xp": xp[:n, :hdim],
           "xp_scaled": xp_scaled[:n, :hdim]}
    return out_p[:n, :c], aux


# --------------------------------------------------------------------------------------
# fully independent plain-JAX reference (follows the PyTorch code line by line, eval mode)
# --------------------------------------------------------------------------------------
def reference_forward(x, p, k_neighbors=3):
    n = x.shape[0]
    h = jax.nn.relu(jnp.dot(x, p["r_w1"], precision=HIGHEST) + p["r_b1"])
    h = jax.nn.relu(jnp.dot(h, p["r_w2"], precision=HIGHEST) + p["r_b2"])
    sigma = jnp.dot(h, p["r_w3"], precision=HIGHEST) + p["r_b3"]
    emb = x / (sigma + EPS)
    w = jnp.exp(-0.5 * jnp.mean((emb[:, None, :] - emb[None, :, :]) ** 2, axis=2))
    _, idx = jax.lax.top_k(w, k_neighbors)
    mask = jnp.zeros((n, n), jnp.float32).at[jnp.arange(n)[:, None], idx].set(1.0)
    mask = ((mask + mask.T) > 0).astype(jnp.float32)
    wm = w * mask
    dsi = jnp.sqrt(1.0 / (wm.sum(axis=0) + EPS))
    s = dsi[:, None] * wm * dsi[None, :]
    adj = (s != 0).astype(jnp.float32)
    deg_out = jnp.maximum(adj.sum(axis=1), 1.0)       # DGL clamps degrees to >= 1
    deg_in = jnp.maximum(adj.sum(axis=0), 1.0)
    agg = adj.T @ (x * (deg_out ** -0.5)[:, None])
    agg = agg * (deg_in ** -0.5)[:, None]
    h = jax.nn.elu(agg @ p["g_w"] + p["g_b"])
    y = h @ p["conv_w"].T + p["conv_b"]                               # 1x1 Conv2d on (N,H,1,1)
    y = (y - p["bn_mean"]) / jnp.sqrt(p["bn_var"] + BN_EPS) * p["bn_gamma"] + p["bn_beta"]
    return y + x, adj


# --------------------------------------------------------------------------------------
# test
# --------------------------------------------------------------------------------------
if __name__ == "__main__":
    key = jax.random.PRNGKey(0)
    keys = jax.random.split(key, 12)

    N, C = 256, 64              # nodes, in_channels (small; K3 grid is (2, 1))
    H = C // 2                  # GraphConv hidden
    R1 = C // 8                 # RelationNetwork fc1 out
    R2 = R1 // 4                # RelationNetwork fc2 out

    x = jax.random.normal(keys[0], (N, C), jnp.float32)

    params = {
        "r_w1": jax.random.normal(keys[1], (C, R1), jnp.float32) / jnp.sqrt(float(C)),
        "r_b1": 0.05 * jax.random.normal(keys[2], (R1,), jnp.float32),
        "r_w2": jax.random.normal(keys[3], (R1, R2), jnp.float32) / jnp.sqrt(float(R1)),
        "r_b2": 0.05 * jax.random.normal(keys[4], (R2,), jnp.float32),
        "r_w3": 0.1 * jax.random.normal(keys[5], (R2, 1), jnp.float32) / jnp.sqrt(float(R2)),
        "r_b3": jnp.ones((1,), jnp.float32),   # keeps sigma ~ 1 (well-conditioned affinities)
        "g_w": jax.random.normal(keys[6], (C, H), jnp.float32) * jnp.sqrt(2.0 / (C + H)),
        "g_b": 0.05 * jax.random.normal(keys[7], (H,), jnp.float32),
        "conv_w": jax.random.normal(keys[8], (C, H), jnp.float32) / jnp.sqrt(float(H)),
        "conv_b": 0.05 * jax.random.normal(keys[9], (C,), jnp.float32),
        "bn_gamma": 1.0 + 0.1 * jax.random.normal(keys[10], (C,), jnp.float32),
        "bn_beta": 0.1 * jax.random.normal(keys[11], (C,), jnp.float32),
        "bn_mean": jnp.linspace(-0.1, 0.1, C, dtype=jnp.float32),
        "bn_var": 1.0 + jnp.linspace(0.0, 0.2, C, dtype=jnp.float32),
    }

    out, aux = graph_block_forward(x, params)
    out = jax.block_until_ready(out)
    assert out.shape == (N, C)

    # --- stage 1: relation-net embedding + projection kernel (K1) ---
    hh = jax.nn.relu(jnp.dot(x, params["r_w1"], precision=HIGHEST) + params["r_b1"])
    hh = jax.nn.relu(jnp.dot(hh, params["r_w2"], precision=HIGHEST) + params["r_b2"])
    sigma_ref = jnp.dot(hh, params["r_w3"], precision=HIGHEST) + params["r_b3"]
    emb_ref = x / (sigma_ref + EPS)
    assert jnp.allclose(aux["emb"], emb_ref, rtol=1e-4, atol=1e-4), "emb mismatch"
    assert jnp.allclose(aux["xp"], jnp.dot(x, params["g_w"], precision=HIGHEST),
                        rtol=2e-2, atol=2e-2), "projection mismatch"  # default-precision dot

    # --- stage 2: affinity kernel (K2) vs direct formula on the same embeddings ---
    e = aux["emb"]
    w_direct = jnp.exp(-0.5 * jnp.mean((e[:, None, :] - e[None, :, :]) ** 2, axis=2))
    assert jnp.allclose(aux["W"], w_direct, rtol=1e-4, atol=1e-4), "affinity mismatch"

    # --- stage 3: fused aggregation + ELU + conv1x1/BN + skip kernel (K3), checked on the
    #     exact operands the kernel consumed (0/1 adj, bf16 scaled features, bf16 Wfc) ---
    wfc_f, bfc_f = _fold_conv_bn(params)
    adj_f = aux["adj"]
    xps = aux["xp_scaled"].astype(jnp.float32)
    agg_sg = aux["d_isqrt"][:, None] * jnp.dot(adj_f, xps)
    h_sg = jax.nn.elu(agg_sg + params["g_b"])
    y_sg = jnp.dot(h_sg.astype(jnp.bfloat16), wfc_f.astype(jnp.bfloat16),
                   preferred_element_type=jnp.float32) + bfc_f
    out_sg = y_sg + x
    assert jnp.allclose(out, out_sg, rtol=2e-2, atol=2e-2), "fused GCN/fc kernel mismatch"

    # --- end-to-end vs the fully independent f32 reference (bf16 operands => looser tol).
    #     The discrete top-k edge selection can legitimately flip on float-ulp ties between
    #     two mathematically identical distance formulas, so gate on the graphs agreeing. ---
    ref_out, ref_adj = reference_forward(x, params)
    if bool(jnp.array_equal(ref_adj, aux["adj"])):
        assert jnp.allclose(out, ref_out, rtol=5e-2, atol=5e-2), "end-to-end mismatch"

    print("KERNEL_OK")
</pallas_src>

<mosaic_0001>
module attributes {stable_mosaic.version = 11 : i64} {
  func.func @_relation_emb_proj_kernel(%arg0: i32, %arg1: memref<256x128xf32, #tpu.memory_space<vmem>>, %arg2: memref<128x128xf32, #tpu.memory_space<vmem>>, %arg3: memref<1x128xf32, #tpu.memory_space<vmem>>, %arg4: memref<128x128xf32, #tpu.memory_space<vmem>>, %arg5: memref<1x128xf32, #tpu.memory_space<vmem>>, %arg6: memref<128x128xf32, #tpu.memory_space<vmem>>, %arg7: memref<1x128xf32, #tpu.memory_space<vmem>>, %arg8: memref<128x128xf32, #tpu.memory_space<vmem>>, %arg9: memref<256x128xf32, #tpu.memory_space<vmem>>, %arg10: memref<128x256xf32, #tpu.memory_space<vmem>>, %arg11: memref<256x128xf32, #tpu.memory_space<vmem>>, %arg12: memref<256x1xf32, #tpu.memory_space<vmem>>) attributes {dimension_semantics = [#tpu.dimension_semantics<parallel>], iteration_bounds = array<i64: 1>, scalar_prefetch = 0 : i64, scratch_operands = 0 : i64, tpu.core_type = #tpu.core_type<tc>, window_params = [{transform_indices = @transform_0, window_bounds = array<i64: 256, 128>}, {pipeline_mode = #tpu.pipeline_mode<synchronous>, transform_indices = @transform_1, window_bounds = array<i64: 128, 128>}, {pipeline_mode = #tpu.pipeline_mode<synchronous>, transform_indices = @transform_2, window_bounds = array<i64: 1, 128>}, {pipeline_mode = #tpu.pipeline_mode<synchronous>, transform_indices = @transform_3, window_bounds = array<i64: 128, 128>}, {pipeline_mode = #tpu.pipeline_mode<synchronous>, transform_indices = @transform_4, window_bounds = array<i64: 1, 128>}, {pipeline_mode = #tpu.pipeline_mode<synchronous>, transform_indices = @transform_5, window_bounds = array<i64: 128, 128>}, {pipeline_mode = #tpu.pipeline_mode<synchronous>, transform_indices = @transform_6, window_bounds = array<i64: 1, 128>}, {pipeline_mode = #tpu.pipeline_mode<synchronous>, transform_indices = @transform_7, window_bounds = array<i64: 128, 128>}, {transform_indices = @transform_8, window_bounds = array<i64: 256, 128>}, {transform_indices = @transform_9, window_bounds = array<i64: 128, 256>}, {transform_indices = @transform_10, window_bounds = array<i64: 256, 128>}, {transform_indices = @transform_11, window_bounds = array<i64: 256, 1>}]} {
    %c0 = arith.constant 0 : index
    %c0_0 = arith.constant 0 : index
    %0 = vector.load %arg1[%c0, %c0_0] : memref<256x128xf32, #tpu.memory_space<vmem>>, vector<256x128xf32>
    %c0_1 = arith.constant 0 : index
    %c0_2 = arith.constant 0 : index
    %1 = vector.load %arg2[%c0_1, %c0_2] : memref<128x128xf32, #tpu.memory_space<vmem>>, vector<128x128xf32>
    %cst = arith.constant dense<0.000000e+00> : vector<256x128xf32>
    %2 = tpu.matmul %0, %1, %cst {dimension_numbers = #tpu.dot_dimension_numbers<[1], [0], [0], [1], [0, 0, 1, 1], [], []>, precision = #tpu.contract_precision<fp32>} : vector<256x128xf32>, vector<128x128xf32>, vector<256x128xf32> -> vector<256x128xf32>
    %c0_3 = arith.constant 0 : index
    %c0_4 = arith.constant 0 : index
    %3 = vector.load %arg3[%c0_3, %c0_4] : memref<1x128xf32, #tpu.memory_space<vmem>>, vector<1x128xf32>
    %4 = vector.broadcast %3 : vector<1x128xf32> to vector<256x128xf32>
    %5 = arith.addf %2, %4 : vector<256x128xf32>
    %cst_5 = arith.constant 0.000000e+00 : f32
    %6 = vector.broadcast %cst_5 : f32 to vector<256x128xf32>
    %7 = arith.maximumf %5, %6 : vector<256x128xf32>
    %c0_6 = arith.constant 0 : index
    %c0_7 = arith.constant 0 : index
    %8 = vector.load %arg4[%c0_6, %c0_7] : memref<128x128xf32, #tpu.memory_space<vmem>>, vector<128x128xf32>
    %cst_8 = arith.constant dense<0.000000e+00> : vector<256x128xf32>
    %9 = tpu.matmul %7, %8, %cst_8 {dimension_numbers = #tpu.dot_dimension_numbers<[1], [0], [0], [1], [0, 0, 1, 1], [], []>, precision = #tpu.contract_precision<fp32>} : vector<256x128xf32>, vector<128x128xf32>, vector<256x128xf32> -> vector<256x128xf32>
    %c0_9 = arith.constant 0 : index
    %c0_10 = arith.constant 0 : index
    %10 = vector.load %arg5[%c0_9, %c0_10] : memref<1x128xf32, #tpu.memory_space<vmem>>, vector<1x128xf32>
    %11 = vector.broadcast %10 : vector<1x128xf32> to vector<256x128xf32>
    %12 = arith.addf %9, %11 : vector<256x128xf32>
    %cst_11 = arith.constant 0.000000e+00 : f32
    %13 = vector.broadcast %cst_11 : f32 to vector<256x128xf32>
    %14 = arith.maximumf %12, %13 : vector<256x128xf32>
    %c0_12 = arith.constant 0 : index
    %c0_13 = arith.constant 0 : index
    %15 = vector.load %arg6[%c0_12, %c0_13] : memref<128x128xf32, #tpu.memory_space<vmem>>, vector<128x128xf32>
    %cst_14 = arith.constant dense<0.000000e+00> : vector<256x128xf32>
    %16 = tpu.matmul %14, %15, %cst_14 {dimension_numbers = #tpu.dot_dimension_numbers<[1], [0], [0], [1], [0, 0, 1, 1], [], []>, precision = #tpu.contract_precision<fp32>} : vector<256x128xf32>, vector<128x128xf32>, vector<256x128xf32> -> vector<256x128xf32>
    %c0_15 = arith.constant 0 : index
    %c0_16 = arith.constant 0 : index
    %17 = vector.load %arg7[%c0_15, %c0_16] : memref<1x128xf32, #tpu.memory_space<vmem>>, vector<1x128xf32>
    %18 = vector.broadcast %17 : vector<1x128xf32> to vector<256x128xf32>
    %19 = arith.addf %16, %18 : vector<256x128xf32>
    %20 = vector.extract_strided_slice %19 {offsets = [0, 0], sizes = [256, 1], strides = [1, 1]} : vector<256x128xf32> to vector<256x1xf32>
    %cst_17 = arith.constant 2.22044605E-16 : f32
    %21 = vector.broadcast %cst_17 : f32 to vector<256x1xf32>
    %22 = arith.addf %20, %21 : vector<256x1xf32>
    %23 = vector.broadcast %22 : vector<256x1xf32> to vector<256x128xf32>
    %24 = arith.divf %0, %23 : vector<256x128xf32>
    %c0_18 = arith.constant 0 : index
    %c0_19 = arith.constant 0 : index
    %25 = vector.load %arg9[%c0_18, %c0_19] : memref<256x128xf32, #tpu.memory_space<vmem>>, vector<256x128xf32>
    tpu.vector_store %arg9[%c0_18, %c0_19], %24 {strides = array<i32>} : memref<256x128xf32, #tpu.memory_space<vmem>>, vector<256x128xf32>,
    %26 = tpu.transpose %24, [1, 0] : vector<256x128xf32> -> vector<128x256xf32>
    %c0_20 = arith.constant 0 : index
    %c0_21 = arith.constant 0 : index
    %27 = vector.load %arg10[%c0_20, %c0_21] : memref<128x256xf32, #tpu.memory_space<vmem>>, vector<128x256xf32>
    tpu.vector_store %arg10[%c0_20, %c0_21], %26 {strides = array<i32>} : memref<128x256xf32, #tpu.memory_space<vmem>>, vector<128x256xf32>,
    %28 = arith.mulf %24, %24 : vector<256x128xf32>
    %cst_22 = arith.constant dense<0.000000e+00> : vector<256xf32>
    %29 = vector.multi_reduction <add>, %28, %cst_22 [1] : vector<256x128xf32> to vector<256xf32>
    %30 = vector.shape_cast %29 : vector<256xf32> to vector<256x1xf32>
    %c0_23 = arith.constant 0 : index
    %c0_24 = arith.constant 0 : index
    %31 = vector.load %arg12[%c0_23, %c0_24] : memref<256x1xf32, #tpu.memory_space<vmem>>, vector<256x1xf32>
    tpu.vector_store %arg12[%c0_23, %c0_24], %30 {strides = array<i32>} : memref<256x1xf32, #tpu.memory_space<vmem>>, vector<256x1xf32>,
    %c0_25 = arith.constant 0 : index
    %c0_26 = arith.constant 0 : index
    %32 = vector.load %arg8[%c0_25, %c0_26] : memref<128x128xf32, #tpu.memory_space<vmem>>, vector<128x128xf32>
    %cst_27 = arith.constant dense<0.000000e+00> : vector<256x128xf32>
    %33 = tpu.matmul %0, %32, %cst_27 {dimension_numbers = #tpu.dot_dimension_numbers<[1], [0], [0], [1], [0, 0, 1, 1], [], []>} : vector<256x128xf32>, vector<128x128xf32>, vector<256x128xf32> -> vector<256x128xf32>
    %c0_28 = arith.constant 0 : index
    %c0_29 = arith.constant 0 : index
    %34 = vector.load %arg11[%c0_28, %c0_29] : memref<256x128xf32, #tpu.memory_space<vmem>>, vector<256x128xf32>
    tpu.vector_store %arg11[%c0_28, %c0_29], %33 {strides = array<i32>} : memref<256x128xf32, #tpu.memory_space<vmem>>, vector<256x128xf32>,
    return
  }
  func.func @transform_0(%arg0: i32) -> (i32, i32) {
    %c0_i32 = arith.constant 0 : i32
    %c0_i32_0 = arith.constant 0 : i32
    return %arg0, %c0_i32 : i32, i32
  }
  func.func @transform_1(%arg0: i32) -> (i32, i32) {
    %c0_i32 = arith.constant 0 : i32
    %c0_i32_0 = arith.constant 0 : i32
    %c0_i32_1 = arith.constant 0 : i32
    return %c0_i32, %c0_i32_0 : i32, i32
  }
  func.func @transform_2(%arg0: i32) -> (i32, i32) {
    %c0_i32 = arith.constant 0 : i32
    %c0_i32_0 = arith.constant 0 : i32
    %c0_i32_1 = arith.constant 0 : i32
    return %c0_i32, %c0_i32_0 : i32, i32
  }
  func.func @transform_3(%arg0: i32) -> (i32, i32) {
    %c0_i32 = arith.constant 0 : i32
    %c0_i32_0 = arith.constant 0 : i32
    %c0_i32_1 = arith.constant 0 : i32
    return %c0_i32, %c0_i32_0 : i32, i32
  }
  func.func @transform_4(%arg0: i32) -> (i32, i32) {
    %c0_i32 = arith.constant 0 : i32
    %c0_i32_0 = arith.constant 0 : i32
    %c0_i32_1 = arith.constant 0 : i32
    return %c0_i32, %c0_i32_0 : i32, i32
  }
  func.func @transform_5(%arg0: i32) -> (i32, i32) {
    %c0_i32 = arith.constant 0 : i32
    %c0_i32_0 = arith.constant 0 : i32
    %c0_i32_1 = arith.constant 0 : i32
    return %c0_i32, %c0_i32_0 : i32, i32
  }
  func.func @transform_6(%arg0: i32) -> (i32, i32) {
    %c0_i32 = arith.constant 0 : i32
    %c0_i32_0 = arith.constant 0 : i32
    %c0_i32_1 = arith.constant 0 : i32
    return %c0_i32, %c0_i32_0 : i32, i32
  }
  func.func @transform_7(%arg0: i32) -> (i32, i32) {
    %c0_i32 = arith.constant 0 : i32
    %c0_i32_0 = arith.constant 0 : i32
    %c0_i32_1 = arith.constant 0 : i32
    return %c0_i32, %c0_i32_0 : i32, i32
  }
  func.func @transform_8(%arg0: i32) -> (i32, i32) {
    %c0_i32 = arith.constant 0 : i32
    %c0_i32_0 = arith.constant 0 : i32
    return %arg0, %c0_i32 : i32, i32
  }
  func.func @transform_9(%arg0: i32) -> (i32, i32) {
    %c0_i32 = arith.constant 0 : i32
    %c0_i32_0 = arith.constant 0 : i32
    return %c0_i32, %arg0 : i32, i32
  }
  func.func @transform_10(%arg0: i32) -> (i32, i32) {
    %c0_i32 = arith.constant 0 : i32
    %c0_i32_0 = arith.constant 0 : i32
    return %arg0, %c0_i32 : i32, i32
  }
  func.func @transform_11(%arg0: i32) -> (i32, i32) {
    %c0_i32 = arith.constant 0 : i32
    %c0_i32_0 = arith.constant 0 : i32
    return %arg0, %c0_i32 : i32, i32
  }
}

</mosaic_0001>

<llo_original>
// kernel: tpu_custom_call.1
$region0: #{tpu_custom_call.1}
  #allocation0 [shape = 'u32[]', space=smem, size = 0x4, offset = 0x4, fixed_abs, tag = 'smem constant byte address 0x4 - core index']
  #allocation1 [shape = 'u32[144,128]{1,0:T(1,128)}', space=vmem, size = 0x12000, scoped, tag = 'internal scratch']
  %s0 = inlined_call_operand.hbm [shape: f32[256,128], index: 0, kind: input, shape index: {}]
  %s1 = inlined_call_operand.hbm [shape: f32[128,128], index: 1, kind: input, shape index: {}]
  %s2 = inlined_call_operand.vmem [shape: f32[1,128], index: 2, kind: input, shape index: {}]
  %s3 = inlined_call_operand.hbm [shape: f32[128,128], index: 3, kind: input, shape index: {}]
  %s4 = inlined_call_operand.vmem [shape: f32[1,128], index: 4, kind: input, shape index: {}]
  %s5 = inlined_call_operand.hbm [shape: f32[128,128], index: 5, kind: input, shape index: {}]
  %s6 = inlined_call_operand.vmem [shape: f32[1,128], index: 6, kind: input, shape index: {}]
  %s7 = inlined_call_operand.hbm [shape: f32[128,128], index: 7, kind: input, shape index: {}]
  %s8 = inlined_call_operand.hbm [shape: f32[256,128], index: 8, kind: output, shape index: {0}]
  %s9 = inlined_call_operand.hbm [shape: f32[128,256], index: 9, kind: output, shape index: {1}]
  %s10 = inlined_call_operand.hbm [shape: f32[256,128], index: 10, kind: output, shape index: {2}]
  %s11 = inlined_call_operand.vmem [shape: f32[256,1], index: 11, kind: output, shape index: {3}]
  %12 = xla_tuple %s8, %s9, %s10, %s11
  %s13 = sld [smem:[#allocation0]]
  $region86: #{tpu_custom_call.1} parent=0
    _
  %s15 = ssub.s32 1, %s13
  %s16 = scalar_select 0, %s15, %s13
  $region1: #{tpu_custom_call.1} parent=0
    #allocation2 [shape = 'u8[131072]{0}', space=vmem, size = 0x20000, scoped, tag = 'input window, operand 0, single buffered']
    #allocation3 [shape = 's32[1]{0}', space=sflag, size = 0x4, scoped, tag = 'scoped memory for tpu_custom_call.1']
    #allocation4 [shape = 's32[1]{0}', space=sflag, size = 0x4, scoped, tag = 'scoped memory for tpu_custom_call.1']
    #allocation5 [shape = 'u8[65536]{0}', space=vmem, size = 0x10000, scoped, tag = 'input window, operand 1, single buffered']
    #allocation6 [shape = 's32[1]{0}', space=sflag, size = 0x4, scoped, tag = 'scoped memory for tpu_custom_call.1']
    #allocation7 [shape = 'u8[65536]{0}', space=vmem, size = 0x10000, scoped, tag = 'input window, operand 3, single buffered']
    #allocation8 [shape = 'u8[65536]{0}', space=vmem, size = 0x10000, scoped, tag = 'input window, operand 5, single buffered']
    #allocation9 [shape = 's32[1]{0}', space=sflag, size = 0x4, scoped, tag = 'scoped memory for tpu_custom_call.1']
    #allocation10 [shape = 'u8[65536]{0}', space=vmem, size = 0x10000, scoped, tag = 'input window, operand 7, single buffered']
    #allocation11 [shape = 'u8[131072]{0}', space=vmem, size = 0x20000, scoped, tag = 'output window, operand 0, single buffered']
    #allocation12 [shape = 'u8[131072]{0}', space=vmem, size = 0x20000, scoped, tag = 'output window, operand 1, single buffered']
    #allocation13 [shape = 's32[1]{0}', space=sflag, size = 0x4, scoped, tag = 'scoped memory for tpu_custom_call.1']
    #allocation14 [shape = 'u8[131072]{0}', space=vmem, size = 0x20000, scoped, tag = 'output window, operand 2, single buffered']
    %17 = vsyncpa [#allocation3], 0
    %18 = vsyncpa [#allocation6], 0
    %19 = vsyncpa [#allocation9], 0
    %20 = vsyncpa [#allocation4], 0
    %21 = vsyncpa [#allocation13], 0
    // Predicated region
    $region2: #{tpu_custom_call.1} parent=1 // pred_check
      _
    $region3: #{tpu_custom_call.1} parent=1 // pred_check_branch
      %23 = sbr.rel (0) target = $region5
    $region4: #{tpu_custom_call.1} parent=1 // pred_region
      %s25 = ssub.s32 4096, 4096
      %26 = vsyncadd [#allocation3], %s25
      %s27 = sshll.u32 [#allocation2], 4
      %s28 = int_to_ptr.vmem [resolvable:$true] %s27
      %33 = dma.hbm_to_vmem [thread:$0]  %s0, 4096, %s28, [#allocation3], 128, 128, 8
    $region5: #{tpu_custom_call.1} parent=1 // pred_fallthru
      _
    // Predicated region
    $region6: #{tpu_custom_call.1} parent=1 // pred_check
      _
    $region7: #{tpu_custom_call.1} parent=1 // pred_check_branch
      %35 = sbr.rel (0) target = $region9
    $region8: #{tpu_custom_call.1} parent=1 // pred_region
      %s37 = ssub.s32 2048, 2048
      %38 = vsyncadd [#allocation6], %s37
      %s39 = sshll.u32 [#allocation5], 4
      %s40 = int_to_ptr.vmem [resolvable:$true] %s39
      %45 = dma.hbm_to_vmem [thread:$0]  %s1, 2048, %s40, [#allocation6], 128, 128, 8
    $region9: #{tpu_custom_call.1} parent=1 // pred_fallthru
      _
    // Predicated region
    $region10: #{tpu_custom_call.1} parent=1 // pred_check
      _
    $region11: #{tpu_custom_call.1} parent=1 // pred_check_branch
      %47 = sbr.rel (0) target = $region13
    $region12: #{tpu_custom_call.1} parent=1 // pred_region
      _
    $region13: #{tpu_custom_call.1} parent=1 // pred_fallthru
      _
    // Predicated region
    $region14: #{tpu_custom_call.1} parent=1 // pred_check
      _
    $region15: #{tpu_custom_call.1} parent=1 // pred_check_branch
      %49 = sbr.rel (0) target = $region17
    $region16: #{tpu_custom_call.1} parent=1 // pred_region
      %s51 = ssub.s32 2048, 2048
      %52 = vsyncadd [#allocation6], %s51
      %s53 = sshll.u32 [#allocation7], 4
      %s54 = int_to_ptr.vmem [resolvable:$true] %s53
      %59 = dma.hbm_to_vmem [thread:$0]  %s3, 2048, %s54, [#allocation6], 128, 128, 8
    $region17: #{tpu_custom_call.1} parent=1 // pred_fallthru
      _
    // Predicated region
    $region18: #{tpu_custom_call.1} parent=1 // pred_check
      _
    $region19: #{tpu_custom_call.1} parent=1 // pred_check_branch
      %61 = sbr.rel (0) target = $region21
    $region20: #{tpu_custom_call.1} parent=1 // pred_region
      _
    $region21: #{tpu_custom_call.1} parent=1 // pred_fallthru
      _
    // Predicated region
    $region22: #{tpu_custom_call.1} parent=1 // pred_check
      _
    $region23: #{tpu_custom_call.1} parent=1 // pred_check_branch
      %63 = sbr.rel (0) target = $region25
    $region24: #{tpu_custom_call.1} parent=1 // pred_region
      %s65 = ssub.s32 2048, 2048
      %66 = vsyncadd [#allocation9], %s65
      %s67 = sshll.u32 [#allocation8], 4
      %s68 = int_to_ptr.vmem [resolvable:$true] %s67
      %73 = dma.hbm_to_vmem [thread:$0]  %s5, 2048, %s68, [#allocation9], 128, 128, 8
    $region25: #{tpu_custom_call.1} parent=1 // pred_fallthru
      _
    // Predicated region
    $region26: #{tpu_custom_call.1} parent=1 // pred_check
      _
    $region27: #{tpu_custom_call.1} parent=1 // pred_check_branch
      %75 = sbr.rel (0) target = $region29
    $region28: #{tpu_custom_call.1} parent=1 // pred_region
      _
    $region29: #{tpu_custom_call.1} parent=1 // pred_fallthru
      _
    // Predicated region
    $region30: #{tpu_custom_call.1} parent=1 // pred_check
      _
    $region31: #{tpu_custom_call.1} parent=1 // pred_check_branch
      %77 = sbr.rel (0) target = $region33
    $region32: #{tpu_custom_call.1} parent=1 // pred_region
      %s79 = ssub.s32 2048, 2048
      %80 = vsyncadd [#allocation9], %s79
      %s81 = sshll.u32 [#allocation10], 4
      %s82 = int_to_ptr.vmem [resolvable:$true] %s81
      %87 = dma.hbm_to_vmem [thread:$0]  %s7, 2048, %s82, [#allocation9], 128, 128, 8
    $region33: #{tpu_custom_call.1} parent=1 // pred_fallthru
      _
    // Predicated region
    $region34: #{tpu_custom_call.1} parent=1 // pred_check
      _
    $region35: #{tpu_custom_call.1} parent=1 // pred_check_branch
      %89 = sbr.rel (0) target = $region37
    $region36: #{tpu_custom_call.1} parent=1 // pred_region
      %90 = dma.done [#allocation3], 4096
    $region37: #{tpu_custom_call.1} parent=1 // pred_fallthru
      _
    // Predicated region
    $region38: #{tpu_custom_call.1} parent=1 // pred_check
      _
    $region39: #{tpu_custom_call.1} parent=1 // pred_check_branch
      %92 = sbr.rel (0) target = $region41
    $region40: #{tpu_custom_call.1} parent=1 // pred_region
      %93 = dma.done [#allocation6], 2048
    $region41: #{tpu_custom_call.1} parent=1 // pred_fallthru
      _
    // Predicated region
    $region42: #{tpu_custom_call.1} parent=1 // pred_check
      _
    $region43: #{tpu_custom_call.1} parent=1 // pred_check_branch
      %95 = sbr.rel (0) target = $region45
    $region44: #{tpu_custom_call.1} parent=1 // pred_region
      %96 = dma.done [#allocation6], 2048
    $region45: #{tpu_custom_call.1} parent=1 // pred_fallthru
      _
    // Predicated region
    $region46: #{tpu_custom_call.1} parent=1 // pred_check
      _
    $region47: #{tpu_custom_call.1} parent=1 // pred_check_branch
      %98 = sbr.rel (0) target = $region49
    $region48: #{tpu_custom_call.1} parent=1 // pred_region
      %99 = dma.done [#allocation9], 2048
    $region49: #{tpu_custom_call.1} parent=1 // pred_fallthru
      _
    // Predicated region
    $region50: #{tpu_custom_call.1} parent=1 // pred_check
      _
    $region51: #{tpu_custom_call.1} parent=1 // pred_check_branch
      %101 = sbr.rel (0) target = $region53
    $region52: #{tpu_custom_call.1} parent=1 // pred_region
      %102 = dma.done [#allocation9], 2048
    $region53: #{tpu_custom_call.1} parent=1 // pred_fallthru
      _
    %v103 = vld [vmem:[#allocation2] sm:$0xff]
    %v104 = vld [vmem:[#allocation2 + $0x8] sm:$0xff]
    %v105 = vld [vmem:[#allocation2 + $0x10] sm:$0xff]
    %v106 = vld [vmem:[#allocation2 + $0x18] sm:$0xff]
    %v107 = vld [vmem:[#allocation2 + $0x20] sm:$0xff]
    %v108 = vld [vmem:[#allocation2 + $0x28] sm:$0xff]
    %v109 = vld [vmem:[#allocation2 + $0x30] sm:$0xff]
    %v110 = vld [vmem:[#allocation2 + $0x38] sm:$0xff]
    %v111 = vld [vmem:[#allocation2 + $0x40] sm:$0xff]
    %v112 = vld [vmem:[#allocation2 + $0x48] sm:$0xff]
    %v113 = vld [vmem:[#allocation2 + $0x50] sm:$0xff]
    %v114 = vld [vmem:[#allocation2 + $0x58] sm:$0xff]
    %v115 = vld [vmem:[#allocation2 + $0x60] sm:$0xff]
    %v116 = vld [vmem:[#allocation2 + $0x68] sm:$0xff]
    %v117 = vld [vmem:[#allocation2 + $0x70] sm:$0xff]
    %v118 = vld [vmem:[#allocation2 + $0x78] sm:$0xff]
    %v119 = vld [vmem:[#allocation2 + $0x80] sm:$0xff]
    %v120 = vld [vmem:[#allocation2 + $0x88] sm:$0xff]
    %v121 = vld [vmem:[#allocation2 + $0x90] sm:$0xff]
    %v122 = vld [vmem:[#allocation2 + $0x98] sm:$0xff]
    %v123 = vld [vmem:[#allocation2 + $0xa0] sm:$0xff]
    %v124 = vld [vmem:[#allocation2 + $0xa8] sm:$0xff]
    %v125 = vld [vmem:[#allocation2 + $0xb0] sm:$0xff]
    %v126 = vld [vmem:[#allocation2 + $0xb8] sm:$0xff]
    %v127 = vld [vmem:[#allocation2 + $0xc0] sm:$0xff]
    %v128 = vld [vmem:[#allocation2 + $0xc8] sm:$0xff]
    %v129 = vld [vmem:[#allocation2 + $0xd0] sm:$0xff]
    %v130 = vld [vmem:[#allocation2 + $0xd8] sm:$0xff]
    %v131 = vld [vmem:[#allocation2 + $0xe0] sm:$0xff]
    %v132 = vld [vmem:[#allocation2 + $0xe8] sm:$0xff]
    %v133 = vld [vmem:[#allocation2 + $0xf0] sm:$0xff]
    %v134 = vld [vmem:[#allocation2 + $0xf8] sm:$0xff]
    %v135 = vld [vmem:[#allocation5] sm:$0xff]
    %v136 = vld [vmem:[#allocation5 + $0x8] sm:$0xff]
    %v137 = vld [vmem:[#allocation5 + $0x10] sm:$0xff]
    %v138 = vld [vmem:[#allocation5 + $0x18] sm:$0xff]
    %v139 = vld [vmem:[#allocation5 + $0x20] sm:$0xff]
    %v140 = vld [vmem:[#allocation5 + $0x28] sm:$0xff]
    %v141 = vld [vmem:[#allocation5 + $0x30] sm:$0xff]
    %v142 = vld [vmem:[#allocation5 + $0x38] sm:$0xff]
    %v143 = vld [vmem:[#allocation5 + $0x40] sm:$0xff]
    %v144 = vld [vmem:[#allocation5 + $0x48] sm:$0xff]
    %v145 = vld [vmem:[#allocation5 + $0x50] sm:$0xff]
    %v146 = vld [vmem:[#allocation5 + $0x58] sm:$0xff]
    %v147 = vld [vmem:[#allocation5 + $0x60] sm:$0xff]
    %v148 = vld [vmem:[#allocation5 + $0x68] sm:$0xff]
    %v149 = vld [vmem:[#allocation5 + $0x70] sm:$0xff]
    %v150 = vld [vmem:[#allocation5 + $0x78] sm:$0xff]
    %v151 = vld [vmem:[%s2] sm:$0x1]
    %v153 = vlaneseq
    %v154 = vshrl.u32 %v153, 7
    %v155 = vsub.s32 0, %v154
    %v156 = vrot.slane %v151, %v155
    %158 = vmatprep.subr.mxu0 0.0
    %v159 = vand.u32 %v135, 4294901760
    %160 = vmatpush1.msra.mxu0 %v159
    %161 = vmatprep.subr.mxu0 0.0
    %v162 = vand.u32 %v136, 4294901760
    %163 = vmatpush1.msra.mxu0 %v162
    %164 = vmatprep.subr.mxu0 0.0
    %v165 = vand.u32 %v137, 4294901760
    %166 = vmatpush1.msra.mxu0 %v165
    %167 = vmatprep.subr.mxu0 0.0
    %v168 = vand.u32 %v138, 4294901760
    %169 = vmatpush1.msra.mxu0 %v168
    %170 = vmatprep.subr.mxu0 0.0
    %v171 = vand.u32 %v139, 4294901760
    %172 = vmatpush1.msra.mxu0 %v171
    %173 = vmatprep.subr.mxu0 0.0
    %v174 = vand.u32 %v140, 4294901760
    %175 = vmatpush1.msra.mxu0 %v174
    %176 = vmatprep.subr.mxu0 0.0
    %v177 = vand.u32 %v141, 4294901760
    %178 = vmatpush1.msra.mxu0 %v177
    %179 = vmatprep.subr.mxu0 0.0
    %v180 = vand.u32 %v142, 4294901760
    %181 = vmatpush1.msra.mxu0 %v180
    %182 = vmatprep.subr.mxu0 0.0
    %v183 = vand.u32 %v143, 4294901760
    %184 = vmatpush1.msra.mxu0 %v183
    %185 = vmatprep.subr.mxu0 0.0
    %v186 = vand.u32 %v144, 4294901760
    %187 = vmatpush1.msra.mxu0 %v186
    %188 = vmatprep.subr.mxu0 0.0
    %v189 = vand.u32 %v145, 4294901760
    %190 = vmatpush1.msra.mxu0 %v189
    %191 = vmatprep.subr.mxu0 0.0
    %v192 = vand.u32 %v146, 4294901760
    %193 = vmatpush1.msra.mxu0 %v192
    %194 = vmatprep.subr.mxu0 0.0
    %v195 = vand.u32 %v147, 4294901760
    %196 = vmatpush1.msra.mxu0 %v195
    %197 = vmatprep.subr.mxu0 0.0
    %v198 = vand.u32 %v148, 4294901760
    %199 = vmatpush1.msra.mxu0 %v198
    %200 = vmatprep.subr.mxu0 0.0
    %v201 = vand.u32 %v149, 4294901760
    %202 = vmatpush1.msra.mxu0 %v201
    %203 = vmatprep.subr.mxu0 0.0
    %v204 = vand.u32 %v150, 4294901760
    %205 = vmatpush1.msra.mxu0 %v204
    %206 = vmatprep.subr.mxu0 0.0
    %207 = vmatpush1.msra.mxu0 0.0
    %208 = vmatprep.subr.mxu0 0.0
    %209 = vmatpush1.msra.mxu0 0.0
    %210 = vmatprep.subr.mxu0 0.0
    %211 = vmatpush1.msra.mxu0 0.0
    %212 = vmatprep.subr.mxu0 0.0
    %213 = vmatpush1.msra.mxu0 0.0
    %214 = vmatprep.subr.mxu0 0.0
    %215 = vmatpush1.msra.mxu0 0.0
    %216 = vmatprep.subr.mxu0 0.0
    %217 = vmatpush1.msra.mxu0 0.0
    %218 = vmatprep.subr.mxu0 0.0
    %219 = vmatpush1.msra.mxu0 0.0
    %220 = vmatprep.subr.mxu0 0.0
    %221 = vmatpush1.msra.mxu0 0.0
    %222 = vmatprep.subr.mxu0 0.0
    %223 = vmatpush1.msra.mxu0 0.0
    %224 = vmatprep.subr.mxu0 0.0
    %225 = vmatpush1.msra.mxu0 0.0
    %226 = vmatprep.subr.mxu0 0.0
    %227 = vmatpush1.msra.mxu0 0.0
    %228 = vmatprep.subr.mxu0 0.0
    %229 = vmatpush1.msra.mxu0 0.0
    %230 = vmatprep.subr.mxu0 0.0
    %231 = vmatpush1.msra.mxu0 0.0
    %232 = vmatprep.subr.mxu0 0.0
    %233 = vmatpush1.msra.mxu0 0.0
    %234 = vmatprep.subr.mxu0 0.0
    %235 = vmatpush1.msra.mxu0 0.0
    %236 = vmatprep.subr.mxu0 0.0
    %237 = vmatpush1.msra.mxu0 0.0
    %238 = vmatprep.mubr.f32.mxu0 0.0
    %v239 = vand.u32 %v103, 4294901760
    %v240 = vsub.f32 %v103, %v239
    %v241 = vand.u32 %v240, 4294901760
    %v242 = vsub.f32 %v240, %v241
    %v243 = vand.u32 %v242, 4294901760
    %244 = vmatmul.mubr.f32.gmra.mrb[0].mxu0 %v243
    %v245 = vpop.f32.mrb[0].mxu0
    %v246 = vadd.f32 %v156, %v245
    %v247 = vpop.f32.mrb[0].mxu0
    %248 = vmatprep.mubr.f32.mxu0 0.0
    %v249 = vand.u32 %v104, 4294901760
    %v250 = vsub.f32 %v104, %v249
    %v251 = vand.u32 %v250, 4294901760
    %v252 = vsub.f32 %v250, %v251
    %v253 = vand.u32 %v252, 4294901760
    %254 = vmatmul.mubr.f32.gmra.mrb[0].mxu0 %v253
    %v255 = vpop.f32.mrb[0].mxu0
    %v256 = vadd.f32 %v156, %v255
    %v257 = vpop.f32.mrb[0].mxu0
    %258 = vmatprep.mubr.f32.mxu0 0.0
    %v259 = vand.u32 %v105, 4294901760
    %v260 = vsub.f32 %v105, %v259
    %v261 = vand.u32 %v260, 4294901760
    %v262 = vsub.f32 %v260, %v261
    %v263 = vand.u32 %v262, 4294901760
    %264 = vmatmul.mubr.f32.gmra.mrb[0].mxu0 %v263
    %v265 = vpop.f32.mrb[0].mxu0
    %v266 = vadd.f32 %v156, %v265
    %v267 = vpop.f32.mrb[0].mxu0
    %268 = vmatprep.mubr.f32.mxu0 0.0
    %v269 = vand.u32 %v106, 4294901760
    %v270 = vsub.f32 %v106, %v269
    %v271 = vand.u32 %v270, 4294901760
    %v272 = vsub.f32 %v270, %v271
    %v273 = vand.u32 %v272, 4294901760
    %274 = vmatmul.mubr.f32.gmra.mrb[0].mxu0 %v273
    %v275 = vpop.f32.mrb[0].mxu0
    %v276 = vadd.f32 %v156, %v275
    %v277 = vpop.f32.mrb[0].mxu0
    %278 = vmatprep.mubr.f32.mxu0 0.0
    %v279 = vand.u32 %v107, 4294901760
    %v280 = vsub.f32 %v107, %v279
    %v281 = vand.u32 %v280, 4294901760
    %v282 = vsub.f32 %v280, %v281
    %v283 = vand.u32 %v282, 4294901760
    %284 = vmatmul.mubr.f32.gmra.mrb[0].mxu0 %v283
    %v285 = vpop.f32.mrb[0].mxu0
    %v286 = vadd.f32 %v156, %v285
    %v287 = vpop.f32.mrb[0].mxu0
    %288 = vmatprep.mubr.f32.mxu0 0.0
    %v289 = vand.u32 %v108, 4294901760
    %v290 = vsub.f32 %v108, %v289
    %v291 = vand.u32 %v290, 4294901760
    %v292 = vsub.f32 %v290, %v291
    %v293 = vand.u32 %v292, 4294901760
    %294 = vmatmul.mubr.f32.gmra.mrb[0].mxu0 %v293
    %v295 = vpop.f32.mrb[0].mxu0
    %v296 = vadd.f32 %v156, %v295
    %v297 = vpop.f32.mrb[0].mxu0
    %298 = vmatprep.mubr.f32.mxu0 0.0
    %v299 = vand.u32 %v109, 4294901760
    %v300 = vsub.f32 %v109, %v299
    %v301 = vand.u32 %v300, 4294901760
    %v302 = vsub.f32 %v300, %v301
    %v303 = vand.u32 %v302, 4294901760
    %304 = vmatmul.mubr.f32.gmra.mrb[0].mxu0 %v303
    %v305 = vpop.f32.mrb[0].mxu0
    %v306 = vadd.f32 %v156, %v305
    %v307 = vpop.f32.mrb[0].mxu0
    %308 = vmatprep.mubr.f32.mxu0 0.0
    %v309 = vand.u32 %v110, 4294901760
    %v310 = vsub.f32 %v110, %v309
    %v311 = vand.u32 %v310, 4294901760
    %v312 = vsub.f32 %v310, %v311
    %v313 = vand.u32 %v312, 4294901760
    %314 = vmatmul.mubr.f32.gmra.mrb[0].mxu0 %v313
    %v315 = vpop.f32.mrb[0].mxu0
    %v316 = vadd.f32 %v156, %v315
    %v317 = vpop.f32.mrb[0].mxu0
    %318 = vmatprep.mubr.f32.mxu0 0.0
    %v319 = vand.u32 %v111, 4294901760
    %v320 = vsub.f32 %v111, %v319
    %v321 = vand.u32 %v320, 4294901760
    %v322 = vsub.f32 %v320, %v321
    %v323 = vand.u32 %v322, 4294901760
    %324 = vmatmul.mubr.f32.gmra.mrb[0].mxu0 %v323
    %v325 = vpop.f32.mrb[0].mxu0
    %v326 = vadd.f32 %v156, %v325
    %v327 = vpop.f32.mrb[0].mxu0
    %328 = vmatprep.mubr.f32.mxu0 0.0
    %v329 = vand.u32 %v112, 4294901760
    %v330 = vsub.f32 %v112, %v329
    %v331 = vand.u32 %v330, 4294901760
    %v332 = vsub.f32 %v330, %v331
    %v333 = vand.u32 %v332, 4294901760
    %334 = vmatmul.mubr.f32.gmra.mrb[0].mxu0 %v333
    %v335 = vpop.f32.mrb[0].mxu0
    %v336 = vadd.f32 %v156, %v335
    %v337 = vpop.f32.mrb[0].mxu0
    %338 = vmatprep.mubr.f32.mxu0 0.0
    %v339 = vand.u32 %v113, 4294901760
    %v340 = vsub.f32 %v113, %v339
    %v341 = vand.u32 %v340, 4294901760
    %v342 = vsub.f32 %v340, %v341
    %v343 = vand.u32 %v342, 4294901760
    %344 = vmatmul.mubr.f32.gmra.mrb[0].mxu0 %v343
    %v345 = vpop.f32.mrb[0].mxu0
    %v346 = vadd.f32 %v156, %v345
    %v347 = vpop.f32.mrb[0].mxu0
    %348 = vmatprep.mubr.f32.mxu0 0.0
    %v349 = vand.u32 %v114, 4294901760
    %v350 = vsub.f32 %v114, %v349
    %v351 = vand.u32 %v350, 4294901760
    %v352 = vsub.f32 %v350, %v351
    %v353 = vand.u32 %v352, 4294901760
    %354 = vmatmul.mubr.f32.gmra.mrb[0].mxu0 %v353
    %v355 = vpop.f32.mrb[0].mxu0
    %v356 = vadd.f32 %v156, %v355
    %v357 = vpop.f32.mrb[0].mxu0
    %358 = vmatprep.mubr.f32.mxu0 0.0
    %v359 = vand.u32 %v115, 4294901760
    %v360 = vsub.f32 %v115, %v359
    %v361 = vand.u32 %v360, 4294901760
    %v362 = vsub.f32 %v360, %v361
    %v363 = vand.u32 %v362, 4294901760
    %364 = vmatmul.mubr.f32.gmra.mrb[0].mxu0 %v363
    %v365 = vpop.f32.mrb[0].mxu0
    %v366 = vadd.f32 %v156, %v365
    %v367 = vpop.f32.mrb[0].mxu0
    %368 = vmatprep.mubr.f32.mxu0 0.0
    %v369 = vand.u32 %v116, 4294901760
    %v370 = vsub.f32 %v116, %v369
    %v371 = vand.u32 %v370, 4294901760
    %v372 = vsub.f32 %v370, %v371
    %v373 = vand.u32 %v372, 4294901760
    %374 = vmatmul.mubr.f32.gmra.mrb[0].mxu0 %v373
    %v375 = vpop.f32.mrb[0].mxu0
    %v376 = vadd.f32 %v156, %v375
    %v377 = vpop.f32.mrb[0].mxu0
    %378 = vmatprep.mubr.f32.mxu0 0.0
    %v379 = vand.u32 %v117, 4294901760
    %v380 = vsub.f32 %v117, %v379
    %v381 = vand.u32 %v380, 4294901760
    %v382 = vsub.f32 %v380, %v381
    %v383 = vand.u32 %v382, 4294901760
    %384 = vmatmul.mubr.f32.gmra.mrb[0].mxu0 %v383
    %v385 = vpop.f32.mrb[0].mxu0
    %v386 = vadd.f32 %v156, %v385
    %v387 = vpop.f32.mrb[0].mxu0
    %388 = vmatprep.mubr.f32.mxu0 0.0
    %v389 = vand.u32 %v118, 4294901760
    %v390 = vsub.f32 %v118, %v389
    %v391 = vand.u32 %v390, 4294901760
    %v392 = vsub.f32 %v390, %v391
    %v393 = vand.u32 %v392, 4294901760
    %394 = vmatmul.mubr.f32.gmra.mrb[0].mxu0 %v393
    %v395 = vpop.f32.mrb[0].mxu0
    %v396 = vadd.f32 %v156, %v395
    %v397 = vpop.f32.mrb[0].mxu0
    %398 = vmatprep.mubr.f32.mxu0 0.0
    %v399 = vand.u32 %v119, 4294901760
    %v400 = vsub.f32 %v119, %v399
    %v401 = vand.u32 %v400, 4294901760
    %v402 = vsub.f32 %v400, %v401
    %v403 = vand.u32 %v402, 4294901760
    %404 = vmatmul.mubr.f32.gmra.mrb[0].mxu0 %v403
    %v405 = vpop.f32.mrb[0].mxu0
    %v406 = vadd.f32 %v156, %v405
    %v407 = vpop.f32.mrb[0].mxu0
    %408 = vmatprep.mubr.f32.mxu0 0.0
    %v409 = vand.u32 %v120, 4294901760
    %v410 = vsub.f32 %v120, %v409
    %v411 = vand.u32 %v410, 4294901760
    %v412 = vsub.f32 %v410, %v411
    %v413 = vand.u32 %v412, 4294901760
    %414 = vmatmul.mubr.f32.gmra.mrb[0].mxu0 %v413
    %v415 = vpop.f32.mrb[0].mxu0
    %v416 = vadd.f32 %v156, %v415
    %v417 = vpop.f32.mrb[0].mxu0
    %418 = vmatprep.mubr.f32.mxu0 0.0
    %v419 = vand.u32 %v121, 4294901760
    %v420 = vsub.f32 %v121, %v419
    %v421 = vand.u32 %v420, 4294901760
    %v422 = vsub.f32 %v420, %v421
    %v423 = vand.u32 %v422, 4294901760
    %424 = vmatmul.mubr.f32.gmra.mrb[0].mxu0 %v423
    %v425 = vpop.f32.mrb[0].mxu0
    %v426 = vadd.f32 %v156, %v425
    %v427 = vpop.f32.mrb[0].mxu0
    %428 = vmatprep.mubr.f32.mxu0 0.0
    %v429 = vand.u32 %v122, 4294901760
    %v430 = vsub.f32 %v122, %v429
    %v431 = vand.u32 %v430, 4294901760
    %v432 = vsub.f32 %v430, %v431
    %v433 = vand.u32 %v432, 4294901760
    %434 = vmatmul.mubr.f32.gmra.mrb[0].mxu0 %v433
    %v435 = vpop.f32.mrb[0].mxu0
    %v436 = vadd.f32 %v156, %v435
    %v437 = vpop.f32.mrb[0].mxu0
    %438 = vmatprep.mubr.f32.mxu0 0.0
    %v439 = vand.u32 %v123, 4294901760
    %v440 = vsub.f32 %v123, %v439
    %v441 = vand.u32 %v440, 4294901760
    %v442 = vsub.f32 %v440, %v441
    %v443 = vand.u32 %v442, 4294901760
    %444 = vmatmul.mubr.f32.gmra.mrb[0].mxu0 %v443
    %v445 = vpop.f32.mrb[0].mxu0
    %v446 = vadd.f32 %v156, %v445
    %v447 = vpop.f32.mrb[0].mxu0
    %448 = vmatprep.mubr.f32.mxu0 0.0
    %v449 = vand.u32 %v124, 4294901760
    %v450 = vsub.f32 %v124, %v449
    %v451 = vand.u32 %v450, 4294901760
    %v452 = vsub.f32 %v450, %v451
    %v453 = vand.u32 %v452, 4294901760
    %454 = vmatmul.mubr.f32.gmra.mrb[0].mxu0 %v453
    %v455 = vpop.f32.mrb[0].mxu0
    %v456 = vadd.f32 %v156, %v455
    %v457 = vpop.f32.mrb[0].mxu0
    %458 = vmatprep.mubr.f32.mxu0 0.0
    %v459 = vand.u32 %v125, 4294901760
    %v460 = vsub.f32 %v125, %v459
    %v461 = vand.u32 %v460, 4294901760
    %v462 = vsub.f32 %v460, %v461
    %v463 = vand.u32 %v462, 4294901760
    %464 = vmatmul.mubr.f32.gmra.mrb[0].mxu0 %v463
    %v465 = vpop.f32.mrb[0].mxu0
    %v466 = vadd.f32 %v156, %v465
    %v467 = vpop.f32.mrb[0].mxu0
    %468 = vmatprep.mubr.f32.mxu0 0.0
    %v469 = vand.u32 %v126, 4294901760
    %v470 = vsub.f32 %v126, %v469
    %v471 = vand.u32 %v470, 4294901760
    %v472 = vsub.f32 %v470, %v471
    %v473 = vand.u32 %v472, 4294901760
    %474 = vmatmul.mubr.f32.gmra.mrb[0].mxu0 %v473
    %v475 = vpop.f32.mrb[0].mxu0
    %v476 = vadd.f32 %v156, %v475
    %v477 = vpop.f32.mrb[0].mxu0
    %478 = vmatprep.mubr.f32.mxu0 0.0
    %v479 = vand.u32 %v127, 4294901760
    %v480 = vsub.f32 %v127, %v479
    %v481 = vand.u32 %v480, 4294901760
    %v482 = vsub.f32 %v480, %v481
    %v483 = vand.u32 %v482, 4294901760
    %484 = vmatmul.mubr.f32.gmra.mrb[0].mxu0 %v483
    %v485 = vpop.f32.mrb[0].mxu0
    %v486 = vadd.f32 %v156, %v485
    %v487 = vpop.f32.mrb[0].mxu0
    %488 = vmatprep.mubr.f32.mxu0 0.0
    %v489 = vand.u32 %v128, 4294901760
    %v490 = vsub.f32 %v128, %v489
    %v491 = vand.u32 %v490, 4294901760
    %v492 = vsub.f32 %v490, %v491
    %v493 = vand.u32 %v492, 4294901760
    %494 = vmatmul.mubr.f32.gmra.mrb[0].mxu0 %v493
    %v495 = vpop.f32.mrb[0].mxu0
    %v496 = vadd.f32 %v156, %v495
    %v497 = vpop.f32.mrb[0].mxu0
    %498 = vmatprep.mubr.f32.mxu0 0.0
    %v499 = vand.u32 %v129, 4294901760
    %v500 = vsub.f32 %v129, %v499
    %v501 = vand.u32 %v500, 4294901760
    %v502 = vsub.f32 %v500, %v501
    %v503 = vand.u32 %v502, 4294901760
    %504 = vmatmul.mubr.f32.gmra.mrb[0].mxu0 %v503
    %v505 = vpop.f32.mrb[0].mxu0
    %v506 = vadd.f32 %v156, %v505
    %v507 = vpop.f32.mrb[0].mxu0
    %508 = vmatprep.mubr.f32.mxu0 0.0
    %v509 = vand.u32 %v130, 4294901760
    %v510 = vsub.f32 %v130, %v509
    %v511 = vand.u32 %v510, 4294901760
    %v512 = vsub.f32 %v510, %v511
    %v513 = vand.u32 %v512, 4294901760
    %514 = vmatmul.mubr.f32.gmra.mrb[0].mxu0 %v513
    %v515 = vpop.f32.mrb[0].mxu0
    %v516 = vadd.f32 %v156, %v515
    %v517 = vpop.f32.mrb[0].mxu0
    %518 = vmatprep.mubr.f32.mxu0 0.0
    %v519 = vand.u32 %v131, 4294901760
    %v520 = vsub.f32 %v131, %v519
    %v521 = vand.u32 %v520, 4294901760
    %v522 = vsub.f32 %v520, %v521
    %v523 = vand.u32 %v522, 4294901760
    %524 = vmatmul.mubr.f32.gmra.mrb[0].mxu0 %v523
    %v525 = vpop.f32.mrb[0].mxu0
    %v526 = vadd.f32 %v156, %v525
    %v527 = vpop.f32.mrb[0].mxu0
    %528 = vmatprep.mubr.f32.mxu0 0.0
    %v529 = vand.u32 %v132, 4294901760
    %v530 = vsub.f32 %v132, %v529
    %v531 = vand.u32 %v530, 4294901760
    %v532 = vsub.f32 %v530, %v531
    %v533 = vand.u32 %v532, 4294901760
    %534 = vmatmul.mubr.f32.gmra.mrb[0].mxu0 %v533
    %v535 = vpop.f32.mrb[0].mxu0
    %v536 = vadd.f32 %v156, %v535
    %v537 = vpop.f32.mrb[0].mxu0
    %538 = vmatprep.mubr.f32.mxu0 0.0
    %v539 = vand.u32 %v133, 4294901760
    %v540 = vsub.f32 %v133, %v539
    %v541 = vand.u32 %v540, 4294901760
    %v542 = vsub.f32 %v540, %v541
    %v543 = vand.u32 %v542, 4294901760
    %544 = vmatmul.mubr.f32.gmra.mrb[0].mxu0 %v543
    %v545 = vpop.f32.mrb[0].mxu0
    %v546 = vadd.f32 %v156, %v545
    %v547 = vpop.f32.mrb[0].mxu0
    %548 = vmatprep.mubr.f32.mxu0 0.0
    %v549 = vand.u32 %v134, 4294901760
    %v550 = vsub.f32 %v134, %v549
    %v551 = vand.u32 %v550, 4294901760
    %v552 = vsub.f32 %v550, %v551
    %v553 = vand.u32 %v552, 4294901760
    %554 = vmatmul.mubr.f32.gmra.mrb[0].mxu0 %v553
    %v555 = vpop.f32.mrb[0].mxu0
    %v556 = vadd.f32 %v156, %v555
    %v557 = vpop.f32.mrb[0].mxu0
    %558 = vdwg.mxu0
    %559 = vmatprep.subr.mxu0 0.0
    %v560 = vand.u32 %v135, 4294901760
    %v561 = vsub.f32 %v135, %v560
    %v562 = vand.u32 %v561, 4294901760
    %v563 = vsub.f32 %v561, %v562
    %v564 = vand.u32 %v563, 4294901760
    %565 = vmatpush1.msra.mxu0 %v564
    %566 = vmatprep.subr.mxu0 0.0
    %v567 = vand.u32 %v136, 4294901760
    %v568 = vsub.f32 %v136, %v567
    %v569 = vand.u32 %v568, 4294901760
    %v570 = vsub.f32 %v568, %v569
    %v571 = vand.u32 %v570, 4294901760
    %572 = vmatpush1.msra.mxu0 %v571
    %573 = vmatprep.subr.mxu0 0.0
    %v574 = vand.u32 %v137, 4294901760
    %v575 = vsub.f32 %v137, %v574
    %v576 = vand.u32 %v575, 4294901760
    %v577 = vsub.f32 %v575, %v576
    %v578 = vand.u32 %v577, 4294901760
    %579 = vmatpush1.msra.mxu0 %v578
    %580 = vmatprep.subr.mxu0 0.0
    %v581 = vand.u32 %v138, 4294901760
    %v582 = vsub.f32 %v138, %v581
    %v583 = vand.u32 %v582, 4294901760
    %v584 = vsub.f32 %v582, %v583
    %v585 = vand.u32 %v584, 4294901760
    %586 = vmatpush1.msra.mxu0 %v585
    %587 = vmatprep.subr.mxu0 0.0
    %v588 = vand.u32 %v139, 4294901760
    %v589 = vsub.f32 %v139, %v588
    %v590 = vand.u32 %v589, 4294901760
    %v591 = vsub.f32 %v589, %v590
    %v592 = vand.u32 %v591, 4294901760
    %593 = vmatpush1.msra.mxu0 %v592
    %594 = vmatprep.subr.mxu0 0.0
    %v595 = vand.u32 %v140, 4294901760
    %v596 = vsub.f32 %v140, %v595
    %v597 = vand.u32 %v596, 4294901760
    %v598 = vsub.f32 %v596, %v597
    %v599 = vand.u32 %v598, 4294901760
    %600 = vmatpush1.msra.mxu0 %v599
    %601 = vmatprep.subr.mxu0 0.0
    %v602 = vand.u32 %v141, 4294901760
    %v603 = vsub.f32 %v141, %v602
    %v604 = vand.u32 %v603, 4294901760
    %v605 = vsub.f32 %v603, %v604
    %v606 = vand.u32 %v605, 4294901760
    %607 = vmatpush1.msra.mxu0 %v606
    %608 = vmatprep.subr.mxu0 0.0
    %v609 = vand.u32 %v142, 4294901760
    %v610 = vsub.f32 %v142, %v609
    %v611 = vand.u32 %v610, 4294901760
    %v612 = vsub.f32 %v610, %v611
    %v613 = vand.u32 %v612, 4294901760
    %614 = vmatpush1.msra.mxu0 %v613
    %615 = vmatprep.subr.mxu0 0.0
    %v616 = vand.u32 %v143, 4294901760
    %v617 = vsub.f32 %v143, %v616
    %v618 = vand.u32 %v617, 4294901760
    %v619 = vsub.f32 %v617, %v618
    %v620 = vand.u32 %v619, 4294901760
    %621 = vmatpush1.msra.mxu0 %v620
    %622 = vmatprep.subr.mxu0 0.0
    %v623 = vand.u32 %v144, 4294901760
    %v624 = vsub.f32 %v144, %v623
    %v625 = vand.u32 %v624, 4294901760
    %v626 = vsub.f32 %v624, %v625
    %v627 = vand.u32 %v626, 4294901760
    %628 = vmatpush1.msra.mxu0 %v627
    %629 = vmatprep.subr.mxu0 0.0
    %v630 = vand.u32 %v145, 4294901760
    %v631 = vsub.f32 %v145, %v630
    %v632 = vand.u32 %v631, 4294901760
    %v633 = vsub.f32 %v631, %v632
    %v634 = vand.u32 %v633, 4294901760
    %635 = vmatpush1.msra.mxu0 %v634
    %636 = vmatprep.subr.mxu0 0.0
    %v637 = vand.u32 %v146, 4294901760
    %v638 = vsub.f32 %v146, %v637
    %v639 = vand.u32 %v638, 4294901760
    %v640 = vsub.f32 %v638, %v639
    %v641 = vand.u32 %v640, 4294901760
    %642 = vmatpush1.msra.mxu0 %v641
    %643 = vmatprep.subr.mxu0 0.0
    %v644 = vand.u32 %v147, 4294901760
    %v645 = vsub.f32 %v147, %v644
    %v646 = vand.u32 %v645, 4294901760
    %v647 = vsub.f32 %v645, %v646
    %v648 = vand.u32 %v647, 4294901760
    %649 = vmatpush1.msra.mxu0 %v648
    %650 = vmatprep.subr.mxu0 0.0
    %v651 = vand.u32 %v148, 4294901760
    %v652 = vsub.f32 %v148, %v651
    %v653 = vand.u32 %v652, 4294901760
    %v654 = vsub.f32 %v652, %v653
    %v655 = vand.u32 %v654, 4294901760
    %656 = vmatpush1.msra.mxu0 %v655
    %657 = vmatprep.subr.mxu0 0.0
    %v658 = vand.u32 %v149, 4294901760
    %v659 = vsub.f32 %v149, %v658
    %v660 = vand.u32 %v659, 4294901760
    %v661 = vsub.f32 %v659, %v660
    %v662 = vand.u32 %v661, 4294901760
    %663 = vmatpush1.msra.mxu0 %v662
    %664 = vmatprep.subr.mxu0 0.0
    %v665 = vand.u32 %v150, 4294901760
    %v666 = vsub.f32 %v150, %v665
    %v667 = vand.u32 %v666, 4294901760
    %v668 = vsub.f32 %v666, %v667
    %v669 = vand.u32 %v668, 4294901760
    %670 = vmatpush1.msra.mxu0 %v669
    %671 = vmatprep.subr.mxu0 0.0
    %672 = vmatpush1.msra.mxu0 0.0
    %673 = vmatprep.subr.mxu0 0.0
    %674 = vmatpush1.msra.mxu0 0.0
    %675 = vmatprep.subr.mxu0 0.0
    %676 = vmatpush1.msra.mxu0 0.0
    %677 = vmatprep.subr.mxu0 0.0
    %678 = vmatpush1.msra.mxu0 0.0
    %679 = vmatprep.subr.mxu0 0.0
    %680 = vmatpush1.msra.mxu0 0.0
    %681 = vmatprep.subr.mxu0 0.0
    %682 = vmatpush1.msra.mxu0 0.0
    %683 = vmatprep.subr.mxu0 0.0
    %684 = vmatpush1.msra.mxu0 0.0
    %685 = vmatprep.subr.mxu0 0.0
    %686 = vmatpush1.msra.mxu0 0.0
    %687 = vmatprep.subr.mxu0 0.0
    %688 = vmatpush1.msra.mxu0 0.0
    %689 = vmatprep.subr.mxu0 0.0
    %690 = vmatpush1.msra.mxu0 0.0
    %691 = vmatprep.subr.mxu0 0.0
    %692 = vmatpush1.msra.mxu0 0.0
    %693 = vmatprep.subr.mxu0 0.0
    %694 = vmatpush1.msra.mxu0 0.0
    %695 = vmatprep.subr.mxu0 0.0
    %696 = vmatpush1.msra.mxu0 0.0
    %697 = vmatprep.subr.mxu0 0.0
    %698 = vmatpush1.msra.mxu0 0.0
    %699 = vmatprep.subr.mxu0 0.0
    %700 = vmatpush1.msra.mxu0 0.0
    %701 = vmatprep.subr.mxu0 0.0
    %702 = vmatpush1.msra.mxu0 0.0
    %703 = vmatprep.mubr.f32.mxu0 0.0
    %v704 = vand.u32 %v103, 4294901760
    %705 = vmatmul.mubr.f32.gmra.mrb[0].mxu0 %v704
    %v706 = vpop.f32.mrb[0].mxu0
    %v707 = vadd.f32 %v246, %v706
    %v708 = vpop.f32.mrb[0].mxu0
    %709 = vmatprep.mubr.f32.mxu0 0.0
    %v710 = vand.u32 %v104, 4294901760
    %711 = vmatmul.mubr.f32.gmra.mrb[0].mxu0 %v710
    %v712 = vpop.f32.mrb[0].mxu0
    %v713 = vadd.f32 %v256, %v712
    %v714 = vpop.f32.mrb[0].mxu0
    %715 = vmatprep.mubr.f32.mxu0 0.0
    %v716 = vand.u32 %v105, 4294901760
    %717 = vmatmul.mubr.f32.gmra.mrb[0].mxu0 %v716
    %v718 = vpop.f32.mrb[0].mxu0
    %v719 = vadd.f32 %v266, %v718
    %v720 = vpop.f32.mrb[0].mxu0
    %721 = vmatprep.mubr.f32.mxu0 0.0
    %v722 = vand.u32 %v106, 4294901760
    %723 = vmatmul.mubr.f32.gmra.mrb[0].mxu0 %v722
    %v724 = vpop.f32.mrb[0].mxu0
    %v725 = vadd.f32 %v276, %v724
    %v726 = vpop.f32.mrb[0].mxu0
    %727 = vmatprep.mubr.f32.mxu0 0.0
    %v728 = vand.u32 %v107, 4294901760
    %729 = vmatmul.mubr.f32.gmra.mrb[0].mxu0 %v728
    %v730 = vpop.f32.mrb[0].mxu0
    %v731 = vadd.f32 %v286, %v730
    %v732 = vpop.f32.mrb[0].mxu0
    %733 = vmatprep.mubr.f32.mxu0 0.0
    %v734 = vand.u32 %v108, 4294901760
    %735 = vmatmul.mubr.f32.gmra.mrb[0].mxu0 %v734
    %v736 = vpop.f32.mrb[0].mxu0
    %v737 = vadd.f32 %v296, %v736
    %v738 = vpop.f32.mrb[0].mxu0
    %739 = vmatprep.mubr.f32.mxu0 0.0
    %v740 = vand.u32 %v109, 4294901760
    %741 = vmatmul.mubr.f32.gmra.mrb[0].mxu0 %v740
    %v742 = vpop.f32.mrb[0].mxu0
    %v743 = vadd.f32 %v306, %v742
    %v744 = vpop.f32.mrb[0].mxu0
    %745 = vmatprep.mubr.f32.mxu0 0.0
    %v746 = vand.u32 %v110, 4294901760
    %747 = vmatmul.mubr.f32.gmra.mrb[0].mxu0 %v746
    %v748 = vpop.f32.mrb[0].mxu0
    %v749 = vadd.f32 %v316, %v748
    %v750 = vpop.f32.mrb[0].mxu0
    %751 = vmatprep.mubr.f32.mxu0 0.0
    %v752 = vand.u32 %v111, 4294901760
    %753 = vmatmul.mubr.f32.gmra.mrb[0].mxu0 %v752
    %v754 = vpop.f32.mrb[0].mxu0
    %v755 = vadd.f32 %v326, %v754
    %v756 = vpop.f32.mrb[0].mxu0
    %757 = vmatprep.mubr.f32.mxu0 0.0
    %v758 = vand.u32 %v112, 4294901760
    %759 = vmatmul.mubr.f32.gmra.mrb[0].mxu0 %v758
    %v760 = vpop.f32.mrb[0].mxu0
    %v761 = vadd.f32 %v336, %v760
    %v762 = vpop.f32.mrb[0].mxu0
    %763 = vmatprep.mubr.f32.mxu0 0.0
    %v764 = vand.u32 %v113, 4294901760
    %765 = vmatmul.mubr.f32.gmra.mrb[0].mxu0 %v764
    %v766 = vpop.f32.mrb[0].mxu0
    %v767 = vadd.f32 %v346, %v766
    %v768 = vpop.f32.mrb[0].mxu0
    %769 = vmatprep.mubr.f32.mxu0 0.0
    %v770 = vand.u32 %v114, 4294901760
    %771 = vmatmul.mubr.f32.gmra.mrb[0].mxu0 %v770
    %v772 = vpop.f32.mrb[0].mxu0
    %v773 = vadd.f32 %v356, %v772
    %v774 = vpop.f32.mrb[0].mxu0
    %775 = vmatprep.mubr.f32.mxu0 0.0
    %v776 = vand.u32 %v115, 4294901760
    %777 = vmatmul.mubr.f32.gmra.mrb[0].mxu0 %v776
    %v778 = vpop.f32.mrb[0].mxu0
    %v779 = vadd.f32 %v366, %v778
    %v780 = vpop.f32.mrb[0].mxu0
    %781 = vmatprep.mubr.f32.mxu0 0.0
    %v782 = vand.u32 %v116, 4294901760
    %783 = vmatmul.mubr.f32.gmra.mrb[0].mxu0 %v782
    %v784 = vpop.f32.mrb[0].mxu0
    %v785 = vadd.f32 %v376, %v784
    %v786 = vpop.f32.mrb[0].mxu0
    %787 = vmatprep.mubr.f32.mxu0 0.0
    %v788 = vand.u32 %v117, 4294901760
    %789 = vmatmul.mubr.f32.gmra.mrb[0].mxu0 %v788
    %v790 = vpop.f32.mrb[0].mxu0
    %v791 = vadd.f32 %v386, %v790
    %v792 = vpop.f32.mrb[0].mxu0
    %793 = vmatprep.mubr.f32.mxu0 0.0
    %v794 = vand.u32 %v118, 4294901760
    %795 = vmatmul.mubr.f32.gmra.mrb[0].mxu0 %v794
    %v796 = vpop.f32.mrb[0].mxu0
    %v797 = vadd.f32 %v396, %v796
    %v798 = vpop.f32.mrb[0].mxu0
    %799 = vmatprep.mubr.f32.mxu0 0.0
    %v800 = vand.u32 %v119, 4294901760
    %801 = vmatmul.mubr.f32.gmra.mrb[0].mxu0 %v800
    %v802 = vpop.f32.mrb[0].mxu0
    %v803 = vadd.f32 %v406, %v802
    %v804 = vpop.f32.mrb[0].mxu0
    %805 = vmatprep.mubr.f32.mxu0 0.0
    %v806 = vand.u32 %v120, 4294901760
    %807 = vmatmul.mubr.f32.gmra.mrb[0].mxu0 %v806
    %v808 = vpop.f32.mrb[0].mxu0
    %v809 = vadd.f32 %v416, %v808
    %v810 = vpop.f32.mrb[0].mxu0
    %811 = vmatprep.mubr.f32.mxu0 0.0
    %v812 = vand.u32 %v121, 4294901760
    %813 = vmatmul.mubr.f32.gmra.mrb[0].mxu0 %v812
    %v814 = vpop.f32.mrb[0].mxu0
    %v815 = vadd.f32 %v426, %v814
    %v816 = vpop.f32.mrb[0].mxu0
    %817 = vmatprep.mubr.f32.mxu0 0.0
    %v818 = vand.u32 %v122, 4294901760
    %819 = vmatmul.mubr.f32.gmra.mrb[0].mxu0 %v818
    %v820 = vpop.f32.mrb[0].mxu0
    %v821 = vadd.f32 %v436, %v820
    %v822 = vpop.f32.mrb[0].mxu0
    %823 = vmatprep.mubr.f32.mxu0 0.0
    %v824 = vand.u32 %v123, 4294901760
    %825 = vmatmul.mubr.f32.gmra.mrb[0].mxu0 %v824
    %v826 = vpop.f32.mrb[0].mxu0
    %v827 = vadd.f32 %v446, %v826
    %v828 = vpop.f32.mrb[0].mxu0
    %829 = vmatprep.mubr.f32.mxu0 0.0
    %v830 = vand.u32 %v124, 4294901760
    %831 = vmatmul.mubr.f32.gmra.mrb[0].mxu0 %v830
    %v832 = vpop.f32.mrb[0].mxu0
    %v833 = vadd.f32 %v456, %v832
    %v834 = vpop.f32.mrb[0].mxu0
    %835 = vmatprep.mubr.f32.mxu0 0.0
    %v836 = vand.u32 %v125, 4294901760
    %837 = vmatmul.mubr.f32.gmra.mrb[0].mxu0 %v836
    %v838 = vpop.f32.mrb[0].mxu0
    %v839 = vadd.f32 %v466, %v838
    %v840 = vpop.f32.mrb[0].mxu0
    %841 = vmatprep.mubr.f32.mxu0 0.0
    %v842 = vand.u32 %v126, 4294901760
    %843 = vmatmul.mubr.f32.gmra.mrb[0].mxu0 %v842
    %v844 = vpop.f32.mrb[0].mxu0
    %v845 = vadd.f32 %v476, %v844
    %v846 = vpop.f32.mrb[0].mxu0
    %847 = vmatprep.mubr.f32.mxu0 0.0
    %v848 = vand.u32 %v127, 4294901760
    %849 = vmatmul.mubr.f32.gmra.mrb[0].mxu0 %v848
    %v850 = vpop.f32.mrb[0].mxu0
    %v851 = vadd.f32 %v486, %v850
    %v852 = vpop.f32.mrb[0].mxu0
    %853 = vmatprep.mubr.f32.mxu0 0.0
    %v854 = vand.u32 %v128, 4294901760
    %855 = vmatmul.mubr.f32.gmra.mrb[0].mxu0 %v854
    %v856 = vpop.f32.mrb[0].mxu0
    %v857 = vadd.f32 %v496, %v856
    %v858 = vpop.f32.mrb[0].mxu0
    %859 = vmatprep.mubr.f32.mxu0 0.0
    %v860 = vand.u32 %v129, 4294901760
    %861 = vmatmul.mubr.f32.gmra.mrb[0].mxu0 %v860
    %v862 = vpop.f32.mrb[0].mxu0
    %v863 = vadd.f32 %v506, %v862
    %v864 = vpop.f32.mrb[0].mxu0
    %865 = vmatprep.mubr.f32.mxu0 0.0
    %v866 = vand.u32 %v130, 4294901760
    %867 = vmatmul.mubr.f32.gmra.mrb[0].mxu0 %v866
    %v868 = vpop.f32.mrb[0].mxu0
    %v869 = vadd.f32 %v516, %v868
    %v870 = vpop.f32.mrb[0].mxu0
    %871 = vmatprep.mubr.f32.mxu0 0.0
    %v872 = vand.u32 %v131, 4294901760
    %873 = vmatmul.mubr.f32.gmra.mrb[0].mxu0 %v872
    %v874 = vpop.f32.mrb[0].mxu0
    %v875 = vadd.f32 %v526, %v874
    %v876 = vpop.f32.mrb[0].mxu0
    %877 = vmatprep.mubr.f32.mxu0 0.0
    %v878 = vand.u32 %v132, 4294901760
    %879 = vmatmul.mubr.f32.gmra.mrb[0].mxu0 %v878
    %v880 = vpop.f32.mrb[0].mxu0
    %v881 = vadd.f32 %v536, %v880
    %v882 = vpop.f32.mrb[0].mxu0
    %883 = vmatprep.mubr.f32.mxu0 0.0
    %v884 = vand.u32 %v133, 4294901760
    %885 = vmatmul.mubr.f32.gmra.mrb[0].mxu0 %v884
    %v886 = vpop.f32.mrb[0].mxu0
    %v887 = vadd.f32 %v546, %v886
    %v888 = vpop.f32.mrb[0].mxu0
    %889 = vmatprep.mubr.f32.mxu0 0.0
    %v890 = vand.u32 %v134, 4294901760
    %891 = vmatmul.mubr.f32.gmra.mrb[0].mxu0 %v890
    %v892 = vpop.f32.mrb[0].mxu0
    %v893 = vadd.f32 %v556, %v892
    %v894 = vpop.f32.mrb[0].mxu0
    %895 = vdwg.mxu0
    %896 = vmatprep.subr.mxu0 0.0
    %v897 = vand.u32 %v135, 4294901760
    %v898 = vsub.f32 %v135, %v897
    %899 = vmatpush1.msra.mxu0 %v898
    %900 = vmatprep.subr.mxu0 0.0
    %v901 = vand.u32 %v136, 4294901760
    %v902 = vsub.f32 %v136, %v901
    %903 = vmatpush1.msra.mxu0 %v902
    %904 = vmatprep.subr.mxu0 0.0
    %v905 = vand.u32 %v137, 4294901760
    %v906 = vsub.f32 %v137, %v905
    %907 = vmatpush1.msra.mxu0 %v906
    %908 = vmatprep.subr.mxu0 0.0
    %v909 = vand.u32 %v138, 4294901760
    %v910 = vsub.f32 %v138, %v909
    %911 = vmatpush1.msra.mxu0 %v910
    %912 = vmatprep.subr.mxu0 0.0
    %v913 = vand.u32 %v139, 4294901760
    %v914 = vsub.f32 %v139, %v913
    %915 = vmatpush1.msra.mxu0 %v914
    %916 = vmatprep.subr.mxu0 0.0
    %v917 = vand.u32 %v140, 4294901760
    %v918 = vsub.f32 %v140, %v917
    %919 = vmatpush1.msra.mxu0 %v918
    %920 = vmatprep.subr.mxu0 0.0
    %v921 = vand.u32 %v141, 4294901760
    %v922 = vsub.f32 %v141, %v921
    %923 = vmatpush1.msra.mxu0 %v922
    %924 = vmatprep.subr.mxu0 0.0
    %v925 = vand.u32 %v142, 4294901760
    %v926 = vsub.f32 %v142, %v925
    %927 = vmatpush1.msra.mxu0 %v926
    %928 = vmatprep.subr.mxu0 0.0
    %v929 = vand.u32 %v143, 4294901760
    %v930 = vsub.f32 %v143, %v929
    %931 = vmatpush1.msra.mxu0 %v930
    %932 = vmatprep.subr.mxu0 0.0
    %v933 = vand.u32 %v144, 4294901760
    %v934 = vsub.f32 %v144, %v933
    %935 = vmatpush1.msra.mxu0 %v934
    %936 = vmatprep.subr.mxu0 0.0
    %v937 = vand.u32 %v145, 4294901760
    %v938 = vsub.f32 %v145, %v937
    %939 = vmatpush1.msra.mxu0 %v938
    %940 = vmatprep.subr.mxu0 0.0
    %v941 = vand.u32 %v146, 4294901760
    %v942 = vsub.f32 %v146, %v941
    %943 = vmatpush1.msra.mxu0 %v942
    %944 = vmatprep.subr.mxu0 0.0
    %v945 = vand.u32 %v147, 4294901760
    %v946 = vsub.f32 %v147, %v945
    %947 = vmatpush1.msra.mxu0 %v946
    %948 = vmatprep.subr.mxu0 0.0
    %v949 = vand.u32 %v148, 4294901760
    %v950 = vsub.f32 %v148, %v949
    %951 = vmatpush1.msra.mxu0 %v950
    %952 = vmatprep.subr.mxu0 0.0
    %v953 = vand.u32 %v149, 4294901760
    %v954 = vsub.f32 %v149, %v953
    %955 = vmatpush1.msra.mxu0 %v954
    %956 = vmatprep.subr.mxu0 0.0
    %v957 = vand.u32 %v150, 4294901760
    %v958 = vsub.f32 %v150, %v957
    %959 = vmatpush1.msra.mxu0 %v958
    %960 = vmatprep.subr.mxu0 0.0
    %961 = vmatpush1.msra.mxu0 0.0
    %962 = vmatprep.subr.mxu0 0.0
    %963 = vmatpush1.msra.mxu0 0.0
    %964 = vmatprep.subr.mxu0 0.0
    %965 = vmatpush1.msra.mxu0 0.0
    %966 = vmatprep.subr.mxu0 0.0
    %967 = vmatpush1.msra.mxu0 0.0
    %968 = vmatprep.subr.mxu0 0.0
    %969 = vmatpush1.msra.mxu0 0.0
    %970 = vmatprep.subr.mxu0 0.0
    %971 = vmatpush1.msra.mxu0 0.0
    %972 = vmatprep.subr.mxu0 0.0
    %973 = vmatpush1.msra.mxu0 0.0
    %974 = vmatprep.subr.mxu0 0.0
    %975 = vmatpush1.msra.mxu0 0.0
    %976 = vmatprep.subr.mxu0 0.0
    %977 = vmatpush1.msra.mxu0 0.0
    %978 = vmatprep.subr.mxu0 0.0
    %979 = vmatpush1.msra.mxu0 0.0
    %980 = vmatprep.subr.mxu0 0.0
    %981 = vmatpush1.msra.mxu0 0.0
    %982 = vmatprep.subr.mxu0 0.0
    %983 = vmatpush1.msra.mxu0 0.0
    %984 = vmatprep.subr.mxu0 0.0
    %985 = vmatpush1.msra.mxu0 0.0
    %986 = vmatprep.subr.mxu0 0.0
    %987 = vmatpush1.msra.mxu0 0.0
    %988 = vmatprep.subr.mxu0 0.0
    %989 = vmatpush1.msra.mxu0 0.0
    %990 = vmatprep.subr.mxu0 0.0
    %991 = vmatpush1.msra.mxu0 0.0
    %992 = vmatprep.mubr.f32.mxu0 0.0
    %v993 = vand.u32 %v103, 4294901760
    %v994 = vsub.f32 %v103, %v993
    %995 = vmatmul.mubr.f32.gmra.mrb[0].mxu0 %v994
    %v996 = vpop.f32.mrb[0].mxu0
    %v997 = vadd.f32 %v707, %v996
    %v998 = vpop.f32.mrb[0].mxu0
    %999 = vmatprep.mubr.f32.mxu0 0.0
    %v1000 = vand.u32 %v104, 4294901760
    %v1001 = vsub.f32 %v104, %v1000
    %1002 = vmatmul.mubr.f32.gmra.mrb[0].mxu0 %v1001
    %v1003 = vpop.f32.mrb[0].mxu0
    %v1004 = vadd.f32 %v713, %v1003
    %v1005 = vpop.f32.mrb[0].mxu0
    %1006 = vmatprep.mubr.f32.mxu0 0.0
    %v1007 = vand.u32 %v105, 4294901760
    %v1008 = vsub.f32 %v105, %v1007
    %1009 = vmatmul.mubr.f32.gmra.mrb[0].mxu0 %v1008
    %v1010 = vpop.f32.mrb[0].mxu0
    %v1011 = vadd.f32 %v719, %v1010
    %v1012 = vpop.f32.mrb[0].mxu0
    %1013 = vmatprep.mubr.f32.mxu0 0.0
    %v1014 = vand.u32 %v106, 4294901760
    %v1015 = vsub.f32 %v106, %v1014
    %1016 = vmatmul.mubr.f32.gmra.mrb[0].mxu0 %v1015
    %v1017 = vpop.f32.mrb[0].mxu0
    %v1018 = vadd.f32 %v725, %v1017
    %v1019 = vpop.f32.mrb[0].mxu0
    %1020 = vmatprep.mubr.f32.mxu0 0.0
    %v1021 = vand.u32 %v107, 4294901760
    %v1022 = vsub.f32 %v107, %v1021
    %1023 = vmatmul.mubr.f32.gmra.mrb[0].mxu0 %v1022
    %v1024 = vpop.f32.mrb[0].mxu0
    %v1025 = vadd.f32 %v731, %v1024
    %v1026 = vpop.f32.mrb[0].mxu0
    %1027 = vmatprep.mubr.f32.mxu0 0.0
    %v1028 = vand.u32 %v108, 4294901760
    %v1029 = vsub.f32 %v108, %v1028
    %1030 = vmatmul.mubr.f32.gmra.mrb[0].mxu0 %v1029
    %v1031 = vpop.f32.mrb[0].mxu0
    %v1032 = vadd.f32 %v737, %v1031
    %v1033 = vpop.f32.mrb[0].mxu0
    %1034 = vmatprep.mubr.f32.mxu0 0.0
    %v1035 = vand.u32 %v109, 4294901760
    %v1036 = vsub.f32 %v109, %v1035
    %1037 = vmatmul.mubr.f32.gmra.mrb[0].mxu0 %v1036
    %v1038 = vpop.f32.mrb[0].mxu0
    %v1039 = vadd.f32 %v743, %v1038
    %v1040 = vpop.f32.mrb[0].mxu0
    %1041 = vmatprep.mubr.f32.mxu0 0.0
    %v1042 = vand.u32 %v110, 4294901760
    %v1043 = vsub.f32 %v110, %v1042
    %1044 = vmatmul.mubr.f32.gmra.mrb[0].mxu0 %v1043
    %v1045 = vpop.f32.mrb[0].mxu0
    %v1046 = vadd.f32 %v749, %v1045
    %v1047 = vpop.f32.mrb[0].mxu0
    %1048 = vmatprep.mubr.f32.mxu0 0.0
    %v1049 = vand.u32 %v111, 4294901760
    %v1050 = vsub.f32 %v111, %v1049
    %1051 = vmatmul.mubr.f32.gmra.mrb[0].mxu0 %v1050
    %v1052 = vpop.f32.mrb[0].mxu0
    %v1053 = vadd.f32 %v755, %v1052
    %v1054 = vpop.f32.mrb[0].mxu0
    %1055 = vmatprep.mubr.f32.mxu0 0.0
    %v1056 = vand.u32 %v112, 4294901760
    %v1057 = vsub.f32 %v112, %v1056
    %1058 = vmatmul.mubr.f32.gmra.mrb[0].mxu0 %v1057
    %v1059 = vpop.f32.mrb[0].mxu0
    %v1060 = vadd.f32 %v761, %v1059
    %v1061 = vpop.f32.mrb[0].mxu0
    %1062 = vmatprep.mubr.f32.mxu0 0.0
    %v1063 = vand.u32 %v113, 4294901760
    %v1064 = vsub.f32 %v113, %v1063
    %1065 = vmatmul.mubr.f32.gmra.mrb[0].mxu0 %v1064
    %v1066 = vpop.f32.mrb[0].mxu0
    %v1067 = vadd.f32 %v767, %v1066
    %v1068 = vpop.f32.mrb[0].mxu0
    %1069 = vmatprep.mubr.f32.mxu0 0.0
    %v1070 = vand.u32 %v114, 4294901760
    %v1071 = vsub.f32 %v114, %v1070
    %1072 = vmatmul.mubr.f32.gmra.mrb[0].mxu0 %v1071
    %v1073 = vpop.f32.mrb[0].mxu0
    %v1074 = vadd.f32 %v773, %v1073
    %v1075 = vpop.f32.mrb[0].mxu0
    %1076 = vmatprep.mubr.f32.mxu0 0.0
    %v1077 = vand.u32 %v115, 4294901760
    %v1078 = vsub.f32 %v115, %v1077
    %1079 = vmatmul.mubr.f32.gmra.mrb[0].mxu0 %v1078
    %v1080 = vpop.f32.mrb[0].mxu0
    %v1081 = vadd.f32 %v779, %v1080
    %v1082 = vpop.f32.mrb[0].mxu0
    %1083 = vmatprep.mubr.f32.mxu0 0.0
    %v1084 = vand.u32 %v116, 4294901760
    %v1085 = vsub.f32 %v116, %v1084
    %1086 = vmatmul.mubr.f32.gmra.mrb[0].mxu0 %v1085
    %v1087 = vpop.f32.mrb[0].mxu0
    %v1088 = vadd.f32 %v785, %v1087
    %v1089 = vpop.f32.mrb[0].mxu0
    %1090 = vmatprep.mubr.f32.mxu0 0.0
    %v1091 = vand.u32 %v117, 4294901760
    %v1092 = vsub.f32 %v117, %v1091
    %1093 = vmatmul.mubr.f32.gmra.mrb[0].mxu0 %v1092
    %v1094 = vpop.f32.mrb[0].mxu0
    %v1095 = vadd.f32 %v791, %v1094
    %v1096 = vpop.f32.mrb[0].mxu0
    %1097 = vmatprep.mubr.f32.mxu0 0.0
    %v1098 = vand.u32 %v118, 4294901760
    %v1099 = vsub.f32 %v118, %v1098
    %1100 = vmatmul.mubr.f32.gmra.mrb[0].mxu0 %v1099
    %v1101 = vpop.f32.mrb[0].mxu0
    %v1102 = vadd.f32 %v797, %v1101
    %v1103 = vpop.f32.mrb[0].mxu0
    %1104 = vmatprep.mubr.f32.mxu0 0.0
    %v1105 = vand.u32 %v119, 4294901760
    %v1106 = vsub.f32 %v119, %v1105
    %1107 = vmatmul.mubr.f32.gmra.mrb[0].mxu0 %v1106
    %v1108 = vpop.f32.mrb[0].mxu0
    %v1109 = vadd.f32 %v803, %v1108
    %v1110 = vpop.f32.mrb[0].mxu0
    %1111 = vmatprep.mubr.f32.mxu0 0.0
    %v1112 = vand.u32 %v120, 4294901760
    %v1113 = vsub.f32 %v120, %v1112
    %1114 = vmatmul.mubr.f32.gmra.mrb[0].mxu0 %v1113
    %v1115 = vpop.f32.mrb[0].mxu0
    %v1116 = vadd.f32 %v809, %v1115
    %v1117 = vpop.f32.mrb[0].mxu0
    %1118 = vmatprep.mubr.f32.mxu0 0.0
    %v1119 = vand.u32 %v121, 4294901760
    %v1120 = vsub.f32 %v121, %v1119
    %1121 = vmatmul.mubr.f32.gmra.mrb[0].mxu0 %v1120
    %v1122 = vpop.f32.mrb[0].mxu0
    %v1123 = vadd.f32 %v815, %v1122
    %v1124 = vpop.f32.mrb[0].mxu0
    %1125 = vmatprep.mubr.f32.mxu0 0.0
    %v1126 = vand.u32 %v122, 4294901760
    %v1127 = vsub.f32 %v122, %v1126
    %1128 = vmatmul.mubr.f32.gmra.mrb[0].mxu0 %v1127
    %v1129 = vpop.f32.mrb[0].mxu0
    %v1130 = vadd.f32 %v821, %v1129
    %v1131 = vpop.f32.mrb[0].mxu0
    %1132 = vmatprep.mubr.f32.mxu0 0.0
    %v1133 = vand.u32 %v123, 4294901760
    %v1134 = vsub.f32 %v123, %v1133
    %1135 = vmatmul.mubr.f32.gmra.mrb[0].mxu0 %v1134
    %v1136 = vpop.f32.mrb[0].mxu0
    %v1137 = vadd.f32 %v827, %v1136
    %v1138 = vpop.f32.mrb[0].mxu0
    %1139 = vmatprep.mubr.f32.mxu0 0.0
    %v1140 = vand.u32 %v124, 4294901760
    %v1141 = vsub.f32 %v124, %v1140
    %1142 = vmatmul.mubr.f32.gmra.mrb[0].mxu0 %v1141
    %v1143 = vpop.f32.mrb[0].mxu0
    %v1144 = vadd.f32 %v833, %v1143
    %v1145 = vpop.f32.mrb[0].mxu0
    %1146 = vmatprep.mubr.f32.mxu0 0.0
    %v1147 = vand.u32 %v125, 4294901760
    %v1148 = vsub.f32 %v125, %v1147
    %1149 = vmatmul.mubr.f32.gmra.mrb[0].mxu0 %v1148
    %v1150 = vpop.f32.mrb[0].mxu0
    %v1151 = vadd.f32 %v839, %v1150
    %v1152 = vpop.f32.mrb[0].mxu0
    %1153 = vmatprep.mubr.f32.mxu0 0.0
    %v1154 = vand.u32 %v126, 4294901760
    %v1155 = vsub.f32 %v126, %v1154
    %1156 = vmatmul.mubr.f32.gmra.mrb[0].mxu0 %v1155
    %v1157 = vpop.f32.mrb[0].mxu0
    %v1158 = vadd.f32 %v845, %v1157
    %v1159 = vpop.f32.mrb[0].mxu0
    %1160 = vmatprep.mubr.f32.mxu0 0.0
    %v1161 = vand.u32 %v127, 4294901760
    %v1162 = vsub.f32 %v127, %v1161
    %1163 = vmatmul.mubr.f32.gmra.mrb[0].mxu0 %v1162
    %v1164 = vpop.f32.mrb[0].mxu0
    %v1165 = vadd.f32 %v851, %v1164
    %v1166 = vpop.f32.mrb[0].mxu0
    %1167 = vmatprep.mubr.f32.mxu0 0.0
    %v1168 = vand.u32 %v128, 4294901760
    %v1169 = vsub.f32 %v128, %v1168
    %1170 = vmatmul.mubr.f32.gmra.mrb[0].mxu0 %v1169
    %v1171 = vpop.f32.mrb[0].mxu0
    %v1172 = vadd.f32 %v857, %v1171
    %v1173 = vpop.f32.mrb[0].mxu0
    %1174 = vmatprep.mubr.f32.mxu0 0.0
    %v1175 = vand.u32 %v129, 4294901760
    %v1176 = vsub.f32 %v129, %v1175
    %1177 = vmatmul.mubr.f32.gmra.mrb[0].mxu0 %v1176
    %v1178 = vpop.f32.mrb[0].mxu0
    %v1179 = vadd.f32 %v863, %v1178
    %v1180 = vpop.f32.mrb[0].mxu0
    %1181 = vmatprep.mubr.f32.mxu0 0.0
    %v1182 = vand.u32 %v130, 4294901760
    %v1183 = vsub.f32 %v130, %v1182
    %1184 = vmatmul.mubr.f32.gmra.mrb[0].mxu0 %v1183
    %v1185 = vpop.f32.mrb[0].mxu0
    %v1186 = vadd.f32 %v869, %v1185
    %v1187 = vpop.f32.mrb[0].mxu0
    %1188 = vmatprep.mubr.f32.mxu0 0.0
    %v1189 = vand.u32 %v131, 4294901760
    %v1190 = vsub.f32 %v131, %v1189
    %1191 = vmatmul.mubr.f32.gmra.mrb[0].mxu0 %v1190
    %v1192 = vpop.f32.mrb[0].mxu0
    %v1193 = vadd.f32 %v875, %v1192
    %v1194 = vpop.f32.mrb[0].mxu0
    %1195 = vmatprep.mubr.f32.mxu0 0.0
    %v1196 = vand.u32 %v132, 4294901760
    %v1197 = vsub.f32 %v132, %v1196
    %1198 = vmatmul.mubr.f32.gmra.mrb[0].mxu0 %v1197
    %v1199 = vpop.f32.mrb[0].mxu0
    %v1200 = vadd.f32 %v881, %v1199
    %v1201 = vpop.f32.mrb[0].mxu0
    %1202 = vmatprep.mubr.f32.mxu0 0.0
    %v1203 = vand.u32 %v133, 4294901760
    %v1204 = vsub.f32 %v133, %v1203
    %1205 = vmatmul.mubr.f32.gmra.mrb[0].mxu0 %v1204
    %v1206 = vpop.f32.mrb[0].mxu0
    %v1207 = vadd.f32 %v887, %v1206
    %v1208 = vpop.f32.mrb[0].mxu0
    %1209 = vmatprep.mubr.f32.mxu0 0.0
    %v1210 = vand.u32 %v134, 4294901760
    %v1211 = vsub.f32 %v134, %v1210
    %1212 = vmatmul.mubr.f32.gmra.mrb[0].mxu0 %v1211
    %v1213 = vpop.f32.mrb[0].mxu0
    %v1214 = vadd.f32 %v893, %v1213
    %v1215 = vpop.f32.mrb[0].mxu0
    %1216 = vdwg.mxu0
    %1217 = vmatprep.subr.mxu0 0.0
    %v1218 = vand.u32 %v135, 4294901760
    %1219 = vmatpush1.msra.mxu0 %v1218
    %1220 = vmatprep.subr.mxu0 0.0
    %v1221 = vand.u32 %v136, 4294901760
    %1222 = vmatpush1.msra.mxu0 %v1221
    %1223 = vmatprep.subr.mxu0 0.0
    %v1224 = vand.u32 %v137, 4294901760
    %1225 = vmatpush1.msra.mxu0 %v1224
    %1226 = vmatprep.subr.mxu0 0.0
    %v1227 = vand.u32 %v138, 4294901760
    %1228 = vmatpush1.msra.mxu0 %v1227
    %1229 = vmatprep.subr.mxu0 0.0
    %v1230 = vand.u32 %v139, 4294901760
    %1231 = vmatpush1.msra.mxu0 %v1230
    %1232 = vmatprep.subr.mxu0 0.0
    %v1233 = vand.u32 %v140, 4294901760
    %1234 = vmatpush1.msra.mxu0 %v1233
    %1235 = vmatprep.subr.mxu0 0.0
    %v1236 = vand.u32 %v141, 4294901760
    %1237 = vmatpush1.msra.mxu0 %v1236
    %1238 = vmatprep.subr.mxu0 0.0
    %v1239 = vand.u32 %v142, 4294901760
    %1240 = vmatpush1.msra.mxu0 %v1239
    %1241 = vmatprep.subr.mxu0 0.0
    %v1242 = vand.u32 %v143, 4294901760
    %1243 = vmatpush1.msra.mxu0 %v1242
    %1244 = vmatprep.subr.mxu0 0.0
    %v1245 = vand.u32 %v144, 4294901760
    %1246 = vmatpush1.msra.mxu0 %v1245
    %1247 = vmatprep.subr.mxu0 0.0
    %v1248 = vand.u32 %v145, 4294901760
    %1249 = vmatpush1.msra.mxu0 %v1248
    %1250 = vmatprep.subr.mxu0 0.0
    %v1251 = vand.u32 %v146, 4294901760
    %1252 = vmatpush1.msra.mxu0 %v1251
    %1253 = vmatprep.subr.mxu0 0.0
    %v1254 = vand.u32 %v147, 4294901760
    %1255 = vmatpush1.msra.mxu0 %v1254
    %1256 = vmatprep.subr.mxu0 0.0
    %v1257 = vand.u32 %v148, 4294901760
    %1258 = vmatpush1.msra.mxu0 %v1257
    %1259 = vmatprep.subr.mxu0 0.0
    %v1260 = vand.u32 %v149, 4294901760
    %1261 = vmatpush1.msra.mxu0 %v1260
    %1262 = vmatprep.subr.mxu0 0.0
    %v1263 = vand.u32 %v150, 4294901760
    %1264 = vmatpush1.msra.mxu0 %v1263
    %1265 = vmatprep.subr.mxu0 0.0
    %1266 = vmatpush1.msra.mxu0 0.0
    %1267 = vmatprep.subr.mxu0 0.0
    %1268 = vmatpush1.msra.mxu0 0.0
    %1269 = vmatprep.subr.mxu0 0.0
    %1270 = vmatpush1.msra.mxu0 0.0
    %1271 = vmatprep.subr.mxu0 0.0
    %1272 = vmatpush1.msra.mxu0 0.0
    %1273 = vmatprep.subr.mxu0 0.0
    %1274 = vmatpush1.msra.mxu0 0.0
    %1275 = vmatprep.subr.mxu0 0.0
    %1276 = vmatpush1.msra.mxu0 0.0
    %1277 = vmatprep.subr.mxu0 0.0
    %1278 = vmatpush1.msra.mxu0 0.0
    %1279 = vmatprep.subr.mxu0 0.0
    %1280 = vmatpush1.msra.mxu0 0.0
    %1281 = vmatprep.subr.mxu0 0.0
    %1282 = vmatpush1.msra.mxu0 0.0
    %1283 = vmatprep.subr.mxu0 0.0
    %1284 = vmatpush1.msra.mxu0 0.0
    %1285 = vmatprep.subr.mxu0 0.0
    %1286 = vmatpush1.msra.mxu0 0.0
    %1287 = vmatprep.subr.mxu0 0.0
    %1288 = vmatpush1.msra.mxu0 0.0
    %1289 = vmatprep.subr.mxu0 0.0
    %1290 = vmatpush1.msra.mxu0 0.0
    %1291 = vmatprep.subr.mxu0 0.0
    %1292 = vmatpush1.msra.mxu0 0.0
    %1293 = vmatprep.subr.mxu0 0.0
    %1294 = vmatpush1.msra.mxu0 0.0
    %1295 = vmatprep.subr.mxu0 0.0
    %1296 = vmatpush1.msra.mxu0 0.0
    %1297 = vmatprep.mubr.f32.mxu0 0.0
    %v1298 = vand.u32 %v103, 4294901760
    %v1299 = vsub.f32 %v103, %v1298
    %v1300 = vand.u32 %v1299, 4294901760
    %1301 = vmatmul.mubr.f32.gmra.mrb[0].mxu0 %v1300
    %v1302 = vpop.f32.mrb[0].mxu0
    %v1303 = vadd.f32 %v997, %v1302
    %v1304 = vpop.f32.mrb[0].mxu0
    %1305 = vmatprep.mubr.f32.mxu0 0.0
    %v1306 = vand.u32 %v104, 4294901760
    %v1307 = vsub.f32 %v104, %v1306
    %v1308 = vand.u32 %v1307, 4294901760
    %1309 = vmatmul.mubr.f32.gmra.mrb[0].mxu0 %v1308
    %v1310 = vpop.f32.mrb[0].mxu0
    %v1311 = vadd.f32 %v1004, %v1310
    %v1312 = vpop.f32.mrb[0].mxu0
    %1313 = vmatprep.mubr.f32.mxu0 0.0
    %v1314 = vand.u32 %v105, 4294901760
    %v1315 = vsub.f32 %v105, %v1314
    %v1316 = vand.u32 %v1315, 4294901760
    %1317 = vmatmul.mubr.f32.gmra.mrb[0].mxu0 %v1316
    %v1318 = vpop.f32.mrb[0].mxu0
    %v1319 = vadd.f32 %v1011, %v1318
    %v1320 = vpop.f32.mrb[0].mxu0
    %1321 = vmatprep.mubr.f32.mxu0 0.0
    %v1322 = vand.u32 %v106, 4294901760
    %v1323 = vsub.f32 %v106, %v1322
    %v1324 = vand.u32 %v1323, 4294901760
    %1325 = vmatmul.mubr.f32.gmra.mrb[0].mxu0 %v1324
    %v1326 = vpop.f32.mrb[0].mxu0
    %v1327 = vadd.f32 %v1018, %v1326
    %v1328 = vpop.f32.mrb[0].mxu0
    %1329 = vmatprep.mubr.f32.mxu0 0.0
    %v1330 = vand.u32 %v107, 4294901760
    %v1331 = vsub.f32 %v107, %v1330
    %v1332 = vand.u32 %v1331, 4294901760
    %1333 = vmatmul.mubr.f32.gmra.mrb[0].mxu0 %v1332
    %v1334 = vpop.f32.mrb[0].mxu0
    %v1335 = vadd.f32 %v1025, %v1334
    %v1336 = vpop.f32.mrb[0].mxu0
    %1337 = vmatprep.mubr.f32.mxu0 0.0
    %v1338 = vand.u32 %v108, 4294901760
    %v1339 = vsub.f32 %v108, %v1338
    %v1340 = vand.u32 %v1339, 4294901760
    %1341 = vmatmul.mubr.f32.gmra.mrb[0].mxu0 %v1340
    %v1342 = vpop.f32.mrb[0].mxu0
    %v1343 = vadd.f32 %v1032, %v1342
    %v1344 = vpop.f32.mrb[0].mxu0
    %1345 = vmatprep.mubr.f32.mxu0 0.0
    %v1346 = vand.u32 %v109, 4294901760
    %v1347 = vsub.f32 %v109, %v1346
    %v1348 = vand.u32 %v1347, 4294901760
    %1349 = vmatmul.mubr.f32.gmra.mrb[0].mxu0 %v1348
    %v1350 = vpop.f32.mrb[0].mxu0
    %v1351 = vadd.f32 %v1039, %v1350
    %v1352 = vpop.f32.mrb[0].mxu0
    %1353 = vmatprep.mubr.f32.mxu0 0.0
    %v1354 = vand.u32 %v110, 4294901760
    %v1355 = vsub.f32 %v110, %v1354
    %v1356 = vand.u32 %v1355, 4294901760
    %1357 = vmatmul.mubr.f32.gmra.mrb[0].mxu0 %v1356
    %v1358 = vpop.f32.mrb[0].mxu0
    %v1359 = vadd.f32 %v1046, %v1358
    %v1360 = vpop.f32.mrb[0].mxu0
    %1361 = vmatprep.mubr.f32.mxu0 0.0
    %v1362 = vand.u32 %v111, 4294901760
    %v1363 = vsub.f32 %v111, %v1362
    %v1364 = vand.u32 %v1363, 4294901760
    %1365 = vmatmul.mubr.f32.gmra.mrb[0].mxu0 %v1364
    %v1366 = vpop.f32.mrb[0].mxu0
    %v1367 = vadd.f32 %v1053, %v1366
    %v1368 = vpop.f32.mrb[0].mxu0
    %1369 = vmatprep.mubr.f32.mxu0 0.0
    %v1370 = vand.u32 %v112, 4294901760
    %v1371 = vsub.f32 %v112, %v1370
    %v1372 = vand.u32 %v1371, 4294901760
    %1373 = vmatmul.mubr.f32.gmra.mrb[0].mxu0 %v1372
    %v1374 = vpop.f32.mrb[0].mxu0
    %v1375 = vadd.f32 %v1060, %v1374
    %v1376 = vpop.f32.mrb[0].mxu0
    %1377 = vmatprep.mubr.f32.mxu0 0.0
    %v1378 = vand.u32 %v113, 4294901760
    %v1379 = vsub.f32 %v113, %v1378
    %v1380 = vand.u32 %v1379, 4294901760
    %1381 = vmatmul.mubr.f32.gmra.mrb[0].mxu0 %v1380
    %v1382 = vpop.f32.mrb[0].mxu0
    %v1383 = vadd.f32 %v1067, %v1382
    %v1384 = vpop.f32.mrb[0].mxu0
    %1385 = vmatprep.mubr.f32.mxu0 0.0
    %v1386 = vand.u32 %v114, 4294901760
    %v1387 = vsub.f32 %v114, %v1386
    %v1388 = vand.u32 %v1387, 4294901760
    %1389 = vmatmul.mubr.f32.gmra.mrb[0].mxu0 %v1388
    %v1390 = vpop.f32.mrb[0].mxu0
    %v1391 = vadd.f32 %v1074, %v1390
    %v1392 = vpop.f32.mrb[0].mxu0
    %1393 = vmatprep.mubr.f32.mxu0 0.0
    %v1394 = vand.u32 %v115, 4294901760
    %v1395 = vsub.f32 %v115, %v1394
    %v1396 = vand.u32 %v1395, 4294901760
    %1397 = vmatmul.mubr.f32.gmra.mrb[0].mxu0 %v1396
    %v1398 = vpop.f32.mrb[0].mxu0
    %v1399 = vadd.f32 %v1081, %v1398
    %v1400 = vpop.f32.mrb[0].mxu0
    %1401 = vmatprep.mubr.f32.mxu0 0.0
    %v1402 = vand.u32 %v116, 4294901760
    %v1403 = vsub.f32 %v116, %v1402
    %v1404 = vand.u32 %v1403, 4294901760
    %1405 = vmatmul.mubr.f32.gmra.mrb[0].mxu0 %v1404
    %v1406 = vpop.f32.mrb[0].mxu0
    %v1407 = vadd.f32 %v1088, %v1406
    %v1408 = vpop.f32.mrb[0].mxu0
    %1409 = vmatprep.mubr.f32.mxu0 0.0
    %v1410 = vand.u32 %v117, 4294901760
    %v1411 = vsub.f32 %v117, %v1410
    %v1412 = vand.u32 %v1411, 4294901760
    %1413 = vmatmul.mubr.f32.gmra.mrb[0].mxu0 %v1412
    %v1414 = vpop.f32.mrb[0].mxu0
    %v1415 = vadd.f32 %v1095, %v1414
    %v1416 = vpop.f32.mrb[0].mxu0
    %1417 = vmatprep.mubr.f32.mxu0 0.0
    %v1418 = vand.u32 %v118, 4294901760
    %v1419 = vsub.f32 %v118, %v1418
    %v1420 = vand.u32 %v1419, 4294901760
    %1421 = vmatmul.mubr.f32.gmra.mrb[0].mxu0 %v1420
    %v1422 = vpop.f32.mrb[0].mxu0
    %v1423 = vadd.f32 %v1102, %v1422
    %v1424 = vpop.f32.mrb[0].mxu0
    %1425 = vmatprep.mubr.f32.mxu0 0.0
    %v1426 = vand.u32 %v119, 4294901760
    %v1427 = vsub.f32 %v119, %v1426
    %v1428 = vand.u32 %v1427, 4294901760
    %1429 = vmatmul.mubr.f32.gmra.mrb[0].mxu0 %v1428
    %v1430 = vpop.f32.mrb[0].mxu0
    %v1431 = vadd.f32 %v1109, %v1430
    %v1432 = vpop.f32.mrb[0].mxu0
    %1433 = vmatprep.mubr.f32.mxu0 0.0
    %v1434 = vand.u32 %v120, 4294901760
    %v1435 = vsub.f32 %v120, %v1434
    %v1436 = vand.u32 %v1435, 4294901760
    %1437 = vmatmul.mubr.f32.gmra.mrb[0].mxu0 %v1436
    %v1438 = vpop.f32.mrb[0].mxu0
    %v1439 = vadd.f32 %v1116, %v1438
    %v1440 = vpop.f32.mrb[0].mxu0
    %1441 = vmatprep.mubr.f32.mxu0 0.0
    %v1442 = vand.u32 %v121, 4294901760
    %v1443 = vsub.f32 %v121, %v1442
    %v1444 = vand.u32 %v1443, 4294901760
    %1445 = vmatmul.mubr.f32.gmra.mrb[0].mxu0 %v1444
    %v1446 = vpop.f32.mrb[0].mxu0
    %v1447 = vadd.f32 %v1123, %v1446
    %v1448 = vpop.f32.mrb[0].mxu0
    %1449 = vmatprep.mubr.f32.mxu0 0.0
    %v1450 = vand.u32 %v122, 4294901760
    %v1451 = vsub.f32 %v122, %v1450
    %v1452 = vand.u32 %v1451, 4294901760
    %1453 = vmatmul.mubr.f32.gmra.mrb[0].mxu0 %v1452
    %v1454 = vpop.f32.mrb[0].mxu0
    %v1455 = vadd.f32 %v1130, %v1454
    %v1456 = vpop.f32.mrb[0].mxu0
    %1457 = vmatprep.mubr.f32.mxu0 0.0
    %v1458 = vand.u32 %v123, 4294901760
    %v1459 = vsub.f32 %v123, %v1458
    %v1460 = vand.u32 %v1459, 4294901760
    %1461 = vmatmul.mubr.f32.gmra.mrb[0].mxu0 %v1460
    %v1462 = vpop.f32.mrb[0].mxu0
    %v1463 = vadd.f32 %v1137, %v1462
    %v1464 = vpop.f32.mrb[0].mxu0
    %1465 = vmatprep.mubr.f32.mxu0 0.0
    %v1466 = vand.u32 %v124, 4294901760
    %v1467 = vsub.f32 %v124, %v1466
    %v1468 = vand.u32 %v1467, 4294901760
    %1469 = vmatmul.mubr.f32.gmra.mrb[0].mxu0 %v1468
    %v1470 = vpop.f32.mrb[0].mxu0
    %v1471 = vadd.f32 %v1144, %v1470
    %v1472 = vpop.f32.mrb[0].mxu0
    %1473 = vmatprep.mubr.f32.mxu0 0.0
    %v1474 = vand.u32 %v125, 4294901760
    %v1475 = vsub.f32 %v125, %v1474
    %v1476 = vand.u32 %v1475, 4294901760
    %1477 = vmatmul.mubr.f32.gmra.mrb[0].mxu0 %v1476
    %v1478 = vpop.f32.mrb[0].mxu0
    %v1479 = vadd.f32 %v1151, %v1478
    %v1480 = vpop.f32.mrb[0].mxu0
    %1481 = vmatprep.mubr.f32.mxu0 0.0
    %v1482 = vand.u32 %v126, 4294901760
    %v1483 = vsub.f32 %v126, %v1482
    %v1484 = vand.u32 %v1483, 4294901760
    %1485 = vmatmul.mubr.f32.gmra.mrb[0].mxu0 %v1484
    %v1486 = vpop.f32.mrb[0].mxu0
    %v1487 = vadd.f32 %v1158, %v1486
    %v1488 = vpop.f32.mrb[0].mxu0
    %1489 = vmatprep.mubr.f32.mxu0 0.0
    %v1490 = vand.u32 %v127, 4294901760
    %v1491 = vsub.f32 %v127, %v1490
    %v1492 = vand.u32 %v1491, 4294901760
    %1493 = vmatmul.mubr.f32.gmra.mrb[0].mxu0 %v1492
    %v1494 = vpop.f32.mrb[0].mxu0
    %v1495 = vadd.f32 %v1165, %v1494
    %v1496 = vpop.f32.mrb[0].mxu0
    %1497 = vmatprep.mubr.f32.mxu0 0.0
    %v1498 = vand.u32 %v128, 4294901760
    %v1499 = vsub.f32 %v128, %v1498
    %v1500 = vand.u32 %v1499, 4294901760
    %1501 = vmatmul.mubr.f32.gmra.mrb[0].mxu0 %v1500
    %v1502 = vpop.f32.mrb[0].mxu0
    %v1503 = vadd.f32 %v1172, %v1502
    %v1504 = vpop.f32.mrb[0].mxu0
    %1505 = vmatprep.mubr.f32.mxu0 0.0
    %v1506 = vand.u32 %v129, 4294901760
    %v1507 = vsub.f32 %v129, %v1506
    %v1508 = vand.u32 %v1507, 4294901760
    %1509 = vmatmul.mubr.f32.gmra.mrb[0].mxu0 %v1508
    %v1510 = vpop.f32.mrb[0].mxu0
    %v1511 = vadd.f32 %v1179, %v1510
    %v1512 = vpop.f32.mrb[0].mxu0
    %1513 = vmatprep.mubr.f32.mxu0 0.0
    %v1514 = vand.u32 %v130, 4294901760
    %v1515 = vsub.f32 %v130, %v1514
    %v1516 = vand.u32 %v1515, 4294901760
    %1517 = vmatmul.mubr.f32.gmra.mrb[0].mxu0 %v1516
    %v1518 = vpop.f32.mrb[0].mxu0
    %v1519 = vadd.f32 %v1186, %v1518
    %v1520 = vpop.f32.mrb[0].mxu0
    %1521 = vmatprep.mubr.f32.mxu0 0.0
    %v1522 = vand.u32 %v131, 4294901760
    %v1523 = vsub.f32 %v131, %v1522
    %v1524 = vand.u32 %v1523, 4294901760
    %1525 = vmatmul.mubr.f32.gmra.mrb[0].mxu0 %v1524
    %v1526 = vpop.f32.mrb[0].mxu0
    %v1527 = vadd.f32 %v1193, %v1526
    %v1528 = vpop.f32.mrb[0].mxu0
    %1529 = vmatprep.mubr.f32.mxu0 0.0
    %v1530 = vand.u32 %v132, 4294901760
    %v1531 = vsub.f32 %v132, %v1530
    %v1532 = vand.u32 %v1531, 4294901760
    %1533 = vmatmul.mubr.f32.gmra.mrb[0].mxu0 %v1532
    %v1534 = vpop.f32.mrb[0].mxu0
    %v1535 = vadd.f32 %v1200, %v1534
    %v1536 = vpop.f32.mrb[0].mxu0
    %1537 = vmatprep.mubr.f32.mxu0 0.0
    %v1538 = vand.u32 %v133, 4294901760
    %v1539 = vsub.f32 %v133, %v1538
    %v1540 = vand.u32 %v1539, 4294901760
    %1541 = vmatmul.mubr.f32.gmra.mrb[0].mxu0 %v1540
    %v1542 = vpop.f32.mrb[0].mxu0
    %v1543 = vadd.f32 %v1207, %v1542
    %v1544 = vpop.f32.mrb[0].mxu0
    %1545 = vmatprep.mubr.f32.mxu0 0.0
    %v1546 = vand.u32 %v134, 4294901760
    %v1547 = vsub.f32 %v134, %v1546
    %v1548 = vand.u32 %v1547, 4294901760
    %1549 = vmatmul.mubr.f32.gmra.mrb[0].mxu0 %v1548
    %v1550 = vpop.f32.mrb[0].mxu0
    %v1551 = vadd.f32 %v1214, %v1550
    %v1552 = vpop.f32.mrb[0].mxu0
    %1553 = vdwg.mxu0
    %1554 = vmatprep.subr.mxu0 0.0
    %v1555 = vand.u32 %v135, 4294901760
    %v1556 = vsub.f32 %v135, %v1555
    %v1557 = vand.u32 %v1556, 4294901760
    %1558 = vmatpush1.msra.mxu0 %v1557
    %1559 = vmatprep.subr.mxu0 0.0
    %v1560 = vand.u32 %v136, 4294901760
    %v1561 = vsub.f32 %v136, %v1560
    %v1562 = vand.u32 %v1561, 4294901760
    %1563 = vmatpush1.msra.mxu0 %v1562
    %1564 = vmatprep.subr.mxu0 0.0
    %v1565 = vand.u32 %v137, 4294901760
    %v1566 = vsub.f32 %v137, %v1565
    %v1567 = vand.u32 %v1566, 4294901760
    %1568 = vmatpush1.msra.mxu0 %v1567
    %1569 = vmatprep.subr.mxu0 0.0
    %v1570 = vand.u32 %v138, 4294901760
    %v1571 = vsub.f32 %v138, %v1570
    %v1572 = vand.u32 %v1571, 4294901760
    %1573 = vmatpush1.msra.mxu0 %v1572
    %1574 = vmatprep.subr.mxu0 0.0
    %v1575 = vand.u32 %v139, 4294901760
    %v1576 = vsub.f32 %v139, %v1575
    %v1577 = vand.u32 %v1576, 4294901760
    %1578 = vmatpush1.msra.mxu0 %v1577
    %1579 = vmatprep.subr.mxu0 0.0
    %v1580 = vand.u32 %v140, 4294901760
    %v1581 = vsub.f32 %v140, %v1580
    %v1582 = vand.u32 %v1581, 4294901760
    %1583 = vmatpush1.msra.mxu0 %v1582
    %1584 = vmatprep.subr.mxu0 0.0
    %v1585 = vand.u32 %v141, 4294901760
    %v1586 = vsub.f32 %v141, %v1585
    %v1587 = vand.u32 %v1586, 4294901760
    %1588 = vmatpush1.msra.mxu0 %v1587
    %1589 = vmatprep.subr.mxu0 0.0
    %v1590 = vand.u32 %v142, 4294901760
    %v1591 = vsub.f32 %v142, %v1590
    %v1592 = vand.u32 %v1591, 4294901760
    %1593 = vmatpush1.msra.mxu0 %v1592
    %1594 = vmatprep.subr.mxu0 0.0
    %v1595 = vand.u32 %v143, 4294901760
    %v1596 = vsub.f32 %v143, %v1595
    %v1597 = vand.u32 %v1596, 4294901760
    %1598 = vmatpush1.msra.mxu0 %v1597
    %1599 = vmatprep.subr.mxu0 0.0
    %v1600 = vand.u32 %v144, 4294901760
    %v1601 = vsub.f32 %v144, %v1600
    %v1602 = vand.u32 %v1601, 4294901760
    %1603 = vmatpush1.msra.mxu0 %v1602
    %1604 = vmatprep.subr.mxu0 0.0
    %v1605 = vand.u32 %v145, 4294901760
    %v1606 = vsub.f32 %v145, %v1605
    %v1607 = vand.u32 %v1606, 4294901760
    %1608 = vmatpush1.msra.mxu0 %v1607
    %1609 = vmatprep.subr.mxu0 0.0
    %v1610 = vand.u32 %v146, 4294901760
    %v1611 = vsub.f32 %v146, %v1610
    %v1612 = vand.u32 %v1611, 4294901760
    %1613 = vmatpush1.msra.mxu0 %v1612
    %1614 = vmatprep.subr.mxu0 0.0
    %v1615 = vand.u32 %v147, 4294901760
    %v1616 = vsub.f32 %v147, %v1615
    %v1617 = vand.u32 %v1616, 4294901760
    %1618 = vmatpush1.msra.mxu0 %v1617
    %1619 = vmatprep.subr.mxu0 0.0
    %v1620 = vand.u32 %v148, 4294901760
    %v1621 = vsub.f32 %v148, %v1620
    %v1622 = vand.u32 %v1621, 4294901760
    %1623 = vmatpush1.msra.mxu0 %v1622
    %1624 = vmatprep.subr.mxu0 0.0
    %v1625 = vand.u32 %v149, 4294901760
    %v1626 = vsub.f32 %v149, %v1625
    %v1627 = vand.u32 %v1626, 4294901760
    %1628 = vmatpush1.msra.mxu0 %v1627
    %1629 = vmatprep.subr.mxu0 0.0
    %v1630 = vand.u32 %v150, 4294901760
    %v1631 = vsub.f32 %v150, %v1630
    %v1632 = vand.u32 %v1631, 4294901760
    %1633 = vmatpush1.msra.mxu0 %v1632
    %1634 = vmatprep.subr.mxu0 0.0
    %1635 = vmatpush1.msra.mxu0 0.0
    %1636 = vmatprep.subr.mxu0 0.0
    %1637 = vmatpush1.msra.mxu0 0.0
    %1638 = vmatprep.subr.mxu0 0.0
    %1639 = vmatpush1.msra.mxu0 0.0
    %1640 = vmatprep.subr.mxu0 0.0
    %1641 = vmatpush1.msra.mxu0 0.0
    %1642 = vmatprep.subr.mxu0 0.0
    %1643 = vmatpush1.msra.mxu0 0.0
    %1644 = vmatprep.subr.mxu0 0.0
    %1645 = vmatpush1.msra.mxu0 0.0
    %1646 = vmatprep.subr.mxu0 0.0
    %1647 = vmatpush1.msra.mxu0 0.0
    %1648 = vmatprep.subr.mxu0 0.0
    %1649 = vmatpush1.msra.mxu0 0.0
    %1650 = vmatprep.subr.mxu0 0.0
    %1651 = vmatpush1.msra.mxu0 0.0
    %1652 = vmatprep.subr.mxu0 0.0
    %1653 = vmatpush1.msra.mxu0 0.0
    %1654 = vmatprep.subr.mxu0 0.0
    %1655 = vmatpush1.msra.mxu0 0.0
    %1656 = vmatprep.subr.mxu0 0.0
    %1657 = vmatpush1.msra.mxu0 0.0
    %1658 = vmatprep.subr.mxu0 0.0
    %1659 = vmatpush1.msra.mxu0 0.0
    %1660 = vmatprep.subr.mxu0 0.0
    %1661 = vmatpush1.msra.mxu0 0.0
    %1662 = vmatprep.subr.mxu0 0.0
    %1663 = vmatpush1.msra.mxu0 0.0
    %1664 = vmatprep.subr.mxu0 0.0
    %1665 = vmatpush1.msra.mxu0 0.0
    %1666 = vmatprep.mubr.f32.mxu0 0.0
    %v1667 = vand.u32 %v103, 4294901760
    %1668 = vmatmul.mubr.f32.gmra.mrb[0].mxu0 %v1667
    %v1669 = vpop.f32.mrb[0].mxu0
    %v1670 = vadd.f32 %v1303, %v1669
    %v1671 = vpop.f32.mrb[0].mxu0
    %1672 = vmatprep.mubr.f32.mxu0 0.0
    %v1673 = vand.u32 %v104, 4294901760
    %1674 = vmatmul.mubr.f32.gmra.mrb[0].mxu0 %v1673
    %v1675 = vpop.f32.mrb[0].mxu0
    %v1676 = vadd.f32 %v1311, %v1675
    %v1677 = vpop.f32.mrb[0].mxu0
    %1678 = vmatprep.mubr.f32.mxu0 0.0
    %v1679 = vand.u32 %v105, 4294901760
    %1680 = vmatmul.mubr.f32.gmra.mrb[0].mxu0 %v1679
    %v1681 = vpop.f32.mrb[0].mxu0
    %v1682 = vadd.f32 %v1319, %v1681
    %v1683 = vpop.f32.mrb[0].mxu0
    %1684 = vmatprep.mubr.f32.mxu0 0.0
    %v1685 = vand.u32 %v106, 4294901760
    %1686 = vmatmul.mubr.f32.gmra.mrb[0].mxu0 %v1685
    %v1687 = vpop.f32.mrb[0].mxu0
    %v1688 = vadd.f32 %v1327, %v1687
    %v1689 = vpop.f32.mrb[0].mxu0
    %1690 = vmatprep.mubr.f32.mxu0 0.0
    %v1691 = vand.u32 %v107, 4294901760
    %1692 = vmatmul.mubr.f32.gmra.mrb[0].mxu0 %v1691
    %v1693 = vpop.f32.mrb[0].mxu0
    %v1694 = vadd.f32 %v1335, %v1693
    %v1695 = vpop.f32.mrb[0].mxu0
    %1696 = vmatprep.mubr.f32.mxu0 0.0
    %v1697 = vand.u32 %v108, 4294901760
    %1698 = vmatmul.mubr.f32.gmra.mrb[0].mxu0 %v1697
    %v1699 = vpop.f32.mrb[0].mxu0
    %v1700 = vadd.f32 %v1343, %v1699
    %v1701 = vpop.f32.mrb[0].mxu0
    %1702 = vmatprep.mubr.f32.mxu0 0.0
    %v1703 = vand.u32 %v109, 4294901760
    %1704 = vmatmul.mubr.f32.gmra.mrb[0].mxu0 %v1703
    %v1705 = vpop.f32.mrb[0].mxu0
    %v1706 = vadd.f32 %v1351, %v1705
    %v1707 = vpop.f32.mrb[0].mxu0
    %1708 = vmatprep.mubr.f32.mxu0 0.0
    %v1709 = vand.u32 %v110, 4294901760
    %1710 = vmatmul.mubr.f32.gmra.mrb[0].mxu0 %v1709
    %v1711 = vpop.f32.mrb[0].mxu0
    %v1712 = vadd.f32 %v1359, %v1711
    %v1713 = vpop.f32.mrb[0].mxu0
    %1714 = vmatprep.mubr.f32.mxu0 0.0
    %v1715 = vand.u32 %v111, 4294901760
    %1716 = vmatmul.mubr.f32.gmra.mrb[0].mxu0 %v1715
    %v1717 = vpop.f32.mrb[0].mxu0
    %v1718 = vadd.f32 %v1367, %v1717
    %v1719 = vpop.f32.mrb[0].mxu0
    %1720 = vmatprep.mubr.f32.mxu0 0.0
    %v1721 = vand.u32 %v112, 4294901760
    %1722 = vmatmul.mubr.f32.gmra.mrb[0].mxu0 %v1721
    %v1723 = vpop.f32.mrb[0].mxu0
    %v1724 = vadd.f32 %v1375, %v1723
    %v1725 = vpop.f32.mrb[0].mxu0
    %1726 = vmatprep.mubr.f32.mxu0 0.0
    %v1727 = vand.u32 %v113, 4294901760
    %1728 = vmatmul.mubr.f32.gmra.mrb[0].mxu0 %v1727
    %v1729 = vpop.f32.mrb[0].mxu0
    %v1730 = vadd.f32 %v1383, %v1729
    %v1731 = vpop.f32.mrb[0].mxu0
    %1732 = vmatprep.mubr.f32.mxu0 0.0
    %v1733 = vand.u32 %v114, 4294901760
    %1734 = vmatmul.mubr.f32.gmra.mrb[0].mxu0 %v1733
    %v1735 = vpop.f32.mrb[0].mxu0
    %v1736 = vadd.f32 %v1391, %v1735
    %v1737 = vpop.f32.mrb[0].mxu0
    %1738 = vmatprep.mubr.f32.mxu0 0.0
    %v1739 = vand.u32 %v115, 4294901760
    %1740 = vmatmul.mubr.f32.gmra.mrb[0].mxu0 %v1739
    %v1741 = vpop.f32.mrb[0].mxu0
    %v1742 = vadd.f32 %v1399, %v1741
    %v1743 = vpop.f32.mrb[0].mxu0
    %1744 = vmatprep.mubr.f32.mxu0 0.0
    %v1745 = vand.u32 %v116, 4294901760
    %1746 = vmatmul.mubr.f32.gmra.mrb[0].mxu0 %v1745
    %v1747 = vpop.f32.mrb[0].mxu0
    %v1748 = vadd.f32 %v1407, %v1747
    %v1749 = vpop.f32.mrb[0].mxu0
    %1750 = vmatprep.mubr.f32.mxu0 0.0
    %v1751 = vand.u32 %v117, 4294901760
    %1752 = vmatmul.mubr.f32.gmra.mrb[0].mxu0 %v1751
    %v1753 = vpop.f32.mrb[0].mxu0
    %v1754 = vadd.f32 %v1415, %v1753
    %v1755 = vpop.f32.mrb[0].mxu0
    %1756 = vmatprep.mubr.f32.mxu0 0.0
    %v1757 = vand.u32 %v118, 4294901760
    %1758 = vmatmul.mubr.f32.gmra.mrb[0].mxu0 %v1757
    %v1759 = vpop.f32.mrb[0].mxu0
    %v1760 = vadd.f32 %v1423, %v1759
    %v1761 = vpop.f32.mrb[0].mxu0
    %1762 = vmatprep.mubr.f32.mxu0 0.0
    %v1763 = vand.u32 %v119, 4294901760
    %1764 = vmatmul.mubr.f32.gmra.mrb[0].mxu0 %v1763
    %v1765 = vpop.f32.mrb[0].mxu0
    %v1766 = vadd.f32 %v1431, %v1765
    %v1767 = vpop.f32.mrb[0].mxu0
    %1768 = vmatprep.mubr.f32.mxu0 0.0
    %v1769 = vand.u32 %v120, 4294901760
    %1770 = vmatmul.mubr.f32.gmra.mrb[0].mxu0 %v1769
    %v1771 = vpop.f32.mrb[0].mxu0
    %v1772 = vadd.f32 %v1439, %v1771
    %v1773 = vpop.f32.mrb[0].mxu0
    %1774 = vmatprep.mubr.f32.mxu0 0.0
    %v1775 = vand.u32 %v121, 4294901760
    %1776 = vmatmul.mubr.f32.gmra.mrb[0].mxu0 %v1775
    %v1777 = vpop.f32.mrb[0].mxu0
    %v1778 = vadd.f32 %v1447, %v1777
    %v1779 = vpop.f32.mrb[0].mxu0
    %1780 = vmatprep.mubr.f32.mxu0 0.0
    %v1781 = vand.u32 %v122, 4294901760
    %1782 = vmatmul.mubr.f32.gmra.mrb[0].mxu0 %v1781
    %v1783 = vpop.f32.mrb[0].mxu0
    %v1784 = vadd.f32 %v1455, %v1783
    %v1785 = vpop.f32.mrb[0].mxu0
    %1786 = vmatprep.mubr.f32.mxu0 0.0
    %v1787 = vand.u32 %v123, 4294901760
    %1788 = vmatmul.mubr.f32.gmra.mrb[0].mxu0 %v1787
    %v1789 = vpop.f32.mrb[0].mxu0
    %v1790 = vadd.f32 %v1463, %v1789
    %v1791 = vpop.f32.mrb[0].mxu0
    %1792 = vmatprep.mubr.f32.mxu0 0.0
    %v1793 = vand.u32 %v124, 4294901760
    %1794 = vmatmul.mubr.f32.gmra.mrb[0].mxu0 %v1793
    %v1795 = vpop.f32.mrb[0].mxu0
    %v1796 = vadd.f32 %v1471, %v1795
    %v1797 = vpop.f32.mrb[0].mxu0
    %1798 = vmatprep.mubr.f32.mxu0 0.0
    %v1799 = vand.u32 %v125, 4294901760
    %1800 = vmatmul.mubr.f32.gmra.mrb[0].mxu0 %v1799
    %v1801 = vpop.f32.mrb[0].mxu0
    %v1802 = vadd.f32 %v1479, %v1801
    %v1803 = vpop.f32.mrb[0].mxu0
    %1804 = vmatprep.mubr.f32.mxu0 0.0
    %v1805 = vand.u32 %v126, 4294901760
    %1806 = vmatmul.mubr.f32.gmra.mrb[0].mxu0 %v1805
    %v1807 = vpop.f32.mrb[0].mxu0
    %v1808 = vadd.f32 %v1487, %v1807
    %v1809 = vpop.f32.mrb[0].mxu0
    %1810 = vmatprep.mubr.f32.mxu0 0.0
    %v1811 = vand.u32 %v127, 4294901760
    %1812 = vmatmul.mubr.f32.gmra.mrb[0].mxu0 %v1811
    %v1813 = vpop.f32.mrb[0].mxu0
    %v1814 = vadd.f32 %v1495, %v1813
    %v1815 = vpop.f32.mrb[0].mxu0
    %1816 = vmatprep.mubr.f32.mxu0 0.0
    %v1817 = vand.u32 %v128, 4294901760
    %1818 = vmatmul.mubr.f32.gmra.mrb[0].mxu0 %v1817
    %v1819 = vpop.f32.mrb[0].mxu0
    %v1820 = vadd.f32 %v1503, %v1819
    %v1821 = vpop.f32.mrb[0].mxu0
    %1822 = vmatprep.mubr.f32.mxu0 0.0
    %v1823 = vand.u32 %v129, 4294901760
    %1824 = vmatmul.mubr.f32.gmra.mrb[0].mxu0 %v1823
    %v1825 = vpop.f32.mrb[0].mxu0
    %v1826 = vadd.f32 %v1511, %v1825
    %v1827 = vpop.f32.mrb[0].mxu0
    %1828 = vmatprep.mubr.f32.mxu0 0.0
    %v1829 = vand.u32 %v130, 4294901760
    %1830 = vmatmul.mubr.f32.gmra.mrb[0].mxu0 %v1829
    %v1831 = vpop.f32.mrb[0].mxu0
    %v1832 = vadd.f32 %v1519, %v1831
    %v1833 = vpop.f32.mrb[0].mxu0
    %1834 = vmatprep.mubr.f32.mxu0 0.0
    %v1835 = vand.u32 %v131, 4294901760
    %1836 = vmatmul.mubr.f32.gmra.mrb[0].mxu0 %v1835
    %v1837 = vpop.f32.mrb[0].mxu0
    %v1838 = vadd.f32 %v1527, %v1837
    %v1839 = vpop.f32.mrb[0].mxu0
    %1840 = vmatprep.mubr.f32.mxu0 0.0
    %v1841 = vand.u32 %v132, 4294901760
    %1842 = vmatmul.mubr.f32.gmra.mrb[0].mxu0 %v1841
    %v1843 = vpop.f32.mrb[0].mxu0
    %v1844 = vadd.f32 %v1535, %v1843
    %v1845 = vpop.f32.mrb[0].mxu0
    %1846 = vmatprep.mubr.f32.mxu0 0.0
    %v1847 = vand.u32 %v133, 4294901760
    %1848 = vmatmul.mubr.f32.gmra.mrb[0].mxu0 %v1847
    %v1849 = vpop.f32.mrb[0].mxu0
    %v1850 = vadd.f32 %v1543, %v1849
    %v1851 = vpop.f32.mrb[0].mxu0
    %1852 = vmatprep.mubr.f32.mxu0 0.0
    %v1853 = vand.u32 %v134, 4294901760
    %1854 = vmatmul.mubr.f32.gmra.mrb[0].mxu0 %v1853
    %v1855 = vpop.f32.mrb[0].mxu0
    %v1856 = vadd.f32 %v1551, %v1855
    %v1857 = vpop.f32.mrb[0].mxu0
    %1858 = vdwg.mxu0
    %1859 = vmatprep.subr.mxu0 0.0
    %v1860 = vand.u32 %v135, 4294901760
    %1861 = vmatpush1.msra.mxu0 %v1860
    %1862 = vmatprep.subr.mxu0 0.0
    %v1863 = vand.u32 %v136, 4294901760
    %1864 = vmatpush1.msra.mxu0 %v1863
    %1865 = vmatprep.subr.mxu0 0.0
    %v1866 = vand.u32 %v137, 4294901760
    %1867 = vmatpush1.msra.mxu0 %v1866
    %1868 = vmatprep.subr.mxu0 0.0
    %v1869 = vand.u32 %v138, 4294901760
    %1870 = vmatpush1.msra.mxu0 %v1869
    %1871 = vmatprep.subr.mxu0 0.0
    %v1872 = vand.u32 %v139, 4294901760
    %1873 = vmatpush1.msra.mxu0 %v1872
    %1874 = vmatprep.subr.mxu0 0.0
    %v1875 = vand.u32 %v140, 4294901760
    %1876 = vmatpush1.msra.mxu0 %v1875
    %1877 = vmatprep.subr.mxu0 0.0
    %v1878 = vand.u32 %v141, 4294901760
    %1879 = vmatpush1.msra.mxu0 %v1878
    %1880 = vmatprep.subr.mxu0 0.0
    %v1881 = vand.u32 %v142, 4294901760
    %1882 = vmatpush1.msra.mxu0 %v1881
    %1883 = vmatprep.subr.mxu0 0.0
    %v1884 = vand.u32 %v143, 4294901760
    %1885 = vmatpush1.msra.mxu0 %v1884
    %1886 = vmatprep.subr.mxu0 0.0
    %v1887 = vand.u32 %v144, 4294901760
    %1888 = vmatpush1.msra.mxu0 %v1887
    %1889 = vmatprep.subr.mxu0 0.0
    %v1890 = vand.u32 %v145, 4294901760
    %1891 = vmatpush1.msra.mxu0 %v1890
    %1892 = vmatprep.subr.mxu0 0.0
    %v1893 = vand.u32 %v146, 4294901760
    %1894 = vmatpush1.msra.mxu0 %v1893
    %1895 = vmatprep.subr.mxu0 0.0
    %v1896 = vand.u32 %v147, 4294901760
    %1897 = vmatpush1.msra.mxu0 %v1896
    %1898 = vmatprep.subr.mxu0 0.0
    %v1899 = vand.u32 %v148, 4294901760
    %1900 = vmatpush1.msra.mxu0 %v1899
    %1901 = vmatprep.subr.mxu0 0.0
    %v1902 = vand.u32 %v149, 4294901760
    %1903 = vmatpush1.msra.mxu0 %v1902
    %1904 = vmatprep.subr.mxu0 0.0
    %v1905 = vand.u32 %v150, 4294901760
    %1906 = vmatpush1.msra.mxu0 %v1905
    %1907 = vmatprep.subr.mxu0 0.0
    %1908 = vmatpush1.msra.mxu0 0.0
    %1909 = vmatprep.subr.mxu0 0.0
    %1910 = vmatpush1.msra.mxu0 0.0
    %1911 = vmatprep.subr.mxu0 0.0
    %1912 = vmatpush1.msra.mxu0 0.0
    %1913 = vmatprep.subr.mxu0 0.0
    %1914 = vmatpush1.msra.mxu0 0.0
    %1915 = vmatprep.subr.mxu0 0.0
    %1916 = vmatpush1.msra.mxu0 0.0
    %1917 = vmatprep.subr.mxu0 0.0
    %1918 = vmatpush1.msra.mxu0 0.0
    %1919 = vmatprep.subr.mxu0 0.0
    %1920 = vmatpush1.msra.mxu0 0.0
    %1921 = vmatprep.subr.mxu0 0.0
    %1922 = vmatpush1.msra.mxu0 0.0
    %1923 = vmatprep.subr.mxu0 0.0
    %1924 = vmatpush1.msra.mxu0 0.0
    %1925 = vmatprep.subr.mxu0 0.0
    %1926 = vmatpush1.msra.mxu0 0.0
    %1927 = vmatprep.subr.mxu0 0.0
    %1928 = vmatpush1.msra.mxu0 0.0
    %1929 = vmatprep.subr.mxu0 0.0
    %1930 = vmatpush1.msra.mxu0 0.0
    %1931 = vmatprep.subr.mxu0 0.0
    %1932 = vmatpush1.msra.mxu0 0.0
    %1933 = vmatprep.subr.mxu0 0.0
    %1934 = vmatpush1.msra.mxu0 0.0
    %1935 = vmatprep.subr.mxu0 0.0
    %1936 = vmatpush1.msra.mxu0 0.0
    %1937 = vmatprep.subr.mxu0 0.0
    %1938 = vmatpush1.msra.mxu0 0.0
    %1939 = vmatprep.mubr.f32.mxu0 0.0
    %v1940 = vand.u32 %v103, 4294901760
    %1941 = vmatmul.mubr.f32.gmra.mrb[0].mxu0 %v1940
    %v1942 = vpop.f32.mrb[0].mxu0
    %v1943 = vadd.f32 %v1670, %v1942
    %v1944 = vpop.f32.mrb[0].mxu0
    %1945 = vmatprep.mubr.f32.mxu0 0.0
    %v1946 = vand.u32 %v104, 4294901760
    %1947 = vmatmul.mubr.f32.gmra.mrb[0].mxu0 %v1946
    %v1948 = vpop.f32.mrb[0].mxu0
    %v1949 = vadd.f32 %v1676, %v1948
    %v1950 = vpop.f32.mrb[0].mxu0
    %1951 = vmatprep.mubr.f32.mxu0 0.0
    %v1952 = vand.u32 %v105, 4294901760
    %1953 = vmatmul.mubr.f32.gmra.mrb[0].mxu0 %v1952
    %v1954 = vpop.f32.mrb[0].mxu0
    %v1955 = vadd.f32 %v1682, %v1954
    %v1956 = vpop.f32.mrb[0].mxu0
    %1957 = vmatprep.mubr.f32.mxu0 0.0
    %v1958 = vand.u32 %v106, 4294901760
    %1959 = vmatmul.mubr.f32.gmra.mrb[0].mxu0 %v1958
    %v1960 = vpop.f32.mrb[0].mxu0
    %v1961 = vadd.f32 %v1688, %v1960
    %v1962 = vpop.f32.mrb[0].mxu0
    %1963 = vmatprep.mubr.f32.mxu0 0.0
    %v1964 = vand.u32 %v107, 4294901760
    %1965 = vmatmul.mubr.f32.gmra.mrb[0].mxu0 %v1964
    %v1966 = vpop.f32.mrb[0].mxu0
    %v1967 = vadd.f32 %v1694, %v1966
    %v1968 = vpop.f32.mrb[0].mxu0
    %1969 = vmatprep.mubr.f32.mxu0 0.0
    %v1970 = vand.u32 %v108, 4294901760
    %1971 = vmatmul.mubr.f32.gmra.mrb[0].mxu0 %v1970
    %v1972 = vpop.f32.mrb[0].mxu0
    %v1973 = vadd.f32 %v1700, %v1972
    %v1974 = vpop.f32.mrb[0].mxu0
    %1975 = vmatprep.mubr.f32.mxu0 0.0
    %v1976 = vand.u32 %v109, 4294901760
    %1977 = vmatmul.mubr.f32.gmra.mrb[0].mxu0 %v1976
    %v1978 = vpop.f32.mrb[0].mxu0
    %v1979 = vadd.f32 %v1706, %v1978
    %v1980 = vpop.f32.mrb[0].mxu0
    %1981 = vmatprep.mubr.f32.mxu0 0.0
    %v1982 = vand.u32 %v110, 4294901760
    %1983 = vmatmul.mubr.f32.gmra.mrb[0].mxu0 %v1982
    %v1984 = vpop.f32.mrb[0].mxu0
    %v1985 = vadd.f32 %v1712, %v1984
    %v1986 = vpop.f32.mrb[0].mxu0
    %1987 = vmatprep.mubr.f32.mxu0 0.0
    %v1988 = vand.u32 %v111, 4294901760
    %1989 = vmatmul.mubr.f32.gmra.mrb[0].mxu0 %v1988
    %v1990 = vpop.f32.mrb[0].mxu0
    %v1991 = vadd.f32 %v1718, %v1990
    %v1992 = vpop.f32.mrb[0].mxu0
    %1993 = vmatprep.mubr.f32.mxu0 0.0
    %v1994 = vand.u32 %v112, 4294901760
    %1995 = vmatmul.mubr.f32.gmra.mrb[0].mxu0 %v1994
    %v1996 = vpop.f32.mrb[0].mxu0
    %v1997 = vadd.f32 %v1724, %v1996
    %v1998 = vpop.f32.mrb[0].mxu0
    %1999 = vmatprep.mubr.f32.mxu0 0.0
    %v2000 = vand.u32 %v113, 4294901760
    %2001 = vmatmul.mubr.f32.gmra.mrb[0].mxu0 %v2000
    %v2002 = vpop.f32.mrb[0].mxu0
    %v2003 = vadd.f32 %v1730, %v2002
    %v2004 = vpop.f32.mrb[0].mxu0
    %2005 = vmatprep.mubr.f32.mxu0 0.0
    %v2006 = vand.u32 %v114, 4294901760
    %2007 = vmatmul.mubr.f32.gmra.mrb[0].mxu0 %v2006
    %v2008 = vpop.f32.mrb[0].mxu0
    %v2009 = vadd.f32 %v1736, %v2008
    %v2010 = vpop.f32.mrb[0].mxu0
    %2011 = vmatprep.mubr.f32.mxu0 0.0
    %v2012 = vand.u32 %v115, 4294901760
    %2013 = vmatmul.mubr.f32.gmra.mrb[0].mxu0 %v2012
    %v2014 = vpop.f32.mrb[0].mxu0
    %v2015 = vadd.f32 %v1742, %v2014
    %v2016 = vpop.f32.mrb[0].mxu0
    %2017 = vmatprep.mubr.f32.mxu0 0.0
    %v2018 = vand.u32 %v116, 4294901760
    %2019 = vmatmul.mubr.f32.gmra.mrb[0].mxu0 %v2018
    %v2020 = vpop.f32.mrb[0].mxu0
    %v2021 = vadd.f32 %v1748, %v2020
    %v2022 = vpop.f32.mrb[0].mxu0
    %2023 = vmatprep.mubr.f32.mxu0 0.0
    %v2024 = vand.u32 %v117, 4294901760
    %2025 = vmatmul.mubr.f32.gmra.mrb[0].mxu0 %v2024
    %v2026 = vpop.f32.mrb[0].mxu0
    %v2027 = vadd.f32 %v1754, %v2026
    %v2028 = vpop.f32.mrb[0].mxu0
    %2029 = vmatprep.mubr.f32.mxu0 0.0
    %v2030 = vand.u32 %v118, 4294901760
    %2031 = vmatmul.mubr.f32.gmra.mrb[0].mxu0 %v2030
    %v2032 = vpop.f32.mrb[0].mxu0
    %v2033 = vadd.f32 %v1760, %v2032
    %v2034 = vpop.f32.mrb[0].mxu0
    %2035 = vmatprep.mubr.f32.mxu0 0.0
    %v2036 = vand.u32 %v119, 4294901760
    %2037 = vmatmul.mubr.f32.gmra.mrb[0].mxu0 %v2036
    %v2038 = vpop.f32.mrb[0].mxu0
    %v2039 = vadd.f32 %v1766, %v2038
    %v2040 = vpop.f32.mrb[0].mxu0
    %2041 = vmatprep.mubr.f32.mxu0 0.0
    %v2042 = vand.u32 %v120, 4294901760
    %2043 = vmatmul.mubr.f32.gmra.mrb[0].mxu0 %v2042
    %v2044 = vpop.f32.mrb[0].mxu0
    %v2045 = vadd.f32 %v1772, %v2044
    %v2046 = vpop.f32.mrb[0].mxu0
    %2047 = vmatprep.mubr.f32.mxu0 0.0
    %v2048 = vand.u32 %v121, 4294901760
    %2049 = vmatmul.mubr.f32.gmra.mrb[0].mxu0 %v2048
    %v2050 = vpop.f32.mrb[0].mxu0
    %v2051 = vadd.f32 %v1778, %v2050
    %v2052 = vpop.f32.mrb[0].mxu0
    %2053 = vmatprep.mubr.f32.mxu0 0.0
    %v2054 = vand.u32 %v122, 4294901760
    %2055 = vmatmul.mubr.f32.gmra.mrb[0].mxu0 %v2054
    %v2056 = vpop.f32.mrb[0].mxu0
    %v2057 = vadd.f32 %v1784, %v2056
    %v2058 = vpop.f32.mrb[0].mxu0
    %2059 = vmatprep.mubr.f32.mxu0 0.0
    %v2060 = vand.u32 %v123, 4294901760
    %2061 = vmatmul.mubr.f32.gmra.mrb[0].mxu0 %v2060
    %v2062 = vpop.f32.mrb[0].mxu0
    %v2063 = vadd.f32 %v1790, %v2062
    %v2064 = vpop.f32.mrb[0].mxu0
    %2065 = vmatprep.mubr.f32.mxu0 0.0
    %v2066 = vand.u32 %v124, 4294901760
    %2067 = vmatmul.mubr.f32.gmra.mrb[0].mxu0 %v2066
    %v2068 = vpop.f32.mrb[0].mxu0
    %v2069 = vadd.f32 %v1796, %v2068
    %v2070 = vpop.f32.mrb[0].mxu0
    %2071 = vmatprep.mubr.f32.mxu0 0.0
    %v2072 = vand.u32 %v125, 4294901760
    %2073 = vmatmul.mubr.f32.gmra.mrb[0].mxu0 %v2072
    %v2074 = vpop.f32.mrb[0].mxu0
    %v2075 = vadd.f32 %v1802, %v2074
    %v2076 = vpop.f32.mrb[0].mxu0
    %2077 = vmatprep.mubr.f32.mxu0 0.0
    %v2078 = vand.u32 %v126, 4294901760
    %2079 = vmatmul.mubr.f32.gmra.mrb[0].mxu0 %v2078
    %v2080 = vpop.f32.mrb[0].mxu0
    %v2081 = vadd.f32 %v1808, %v2080
    %v2082 = vpop.f32.mrb[0].mxu0
    %2083 = vmatprep.mubr.f32.mxu0 0.0
    %v2084 = vand.u32 %v127, 4294901760
    %2085 = vmatmul.mubr.f32.gmra.mrb[0].mxu0 %v2084
    %v2086 = vpop.f32.mrb[0].mxu0
    %v2087 = vadd.f32 %v1814, %v2086
    %v2088 = vpop.f32.mrb[0].mxu0
    %2089 = vmatprep.mubr.f32.mxu0 0.0
    %v2090 = vand.u32 %v128, 4294901760
    %2091 = vmatmul.mubr.f32.gmra.mrb[0].mxu0 %v2090
    %v2092 = vpop.f32.mrb[0].mxu0
    %v2093 = vadd.f32 %v1820, %v2092
    %v2094 = vpop.f32.mrb[0].mxu0
    %2095 = vmatprep.mubr.f32.mxu0 0.0
    %v2096 = vand.u32 %v129, 4294901760
    %2097 = vmatmul.mubr.f32.gmra.mrb[0].mxu0 %v2096
    %v2098 = vpop.f32.mrb[0].mxu0
    %v2099 = vadd.f32 %v1826, %v2098
    %v2100 = vpop.f32.mrb[0].mxu0
    %2101 = vmatprep.mubr.f32.mxu0 0.0
    %v2102 = vand.u32 %v130, 4294901760
    %2103 = vmatmul.mubr.f32.gmra.mrb[0].mxu0 %v2102
    %v2104 = vpop.f32.mrb[0].mxu0
    %v2105 = vadd.f32 %v1832, %v2104
    %v2106 = vpop.f32.mrb[0].mxu0
    %2107 = vmatprep.mubr.f32.mxu0 0.0
    %v2108 = vand.u32 %v131, 4294901760
    %2109 = vmatmul.mubr.f32.gmra.mrb[0].mxu0 %v2108
    %v2110 = vpop.f32.mrb[0].mxu0
    %v2111 = vadd.f32 %v1838, %v2110
    %v2112 = vpop.f32.mrb[0].mxu0
    %2113 = vmatprep.mubr.f32.mxu0 0.0
    %v2114 = vand.u32 %v132, 4294901760
    %2115 = vmatmul.mubr.f32.gmra.mrb[0].mxu0 %v2114
    %v2116 = vpop.f32.mrb[0].mxu0
    %v2117 = vadd.f32 %v1844, %v2116
    %v2118 = vpop.f32.mrb[0].mxu0
    %2119 = vmatprep.mubr.f32.mxu0 0.0
    %v2120 = vand.u32 %v133, 4294901760
    %2121 = vmatmul.mubr.f32.gmra.mrb[0].mxu0 %v2120
    %v2122 = vpop.f32.mrb[0].mxu0
    %v2123 = vadd.f32 %v1850, %v2122
    %v2124 = vpop.f32.mrb[0].mxu0
    %2125 = vmatprep.mubr.f32.mxu0 0.0
    %v2126 = vand.u32 %v134, 4294901760
    %2127 = vmatmul.mubr.f32.gmra.mrb[0].mxu0 %v2126
    %v2128 = vpop.f32.mrb[0].mxu0
    %v2129 = vadd.f32 %v1856, %v2128
    %v2130 = vpop.f32.mrb[0].mxu0
    %2131 = vdwg.mxu0
    %v2132 = vmax.f32 %v1943, 0.0
    %v2133 = vmax.f32 %v1949, 0.0
    %v2134 = vmax.f32 %v1955, 0.0
    %v2135 = vmax.f32 %v1961, 0.0
    %v2136 = vmax.f32 %v1967, 0.0
    %v2137 = vmax.f32 %v1973, 0.0
    %v2138 = vmax.f32 %v1979, 0.0
    %v2139 = vmax.f32 %v1985, 0.0
    %v2140 = vmax.f32 %v1991, 0.0
    %v2141 = vmax.f32 %v1997, 0.0
    %v2142 = vmax.f32 %v2003, 0.0
    %v2143 = vmax.f32 %v2009, 0.0
    %v2144 = vmax.f32 %v2015, 0.0
    %v2145 = vmax.f32 %v2021, 0.0
    %v2146 = vmax.f32 %v2027, 0.0
    %v2147 = vmax.f32 %v2033, 0.0
    %v2148 = vmax.f32 %v2039, 0.0
    %v2149 = vmax.f32 %v2045, 0.0
    %v2150 = vmax.f32 %v2051, 0.0
    %v2151 = vmax.f32 %v2057, 0.0
    %v2152 = vmax.f32 %v2063, 0.0
    %v2153 = vmax.f32 %v2069, 0.0
    %v2154 = vmax.f32 %v2075, 0.0
    %v2155 = vmax.f32 %v2081, 0.0
    %v2156 = vmax.f32 %v2087, 0.0
    %v2157 = vmax.f32 %v2093, 0.0
    %v2158 = vmax.f32 %v2099, 0.0
    %v2159 = vmax.f32 %v2105, 0.0
    %v2160 = vmax.f32 %v2111, 0.0
    %v2161 = vmax.f32 %v2117, 0.0
    %v2162 = vmax.f32 %v2123, 0.0
    %v2163 = vmax.f32 %v2129, 0.0
    %v2164 = vld [vmem:[#allocation7] sm:$0xff]
    %v2165 = vld [vmem:[#allocation7 + $0x8] sm:$0xff]
    %v2166 = vld [vmem:[#allocation7 + $0x10] sm:$0xff]
    %v2167 = vld [vmem:[#allocation7 + $0x18] sm:$0xff]
    %v2168 = vld [vmem:[#allocation7 + $0x20] sm:$0xff]
    %v2169 = vld [vmem:[#allocation7 + $0x28] sm:$0xff]
    %v2170 = vld [vmem:[#allocation7 + $0x30] sm:$0xff]
    %v2171 = vld [vmem:[#allocation7 + $0x38] sm:$0xff]
    %v2172 = vld [vmem:[#allocation7 + $0x40] sm:$0xff]
    %v2173 = vld [vmem:[#allocation7 + $0x48] sm:$0xff]
    %v2174 = vld [vmem:[#allocation7 + $0x50] sm:$0xff]
    %v2175 = vld [vmem:[#allocation7 + $0x58] sm:$0xff]
    %v2176 = vld [vmem:[#allocation7 + $0x60] sm:$0xff]
    %v2177 = vld [vmem:[#allocation7 + $0x68] sm:$0xff]
    %v2178 = vld [vmem:[#allocation7 + $0x70] sm:$0xff]
    %v2179 = vld [vmem:[#allocation7 + $0x78] sm:$0xff]
    %v2180 = vld [vmem:[%s4] sm:$0x1]
    %v2182 = vlaneseq
    %v2183 = vshrl.u32 %v2182, 7
    %v2184 = vsub.s32 0, %v2183
    %v2185 = vrot.slane %v2180, %v2184
    %2187 = vmatprep.subr.mxu0 0.0
    %v2188 = vand.u32 %v2164, 4294901760
    %2189 = vmatpush1.msra.mxu0 %v2188
    %2190 = vmatprep.subr.mxu0 0.0
    %v2191 = vand.u32 %v2165, 4294901760
    %2192 = vmatpush1.msra.mxu0 %v2191
    %2193 = vmatprep.subr.mxu0 0.0
    %v2194 = vand.u32 %v2166, 4294901760
    %2195 = vmatpush1.msra.mxu0 %v2194
    %2196 = vmatprep.subr.mxu0 0.0
    %v2197 = vand.u32 %v2167, 4294901760
    %2198 = vmatpush1.msra.mxu0 %v2197
    %2199 = vmatprep.subr.mxu0 0.0
    %v2200 = vand.u32 %v2168, 4294901760
    %2201 = vmatpush1.msra.mxu0 %v2200
    %2202 = vmatprep.subr.mxu0 0.0
    %v2203 = vand.u32 %v2169, 4294901760
    %2204 = vmatpush1.msra.mxu0 %v2203
    %2205 = vmatprep.subr.mxu0 0.0
    %v2206 = vand.u32 %v2170, 4294901760
    %2207 = vmatpush1.msra.mxu0 %v2206
    %2208 = vmatprep.subr.mxu0 0.0
    %v2209 = vand.u32 %v2171, 4294901760
    %2210 = vmatpush1.msra.mxu0 %v2209
    %2211 = vmatprep.subr.mxu0 0.0
    %v2212 = vand.u32 %v2172, 4294901760
    %2213 = vmatpush1.msra.mxu0 %v2212
    %2214 = vmatprep.subr.mxu0 0.0
    %v2215 = vand.u32 %v2173, 4294901760
    %2216 = vmatpush1.msra.mxu0 %v2215
    %2217 = vmatprep.subr.mxu0 0.0
    %v2218 = vand.u32 %v2174, 4294901760
    %2219 = vmatpush1.msra.mxu0 %v2218
    %2220 = vmatprep.subr.mxu0 0.0
    %v2221 = vand.u32 %v2175, 4294901760
    %2222 = vmatpush1.msra.mxu0 %v2221
    %2223 = vmatprep.subr.mxu0 0.0
    %v2224 = vand.u32 %v2176, 4294901760
    %2225 = vmatpush1.msra.mxu0 %v2224
    %2226 = vmatprep.subr.mxu0 0.0
    %v2227 = vand.u32 %v2177, 4294901760
    %2228 = vmatpush1.msra.mxu0 %v2227
    %2229 = vmatprep.subr.mxu0 0.0
    %v2230 = vand.u32 %v2178, 4294901760
    %2231 = vmatpush1.msra.mxu0 %v2230
    %2232 = vmatprep.subr.mxu0 0.0
    %v2233 = vand.u32 %v2179, 4294901760
    %2234 = vmatpush1.msra.mxu0 %v2233
    %2235 = vmatprep.subr.mxu0 0.0
    %2236 = vmatpush1.msra.mxu0 0.0
    %2237 = vmatprep.subr.mxu0 0.0
    %2238 = vmatpush1.msra.mxu0 0.0
    %2239 = vmatprep.subr.mxu0 0.0
    %2240 = vmatpush1.msra.mxu0 0.0
    %2241 = vmatprep.subr.mxu0 0.0
    %2242 = vmatpush1.msra.mxu0 0.0
    %2243 = vmatprep.subr.mxu0 0.0
    %2244 = vmatpush1.msra.mxu0 0.0
    %2245 = vmatprep.subr.mxu0 0.0
    %2246 = vmatpush1.msra.mxu0 0.0
    %2247 = vmatprep.subr.mxu0 0.0
    %2248 = vmatpush1.msra.mxu0 0.0
    %2249 = vmatprep.subr.mxu0 0.0
    %2250 = vmatpush1.msra.mxu0 0.0
    %2251 = vmatprep.subr.mxu0 0.0
    %2252 = vmatpush1.msra.mxu0 0.0
    %2253 = vmatprep.subr.mxu0 0.0
    %2254 = vmatpush1.msra.mxu0 0.0
    %2255 = vmatprep.subr.mxu0 0.0
    %2256 = vmatpush1.msra.mxu0 0.0
    %2257 = vmatprep.subr.mxu0 0.0
    %2258 = vmatpush1.msra.mxu0 0.0
    %2259 = vmatprep.subr.mxu0 0.0
    %2260 = vmatpush1.msra.mxu0 0.0
    %2261 = vmatprep.subr.mxu0 0.0
    %2262 = vmatpush1.msra.mxu0 0.0
    %2263 = vmatprep.subr.mxu0 0.0
    %2264 = vmatpush1.msra.mxu0 0.0
    %2265 = vmatprep.subr.mxu0 0.0
    %2266 = vmatpush1.msra.mxu0 0.0
    %2267 = vmatprep.mubr.f32.mxu0 0.0
    %v2268 = vand.u32 %v2132, 4294901760
    %v2269 = vsub.f32 %v2132, %v2268
    %v2270 = vand.u32 %v2269, 4294901760
    %v2271 = vsub.f32 %v2269, %v2270
    %v2272 = vand.u32 %v2271, 4294901760
    %2273 = vmatmul.mubr.f32.gmra.mrb[0].mxu0 %v2272
    %v2274 = vpop.f32.mrb[0].mxu0
    %v2275 = vadd.f32 %v2185, %v2274
    %v2276 = vpop.f32.mrb[0].mxu0
    %2277 = vmatprep.mubr.f32.mxu0 0.0
    %v2278 = vand.u32 %v2133, 4294901760
    %v2279 = vsub.f32 %v2133, %v2278
    %v2280 = vand.u32 %v2279, 4294901760
    %v2281 = vsub.f32 %v2279, %v2280
    %v2282 = vand.u32 %v2281, 4294901760
    %2283 = vmatmul.mubr.f32.gmra.mrb[0].mxu0 %v2282
    %v2284 = vpop.f32.mrb[0].mxu0
    %v2285 = vadd.f32 %v2185, %v2284
    %v2286 = vpop.f32.mrb[0].mxu0
    %2287 = vmatprep.mubr.f32.mxu0 0.0
    %v2288 = vand.u32 %v2134, 4294901760
    %v2289 = vsub.f32 %v2134, %v2288
    %v2290 = vand.u32 %v2289, 4294901760
    %v2291 = vsub.f32 %v2289, %v2290
    %v2292 = vand.u32 %v2291, 4294901760
    %2293 = vmatmul.mubr.f32.gmra.mrb[0].mxu0 %v2292
    %v2294 = vpop.f32.mrb[0].mxu0
    %v2295 = vadd.f32 %v2185, %v2294
    %v2296 = vpop.f32.mrb[0].mxu0
    %2297 = vmatprep.mubr.f32.mxu0 0.0
    %v2298 = vand.u32 %v2135, 4294901760
    %v2299 = vsub.f32 %v2135, %v2298
    %v2300 = vand.u32 %v2299, 4294901760
    %v2301 = vsub.f32 %v2299, %v2300
    %v2302 = vand.u32 %v2301, 4294901760
    %2303 = vmatmul.mubr.f32.gmra.mrb[0].mxu0 %v2302
    %v2304 = vpop.f32.mrb[0].mxu0
    %v2305 = vadd.f32 %v2185, %v2304
    %v2306 = vpop.f32.mrb[0].mxu0
    %2307 = vmatprep.mubr.f32.mxu0 0.0
    %v2308 = vand.u32 %v2136, 4294901760
    %v2309 = vsub.f32 %v2136, %v2308
    %v2310 = vand.u32 %v2309, 4294901760
    %v2311 = vsub.f32 %v2309, %v2310
    %v2312 = vand.u32 %v2311, 4294901760
    %2313 = vmatmul.mubr.f32.gmra.mrb[0].mxu0 %v2312
    %v2314 = vpop.f32.mrb[0].mxu0
    %v2315 = vadd.f32 %v2185, %v2314
    %v2316 = vpop.f32.mrb[0].mxu0
    %2317 = vmatprep.mubr.f32.mxu0 0.0
    %v2318 = vand.u32 %v2137, 4294901760
    %v2319 = vsub.f32 %v2137, %v2318
    %v2320 = vand.u32 %v2319, 4294901760
    %v2321 = vsub.f32 %v2319, %v2320
    %v2322 = vand.u32 %v2321, 4294901760
    %2323 = vmatmul.mubr.f32.gmra.mrb[0].mxu0 %v2322
    %v2324 = vpop.f32.mrb[0].mxu0
    %v2325 = vadd.f32 %v2185, %v2324
    %v2326 = vpop.f32.mrb[0].mxu0
    %2327 = vmatprep.mubr.f32.mxu0 0.0
    %v2328 = vand.u32 %v2138, 4294901760
    %v2329 = vsub.f32 %v2138, %v2328
    %v2330 = vand.u32 %v2329, 4294901760
    %v2331 = vsub.f32 %v2329, %v2330
    %v2332 = vand.u32 %v2331, 4294901760
    %2333 = vmatmul.mubr.f32.gmra.mrb[0].mxu0 %v2332
    %v2334 = vpop.f32.mrb[0].mxu0
    %v2335 = vadd.f32 %v2185, %v2334
    %v2336 = vpop.f32.mrb[0].mxu0
    %2337 = vmatprep.mubr.f32.mxu0 0.0
    %v2338 = vand.u32 %v2139, 4294901760
    %v2339 = vsub.f32 %v2139, %v2338
    %v2340 = vand.u32 %v2339, 4294901760
    %v2341 = vsub.f32 %v2339, %v2340
    %v2342 = vand.u32 %v2341, 4294901760
    %2343 = vmatmul.mubr.f32.gmra.mrb[0].mxu0 %v2342
    %v2344 = vpop.f32.mrb[0].mxu0
    %v2345 = vadd.f32 %v2185, %v2344
    %v2346 = vpop.f32.mrb[0].mxu0
    %2347 = vmatprep.mubr.f32.mxu0 0.0
    %v2348 = vand.u32 %v2140, 4294901760
    %v2349 = vsub.f32 %v2140, %v2348
    %v2350 = vand.u32 %v2349, 4294901760
    %v2351 = vsub.f32 %v2349, %v2350
    %v2352 = vand.u32 %v2351, 4294901760
    %2353 = vmatmul.mubr.f32.gmra.mrb[0].mxu0 %v2352
    %v2354 = vpop.f32.mrb[0].mxu0
    %v2355 = vadd.f32 %v2185, %v2354
    %v2356 = vpop.f32.mrb[0].mxu0
    %2357 = vmatprep.mubr.f32.mxu0 0.0
    %v2358 = vand.u32 %v2141, 4294901760
    %v2359 = vsub.f32 %v2141, %v2358
    %v2360 = vand.u32 %v2359, 4294901760
    %v2361 = vsub.f32 %v2359, %v2360
    %v2362 = vand.u32 %v2361, 4294901760
    %2363 = vmatmul.mubr.f32.gmra.mrb[0].mxu0 %v2362
    %v2364 = vpop.f32.mrb[0].mxu0
    %v2365 = vadd.f32 %v2185, %v2364
    %v2366 = vpop.f32.mrb[0].mxu0
    %2367 = vmatprep.mubr.f32.mxu0 0.0
    %v2368 = vand.u32 %v2142, 4294901760
    %v2369 = vsub.f32 %v2142, %v2368
    %v2370 = vand.u32 %v2369, 4294901760
    %v2371 = vsub.f32 %v2369, %v2370
    %v2372 = vand.u32 %v2371, 4294901760
    %2373 = vmatmul.mubr.f32.gmra.mrb[0].mxu0 %v2372
    %v2374 = vpop.f32.mrb[0].mxu0
    %v2375 = vadd.f32 %v2185, %v2374
    %v2376 = vpop.f32.mrb[0].mxu0
    %2377 = vmatprep.mubr.f32.mxu0 0.0
    %v2378 = vand.u32 %v2143, 4294901760
    %v2379 = vsub.f32 %v2143, %v2378
    %v2380 = vand.u32 %v2379, 4294901760
    %v2381 = vsub.f32 %v2379, %v2380
    %v2382 = vand.u32 %v2381, 4294901760
    %2383 = vmatmul.mubr.f32.gmra.mrb[0].mxu0 %v2382
    %v2384 = vpop.f32.mrb[0].mxu0
    %v2385 = vadd.f32 %v2185, %v2384
    %v2386 = vpop.f32.mrb[0].mxu0
    %2387 = vmatprep.mubr.f32.mxu0 0.0
    %v2388 = vand.u32 %v2144, 4294901760
    %v2389 = vsub.f32 %v2144, %v2388
    %v2390 = vand.u32 %v2389, 4294901760
    %v2391 = vsub.f32 %v2389, %v2390
    %v2392 = vand.u32 %v2391, 4294901760
    %2393 = vmatmul.mubr.f32.gmra.mrb[0].mxu0 %v2392
    %v2394 = vpop.f32.mrb[0].mxu0
    %v2395 = vadd.f32 %v2185, %v2394
    %v2396 = vpop.f32.mrb[0].mxu0
    %2397 = vmatprep.mubr.f32.mxu0 0.0
    %v2398 = vand.u32 %v2145, 4294901760
    %v2399 = vsub.f32 %v2145, %v2398
    %v2400 = vand.u32 %v2399, 4294901760
    %v2401 = vsub.f32 %v2399, %v2400
    %v2402 = vand.u32 %v2401, 4294901760
    %2403 = vmatmul.mubr.f32.gmra.mrb[0].mxu0 %v2402
    %v2404 = vpop.f32.mrb[0].mxu0
    %v2405 = vadd.f32 %v2185, %v2404
    %v2406 = vpop.f32.mrb[0].mxu0
    %2407 = vmatprep.mubr.f32.mxu0 0.0
    %v2408 = vand.u32 %v2146, 4294901760
    %v2409 = vsub.f32 %v2146, %v2408
    %v2410 = vand.u32 %v2409, 4294901760
    %v2411 = vsub.f32 %v2409, %v2410
    %v2412 = vand.u32 %v2411, 4294901760
    %2413 = vmatmul.mubr.f32.gmra.mrb[0].mxu0 %v2412
    %v2414 = vpop.f32.mrb[0].mxu0
    %v2415 = vadd.f32 %v2185, %v2414
    %v2416 = vpop.f32.mrb[0].mxu0
    %2417 = vmatprep.mubr.f32.mxu0 0.0
    %v2418 = vand.u32 %v2147, 4294901760
    %v2419 = vsub.f32 %v2147, %v2418
    %v2420 = vand.u32 %v2419, 4294901760
    %v2421 = vsub.f32 %v2419, %v2420
    %v2422 = vand.u32 %v2421, 4294901760
    %2423 = vmatmul.mubr.f32.gmra.mrb[0].mxu0 %v2422
    %v2424 = vpop.f32.mrb[0].mxu0
    %v2425 = vadd.f32 %v2185, %v2424
    %v2426 = vpop.f32.mrb[0].mxu0
    %2427 = vmatprep.mubr.f32.mxu0 0.0
    %v2428 = vand.u32 %v2148, 4294901760
    %v2429 = vsub.f32 %v2148, %v2428
    %v2430 = vand.u32 %v2429, 4294901760
    %v2431 = vsub.f32 %v2429, %v2430
    %v2432 = vand.u32 %v2431, 4294901760
    %2433 = vmatmul.mubr.f32.gmra.mrb[0].mxu0 %v2432
    %v2434 = vpop.f32.mrb[0].mxu0
    %v2435 = vadd.f32 %v2185, %v2434
    %v2436 = vpop.f32.mrb[0].mxu0
    %2437 = vmatprep.mubr.f32.mxu0 0.0
    %v2438 = vand.u32 %v2149, 4294901760
    %v2439 = vsub.f32 %v2149, %v2438
    %v2440 = vand.u32 %v2439, 4294901760
    %v2441 = vsub.f32 %v2439, %v2440
    %v2442 = vand.u32 %v2441, 4294901760
    %2443 = vmatmul.mubr.f32.gmra.mrb[0].mxu0 %v2442
    %v2444 = vpop.f32.mrb[0].mxu0
    %v2445 = vadd.f32 %v2185, %v2444
    %v2446 = vpop.f32.mrb[0].mxu0
    %2447 = vmatprep.mubr.f32.mxu0 0.0
    %v2448 = vand.u32 %v2150, 4294901760
    %v2449 = vsub.f32 %v2150, %v2448
    %v2450 = vand.u32 %v2449, 4294901760
    %v2451 = vsub.f32 %v2449, %v2450
    %v2452 = vand.u32 %v2451, 4294901760
    %2453 = vmatmul.mubr.f32.gmra.mrb[0].mxu0 %v2452
    %v2454 = vpop.f32.mrb[0].mxu0
    %v2455 = vadd.f32 %v2185, %v2454
    %v2456 = vpop.f32.mrb[0].mxu0
    %2457 = vmatprep.mubr.f32.mxu0 0.0
    %v2458 = vand.u32 %v2151, 4294901760
    %v2459 = vsub.f32 %v2151, %v2458
    %v2460 = vand.u32 %v2459, 4294901760
    %v2461 = vsub.f32 %v2459, %v2460
    %v2462 = vand.u32 %v2461, 4294901760
    %2463 = vmatmul.mubr.f32.gmra.mrb[0].mxu0 %v2462
    %v2464 = vpop.f32.mrb[0].mxu0
    %v2465 = vadd.f32 %v2185, %v2464
    %v2466 = vpop.f32.mrb[0].mxu0
    %2467 = vmatprep.mubr.f32.mxu0 0.0
    %v2468 = vand.u32 %v2152, 4294901760
    %v2469 = vsub.f32 %v2152, %v2468
    %v2470 = vand.u32 %v2469, 4294901760
    %v2471 = vsub.f32 %v2469, %v2470
    %v2472 = vand.u32 %v2471, 4294901760
    %2473 = vmatmul.mubr.f32.gmra.mrb[0].mxu0 %v2472
    %v2474 = vpop.f32.mrb[0].mxu0
    %v2475 = vadd.f32 %v2185, %v2474
    %v2476 = vpop.f32.mrb[0].mxu0
    %2477 = vmatprep.mubr.f32.mxu0 0.0
    %v2478 = vand.u32 %v2153, 4294901760
    %v2479 = vsub.f32 %v2153, %v2478
    %v2480 = vand.u32 %v2479, 4294901760
    %v2481 = vsub.f32 %v2479, %v2480
    %v2482 = vand.u32 %v2481, 4294901760
    %2483 = vmatmul.mubr.f32.gmra.mrb[0].mxu0 %v2482
    %v2484 = vpop.f32.mrb[0].mxu0
    %v2485 = vadd.f32 %v2185, %v2484
    %v2486 = vpop.f32.mrb[0].mxu0
    %2487 = vmatprep.mubr.f32.mxu0 0.0
    %v2488 = vand.u32 %v2154, 4294901760
    %v2489 = vsub.f32 %v2154, %v2488
    %v2490 = vand.u32 %v2489, 4294901760
    %v2491 = vsub.f32 %v2489, %v2490
    %v2492 = vand.u32 %v2491, 4294901760
    %2493 = vmatmul.mubr.f32.gmra.mrb[0].mxu0 %v2492
    %v2494 = vpop.f32.mrb[0].mxu0
    %v2495 = vadd.f32 %v2185, %v2494
    %v2496 = vpop.f32.mrb[0].mxu0
    %2497 = vmatprep.mubr.f32.mxu0 0.0
    %v2498 = vand.u32 %v2155, 4294901760
    %v2499 = vsub.f32 %v2155, %v2498
    %v2500 = vand.u32 %v2499, 4294901760
    %v2501 = vsub.f32 %v2499, %v2500
    %v2502 = vand.u32 %v2501, 4294901760
    %2503 = vmatmul.mubr.f32.gmra.mrb[0].mxu0 %v2502
    %v2504 = vpop.f32.mrb[0].mxu0
    %v2505 = vadd.f32 %v2185, %v2504
    %v2506 = vpop.f32.mrb[0].mxu0
    %2507 = vmatprep.mubr.f32.mxu0 0.0
    %v2508 = vand.u32 %v2156, 4294901760
    %v2509 = vsub.f32 %v2156, %v2508
    %v2510 = vand.u32 %v2509, 4294901760
    %v2511 = vsub.f32 %v2509, %v2510
    %v2512 = vand.u32 %v2511, 4294901760
    %2513 = vmatmul.mubr.f32.gmra.mrb[0].mxu0 %v2512
    %v2514 = vpop.f32.mrb[0].mxu0
    %v2515 = vadd.f32 %v2185, %v2514
    %v2516 = vpop.f32.mrb[0].mxu0
    %2517 = vmatprep.mubr.f32.mxu0 0.0
    %v2518 = vand.u32 %v2157, 4294901760
    %v2519 = vsub.f32 %v2157, %v2518
    %v2520 = vand.u32 %v2519, 4294901760
    %v2521 = vsub.f32 %v2519, %v2520
    %v2522 = vand.u32 %v2521, 4294901760
    %2523 = vmatmul.mubr.f32.gmra.mrb[0].mxu0 %v2522
    %v2524 = vpop.f32.mrb[0].mxu0
    %v2525 = vadd.f32 %v2185, %v2524
    %v2526 = vpop.f32.mrb[0].mxu0
    %2527 = vmatprep.mubr.f32.mxu0 0.0
    %v2528 = vand.u32 %v2158, 4294901760
    %v2529 = vsub.f32 %v2158, %v2528
    %v2530 = vand.u32 %v2529, 4294901760
    %v2531 = vsub.f32 %v2529, %v2530
    %v2532 = vand.u32 %v2531, 4294901760
    %2533 = vmatmul.mubr.f32.gmra.mrb[0].mxu0 %v2532
    %v2534 = vpop.f32.mrb[0].mxu0
    %v2535 = vadd.f32 %v2185, %v2534
    %v2536 = vpop.f32.mrb[0].mxu0
    %2537 = vmatprep.mubr.f32.mxu0 0.0
    %v2538 = vand.u32 %v2159, 4294901760
    %v2539 = vsub.f32 %v2159, %v2538
    %v2540 = vand.u32 %v2539, 4294901760
    %v2541 = vsub.f32 %v2539, %v2540
    %v2542 = vand.u32 %v2541, 4294901760
    %2543 = vmatmul.mubr.f32.gmra.mrb[0].mxu0 %v2542
    %v2544 = vpop.f32.mrb[0].mxu0
    %v2545 = vadd.f32 %v2185, %v2544
    %v2546 = vpop.f32.mrb[0].mxu0
    %2547 = vmatprep.mubr.f32.mxu0 0.0
    %v2548 = vand.u32 %v2160, 4294901760
    %v2549 = vsub.f32 %v2160, %v2548
    %v2550 = vand.u32 %v2549, 4294901760
    %v2551 = vsub.f32 %v2549, %v2550
    %v2552 = vand.u32 %v2551, 4294901760
    %2553 = vmatmul.mubr.f32.gmra.mrb[0].mxu0 %v2552
    %v2554 = vpop.f32.mrb[0].mxu0
    %v2555 = vadd.f32 %v2185, %v2554
    %v2556 = vpop.f32.mrb[0].mxu0
    %2557 = vmatprep.mubr.f32.mxu0 0.0
    %v2558 = vand.u32 %v2161, 4294901760
    %v2559 = vsub.f32 %v2161, %v2558
    %v2560 = vand.u32 %v2559, 4294901760
    %v2561 = vsub.f32 %v2559, %v2560
    %v2562 = vand.u32 %v2561, 4294901760
    %2563 = vmatmul.mubr.f32.gmra.mrb[0].mxu0 %v2562
    %v2564 = vpop.f32.mrb[0].mxu0
    %v2565 = vadd.f32 %v2185, %v2564
    %v2566 = vpop.f32.mrb[0].mxu0
    %2567 = vmatprep.mubr.f32.mxu0 0.0
    %v2568 = vand.u32 %v2162, 4294901760
    %v2569 = vsub.f32 %v2162, %v2568
    %v2570 = vand.u32 %v2569, 4294901760
    %v2571 = vsub.f32 %v2569, %v2570
    %v2572 = vand.u32 %v2571, 4294901760
    %2573 = vmatmul.mubr.f32.gmra.mrb[0].mxu0 %v2572
    %v2574 = vpop.f32.mrb[0].mxu0
    %v2575 = vadd.f32 %v2185, %v2574
    %v2576 = vpop.f32.mrb[0].mxu0
    %2577 = vmatprep.mubr.f32.mxu0 0.0
    %v2578 = vand.u32 %v2163, 4294901760
    %v2579 = vsub.f32 %v2163, %v2578
    %v2580 = vand.u32 %v2579, 4294901760
    %v2581 = vsub.f32 %v2579, %v2580
    %v2582 = vand.u32 %v2581, 4294901760
    %2583 = vmatmul.mubr.f32.gmra.mrb[0].mxu0 %v2582
    %v2584 = vpop.f32.mrb[0].mxu0
    %v2585 = vadd.f32 %v2185, %v2584
    %v2586 = vpop.f32.mrb[0].mxu0
    %2587 = vdwg.mxu0
    %2588 = vmatprep.subr.mxu0 0.0
    %v2589 = vand.u32 %v2164, 4294901760
    %v2590 = vsub.f32 %v2164, %v2589
    %v2591 = vand.u32 %v2590, 4294901760
    %v2592 = vsub.f32 %v2590, %v2591
    %v2593 = vand.u32 %v2592, 4294901760
    %2594 = vmatpush1.msra.mxu0 %v2593
    %2595 = vmatprep.subr.mxu0 0.0
    %v2596 = vand.u32 %v2165, 4294901760
    %v2597 = vsub.f32 %v2165, %v2596
    %v2598 = vand.u32 %v2597, 4294901760
    %v2599 = vsub.f32 %v2597, %v2598
    %v2600 = vand.u32 %v2599, 4294901760
    %2601 = vmatpush1.msra.mxu0 %v2600
    %2602 = vmatprep.subr.mxu0 0.0
    %v2603 = vand.u32 %v2166, 4294901760
    %v2604 = vsub.f32 %v2166, %v2603
    %v2605 = vand.u32 %v2604, 4294901760
    %v2606 = vsub.f32 %v2604, %v2605
    %v2607 = vand.u32 %v2606, 4294901760
    %2608 = vmatpush1.msra.mxu0 %v2607
    %2609 = vmatprep.subr.mxu0 0.0
    %v2610 = vand.u32 %v2167, 4294901760
    %v2611 = vsub.f32 %v2167, %v2610
    %v2612 = vand.u32 %v2611, 4294901760
    %v2613 = vsub.f32 %v2611, %v2612
    %v2614 = vand.u32 %v2613, 4294901760
    %2615 = vmatpush1.msra.mxu0 %v2614
    %2616 = vmatprep.subr.mxu0 0.0
    %v2617 = vand.u32 %v2168, 4294901760
    %v2618 = vsub.f32 %v2168, %v2617
    %v2619 = vand.u32 %v2618, 4294901760
    %v2620 = vsub.f32 %v2618, %v2619
    %v2621 = vand.u32 %v2620, 4294901760
    %2622 = vmatpush1.msra.mxu0 %v2621
    %2623 = vmatprep.subr.mxu0 0.0
    %v2624 = vand.u32 %v2169, 4294901760
    %v2625 = vsub.f32 %v2169, %v2624
    %v2626 = vand.u32 %v2625, 4294901760
    %v2627 = vsub.f32 %v2625, %v2626
    %v2628 = vand.u32 %v2627, 4294901760
    %2629 = vmatpush1.msra.mxu0 %v2628
    %2630 = vmatprep.subr.mxu0 0.0
    %v2631 = vand.u32 %v2170, 4294901760
    %v2632 = vsub.f32 %v2170, %v2631
    %v2633 = vand.u32 %v2632, 4294901760
    %v2634 = vsub.f32 %v2632, %v2633
    %v2635 = vand.u32 %v2634, 4294901760
    %2636 = vmatpush1.msra.mxu0 %v2635
    %2637 = vmatprep.subr.mxu0 0.0
    %v2638 = vand.u32 %v2171, 4294901760
    %v2639 = vsub.f32 %v2171, %v2638
    %v2640 = vand.u32 %v2639, 4294901760
    %v2641 = vsub.f32 %v2639, %v2640
    %v2642 = vand.u32 %v2641, 4294901760
    %2643 = vmatpush1.msra.mxu0 %v2642
    %2644 = vmatprep.subr.mxu0 0.0
    %v2645 = vand.u32 %v2172, 4294901760
    %v2646 = vsub.f32 %v2172, %v2645
    %v2647 = vand.u32 %v2646, 4294901760
    %v2648 = vsub.f32 %v2646, %v2647
    %v2649 = vand.u32 %v2648, 4294901760
    %2650 = vmatpush1.msra.mxu0 %v2649
    %2651 = vmatprep.subr.mxu0 0.0
    %v2652 = vand.u32 %v2173, 4294901760
    %v2653 = vsub.f32 %v2173, %v2652
    %v2654 = vand.u32 %v2653, 4294901760
    %v2655 = vsub.f32 %v2653, %v2654
    %v2656 = vand.u32 %v2655, 4294901760
    %2657 = vmatpush1.msra.mxu0 %v2656
    %2658 = vmatprep.subr.mxu0 0.0
    %v2659 = vand.u32 %v2174, 4294901760
    %v2660 = vsub.f32 %v2174, %v2659
    %v2661 = vand.u32 %v2660, 4294901760
    %v2662 = vsub.f32 %v2660, %v2661
    %v2663 = vand.u32 %v2662, 4294901760
    %2664 = vmatpush1.msra.mxu0 %v2663
    %2665 = vmatprep.subr.mxu0 0.0
    %v2666 = vand.u32 %v2175, 4294901760
    %v2667 = vsub.f32 %v2175, %v2666
    %v2668 = vand.u32 %v2667, 4294901760
    %v2669 = vsub.f32 %v2667, %v2668
    %v2670 = vand.u32 %v2669, 4294901760
    %2671 = vmatpush1.msra.mxu0 %v2670
    %2672 = vmatprep.subr.mxu0 0.0
    %v2673 = vand.u32 %v2176, 4294901760
    %v2674 = vsub.f32 %v2176, %v2673
    %v2675 = vand.u32 %v2674, 4294901760
    %v2676 = vsub.f32 %v2674, %v2675
    %v2677 = vand.u32 %v2676, 4294901760
    %2678 = vmatpush1.msra.mxu0 %v2677
    %2679 = vmatprep.subr.mxu0 0.0
    %v2680 = vand.u32 %v2177, 4294901760
    %v2681 = vsub.f32 %v2177, %v2680
    %v2682 = vand.u32 %v2681, 4294901760
    %v2683 = vsub.f32 %v2681, %v2682
    %v2684 = vand.u32 %v2683, 4294901760
    %2685 = vmatpush1.msra.mxu0 %v2684
    %2686 = vmatprep.subr.mxu0 0.0
    %v2687 = vand.u32 %v2178, 4294901760
    %v2688 = vsub.f32 %v2178, %v2687
    %v2689 = vand.u32 %v2688, 4294901760
    %v2690 = vsub.f32 %v2688, %v2689
    %v2691 = vand.u32 %v2690, 4294901760
    %2692 = vmatpush1.msra.mxu0 %v2691
    %2693 = vmatprep.subr.mxu0 0.0
    %v2694 = vand.u32 %v2179, 4294901760
    %v2695 = vsub.f32 %v2179, %v2694
    %v2696 = vand.u32 %v2695, 4294901760
    %v2697 = vsub.f32 %v2695, %v2696
    %v2698 = vand.u32 %v2697, 4294901760
    %2699 = vmatpush1.msra.mxu0 %v2698
    %2700 = vmatprep.subr.mxu0 0.0
    %2701 = vmatpush1.msra.mxu0 0.0
    %2702 = vmatprep.subr.mxu0 0.0
    %2703 = vmatpush1.msra.mxu0 0.0
    %2704 = vmatprep.subr.mxu0 0.0
    %2705 = vmatpush1.msra.mxu0 0.0
    %2706 = vmatprep.subr.mxu0 0.0
    %2707 = vmatpush1.msra.mxu0 0.0
    %2708 = vmatprep.subr.mxu0 0.0
    %2709 = vmatpush1.msra.mxu0 0.0
    %2710 = vmatprep.subr.mxu0 0.0
    %2711 = vmatpush1.msra.mxu0 0.0
    %2712 = vmatprep.subr.mxu0 0.0
    %2713 = vmatpush1.msra.mxu0 0.0
    %2714 = vmatprep.subr.mxu0 0.0
    %2715 = vmatpush1.msra.mxu0 0.0
    %2716 = vmatprep.subr.mxu0 0.0
    %2717 = vmatpush1.msra.mxu0 0.0
    %2718 = vmatprep.subr.mxu0 0.0
    %2719 = vmatpush1.msra.mxu0 0.0
    %2720 = vmatprep.subr.mxu0 0.0
    %2721 = vmatpush1.msra.mxu0 0.0
    %2722 = vmatprep.subr.mxu0 0.0
    %2723 = vmatpush1.msra.mxu0 0.0
    %2724 = vmatprep.subr.mxu0 0.0
    %2725 = vmatpush1.msra.mxu0 0.0
    %2726 = vmatprep.subr.mxu0 0.0
    %2727 = vmatpush1.msra.mxu0 0.0
    %2728 = vmatprep.subr.mxu0 0.0
    %2729 = vmatpush1.msra.mxu0 0.0
    %2730 = vmatprep.subr.mxu0 0.0
    %2731 = vmatpush1.msra.mxu0 0.0
    %2732 = vmatprep.mubr.f32.mxu0 0.0
    %v2733 = vand.u32 %v2132, 4294901760
    %2734 = vmatmul.mubr.f32.gmra.mrb[0].mxu0 %v2733
    %v2735 = vpop.f32.mrb[0].mxu0
    %v2736 = vadd.f32 %v2275, %v2735
    %v2737 = vpop.f32.mrb[0].mxu0
    %2738 = vmatprep.mubr.f32.mxu0 0.0
    %v2739 = vand.u32 %v2133, 4294901760
    %2740 = vmatmul.mubr.f32.gmra.mrb[0].mxu0 %v2739
    %v2741 = vpop.f32.mrb[0].mxu0
    %v2742 = vadd.f32 %v2285, %v2741
    %v2743 = vpop.f32.mrb[0].mxu0
    %2744 = vmatprep.mubr.f32.mxu0 0.0
    %v2745 = vand.u32 %v2134, 4294901760
    %2746 = vmatmul.mubr.f32.gmra.mrb[0].mxu0 %v2745
    %v2747 = vpop.f32.mrb[0].mxu0
    %v2748 = vadd.f32 %v2295, %v2747
    %v2749 = vpop.f32.mrb[0].mxu0
    %2750 = vmatprep.mubr.f32.mxu0 0.0
    %v2751 = vand.u32 %v2135, 4294901760
    %2752 = vmatmul.mubr.f32.gmra.mrb[0].mxu0 %v2751
    %v2753 = vpop.f32.mrb[0].mxu0
    %v2754 = vadd.f32 %v2305, %v2753
    %v2755 = vpop.f32.mrb[0].mxu0
    %2756 = vmatprep.mubr.f32.mxu0 0.0
    %v2757 = vand.u32 %v2136, 4294901760
    %2758 = vmatmul.mubr.f32.gmra.mrb[0].mxu0 %v2757
    %v2759 = vpop.f32.mrb[0].mxu0
    %v2760 = vadd.f32 %v2315, %v2759
    %v2761 = vpop.f32.mrb[0].mxu0
    %2762 = vmatprep.mubr.f32.mxu0 0.0
    %v2763 = vand.u32 %v2137, 4294901760
    %2764 = vmatmul.mubr.f32.gmra.mrb[0].mxu0 %v2763
    %v2765 = vpop.f32.mrb[0].mxu0
    %v2766 = vadd.f32 %v2325, %v2765
    %v2767 = vpop.f32.mrb[0].mxu0
    %2768 = vmatprep.mubr.f32.mxu0 0.0
    %v2769 = vand.u32 %v2138, 4294901760
    %2770 = vmatmul.mubr.f32.gmra.mrb[0].mxu0 %v2769
    %v2771 = vpop.f32.mrb[0].mxu0
    %v2772 = vadd.f32 %v2335, %v2771
    %v2773 = vpop.f32.mrb[0].mxu0
    %2774 = vmatprep.mubr.f32.mxu0 0.0
    %v2775 = vand.u32 %v2139, 4294901760
    %2776 = vmatmul.mubr.f32.gmra.mrb[0].mxu0 %v2775
    %v2777 = vpop.f32.mrb[0].mxu0
    %v2778 = vadd.f32 %v2345, %v2777
    %v2779 = vpop.f32.mrb[0].mxu0
    %2780 = vmatprep.mubr.f32.mxu0 0.0
    %v2781 = vand.u32 %v2140, 4294901760
    %2782 = vmatmul.mubr.f32.gmra.mrb[0].mxu0 %v2781
    %v2783 = vpop.f32.mrb[0].mxu0
    %v2784 = vadd.f32 %v2355, %v2783
    %v2785 = vpop.f32.mrb[0].mxu0
    %2786 = vmatprep.mubr.f32.mxu0 0.0
    %v2787 = vand.u32 %v2141, 4294901760
    %2788 = vmatmul.mubr.f32.gmra.mrb[0].mxu0 %v2787
    %v2789 = vpop.f32.mrb[0].mxu0
    %v2790 = vadd.f32 %v2365, %v2789
    %v2791 = vpop.f32.mrb[0].mxu0
    %2792 = vmatprep.mubr.f32.mxu0 0.0
    %v2793 = vand.u32 %v2142, 4294901760
    %2794 = vmatmul.mubr.f32.gmra.mrb[0].mxu0 %v2793
    %v2795 = vpop.f32.mrb[0].mxu0
    %v2796 = vadd.f32 %v2375, %v2795
    %v2797 = vpop.f32.mrb[0].mxu0
    %2798 = vmatprep.mubr.f32.mxu0 0.0
    %v2799 = vand.u32 %v2143, 4294901760
    %2800 = vmatmul.mubr.f32.gmra.mrb[0].mxu0 %v2799
    %v2801 = vpop.f32.mrb[0].mxu0
    %v2802 = vadd.f32 %v2385, %v2801
    %v2803 = vpop.f32.mrb[0].mxu0
    %2804 = vmatprep.mubr.f32.mxu0 0.0
    %v2805 = vand.u32 %v2144, 4294901760
    %2806 = vmatmul.mubr.f32.gmra.mrb[0].mxu0 %v2805
    %v2807 = vpop.f32.mrb[0].mxu0
    %v2808 = vadd.f32 %v2395, %v2807
    %v2809 = vpop.f32.mrb[0].mxu0
    %2810 = vmatprep.mubr.f32.mxu0 0.0
    %v2811 = vand.u32 %v2145, 4294901760
    %2812 = vmatmul.mubr.f32.gmra.mrb[0].mxu0 %v2811
    %v2813 = vpop.f32.mrb[0].mxu0
    %v2814 = vadd.f32 %v2405, %v2813
    %v2815 = vpop.f32.mrb[0].mxu0
    %2816 = vmatprep.mubr.f32.mxu0 0.0
    %v2817 = vand.u32 %v2146, 4294901760
    %2818 = vmatmul.mubr.f32.gmra.mrb[0].mxu0 %v2817
    %v2819 = vpop.f32.mrb[0].mxu0
    %v2820 = vadd.f32 %v2415, %v2819
    %v2821 = vpop.f32.mrb[0].mxu0
    %2822 = vmatprep.mubr.f32.mxu0 0.0
    %v2823 = vand.u32 %v2147, 4294901760
    %2824 = vmatmul.mubr.f32.gmra.mrb[0].mxu0 %v2823
    %v2825 = vpop.f32.mrb[0].mxu0
    %v2826 = vadd.f32 %v2425, %v2825
    %v2827 = vpop.f32.mrb[0].mxu0
    %2828 = vmatprep.mubr.f32.mxu0 0.0
    %v2829 = vand.u32 %v2148, 4294901760
    %2830 = vmatmul.mubr.f32.gmra.mrb[0].mxu0 %v2829
    %v2831 = vpop.f32.mrb[0].mxu0
    %v2832 = vadd.f32 %v2435, %v2831
    %v2833 = vpop.f32.mrb[0].mxu0
    %2834 = vmatprep.mubr.f32.mxu0 0.0
    %v2835 = vand.u32 %v2149, 4294901760
    %2836 = vmatmul.mubr.f32.gmra.mrb[0].mxu0 %v2835
    %v2837 = vpop.f32.mrb[0].mxu0
    %v2838 = vadd.f32 %v2445, %v2837
    %v2839 = vpop.f32.mrb[0].mxu0
    %2840 = vmatprep.mubr.f32.mxu0 0.0
    %v2841 = vand.u32 %v2150, 4294901760
    %2842 = vmatmul.mubr.f32.gmra.mrb[0].mxu0 %v2841
    %v2843 = vpop.f32.mrb[0].mxu0
    %v2844 = vadd.f32 %v2455, %v2843
    %v2845 = vpop.f32.mrb[0].mxu0
    %2846 = vmatprep.mubr.f32.mxu0 0.0
    %v2847 = vand.u32 %v2151, 4294901760
    %2848 = vmatmul.mubr.f32.gmra.mrb[0].mxu0 %v2847
    %v2849 = vpop.f32.mrb[0].mxu0
    %v2850 = vadd.f32 %v2465, %v2849
    %v2851 = vpop.f32.mrb[0].mxu0
    %2852 = vmatprep.mubr.f32.mxu0 0.0
    %v2853 = vand.u32 %v2152, 4294901760
    %2854 = vmatmul.mubr.f32.gmra.mrb[0].mxu0 %v2853
    %v2855 = vpop.f32.mrb[0].mxu0
    %v2856 = vadd.f32 %v2475, %v2855
    %v2857 = vpop.f32.mrb[0].mxu0
    %2858 = vmatprep.mubr.f32.mxu0 0.0
    %v2859 = vand.u32 %v2153, 4294901760
    %2860 = vmatmul.mubr.f32.gmra.mrb[0].mxu0 %v2859
    %v2861 = vpop.f32.mrb[0].mxu0
    %v2862 = vadd.f32 %v2485, %v2861
    %v2863 = vpop.f32.mrb[0].mxu0
    %2864 = vmatprep.mubr.f32.mxu0 0.0
    %v2865 = vand.u32 %v2154, 4294901760
    %2866 = vmatmul.mubr.f32.gmra.mrb[0].mxu0 %v2865
    %v2867 = vpop.f32.mrb[0].mxu0
    %v2868 = vadd.f32 %v2495, %v2867
    %v2869 = vpop.f32.mrb[0].mxu0
    %2870 = vmatprep.mubr.f32.mxu0 0.0
    %v2871 = vand.u32 %v2155, 4294901760
    %2872 = vmatmul.mubr.f32.gmra.mrb[0].mxu0 %v2871
    %v2873 = vpop.f32.mrb[0].mxu0
    %v2874 = vadd.f32 %v2505, %v2873
    %v2875 = vpop.f32.mrb[0].mxu0
    %2876 = vmatprep.mubr.f32.mxu0 0.0
    %v2877 = vand.u32 %v2156, 4294901760
    %2878 = vmatmul.mubr.f32.gmra.mrb[0].mxu0 %v2877
    %v2879 = vpop.f32.mrb[0].mxu0
    %v2880 = vadd.f32 %v2515, %v2879
    %v2881 = vpop.f32.mrb[0].mxu0
    %2882 = vmatprep.mubr.f32.mxu0 0.0
    %v2883 = vand.u32 %v2157, 4294901760
    %2884 = vmatmul.mubr.f32.gmra.mrb[0].mxu0 %v2883
    %v2885 = vpop.f32.mrb[0].mxu0
    %v2886 = vadd.f32 %v2525, %v2885
    %v2887 = vpop.f32.mrb[0].mxu0
    %2888 = vmatprep.mubr.f32.mxu0 0.0
    %v2889 = vand.u32 %v2158, 4294901760
    %2890 = vmatmul.mubr.f32.gmra.mrb[0].mxu0 %v2889
    %v2891 = vpop.f32.mrb[0].mxu0
    %v2892 = vadd.f32 %v2535, %v2891
    %v2893 = vpop.f32.mrb[0].mxu0
    %2894 = vmatprep.mubr.f32.mxu0 0.0
    %v2895 = vand.u32 %v2159, 4294901760
    %2896 = vmatmul.mubr.f32.gmra.mrb[0].mxu0 %v2895
    %v2897 = vpop.f32.mrb[0].mxu0
    %v2898 = vadd.f32 %v2545, %v2897
    %v2899 = vpop.f32.mrb[0].mxu0
    %2900 = vmatprep.mubr.f32.mxu0 0.0
    %v2901 = vand.u32 %v2160, 4294901760
    %2902 = vmatmul.mubr.f32.gmra.mrb[0].mxu0 %v2901
    %v2903 = vpop.f32.mrb[0].mxu0
    %v2904 = vadd.f32 %v2555, %v2903
    %v2905 = vpop.f32.mrb[0].mxu0
    %2906 = vmatprep.mubr.f32.mxu0 0.0
    %v2907 = vand.u32 %v2161, 4294901760
    %2908 = vmatmul.mubr.f32.gmra.mrb[0].mxu0 %v2907
    %v2909 = vpop.f32.mrb[0].mxu0
    %v2910 = vadd.f32 %v2565, %v2909
    %v2911 = vpop.f32.mrb[0].mxu0
    %2912 = vmatprep.mubr.f32.mxu0 0.0
    %v2913 = vand.u32 %v2162, 4294901760
    %2914 = vmatmul.mubr.f32.gmra.mrb[0].mxu0 %v2913
    %v2915 = vpop.f32.mrb[0].mxu0
    %v2916 = vadd.f32 %v2575, %v2915
    %v2917 = vpop.f32.mrb[0].mxu0
    %2918 = vmatprep.mubr.f32.mxu0 0.0
    %v2919 = vand.u32 %v2163, 4294901760
    %2920 = vmatmul.mubr.f32.gmra.mrb[0].mxu0 %v2919
    %v2921 = vpop.f32.mrb[0].mxu0
    %v2922 = vadd.f32 %v2585, %v2921
    %v2923 = vpop.f32.mrb[0].mxu0
    %2924 = vdwg.mxu0
    %2925 = vmatprep.subr.mxu0 0.0
    %v2926 = vand.u32 %v2164, 4294901760
    %v2927 = vsub.f32 %v2164, %v2926
    %2928 = vmatpush1.msra.mxu0 %v2927
    %2929 = vmatprep.subr.mxu0 0.0
    %v2930 = vand.u32 %v2165, 4294901760
    %v2931 = vsub.f32 %v2165, %v2930
    %2932 = vmatpush1.msra.mxu0 %v2931
    %2933 = vmatprep.subr.mxu0 0.0
    %v2934 = vand.u32 %v2166, 4294901760
    %v2935 = vsub.f32 %v2166, %v2934
    %2936 = vmatpush1.msra.mxu0 %v2935
    %2937 = vmatprep.subr.mxu0 0.0
    %v2938 = vand.u32 %v2167, 4294901760
    %v2939 = vsub.f32 %v2167, %v2938
    %2940 = vmatpush1.msra.mxu0 %v2939
    %2941 = vmatprep.subr.mxu0 0.0
    %v2942 = vand.u32 %v2168, 4294901760
    %v2943 = vsub.f32 %v2168, %v2942
    %2944 = vmatpush1.msra.mxu0 %v2943
    %2945 = vmatprep.subr.mxu0 0.0
    %v2946 = vand.u32 %v2169, 4294901760
    %v2947 = vsub.f32 %v2169, %v2946
    %2948 = vmatpush1.msra.mxu0 %v2947
    %2949 = vmatprep.subr.mxu0 0.0
    %v2950 = vand.u32 %v2170, 4294901760
    %v2951 = vsub.f32 %v2170, %v2950
    %2952 = vmatpush1.msra.mxu0 %v2951
    %2953 = vmatprep.subr.mxu0 0.0
    %v2954 = vand.u32 %v2171, 4294901760
    %v2955 = vsub.f32 %v2171, %v2954
    %2956 = vmatpush1.msra.mxu0 %v2955
    %2957 = vmatprep.subr.mxu0 0.0
    %v2958 = vand.u32 %v2172, 4294901760
    %v2959 = vsub.f32 %v2172, %v2958
    %2960 = vmatpush1.msra.mxu0 %v2959
    %2961 = vmatprep.subr.mxu0 0.0
    %v2962 = vand.u32 %v2173, 4294901760
    %v2963 = vsub.f32 %v2173, %v2962
    %2964 = vmatpush1.msra.mxu0 %v2963
    %2965 = vmatprep.subr.mxu0 0.0
    %v2966 = vand.u32 %v2174, 4294901760
    %v2967 = vsub.f32 %v2174, %v2966
    %2968 = vmatpush1.msra.mxu0 %v2967
    %2969 = vmatprep.subr.mxu0 0.0
    %v2970 = vand.u32 %v2175, 4294901760
    %v2971 = vsub.f32 %v2175, %v2970
    %2972 = vmatpush1.msra.mxu0 %v2971
    %2973 = vmatprep.subr.mxu0 0.0
    %v2974 = vand.u32 %v2176, 4294901760
    %v2975 = vsub.f32 %v2176, %v2974
    %2976 = vmatpush1.msra.mxu0 %v2975
    %2977 = vmatprep.subr.mxu0 0.0
    %v2978 = vand.u32 %v2177, 4294901760
    %v2979 = vsub.f32 %v2177, %v2978
    %2980 = vmatpush1.msra.mxu0 %v2979
    %2981 = vmatprep.subr.mxu0 0.0
    %v2982 = vand.u32 %v2178, 4294901760
    %v2983 = vsub.f32 %v2178, %v2982
    %2984 = vmatpush1.msra.mxu0 %v2983
    %2985 = vmatprep.subr.mxu0 0.0
    %v2986 = vand.u32 %v2179, 4294901760
    %v2987 = vsub.f32 %v2179, %v2986
    %2988 = vmatpush1.msra.mxu0 %v2987
    %2989 = vmatprep.subr.mxu0 0.0
    %2990 = vmatpush1.msra.mxu0 0.0
    %2991 = vmatprep.subr.mxu0 0.0
    %2992 = vmatpush1.msra.mxu0 0.0
    %2993 = vmatprep.subr.mxu0 0.0
    %2994 = vmatpush1.msra.mxu0 0.0
    %2995 = vmatprep.subr.mxu0 0.0
    %2996 = vmatpush1.msra.mxu0 0.0
    %2997 = vmatprep.subr.mxu0 0.0
    %2998 = vmatpush1.msra.mxu0 0.0
    %2999 = vmatprep.subr.mxu0 0.0
    %3000 = vmatpush1.msra.mxu0 0.0
    %3001 = vmatprep.subr.mxu0 0.0
    %3002 = vmatpush1.msra.mxu0 0.0
    %3003 = vmatprep.subr.mxu0 0.0
    %3004 = vmatpush1.msra.mxu0 0.0
    %3005 = vmatprep.subr.mxu0 0.0
    %3006 = vmatpush1.msra.mxu0 0.0
    %3007 = vmatprep.subr.mxu0 0.0
    %3008 = vmatpush1.msra.mxu0 0.0
    %3009 = vmatprep.subr.mxu0 0.0
    %3010 = vmatpush1.msra.mxu0 0.0
    %3011 = vmatprep.subr.mxu0 0.0
    %3012 = vmatpush1.msra.mxu0 0.0
    %3013 = vmatprep.subr.mxu0 0.0
    %3014 = vmatpush1.msra.mxu0 0.0
    %3015 = vmatprep.subr.mxu0 0.0
    %3016 = vmatpush1.msra.mxu0 0.0
    %3017 = vmatprep.subr.mxu0 0.0
    %3018 = vmatpush1.msra.mxu0 0.0
    %3019 = vmatprep.subr.mxu0 0.0
    %3020 = vmatpush1.msra.mxu0 0.0
    %3021 = vmatprep.mubr.f32.mxu0 0.0
    %v3022 = vand.u32 %v2132, 4294901760
    %v3023 = vsub.f32 %v2132, %v3022
    %3024 = vmatmul.mubr.f32.gmra.mrb[0].mxu0 %v3023
    %v3025 = vpop.f32.mrb[0].mxu0
    %v3026 = vadd.f32 %v2736, %v3025
    %v3027 = vpop.f32.mrb[0].mxu0
    %3028 = vmatprep.mubr.f32.mxu0 0.0
    %v3029 = vand.u32 %v2133, 4294901760
    %v3030 = vsub.f32 %v2133, %v3029
    %3031 = vmatmul.mubr.f32.gmra.mrb[0].mxu0 %v3030
    %v3032 = vpop.f32.mrb[0].mxu0
    %v3033 = vadd.f32 %v2742, %v3032
    %v3034 = vpop.f32.mrb[0].mxu0
    %3035 = vmatprep.mubr.f32.mxu0 0.0
    %v3036 = vand.u32 %v2134, 4294901760
    %v3037 = vsub.f32 %v2134, %v3036
    %3038 = vmatmul.mubr.f32.gmra.mrb[0].mxu0 %v3037
    %v3039 = vpop.f32.mrb[0].mxu0
    %v3040 = vadd.f32 %v2748, %v3039
    %v3041 = vpop.f32.mrb[0].mxu0
    %3042 = vmatprep.mubr.f32.mxu0 0.0
    %v3043 = vand.u32 %v2135, 4294901760
    %v3044 = vsub.f32 %v2135, %v3043
    %3045 = vmatmul.mubr.f32.gmra.mrb[0].mxu0 %v3044
    %v3046 = vpop.f32.mrb[0].mxu0
    %v3047 = vadd.f32 %v2754, %v3046
    %v3048 = vpop.f32.mrb[0].mxu0
    %3049 = vmatprep.mubr.f32.mxu0 0.0
    %v3050 = vand.u32 %v2136, 4294901760
    %v3051 = vsub.f32 %v2136, %v3050
    %3052 = vmatmul.mubr.f32.gmra.mrb[0].mxu0 %v3051
    %v3053 = vpop.f32.mrb[0].mxu0
    %v3054 = vadd.f32 %v2760, %v3053
    %v3055 = vpop.f32.mrb[0].mxu0
    %3056 = vmatprep.mubr.f32.mxu0 0.0
    %v3057 = vand.u32 %v2137, 4294901760
    %v3058 = vsub.f32 %v2137, %v3057
    %3059 = vmatmul.mubr.f32.gmra.mrb[0].mxu0 %v3058
    %v3060 = vpop.f32.mrb[0].mxu0
    %v3061 = vadd.f32 %v2766, %v3060
    %v3062 = vpop.f32.mrb[0].mxu0
    %3063 = vmatprep.mubr.f32.mxu0 0.0
    %v3064 = vand.u32 %v2138, 4294901760
    %v3065 = vsub.f32 %v2138, %v3064
    %3066 = vmatmul.mubr.f32.gmra.mrb[0].mxu0 %v3065
    %v3067 = vpop.f32.mrb[0].mxu0
    %v3068 = vadd.f32 %v2772, %v3067
    %v3069 = vpop.f32.mrb[0].mxu0
    %3070 = vmatprep.mubr.f32.mxu0 0.0
    %v3071 = vand.u32 %v2139, 4294901760
    %v3072 = vsub.f32 %v2139, %v3071
    %3073 = vmatmul.mubr.f32.gmra.mrb[0].mxu0 %v3072
    %v3074 = vpop.f32.mrb[0].mxu0
    %v3075 = vadd.f32 %v2778, %v3074
    %v3076 = vpop.f32.mrb[0].mxu0
    %3077 = vmatprep.mubr.f32.mxu0 0.0
    %v3078 = vand.u32 %v2140, 4294901760
    %v3079 = vsub.f32 %v2140, %v3078
    %3080 = vmatmul.mubr.f32.gmra.mrb[0].mxu0 %v3079
    %v3081 = vpop.f32.mrb[0].mxu0
    %v3082 = vadd.f32 %v2784, %v3081
    %v3083 = vpop.f32.mrb[0].mxu0
    %3084 = vmatprep.mubr.f32.mxu0 0.0
    %v3085 = vand.u32 %v2141, 4294901760
    %v3086 = vsub.f32 %v2141, %v3085
    %3087 = vmatmul.mubr.f32.gmra.mrb[0].mxu0 %v3086
    %v3088 = vpop.f32.mrb[0].mxu0
    %v3089 = vadd.f32 %v2790, %v3088
    %v3090 = vpop.f32.mrb[0].mxu0
    %3091 = vmatprep.mubr.f32.mxu0 0.0
    %v3092 = vand.u32 %v2142, 4294901760
    %v3093 = vsub.f32 %v2142, %v3092
    %3094 = vmatmul.mubr.f32.gmra.mrb[0].mxu0 %v3093
    %v3095 = vpop.f32.mrb[0].mxu0
    %v3096 = vadd.f32 %v2796, %v3095
    %v3097 = vpop.f32.mrb[0].mxu0
    %3098 = vmatprep.mubr.f32.mxu0 0.0
    %v3099 = vand.u32 %v2143, 4294901760
    %v3100 = vsub.f32 %v2143, %v3099
    %3101 = vmatmul.mubr.f32.gmra.mrb[0].mxu0 %v3100
    %v3102 = vpop.f32.mrb[0].mxu0
    %v3103 = vadd.f32 %v2802, %v3102
    %v3104 = vpop.f32.mrb[0].mxu0
    %3105 = vmatprep.mubr.f32.mxu0 0.0
    %v3106 = vand.u32 %v2144, 4294901760
    %v3107 = vsub.f32 %v2144, %v3106
    %3108 = vmatmul.mubr.f32.gmra.mrb[0].mxu0 %v3107
    %v3109 = vpop.f32.mrb[0].mxu0
    %v3110 = vadd.f32 %v2808, %v3109
    %v3111 = vpop.f32.mrb[0].mxu0
    %3112 = vmatprep.mubr.f32.mxu0 0.0
    %v3113 = vand.u32 %v2145, 4294901760
    %v3114 = vsub.f32 %v2145, %v3113
    %3115 = vmatmul.mubr.f32.gmra.mrb[0].mxu0 %v3114
    %v3116 = vpop.f32.mrb[0].mxu0
    %v3117 = vadd.f32 %v2814, %v3116
    %v3118 = vpop.f32.mrb[0].mxu0
    %3119 = vmatprep.mubr.f32.mxu0 0.0
    %v3120 = vand.u32 %v2146, 4294901760
    %v3121 = vsub.f32 %v2146, %v3120
    %3122 = vmatmul.mubr.f32.gmra.mrb[0].mxu0 %v3121
    %v3123 = vpop.f32.mrb[0].mxu0
    %v3124 = vadd.f32 %v2820, %v3123
    %v3125 = vpop.f32.mrb[0].mxu0
    %3126 = vmatprep.mubr.f32.mxu0 0.0
    %v3127 = vand.u32 %v2147, 4294901760
    %v3128 = vsub.f32 %v2147, %v3127
    %3129 = vmatmul.mubr.f32.gmra.mrb[0].mxu0 %v3128
    %v3130 = vpop.f32.mrb[0].mxu0
    %v3131 = vadd.f32 %v2826, %v3130
    %v3132 = vpop.f32.mrb[0].mxu0
    %3133 = vmatprep.mubr.f32.mxu0 0.0
    %v3134 = vand.u32 %v2148, 4294901760
    %v3135 = vsub.f32 %v2148, %v3134
    %3136 = vmatmul.mubr.f32.gmra.mrb[0].mxu0 %v3135
    %v3137 = vpop.f32.mrb[0].mxu0
    %v3138 = vadd.f32 %v2832, %v3137
    %v3139 = vpop.f32.mrb[0].mxu0
    %3140 = vmatprep.mubr.f32.mxu0 0.0
    %v3141 = vand.u32 %v2149, 4294901760
    %v3142 = vsub.f32 %v2149, %v3141
    %3143 = vmatmul.mubr.f32.gmra.mrb[0].mxu0 %v3142
    %v3144 = vpop.f32.mrb[0].mxu0
    %v3145 = vadd.f32 %v2838, %v3144
    %v3146 = vpop.f32.mrb[0].mxu0
    %3147 = vmatprep.mubr.f32.mxu0 0.0
    %v3148 = vand.u32 %v2150, 4294901760
    %v3149 = vsub.f32 %v2150, %v3148
    %3150 = vmatmul.mubr.f32.gmra.mrb[0].mxu0 %v3149
    %v3151 = vpop.f32.mrb[0].mxu0
    %v3152 = vadd.f32 %v2844, %v3151
    %v3153 = vpop.f32.mrb[0].mxu0
    %3154 = vmatprep.mubr.f32.mxu0 0.0
    %v3155 = vand.u32 %v2151, 4294901760
    %v3156 = vsub.f32 %v2151, %v3155
    %3157 = vmatmul.mubr.f32.gmra.mrb[0].mxu0 %v3156
    %v3158 = vpop.f32.mrb[0].mxu0
    %v3159 = vadd.f32 %v2850, %v3158
    %v3160 = vpop.f32.mrb[0].mxu0
    %3161 = vmatprep.mubr.f32.mxu0 0.0
    %v3162 = vand.u32 %v2152, 4294901760
    %v3163 = vsub.f32 %v2152, %v3162
    %3164 = vmatmul.mubr.f32.gmra.mrb[0].mxu0 %v3163
    %v3165 = vpop.f32.mrb[0].mxu0
    %v3166 = vadd.f32 %v2856, %v3165
    %v3167 = vpop.f32.mrb[0].mxu0
    %3168 = vmatprep.mubr.f32.mxu0 0.0
    %v3169 = vand.u32 %v2153, 4294901760
    %v3170 = vsub.f32 %v2153, %v3169
    %3171 = vmatmul.mubr.f32.gmra.mrb[0].mxu0 %v3170
    %v3172 = vpop.f32.mrb[0].mxu0
    %v3173 = vadd.f32 %v2862, %v3172
    %v3174 = vpop.f32.mrb[0].mxu0
    %3175 = vmatprep.mubr.f32.mxu0 0.0
    %v3176 = vand.u32 %v2154, 4294901760
    %v3177 = vsub.f32 %v2154, %v3176
    %3178 = vmatmul.mubr.f32.gmra.mrb[0].mxu0 %v3177
    %v3179 = vpop.f32.mrb[0].mxu0
    %v3180 = vadd.f32 %v2868, %v3179
    %v3181 = vpop.f32.mrb[0].mxu0
    %3182 = vmatprep.mubr.f32.mxu0 0.0
    %v3183 = vand.u32 %v2155, 4294901760
    %v3184 = vsub.f32 %v2155, %v3183
    %3185 = vmatmul.mubr.f32.gmra.mrb[0].mxu0 %v3184
    %v3186 = vpop.f32.mrb[0].mxu0
    %v3187 = vadd.f32 %v2874, %v3186
    %v3188 = vpop.f32.mrb[0].mxu0
    %3189 = vmatprep.mubr.f32.mxu0 0.0
    %v3190 = vand.u32 %v2156, 4294901760
    %v3191 = vsub.f32 %v2156, %v3190
    %3192 = vmatmul.mubr.f32.gmra.mrb[0].mxu0 %v3191
    %v3193 = vpop.f32.mrb[0].mxu0
    %v3194 = vadd.f32 %v2880, %v3193
    %v3195 = vpop.f32.mrb[0].mxu0
    %3196 = vmatprep.mubr.f32.mxu0 0.0
    %v3197 = vand.u32 %v2157, 4294901760
    %v3198 = vsub.f32 %v2157, %v3197
    %3199 = vmatmul.mubr.f32.gmra.mrb[0].mxu0 %v3198
    %v3200 = vpop.f32.mrb[0].mxu0
    %v3201 = vadd.f32 %v2886, %v3200
    %v3202 = vpop.f32.mrb[0].mxu0
    %3203 = vmatprep.mubr.f32.mxu0 0.0
    %v3204 = vand.u32 %v2158, 4294901760
    %v3205 = vsub.f32 %v2158, %v3204
    %3206 = vmatmul.mubr.f32.gmra.mrb[0].mxu0 %v3205
    %v3207 = vpop.f32.mrb[0].mxu0
    %v3208 = vadd.f32 %v2892, %v3207
    %v3209 = vpop.f32.mrb[0].mxu0
    %3210 = vmatprep.mubr.f32.mxu0 0.0
    %v3211 = vand.u32 %v2159, 4294901760
    %v3212 = vsub.f32 %v2159, %v3211
    %3213 = vmatmul.mubr.f32.gmra.mrb[0].mxu0 %v3212
    %v3214 = vpop.f32.mrb[0].mxu0
    %v3215 = vadd.f32 %v2898, %v3214
    %v3216 = vpop.f32.mrb[0].mxu0
    %3217 = vmatprep.mubr.f32.mxu0 0.0
    %v3218 = vand.u32 %v2160, 4294901760
    %v3219 = vsub.f32 %v2160, %v3218
    %3220 = vmatmul.mubr.f32.gmra.mrb[0].mxu0 %v3219
    %v3221 = vpop.f32.mrb[0].mxu0
    %v3222 = vadd.f32 %v2904, %v3221
    %v3223 = vpop.f32.mrb[0].mxu0
    %3224 = vmatprep.mubr.f32.mxu0 0.0
    %v3225 = vand.u32 %v2161, 4294901760
    %v3226 = vsub.f32 %v2161, %v3225
    %3227 = vmatmul.mubr.f32.gmra.mrb[0].mxu0 %v3226
    %v3228 = vpop.f32.mrb[0].mxu0
    %v3229 = vadd.f32 %v2910, %v3228
    %v3230 = vpop.f32.mrb[0].mxu0
    %3231 = vmatprep.mubr.f32.mxu0 0.0
    %v3232 = vand.u32 %v2162, 4294901760
    %v3233 = vsub.f32 %v2162, %v3232
    %3234 = vmatmul.mubr.f32.gmra.mrb[0].mxu0 %v3233
    %v3235 = vpop.f32.mrb[0].mxu0
    %v3236 = vadd.f32 %v2916, %v3235
    %v3237 = vpop.f32.mrb[0].mxu0
    %3238 = vmatprep.mubr.f32.mxu0 0.0
    %v3239 = vand.u32 %v2163, 4294901760
    %v3240 = vsub.f32 %v2163, %v3239
    %3241 = vmatmul.mubr.f32.gmra.mrb[0].mxu0 %v3240
    %v3242 = vpop.f32.mrb[0].mxu0
    %v3243 = vadd.f32 %v2922, %v3242
    %v3244 = vpop.f32.mrb[0].mxu0
    %3245 = vdwg.mxu0
    %3246 = vmatprep.subr.mxu0 0.0
    %v3247 = vand.u32 %v2164, 4294901760
    %3248 = vmatpush1.msra.mxu0 %v3247
    %3249 = vmatprep.subr.mxu0 0.0
    %v3250 = vand.u32 %v2165, 4294901760
    %3251 = vmatpush1.msra.mxu0 %v3250
    %3252 = vmatprep.subr.mxu0 0.0
    %v3253 = vand.u32 %v2166, 4294901760
    %3254 = vmatpush1.msra.mxu0 %v3253
    %3255 = vmatprep.subr.mxu0 0.0
    %v3256 = vand.u32 %v2167, 4294901760
    %3257 = vmatpush1.msra.mxu0 %v3256
    %3258 = vmatprep.subr.mxu0 0.0
    %v3259 = vand.u32 %v2168, 4294901760
    %3260 = vmatpush1.msra.mxu0 %v3259
    %3261 = vmatprep.subr.mxu0 0.0
    %v3262 = vand.u32 %v2169, 4294901760
    %3263 = vmatpush1.msra.mxu0 %v3262
    %3264 = vmatprep.subr.mxu0 0.0
    %v3265 = vand.u32 %v2170, 4294901760
    %3266 = vmatpush1.msra.mxu0 %v3265
    %3267 = vmatprep.subr.mxu0 0.0
    %v3268 = vand.u32 %v2171, 4294901760
    %3269 = vmatpush1.msra.mxu0 %v3268
    %3270 = vmatprep.subr.mxu0 0.0
    %v3271 = vand.u32 %v2172, 4294901760
    %3272 = vmatpush1.msra.mxu0 %v3271
    %3273 = vmatprep.subr.mxu0 0.0
    %v3274 = vand.u32 %v2173, 4294901760
    %3275 = vmatpush1.msra.mxu0 %v3274
    %3276 = vmatprep.subr.mxu0 0.0
    %v3277 = vand.u32 %v2174, 4294901760
    %3278 = vmatpush1.msra.mxu0 %v3277
    %3279 = vmatprep.subr.mxu0 0.0
    %v3280 = vand.u32 %v2175, 4294901760
    %3281 = vmatpush1.msra.mxu0 %v3280
    %3282 = vmatprep.subr.mxu0 0.0
    %v3283 = vand.u32 %v2176, 4294901760
    %3284 = vmatpush1.msra.mxu0 %v3283
    %3285 = vmatprep.subr.mxu0 0.0
    %v3286 = vand.u32 %v2177, 4294901760
    %3287 = vmatpush1.msra.mxu0 %v3286
    %3288 = vmatprep.subr.mxu0 0.0
    %v3289 = vand.u32 %v2178, 4294901760
    %3290 = vmatpush1.msra.mxu0 %v3289
    %3291 = vmatprep.subr.mxu0 0.0
    %v3292 = vand.u32 %v2179, 4294901760
    %3293 = vmatpush1.msra.mxu0 %v3292
    %3294 = vmatprep.subr.mxu0 0.0
    %3295 = vmatpush1.msra.mxu0 0.0
    %3296 = vmatprep.subr.mxu0 0.0
    %3297 = vmatpush1.msra.mxu0 0.0
    %3298 = vmatprep.subr.mxu0 0.0
    %3299 = vmatpush1.msra.mxu0 0.0
    %3300 = vmatprep.subr.mxu0 0.0
    %3301 = vmatpush1.msra.mxu0 0.0
    %3302 = vmatprep.subr.mxu0 0.0
    %3303 = vmatpush1.msra.mxu0 0.0
    %3304 = vmatprep.subr.mxu0 0.0
    %3305 = vmatpush1.msra.mxu0 0.0
    %3306 = vmatprep.subr.mxu0 0.0
    %3307 = vmatpush1.msra.mxu0 0.0
    %3308 = vmatprep.subr.mxu0 0.0
    %3309 = vmatpush1.msra.mxu0 0.0
    %3310 = vmatprep.subr.mxu0 0.0
    %3311 = vmatpush1.msra.mxu0 0.0
    %3312 = vmatprep.subr.mxu0 0.0
    %3313 = vmatpush1.msra.mxu0 0.0
    %3314 = vmatprep.subr.mxu0 0.0
    %3315 = vmatpush1.msra.mxu0 0.0
    %3316 = vmatprep.subr.mxu0 0.0
    %3317 = vmatpush1.msra.mxu0 0.0
    %3318 = vmatprep.subr.mxu0 0.0
    %3319 = vmatpush1.msra.mxu0 0.0
    %3320 = vmatprep.subr.mxu0 0.0
    %3321 = vmatpush1.msra.mxu0 0.0
    %3322 = vmatprep.subr.mxu0 0.0
    %3323 = vmatpush1.msra.mxu0 0.0
    %3324 = vmatprep.subr.mxu0 0.0
    %3325 = vmatpush1.msra.mxu0 0.0
    %3326 = vmatprep.mubr.f32.mxu0 0.0
    %v3327 = vand.u32 %v2132, 4294901760
    %v3328 = vsub.f32 %v2132, %v3327
    %v3329 = vand.u32 %v3328, 4294901760
    %3330 = vmatmul.mubr.f32.gmra.mrb[0].mxu0 %v3329
    %v3331 = vpop.f32.mrb[0].mxu0
    %v3332 = vadd.f32 %v3026, %v3331
    %v3333 = vpop.f32.mrb[0].mxu0
    %3334 = vmatprep.mubr.f32.mxu0 0.0
    %v3335 = vand.u32 %v2133, 4294901760
    %v3336 = vsub.f32 %v2133, %v3335
    %v3337 = vand.u32 %v3336, 4294901760
    %3338 = vmatmul.mubr.f32.gmra.mrb[0].mxu0 %v3337
    %v3339 = vpop.f32.mrb[0].mxu0
    %v3340 = vadd.f32 %v3033, %v3339
    %v3341 = vpop.f32.mrb[0].mxu0
    %3342 = vmatprep.mubr.f32.mxu0 0.0
    %v3343 = vand.u32 %v2134, 4294901760
    %v3344 = vsub.f32 %v2134, %v3343
    %v3345 = vand.u32 %v3344, 4294901760
    %3346 = vmatmul.mubr.f32.gmra.mrb[0].mxu0 %v3345
    %v3347 = vpop.f32.mrb[0].mxu0
    %v3348 = vadd.f32 %v3040, %v3347
    %v3349 = vpop.f32.mrb[0].mxu0
    %3350 = vmatprep.mubr.f32.mxu0 0.0
    %v3351 = vand.u32 %v2135, 4294901760
    %v3352 = vsub.f32 %v2135, %v3351
    %v3353 = vand.u32 %v3352, 4294901760
    %3354 = vmatmul.mubr.f32.gmra.mrb[0].mxu0 %v3353
    %v3355 = vpop.f32.mrb[0].mxu0
    %v3356 = vadd.f32 %v3047, %v3355
    %v3357 = vpop.f32.mrb[0].mxu0
    %3358 = vmatprep.mubr.f32.mxu0 0.0
    %v3359 = vand.u32 %v2136, 4294901760
    %v3360 = vsub.f32 %v2136, %v3359
    %v3361 = vand.u32 %v3360, 4294901760
    %3362 = vmatmul.mubr.f32.gmra.mrb[0].mxu0 %v3361
    %v3363 = vpop.f32.mrb[0].mxu0
    %v3364 = vadd.f32 %v3054, %v3363
    %v3365 = vpop.f32.mrb[0].mxu0
    %3366 = vmatprep.mubr.f32.mxu0 0.0
    %v3367 = vand.u32 %v2137, 4294901760
    %v3368 = vsub.f32 %v2137, %v3367
    %v3369 = vand.u32 %v3368, 4294901760
    %3370 = vmatmul.mubr.f32.gmra.mrb[0].mxu0 %v3369
    %v3371 = vpop.f32.mrb[0].mxu0
    %v3372 = vadd.f32 %v3061, %v3371
    %v3373 = vpop.f32.mrb[0].mxu0
    %3374 = vmatprep.mubr.f32.mxu0 0.0
    %v3375 = vand.u32 %v2138, 4294901760
    %v3376 = vsub.f32 %v2138, %v3375
    %v3377 = vand.u32 %v3376, 4294901760
    %3378 = vmatmul.mubr.f32.gmra.mrb[0].mxu0 %v3377
    %v3379 = vpop.f32.mrb[0].mxu0
    %v3380 = vadd.f32 %v3068, %v3379
    %v3381 = vpop.f32.mrb[0].mxu0
    %3382 = vmatprep.mubr.f32.mxu0 0.0
    %v3383 = vand.u32 %v2139, 4294901760
    %v3384 = vsub.f32 %v2139, %v3383
    %v3385 = vand.u32 %v3384, 4294901760
    %3386 = vmatmul.mubr.f32.gmra.mrb[0].mxu0 %v3385
    %v3387 = vpop.f32.mrb[0].mxu0
    %v3388 = vadd.f32 %v3075, %v3387
    %v3389 = vpop.f32.mrb[0].mxu0
    %3390 = vmatprep.mubr.f32.mxu0 0.0
    %v3391 = vand.u32 %v2140, 4294901760
    %v3392 = vsub.f32 %v2140, %v3391
    %v3393 = vand.u32 %v3392, 4294901760
    %3394 = vmatmul.mubr.f32.gmra.mrb[0].mxu0 %v3393
    %v3395 = vpop.f32.mrb[0].mxu0
    %v3396 = vadd.f32 %v3082, %v3395
    %v3397 = vpop.f32.mrb[0].mxu0
    %3398 = vmatprep.mubr.f32.mxu0 0.0
    %v3399 = vand.u32 %v2141, 4294901760
    %v3400 = vsub.f32 %v2141, %v3399
    %v3401 = vand.u32 %v3400, 4294901760
    %3402 = vmatmul.mubr.f32.gmra.mrb[0].mxu0 %v3401
    %v3403 = vpop.f32.mrb[0].mxu0
    %v3404 = vadd.f32 %v3089, %v3403
    %v3405 = vpop.f32.mrb[0].mxu0
    %3406 = vmatprep.mubr.f32.mxu0 0.0
    %v3407 = vand.u32 %v2142, 4294901760
    %v3408 = vsub.f32 %v2142, %v3407
    %v3409 = vand.u32 %v3408, 4294901760
    %3410 = vmatmul.mubr.f32.gmra.mrb[0].mxu0 %v3409
    %v3411 = vpop.f32.mrb[0].mxu0
    %v3412 = vadd.f32 %v3096, %v3411
    %v3413 = vpop.f32.mrb[0].mxu0
    %3414 = vmatprep.mubr.f32.mxu0 0.0
    %v3415 = vand.u32 %v2143, 4294901760
    %v3416 = vsub.f32 %v2143, %v3415
    %v3417 = vand.u32 %v3416, 4294901760
    %3418 = vmatmul.mubr.f32.gmra.mrb[0].mxu0 %v3417
    %v3419 = vpop.f32.mrb[0].mxu0
    %v3420 = vadd.f32 %v3103, %v3419
    %v3421 = vpop.f32.mrb[0].mxu0
    %3422 = vmatprep.mubr.f32.mxu0 0.0
    %v3423 = vand.u32 %v2144, 4294901760
    %v3424 = vsub.f32 %v2144, %v3423
    %v3425 = vand.u32 %v3424, 4294901760
    %3426 = vmatmul.mubr.f32.gmra.mrb[0].mxu0 %v3425
    %v3427 = vpop.f32.mrb[0].mxu0
    %v3428 = vadd.f32 %v3110, %v3427
    %v3429 = vpop.f32.mrb[0].mxu0
    %3430 = vmatprep.mubr.f32.mxu0 0.0
    %v3431 = vand.u32 %v2145, 4294901760
    %v3432 = vsub.f32 %v2145, %v3431
    %v3433 = vand.u32 %v3432, 4294901760
    %3434 = vmatmul.mubr.f32.gmra.mrb[0].mxu0 %v3433
    %v3435 = vpop.f32.mrb[0].mxu0
    %v3436 = vadd.f32 %v3117, %v3435
    %v3437 = vpop.f32.mrb[0].mxu0
    %3438 = vmatprep.mubr.f32.mxu0 0.0
    %v3439 = vand.u32 %v2146, 4294901760
    %v3440 = vsub.f32 %v2146, %v3439
    %v3441 = vand.u32 %v3440, 4294901760
    %3442 = vmatmul.mubr.f32.gmra.mrb[0].mxu0 %v3441
    %v3443 = vpop.f32.mrb[0].mxu0
    %v3444 = vadd.f32 %v3124, %v3443
    %v3445 = vpop.f32.mrb[0].mxu0
    %3446 = vmatprep.mubr.f32.mxu0 0.0
    %v3447 = vand.u32 %v2147, 4294901760
    %v3448 = vsub.f32 %v2147, %v3447
    %v3449 = vand.u32 %v3448, 4294901760
    %3450 = vmatmul.mubr.f32.gmra.mrb[0].mxu0 %v3449
    %v3451 = vpop.f32.mrb[0].mxu0
    %v3452 = vadd.f32 %v3131, %v3451
    %v3453 = vpop.f32.mrb[0].mxu0
    %3454 = vmatprep.mubr.f32.mxu0 0.0
    %v3455 = vand.u32 %v2148, 4294901760
    %v3456 = vsub.f32 %v2148, %v3455
    %v3457 = vand.u32 %v3456, 4294901760
    %3458 = vmatmul.mubr.f32.gmra.mrb[0].mxu0 %v3457
    %v3459 = vpop.f32.mrb[0].mxu0
    %v3460 = vadd.f32 %v3138, %v3459
    %v3461 = vpop.f32.mrb[0].mxu0
    %3462 = vmatprep.mubr.f32.mxu0 0.0
    %v3463 = vand.u32 %v2149, 4294901760
    %v3464 = vsub.f32 %v2149, %v3463
    %v3465 = vand.u32 %v3464, 4294901760
    %3466 = vmatmul.mubr.f32.gmra.mrb[0].mxu0 %v3465
    %v3467 = vpop.f32.mrb[0].mxu0
    %v3468 = vadd.f32 %v3145, %v3467
    %v3469 = vpop.f32.mrb[0].mxu0
    %3470 = vmatprep.mubr.f32.mxu0 0.0
    %v3471 = vand.u32 %v2150, 4294901760
    %v3472 = vsub.f32 %v2150, %v3471
    %v3473 = vand.u32 %v3472, 4294901760
    %3474 = vmatmul.mubr.f32.gmra.mrb[0].mxu0 %v3473
    %v3475 = vpop.f32.mrb[0].mxu0
    %v3476 = vadd.f32 %v3152, %v3475
    %v3477 = vpop.f32.mrb[0].mxu0
    %3478 = vmatprep.mubr.f32.mxu0 0.0
    %v3479 = vand.u32 %v2151, 4294901760
    %v3480 = vsub.f32 %v2151, %v3479
    %v3481 = vand.u32 %v3480, 4294901760
    %3482 = vmatmul.mubr.f32.gmra.mrb[0].mxu0 %v3481
    %v3483 = vpop.f32.mrb[0].mxu0
    %v3484 = vadd.f32 %v3159, %v3483
    %v3485 = vpop.f32.mrb[0].mxu0
    %3486 = vmatprep.mubr.f32.mxu0 0.0
    %v3487 = vand.u32 %v2152, 4294901760
    %v3488 = vsub.f32 %v2152, %v3487
    %v3489 = vand.u32 %v3488, 4294901760
    %3490 = vmatmul.mubr.f32.gmra.mrb[0].mxu0 %v3489
    %v3491 = vpop.f32.mrb[0].mxu0
    %v3492 = vadd.f32 %v3166, %v3491
    %v3493 = vpop.f32.mrb[0].mxu0
    %3494 = vmatprep.mubr.f32.mxu0 0.0
    %v3495 = vand.u32 %v2153, 4294901760
    %v3496 = vsub.f32 %v2153, %v3495
    %v3497 = vand.u32 %v3496, 4294901760
    %3498 = vmatmul.mubr.f32.gmra.mrb[0].mxu0 %v3497
    %v3499 = vpop.f32.mrb[0].mxu0
    %v3500 = vadd.f32 %v3173, %v3499
    %v3501 = vpop.f32.mrb[0].mxu0
    %3502 = vmatprep.mubr.f32.mxu0 0.0
    %v3503 = vand.u32 %v2154, 4294901760
    %v3504 = vsub.f32 %v2154, %v3503
    %v3505 = vand.u32 %v3504, 4294901760
    %3506 = vmatmul.mubr.f32.gmra.mrb[0].mxu0 %v3505
    %v3507 = vpop.f32.mrb[0].mxu0
    %v3508 = vadd.f32 %v3180, %v3507
    %v3509 = vpop.f32.mrb[0].mxu0
    %3510 = vmatprep.mubr.f32.mxu0 0.0
    %v3511 = vand.u32 %v2155, 4294901760
    %v3512 = vsub.f32 %v2155, %v3511
    %v3513 = vand.u32 %v3512, 4294901760
    %3514 = vmatmul.mubr.f32.gmra.mrb[0].mxu0 %v3513
    %v3515 = vpop.f32.mrb[0].mxu0
    %v3516 = vadd.f32 %v3187, %v3515
    %v3517 = vpop.f32.mrb[0].mxu0
    %3518 = vmatprep.mubr.f32.mxu0 0.0
    %v3519 = vand.u32 %v2156, 4294901760
    %v3520 = vsub.f32 %v2156, %v3519
    %v3521 = vand.u32 %v3520, 4294901760
    %3522 = vmatmul.mubr.f32.gmra.mrb[0].mxu0 %v3521
    %v3523 = vpop.f32.mrb[0].mxu0
    %v3524 = vadd.f32 %v3194, %v3523
    %v3525 = vpop.f32.mrb[0].mxu0
    %3526 = vmatprep.mubr.f32.mxu0 0.0
    %v3527 = vand.u32 %v2157, 4294901760
    %v3528 = vsub.f32 %v2157, %v3527
    %v3529 = vand.u32 %v3528, 4294901760
    %3530 = vmatmul.mubr.f32.gmra.mrb[0].mxu0 %v3529
    %v3531 = vpop.f32.mrb[0].mxu0
    %v3532 = vadd.f32 %v3201, %v3531
    %v3533 = vpop.f32.mrb[0].mxu0
    %3534 = vmatprep.mubr.f32.mxu0 0.0
    %v3535 = vand.u32 %v2158, 4294901760
    %v3536 = vsub.f32 %v2158, %v3535
    %v3537 = vand.u32 %v3536, 4294901760
    %3538 = vmatmul.mubr.f32.gmra.mrb[0].mxu0 %v3537
    %v3539 = vpop.f32.mrb[0].mxu0
    %v3540 = vadd.f32 %v3208, %v3539
    %v3541 = vpop.f32.mrb[0].mxu0
    %3542 = vmatprep.mubr.f32.mxu0 0.0
    %v3543 = vand.u32 %v2159, 4294901760
    %v3544 = vsub.f32 %v2159, %v3543
    %v3545 = vand.u32 %v3544, 4294901760
    %3546 = vmatmul.mubr.f32.gmra.mrb[0].mxu0 %v3545
    %v3547 = vpop.f32.mrb[0].mxu0
    %v3548 = vadd.f32 %v3215, %v3547
    %v3549 = vpop.f32.mrb[0].mxu0
    %3550 = vmatprep.mubr.f32.mxu0 0.0
    %v3551 = vand.u32 %v2160, 4294901760
    %v3552 = vsub.f32 %v2160, %v3551
    %v3553 = vand.u32 %v3552, 4294901760
    %3554 = vmatmul.mubr.f32.gmra.mrb[0].mxu0 %v3553
    %v3555 = vpop.f32.mrb[0].mxu0
    %v3556 = vadd.f32 %v3222, %v3555
    %v3557 = vpop.f32.mrb[0].mxu0
    %3558 = vmatprep.mubr.f32.mxu0 0.0
    %v3559 = vand.u32 %v2161, 4294901760
    %v3560 = vsub.f32 %v2161, %v3559
    %v3561 = vand.u32 %v3560, 4294901760
    %3562 = vmatmul.mubr.f32.gmra.mrb[0].mxu0 %v3561
    %v3563 = vpop.f32.mrb[0].mxu0
    %v3564 = vadd.f32 %v3229, %v3563
    %v3565 = vpop.f32.mrb[0].mxu0
    %3566 = vmatprep.mubr.f32.mxu0 0.0
    %v3567 = vand.u32 %v2162, 4294901760
    %v3568 = vsub.f32 %v2162, %v3567
    %v3569 = vand.u32 %v3568, 4294901760
    %3570 = vmatmul.mubr.f32.gmra.mrb[0].mxu0 %v3569
    %v3571 = vpop.f32.mrb[0].mxu0
    %v3572 = vadd.f32 %v3236, %v3571
    %v3573 = vpop.f32.mrb[0].mxu0
    %3574 = vmatprep.mubr.f32.mxu0 0.0
    %v3575 = vand.u32 %v2163, 4294901760
    %v3576 = vsub.f32 %v2163, %v3575
    %v3577 = vand.u32 %v3576, 4294901760
    %3578 = vmatmul.mubr.f32.gmra.mrb[0].mxu0 %v3577
    %v3579 = vpop.f32.mrb[0].mxu0
    %v3580 = vadd.f32 %v3243, %v3579
    %v3581 = vpop.f32.mrb[0].mxu0
    %3582 = vdwg.mxu0
    %3583 = vmatprep.subr.mxu0 0.0
    %v3584 = vand.u32 %v2164, 4294901760
    %v3585 = vsub.f32 %v2164, %v3584
    %v3586 = vand.u32 %v3585, 4294901760
    %3587 = vmatpush1.msra.mxu0 %v3586
    %3588 = vmatprep.subr.mxu0 0.0
    %v3589 = vand.u32 %v2165, 4294901760
    %v3590 = vsub.f32 %v2165, %v3589
    %v3591 = vand.u32 %v3590, 4294901760
    %3592 = vmatpush1.msra.mxu0 %v3591
    %3593 = vmatprep.subr.mxu0 0.0
    %v3594 = vand.u32 %v2166, 4294901760
    %v3595 = vsub.f32 %v2166, %v3594
    %v3596 = vand.u32 %v3595, 4294901760
    %3597 = vmatpush1.msra.mxu0 %v3596
    %3598 = vmatprep.subr.mxu0 0.0
    %v3599 = vand.u32 %v2167, 4294901760
    %v3600 = vsub.f32 %v2167, %v3599
    %v3601 = vand.u32 %v3600, 4294901760
    %3602 = vmatpush1.msra.mxu0 %v3601
    %3603 = vmatprep.subr.mxu0 0.0
    %v3604 = vand.u32 %v2168, 4294901760
    %v3605 = vsub.f32 %v2168, %v3604
    %v3606 = vand.u32 %v3605, 4294901760
    %3607 = vmatpush1.msra.mxu0 %v3606
    %3608 = vmatprep.subr.mxu0 0.0
    %v3609 = vand.u32 %v2169, 4294901760
    %v3610 = vsub.f32 %v2169, %v3609
    %v3611 = vand.u32 %v3610, 4294901760
    %3612 = vmatpush1.msra.mxu0 %v3611
    %3613 = vmatprep.subr.mxu0 0.0
    %v3614 = vand.u32 %v2170, 4294901760
    %v3615 = vsub.f32 %v2170, %v3614
    %v3616 = vand.u32 %v3615, 4294901760
    %3617 = vmatpush1.msra.mxu0 %v3616
    %3618 = vmatprep.subr.mxu0 0.0
    %v3619 = vand.u32 %v2171, 4294901760
    %v3620 = vsub.f32 %v2171, %v3619
    %v3621 = vand.u32 %v3620, 4294901760
    %3622 = vmatpush1.msra.mxu0 %v3621
    %3623 = vmatprep.subr.mxu0 0.0
    %v3624 = vand.u32 %v2172, 4294901760
    %v3625 = vsub.f32 %v2172, %v3624
    %v3626 = vand.u32 %v3625, 4294901760
    %3627 = vmatpush1.msra.mxu0 %v3626
    %3628 = vmatprep.subr.mxu0 0.0
    %v3629 = vand.u32 %v2173, 4294901760
    %v3630 = vsub.f32 %v2173, %v3629
    %v3631 = vand.u32 %v3630, 4294901760
    %3632 = vmatpush1.msra.mxu0 %v3631
    %3633 = vmatprep.subr.mxu0 0.0
    %v3634 = vand.u32 %v2174, 4294901760
    %v3635 = vsub.f32 %v2174, %v3634
    %v3636 = vand.u32 %v3635, 4294901760
    %3637 = vmatpush1.msra.mxu0 %v3636
    %3638 = vmatprep.subr.mxu0 0.0
    %v3639 = vand.u32 %v2175, 4294901760
    %v3640 = vsub.f32 %v2175, %v3639
    %v3641 = vand.u32 %v3640, 4294901760
    %3642 = vmatpush1.msra.mxu0 %v3641
    %3643 = vmatprep.subr.mxu0 0.0
    %v3644 = vand.u32 %v2176, 4294901760
    %v3645 = vsub.f32 %v2176, %v3644
    %v3646 = vand.u32 %v3645, 4294901760
    %3647 = vmatpush1.msra.mxu0 %v3646
    %3648 = vmatprep.subr.mxu0 0.0
    %v3649 = vand.u32 %v2177, 4294901760
    %v3650 = vsub.f32 %v2177, %v3649
    %v3651 = vand.u32 %v3650, 4294901760
    %3652 = vmatpush1.msra.mxu0 %v3651
    %3653 = vmatprep.subr.mxu0 0.0
    %v3654 = vand.u32 %v2178, 4294901760
    %v3655 = vsub.f32 %v2178, %v3654
    %v3656 = vand.u32 %v3655, 4294901760
    %3657 = vmatpush1.msra.mxu0 %v3656
    %3658 = vmatprep.subr.mxu0 0.0
    %v3659 = vand.u32 %v2179, 4294901760
    %v3660 = vsub.f32 %v2179, %v3659
    %v3661 = vand.u32 %v3660, 4294901760
    %3662 = vmatpush1.msra.mxu0 %v3661
    %3663 = vmatprep.subr.mxu0 0.0
    %3664 = vmatpush1.msra.mxu0 0.0
    %3665 = vmatprep.subr.mxu0 0.0
    %3666 = vmatpush1.msra.mxu0 0.0
    %3667 = vmatprep.subr.mxu0 0.0
    %3668 = vmatpush1.msra.mxu0 0.0
    %3669 = vmatprep.subr.mxu0 0.0
    %3670 = vmatpush1.msra.mxu0 0.0
    %3671 = vmatprep.subr.mxu0 0.0
    %3672 = vmatpush1.msra.mxu0 0.0
    %3673 = vmatprep.subr.mxu0 0.0
    %3674 = vmatpush1.msra.mxu0 0.0
    %3675 = vmatprep.subr.mxu0 0.0
    %3676 = vmatpush1.msra.mxu0 0.0
    %3677 = vmatprep.subr.mxu0 0.0
    %3678 = vmatpush1.msra.mxu0 0.0
    %3679 = vmatprep.subr.mxu0 0.0
    %3680 = vmatpush1.msra.mxu0 0.0
    %3681 = vmatprep.subr.mxu0 0.0
    %3682 = vmatpush1.msra.mxu0 0.0
    %3683 = vmatprep.subr.mxu0 0.0
    %3684 = vmatpush1.msra.mxu0 0.0
    %3685 = vmatprep.subr.mxu0 0.0
    %3686 = vmatpush1.msra.mxu0 0.0
    %3687 = vmatprep.subr.mxu0 0.0
    %3688 = vmatpush1.msra.mxu0 0.0
    %3689 = vmatprep.subr.mxu0 0.0
    %3690 = vmatpush1.msra.mxu0 0.0
    %3691 = vmatprep.subr.mxu0 0.0
    %3692 = vmatpush1.msra.mxu0 0.0
    %3693 = vmatprep.subr.mxu0 0.0
    %3694 = vmatpush1.msra.mxu0 0.0
    %3695 = vmatprep.mubr.f32.mxu0 0.0
    %v3696 = vand.u32 %v2132, 4294901760
    %3697 = vmatmul.mubr.f32.gmra.mrb[0].mxu0 %v3696
    %v3698 = vpop.f32.mrb[0].mxu0
    %v3699 = vadd.f32 %v3332, %v3698
    %v3700 = vpop.f32.mrb[0].mxu0
    %3701 = vmatprep.mubr.f32.mxu0 0.0
    %v3702 = vand.u32 %v2133, 4294901760
    %3703 = vmatmul.mubr.f32.gmra.mrb[0].mxu0 %v3702
    %v3704 = vpop.f32.mrb[0].mxu0
    %v3705 = vadd.f32 %v3340, %v3704
    %v3706 = vpop.f32.mrb[0].mxu0
    %3707 = vmatprep.mubr.f32.mxu0 0.0
    %v3708 = vand.u32 %v2134, 4294901760
    %3709 = vmatmul.mubr.f32.gmra.mrb[0].mxu0 %v3708
    %v3710 = vpop.f32.mrb[0].mxu0
    %v3711 = vadd.f32 %v3348, %v3710
    %v3712 = vpop.f32.mrb[0].mxu0
    %3713 = vmatprep.mubr.f32.mxu0 0.0
    %v3714 = vand.u32 %v2135, 4294901760
    %3715 = vmatmul.mubr.f32.gmra.mrb[0].mxu0 %v3714
    %v3716 = vpop.f32.mrb[0].mxu0
    %v3717 = vadd.f32 %v3356, %v3716
    %v3718 = vpop.f32.mrb[0].mxu0
    %3719 = vmatprep.mubr.f32.mxu0 0.0
    %v3720 = vand.u32 %v2136, 4294901760
    %3721 = vmatmul.mubr.f32.gmra.mrb[0].mxu0 %v3720
    %v3722 = vpop.f32.mrb[0].mxu0
    %v3723 = vadd.f32 %v3364, %v3722
    %v3724 = vpop.f32.mrb[0].mxu0
    %3725 = vmatprep.mubr.f32.mxu0 0.0
    %v3726 = vand.u32 %v2137, 4294901760
    %3727 = vmatmul.mubr.f32.gmra.mrb[0].mxu0 %v3726
    %v3728 = vpop.f32.mrb[0].mxu0
    %v3729 = vadd.f32 %v3372, %v3728
    %v3730 = vpop.f32.mrb[0].mxu0
    %3731 = vmatprep.mubr.f32.mxu0 0.0
    %v3732 = vand.u32 %v2138, 4294901760
    %3733 = vmatmul.mubr.f32.gmra.mrb[0].mxu0 %v3732
    %v3734 = vpop.f32.mrb[0].mxu0
    %v3735 = vadd.f32 %v3380, %v3734
    %v3736 = vpop.f32.mrb[0].mxu0
    %3737 = vmatprep.mubr.f32.mxu0 0.0
    %v3738 = vand.u32 %v2139, 4294901760
    %3739 = vmatmul.mubr.f32.gmra.mrb[0].mxu0 %v3738
    %v3740 = vpop.f32.mrb[0].mxu0
    %v3741 = vadd.f32 %v3388, %v3740
    %v3742 = vpop.f32.mrb[0].mxu0
    %3743 = vmatprep.mubr.f32.mxu0 0.0
    %v3744 = vand.u32 %v2140, 4294901760
    %3745 = vmatmul.mubr.f32.gmra.mrb[0].mxu0 %v3744
    %v3746 = vpop.f32.mrb[0].mxu0
    %v3747 = vadd.f32 %v3396, %v3746
    %v3748 = vpop.f32.mrb[0].mxu0
    %3749 = vmatprep.mubr.f32.mxu0 0.0
    %v3750 = vand.u32 %v2141, 4294901760
    %3751 = vmatmul.mubr.f32.gmra.mrb[0].mxu0 %v3750
    %v3752 = vpop.f32.mrb[0].mxu0
    %v3753 = vadd.f32 %v3404, %v3752
    %v3754 = vpop.f32.mrb[0].mxu0
    %3755 = vmatprep.mubr.f32.mxu0 0.0
    %v3756 = vand.u32 %v2142, 4294901760
    %3757 = vmatmul.mubr.f32.gmra.mrb[0].mxu0 %v3756
    %v3758 = vpop.f32.mrb[0].mxu0
    %v3759 = vadd.f32 %v3412, %v3758
    %v3760 = vpop.f32.mrb[0].mxu0
    %3761 = vmatprep.mubr.f32.mxu0 0.0
    %v3762 = vand.u32 %v2143, 4294901760
    %3763 = vmatmul.mubr.f32.gmra.mrb[0].mxu0 %v3762
    %v3764 = vpop.f32.mrb[0].mxu0
    %v3765 = vadd.f32 %v3420, %v3764
    %v3766 = vpop.f32.mrb[0].mxu0
    %3767 = vmatprep.mubr.f32.mxu0 0.0
    %v3768 = vand.u32 %v2144, 4294901760
    %3769 = vmatmul.mubr.f32.gmra.mrb[0].mxu0 %v3768
    %v3770 = vpop.f32.mrb[0].mxu0
    %v3771 = vadd.f32 %v3428, %v3770
    %v3772 = vpop.f32.mrb[0].mxu0
    %3773 = vmatprep.mubr.f32.mxu0 0.0
    %v3774 = vand.u32 %v2145, 4294901760
    %3775 = vmatmul.mubr.f32.gmra.mrb[0].mxu0 %v3774
    %v3776 = vpop.f32.mrb[0].mxu0
    %v3777 = vadd.f32 %v3436, %v3776
    %v3778 = vpop.f32.mrb[0].mxu0
    %3779 = vmatprep.mubr.f32.mxu0 0.0
    %v3780 = vand.u32 %v2146, 4294901760
    %3781 = vmatmul.mubr.f32.gmra.mrb[0].mxu0 %v3780
    %v3782 = vpop.f32.mrb[0].mxu0
    %v3783 = vadd.f32 %v3444, %v3782
    %v3784 = vpop.f32.mrb[0].mxu0
    %3785 = vmatprep.mubr.f32.mxu0 0.0
    %v3786 = vand.u32 %v2147, 4294901760
    %3787 = vmatmul.mubr.f32.gmra.mrb[0].mxu0 %v3786
    %v3788 = vpop.f32.mrb[0].mxu0
    %v3789 = vadd.f32 %v3452, %v3788
    %v3790 = vpop.f32.mrb[0].mxu0
    %3791 = vmatprep.mubr.f32.mxu0 0.0
    %v3792 = vand.u32 %v2148, 4294901760
    %3793 = vmatmul.mubr.f32.gmra.mrb[0].mxu0 %v3792
    %v3794 = vpop.f32.mrb[0].mxu0
    %v3795 = vadd.f32 %v3460, %v3794
    %v3796 = vpop.f32.mrb[0].mxu0
    %3797 = vmatprep.mubr.f32.mxu0 0.0
    %v3798 = vand.u32 %v2149, 4294901760
    %3799 = vmatmul.mubr.f32.gmra.mrb[0].mxu0 %v3798
    %v3800 = vpop.f32.mrb[0].mxu0
    %v3801 = vadd.f32 %v3468, %v3800
    %v3802 = vpop.f32.mrb[0].mxu0
    %3803 = vmatprep.mubr.f32.mxu0 0.0
    %v3804 = vand.u32 %v2150, 4294901760
    %3805 = vmatmul.mubr.f32.gmra.mrb[0].mxu0 %v3804
    %v3806 = vpop.f32.mrb[0].mxu0
    %v3807 = vadd.f32 %v3476, %v3806
    %v3808 = vpop.f32.mrb[0].mxu0
    %3809 = vmatprep.mubr.f32.mxu0 0.0
    %v3810 = vand.u32 %v2151, 4294901760
    %3811 = vmatmul.mubr.f32.gmra.mrb[0].mxu0 %v3810
    %v3812 = vpop.f32.mrb[0].mxu0
    %v3813 = vadd.f32 %v3484, %v3812
    %v3814 = vpop.f32.mrb[0].mxu0
    %3815 = vmatprep.mubr.f32.mxu0 0.0
    %v3816 = vand.u32 %v2152, 4294901760
    %3817 = vmatmul.mubr.f32.gmra.mrb[0].mxu0 %v3816
    %v3818 = vpop.f32.mrb[0].mxu0
    %v3819 = vadd.f32 %v3492, %v3818
    %v3820 = vpop.f32.mrb[0].mxu0
    %3821 = vmatprep.mubr.f32.mxu0 0.0
    %v3822 = vand.u32 %v2153, 4294901760
    %3823 = vmatmul.mubr.f32.gmra.mrb[0].mxu0 %v3822
    %v3824 = vpop.f32.mrb[0].mxu0
    %v3825 = vadd.f32 %v3500, %v3824
    %v3826 = vpop.f32.mrb[0].mxu0
    %3827 = vmatprep.mubr.f32.mxu0 0.0
    %v3828 = vand.u32 %v2154, 4294901760
    %3829 = vmatmul.mubr.f32.gmra.mrb[0].mxu0 %v3828
    %v3830 = vpop.f32.mrb[0].mxu0
    %v3831 = vadd.f32 %v3508, %v3830
    %v3832 = vpop.f32.mrb[0].mxu0
    %3833 = vmatprep.mubr.f32.mxu0 0.0
    %v3834 = vand.u32 %v2155, 4294901760
    %3835 = vmatmul.mubr.f32.gmra.mrb[0].mxu0 %v3834
    %v3836 = vpop.f32.mrb[0].mxu0
    %v3837 = vadd.f32 %v3516, %v3836
    %v3838 = vpop.f32.mrb[0].mxu0
    %3839 = vmatprep.mubr.f32.mxu0 0.0
    %v3840 = vand.u32 %v2156, 4294901760
    %3841 = vmatmul.mubr.f32.gmra.mrb[0].mxu0 %v3840
    %v3842 = vpop.f32.mrb[0].mxu0
    %v3843 = vadd.f32 %v3524, %v3842
    %v3844 = vpop.f32.mrb[0].mxu0
    %3845 = vmatprep.mubr.f32.mxu0 0.0
    %v3846 = vand.u32 %v2157, 4294901760
    %3847 = vmatmul.mubr.f32.gmra.mrb[0].mxu0 %v3846
    %v3848 = vpop.f32.mrb[0].mxu0
    %v3849 = vadd.f32 %v3532, %v3848
    %v3850 = vpop.f32.mrb[0].mxu0
    %3851 = vmatprep.mubr.f32.mxu0 0.0
    %v3852 = vand.u32 %v2158, 4294901760
    %3853 = vmatmul.mubr.f32.gmra.mrb[0].mxu0 %v3852
    %v3854 = vpop.f32.mrb[0].mxu0
    %v3855 = vadd.f32 %v3540, %v3854
    %v3856 = vpop.f32.mrb[0].mxu0
    %3857 = vmatprep.mubr.f32.mxu0 0.0
    %v3858 = vand.u32 %v2159, 4294901760
    %3859 = vmatmul.mubr.f32.gmra.mrb[0].mxu0 %v3858
    %v3860 = vpop.f32.mrb[0].mxu0
    %v3861 = vadd.f32 %v3548, %v3860
    %v3862 = vpop.f32.mrb[0].mxu0
    %3863 = vmatprep.mubr.f32.mxu0 0.0
    %v3864 = vand.u32 %v2160, 4294901760
    %3865 = vmatmul.mubr.f32.gmra.mrb[0].mxu0 %v3864
    %v3866 = vpop.f32.mrb[0].mxu0
    %v3867 = vadd.f32 %v3556, %v3866
    %v3868 = vpop.f32.mrb[0].mxu0
    %3869 = vmatprep.mubr.f32.mxu0 0.0
    %v3870 = vand.u32 %v2161, 4294901760
    %3871 = vmatmul.mubr.f32.gmra.mrb[0].mxu0 %v3870
    %v3872 = vpop.f32.mrb[0].mxu0
    %v3873 = vadd.f32 %v3564, %v3872
    %v3874 = vpop.f32.mrb[0].mxu0
    %3875 = vmatprep.mubr.f32.mxu0 0.0
    %v3876 = vand.u32 %v2162, 4294901760
    %3877 = vmatmul.mubr.f32.gmra.mrb[0].mxu0 %v3876
    %v3878 = vpop.f32.mrb[0].mxu0
    %v3879 = vadd.f32 %v3572, %v3878
    %v3880 = vpop.f32.mrb[0].mxu0
    %3881 = vmatprep.mubr.f32.mxu0 0.0
    %v3882 = vand.u32 %v2163, 4294901760
    %3883 = vmatmul.mubr.f32.gmra.mrb[0].mxu0 %v3882
    %v3884 = vpop.f32.mrb[0].mxu0
    %v3885 = vadd.f32 %v3580, %v3884
    %v3886 = vpop.f32.mrb[0].mxu0
    %3887 = vdwg.mxu0
    %3888 = vmatprep.subr.mxu0 0.0
    %v3889 = vand.u32 %v2164, 4294901760
    %3890 = vmatpush1.msra.mxu0 %v3889
    %3891 = vmatprep.subr.mxu0 0.0
    %v3892 = vand.u32 %v2165, 4294901760
    %3893 = vmatpush1.msra.mxu0 %v3892
    %3894 = vmatprep.subr.mxu0 0.0
    %v3895 = vand.u32 %v2166, 4294901760
    %3896 = vmatpush1.msra.mxu0 %v3895
    %3897 = vmatprep.subr.mxu0 0.0
    %v3898 = vand.u32 %v2167, 4294901760
    %3899 = vmatpush1.msra.mxu0 %v3898
    %3900 = vmatprep.subr.mxu0 0.0
    %v3901 = vand.u32 %v2168, 4294901760
    %3902 = vmatpush1.msra.mxu0 %v3901
    %3903 = vmatprep.subr.mxu0 0.0
    %v3904 = vand.u32 %v2169, 4294901760
    %3905 = vmatpush1.msra.mxu0 %v3904
    %3906 = vmatprep.subr.mxu0 0.0
    %v3907 = vand.u32 %v2170, 4294901760
    %3908 = vmatpush1.msra.mxu0 %v3907
    %3909 = vmatprep.subr.mxu0 0.0
    %v3910 = vand.u32 %v2171, 4294901760
    %3911 = vmatpush1.msra.mxu0 %v3910
    %3912 = vmatprep.subr.mxu0 0.0
    %v3913 = vand.u32 %v2172, 4294901760
    %3914 = vmatpush1.msra.mxu0 %v3913
    %3915 = vmatprep.subr.mxu0 0.0
    %v3916 = vand.u32 %v2173, 4294901760
    %3917 = vmatpush1.msra.mxu0 %v3916
    %3918 = vmatprep.subr.mxu0 0.0
    %v3919 = vand.u32 %v2174, 4294901760
    %3920 = vmatpush1.msra.mxu0 %v3919
    %3921 = vmatprep.subr.mxu0 0.0
    %v3922 = vand.u32 %v2175, 4294901760
    %3923 = vmatpush1.msra.mxu0 %v3922
    %3924 = vmatprep.subr.mxu0 0.0
    %v3925 = vand.u32 %v2176, 4294901760
    %3926 = vmatpush1.msra.mxu0 %v3925
    %3927 = vmatprep.subr.mxu0 0.0
    %v3928 = vand.u32 %v2177, 4294901760
    %3929 = vmatpush1.msra.mxu0 %v3928
    %3930 = vmatprep.subr.mxu0 0.0
    %v3931 = vand.u32 %v2178, 4294901760
    %3932 = vmatpush1.msra.mxu0 %v3931
    %3933 = vmatprep.subr.mxu0 0.0
    %v3934 = vand.u32 %v2179, 4294901760
    %3935 = vmatpush1.msra.mxu0 %v3934
    %3936 = vmatprep.subr.mxu0 0.0
    %3937 = vmatpush1.msra.mxu0 0.0
    %3938 = vmatprep.subr.mxu0 0.0
    %3939 = vmatpush1.msra.mxu0 0.0
    %3940 = vmatprep.subr.mxu0 0.0
    %3941 = vmatpush1.msra.mxu0 0.0
    %3942 = vmatprep.subr.mxu0 0.0
    %3943 = vmatpush1.msra.mxu0 0.0
    %3944 = vmatprep.subr.mxu0 0.0
    %3945 = vmatpush1.msra.mxu0 0.0
    %3946 = vmatprep.subr.mxu0 0.0
    %3947 = vmatpush1.msra.mxu0 0.0
    %3948 = vmatprep.subr.mxu0 0.0
    %3949 = vmatpush1.msra.mxu0 0.0
    %3950 = vmatprep.subr.mxu0 0.0
    %3951 = vmatpush1.msra.mxu0 0.0
    %3952 = vmatprep.subr.mxu0 0.0
    %3953 = vmatpush1.msra.mxu0 0.0
    %3954 = vmatprep.subr.mxu0 0.0
    %3955 = vmatpush1.msra.mxu0 0.0
    %3956 = vmatprep.subr.mxu0 0.0
    %3957 = vmatpush1.msra.mxu0 0.0
    %3958 = vmatprep.subr.mxu0 0.0
    %3959 = vmatpush1.msra.mxu0 0.0
    %3960 = vmatprep.subr.mxu0 0.0
    %3961 = vmatpush1.msra.mxu0 0.0
    %3962 = vmatprep.subr.mxu0 0.0
    %3963 = vmatpush1.msra.mxu0 0.0
    %3964 = vmatprep.subr.mxu0 0.0
    %3965 = vmatpush1.msra.mxu0 0.0
    %3966 = vmatprep.subr.mxu0 0.0
    %3967 = vmatpush1.msra.mxu0 0.0
    %3968 = vmatprep.mubr.f32.mxu0 0.0
    %v3969 = vand.u32 %v2132, 4294901760
    %3970 = vmatmul.mubr.f32.gmra.mrb[0].mxu0 %v3969
    %v3971 = vpop.f32.mrb[0].mxu0
    %v3972 = vadd.f32 %v3699, %v3971
    %v3973 = vpop.f32.mrb[0].mxu0
    %3974 = vmatprep.mubr.f32.mxu0 0.0
    %v3975 = vand.u32 %v2133, 4294901760
    %3976 = vmatmul.mubr.f32.gmra.mrb[0].mxu0 %v3975
    %v3977 = vpop.f32.mrb[0].mxu0
    %v3978 = vadd.f32 %v3705, %v3977
    %v3979 = vpop.f32.mrb[0].mxu0
    %3980 = vmatprep.mubr.f32.mxu0 0.0
    %v3981 = vand.u32 %v2134, 4294901760
    %3982 = vmatmul.mubr.f32.gmra.mrb[0].mxu0 %v3981
    %v3983 = vpop.f32.mrb[0].mxu0
    %v3984 = vadd.f32 %v3711, %v3983
    %v3985 = vpop.f32.mrb[0].mxu0
    %3986 = vmatprep.mubr.f32.mxu0 0.0
    %v3987 = vand.u32 %v2135, 4294901760
    %3988 = vmatmul.mubr.f32.gmra.mrb[0].mxu0 %v3987
    %v3989 = vpop.f32.mrb[0].mxu0
    %v3990 = vadd.f32 %v3717, %v3989
    %v3991 = vpop.f32.mrb[0].mxu0
    %3992 = vmatprep.mubr.f32.mxu0 0.0
    %v3993 = vand.u32 %v2136, 4294901760
    %3994 = vmatmul.mubr.f32.gmra.mrb[0].mxu0 %v3993
    %v3995 = vpop.f32.mrb[0].mxu0
    %v3996 = vadd.f32 %v3723, %v3995
    %v3997 = vpop.f32.mrb[0].mxu0
    %3998 = vmatprep.mubr.f32.mxu0 0.0
    %v3999 = vand.u32 %v2137, 4294901760
    %4000 = vmatmul.mubr.f32.gmra.mrb[0].mxu0 %v3999
    %v4001 = vpop.f32.mrb[0].mxu0
    %v4002 = vadd.f32 %v3729, %v4001
    %v4003 = vpop.f32.mrb[0].mxu0
    %4004 = vmatprep.mubr.f32.mxu0 0.0
    %v4005 = vand.u32 %v2138, 4294901760
    %4006 = vmatmul.mubr.f32.gmra.mrb[0].mxu0 %v4005
    %v4007 = vpop.f32.mrb[0].mxu0
    %v4008 = vadd.f32 %v3735, %v4007
    %v4009 = vpop.f32.mrb[0].mxu0
    %4010 = vmatprep.mubr.f32.mxu0 0.0
    %v4011 = vand.u32 %v2139, 4294901760
    %4012 = vmatmul.mubr.f32.gmra.mrb[0].mxu0 %v4011
    %v4013 = vpop.f32.mrb[0].mxu0
    %v4014 = vadd.f32 %v3741, %v4013
    %v4015 = vpop.f32.mrb[0].mxu0
    %4016 = vmatprep.mubr.f32.mxu0 0.0
    %v4017 = vand.u32 %v2140, 4294901760
    %4018 = vmatmul.mubr.f32.gmra.mrb[0].mxu0 %v4017
    %v4019 = vpop.f32.mrb[0].mxu0
    %v4020 = vadd.f32 %v3747, %v4019
    %v4021 = vpop.f32.mrb[0].mxu0
    %4022 = vmatprep.mubr.f32.mxu0 0.0
    %v4023 = vand.u32 %v2141, 4294901760
    %4024 = vmatmul.mubr.f32.gmra.mrb[0].mxu0 %v4023
    %v4025 = vpop.f32.mrb[0].mxu0
    %v4026 = vadd.f32 %v3753, %v4025
    %v4027 = vpop.f32.mrb[0].mxu0
    %4028 = vmatprep.mubr.f32.mxu0 0.0
    %v4029 = vand.u32 %v2142, 4294901760
    %4030 = vmatmul.mubr.f32.gmra.mrb[0].mxu0 %v4029
    %v4031 = vpop.f32.mrb[0].mxu0
    %v4032 = vadd.f32 %v3759, %v4031
    %v4033 = vpop.f32.mrb[0].mxu0
    %4034 = vmatprep.mubr.f32.mxu0 0.0
    %v4035 = vand.u32 %v2143, 4294901760
    %4036 = vmatmul.mubr.f32.gmra.mrb[0].mxu0 %v4035
    %v4037 = vpop.f32.mrb[0].mxu0
    %v4038 = vadd.f32 %v3765, %v4037
    %v4039 = vpop.f32.mrb[0].mxu0
    %4040 = vmatprep.mubr.f32.mxu0 0.0
    %v4041 = vand.u32 %v2144, 4294901760
    %4042 = vmatmul.mubr.f32.gmra.mrb[0].mxu0 %v4041
    %v4043 = vpop.f32.mrb[0].mxu0
    %v4044 = vadd.f32 %v3771, %v4043
    %v4045 = vpop.f32.mrb[0].mxu0
    %4046 = vmatprep.mubr.f32.mxu0 0.0
    %v4047 = vand.u32 %v2145, 4294901760
    %4048 = vmatmul.mubr.f32.gmra.mrb[0].mxu0 %v4047
    %v4049 = vpop.f32.mrb[0].mxu0
    %v4050 = vadd.f32 %v3777, %v4049
    %v4051 = vpop.f32.mrb[0].mxu0
    %4052 = vmatprep.mubr.f32.mxu0 0.0
    %v4053 = vand.u32 %v2146, 4294901760
    %4054 = vmatmul.mubr.f32.gmra.mrb[0].mxu0 %v4053
    %v4055 = vpop.f32.mrb[0].mxu0
    %v4056 = vadd.f32 %v3783, %v4055
    %v4057 = vpop.f32.mrb[0].mxu0
    %4058 = vmatprep.mubr.f32.mxu0 0.0
    %v4059 = vand.u32 %v2147, 4294901760
    %4060 = vmatmul.mubr.f32.gmra.mrb[0].mxu0 %v4059
    %v4061 = vpop.f32.mrb[0].mxu0
    %v4062 = vadd.f32 %v3789, %v4061
    %v4063 = vpop.f32.mrb[0].mxu0
    %4064 = vmatprep.mubr.f32.mxu0 0.0
    %v4065 = vand.u32 %v2148, 4294901760
    %4066 = vmatmul.mubr.f32.gmra.mrb[0].mxu0 %v4065
    %v4067 = vpop.f32.mrb[0].mxu0
    %v4068 = vadd.f32 %v3795, %v4067
    %v4069 = vpop.f32.mrb[0].mxu0
    %4070 = vmatprep.mubr.f32.mxu0 0.0
    %v4071 = vand.u32 %v2149, 4294901760
    %4072 = vmatmul.mubr.f32.gmra.mrb[0].mxu0 %v4071
    %v4073 = vpop.f32.mrb[0].mxu0
    %v4074 = vadd.f32 %v3801, %v4073
    %v4075 = vpop.f32.mrb[0].mxu0
    %4076 = vmatprep.mubr.f32.mxu0 0.0
    %v4077 = vand.u32 %v2150, 4294901760
    %4078 = vmatmul.mubr.f32.gmra.mrb[0].mxu0 %v4077
    %v4079 = vpop.f32.mrb[0].mxu0
    %v4080 = vadd.f32 %v3807, %v4079
    %v4081 = vpop.f32.mrb[0].mxu0
    %4082 = vmatprep.mubr.f32.mxu0 0.0
    %v4083 = vand.u32 %v2151, 4294901760
    %4084 = vmatmul.mubr.f32.gmra.mrb[0].mxu0 %v4083
    %v4085 = vpop.f32.mrb[0].mxu0
    %v4086 = vadd.f32 %v3813, %v4085
    %v4087 = vpop.f32.mrb[0].mxu0
    %4088 = vmatprep.mubr.f32.mxu0 0.0
    %v4089 = vand.u32 %v2152, 4294901760
    %4090 = vmatmul.mubr.f32.gmra.mrb[0].mxu0 %v4089
    %v4091 = vpop.f32.mrb[0].mxu0
    %v4092 = vadd.f32 %v3819, %v4091
    %v4093 = vpop.f32.mrb[0].mxu0
    %4094 = vmatprep.mubr.f32.mxu0 0.0
    %v4095 = vand.u32 %v2153, 4294901760
    %4096 = vmatmul.mubr.f32.gmra.mrb[0].mxu0 %v4095
    %v4097 = vpop.f32.mrb[0].mxu0
    %v4098 = vadd.f32 %v3825, %v4097
    %v4099 = vpop.f32.mrb[0].mxu0
    %4100 = vmatprep.mubr.f32.mxu0 0.0
    %v4101 = vand.u32 %v2154, 4294901760
    %4102 = vmatmul.mubr.f32.gmra.mrb[0].mxu0 %v4101
    %v4103 = vpop.f32.mrb[0].mxu0
    %v4104 = vadd.f32 %v3831, %v4103
    %v4105 = vpop.f32.mrb[0].mxu0
    %4106 = vmatprep.mubr.f32.mxu0 0.0
    %v4107 = vand.u32 %v2155, 4294901760
    %4108 = vmatmul.mubr.f32.gmra.mrb[0].mxu0 %v4107
    %v4109 = vpop.f32.mrb[0].mxu0
    %v4110 = vadd.f32 %v3837, %v4109
    %v4111 = vpop.f32.mrb[0].mxu0
    %4112 = vmatprep.mubr.f32.mxu0 0.0
    %v4113 = vand.u32 %v2156, 4294901760
    %4114 = vmatmul.mubr.f32.gmra.mrb[0].mxu0 %v4113
    %v4115 = vpop.f32.mrb[0].mxu0
    %v4116 = vadd.f32 %v3843, %v4115
    %v4117 = vpop.f32.mrb[0].mxu0
    %4118 = vmatprep.mubr.f32.mxu0 0.0
    %v4119 = vand.u32 %v2157, 4294901760
    %4120 = vmatmul.mubr.f32.gmra.mrb[0].mxu0 %v4119
    %v4121 = vpop.f32.mrb[0].mxu0
    %v4122 = vadd.f32 %v3849, %v4121
    %v4123 = vpop.f32.mrb[0].mxu0
    %4124 = vmatprep.mubr.f32.mxu0 0.0
    %v4125 = vand.u32 %v2158, 4294901760
    %4126 = vmatmul.mubr.f32.gmra.mrb[0].mxu0 %v4125
    %v4127 = vpop.f32.mrb[0].mxu0
    %v4128 = vadd.f32 %v3855, %v4127
    %v4129 = vpop.f32.mrb[0].mxu0
    %4130 = vmatprep.mubr.f32.mxu0 0.0
    %v4131 = vand.u32 %v2159, 4294901760
    %4132 = vmatmul.mubr.f32.gmra.mrb[0].mxu0 %v4131
    %v4133 = vpop.f32.mrb[0].mxu0
    %v4134 = vadd.f32 %v3861, %v4133
    %v4135 = vpop.f32.mrb[0].mxu0
    %4136 = vmatprep.mubr.f32.mxu0 0.0
    %v4137 = vand.u32 %v2160, 4294901760
    %4138 = vmatmul.mubr.f32.gmra.mrb[0].mxu0 %v4137
    %v4139 = vpop.f32.mrb[0].mxu0
    %v4140 = vadd.f32 %v3867, %v4139
    %v4141 = vpop.f32.mrb[0].mxu0
    %4142 = vmatprep.mubr.f32.mxu0 0.0
    %v4143 = vand.u32 %v2161, 4294901760
    %4144 = vmatmul.mubr.f32.gmra.mrb[0].mxu0 %v4143
    %v4145 = vpop.f32.mrb[0].mxu0
    %v4146 = vadd.f32 %v3873, %v4145
    %v4147 = vpop.f32.mrb[0].mxu0
    %4148 = vmatprep.mubr.f32.mxu0 0.0
    %v4149 = vand.u32 %v2162, 4294901760
    %4150 = vmatmul.mubr.f32.gmra.mrb[0].mxu0 %v4149
    %v4151 = vpop.f32.mrb[0].mxu0
    %v4152 = vadd.f32 %v3879, %v4151
    %v4153 = vpop.f32.mrb[0].mxu0
    %4154 = vmatprep.mubr.f32.mxu0 0.0
    %v4155 = vand.u32 %v2163, 4294901760
    %4156 = vmatmul.mubr.f32.gmra.mrb[0].mxu0 %v4155
    %v4157 = vpop.f32.mrb[0].mxu0
    %v4158 = vadd.f32 %v3885, %v4157
    %v4159 = vpop.f32.mrb[0].mxu0
    %4160 = vdwg.mxu0
    %v4161 = vmax.f32 %v3972, 0.0
    %v4162 = vmax.f32 %v3978, 0.0
    %v4163 = vmax.f32 %v3984, 0.0
    %v4164 = vmax.f32 %v3990, 0.0
    %v4165 = vmax.f32 %v3996, 0.0
    %v4166 = vmax.f32 %v4002, 0.0
    %v4167 = vmax.f32 %v4008, 0.0
    %v4168 = vmax.f32 %v4014, 0.0
    %v4169 = vmax.f32 %v4020, 0.0
    %v4170 = vmax.f32 %v4026, 0.0
    %v4171 = vmax.f32 %v4032, 0.0
    %v4172 = vmax.f32 %v4038, 0.0
    %v4173 = vmax.f32 %v4044, 0.0
    %v4174 = vmax.f32 %v4050, 0.0
    %v4175 = vmax.f32 %v4056, 0.0
    %v4176 = vmax.f32 %v4062, 0.0
    %v4177 = vmax.f32 %v4068, 0.0
    %v4178 = vmax.f32 %v4074, 0.0
    %v4179 = vmax.f32 %v4080, 0.0
    %v4180 = vmax.f32 %v4086, 0.0
    %v4181 = vmax.f32 %v4092, 0.0
    %v4182 = vmax.f32 %v4098, 0.0
    %v4183 = vmax.f32 %v4104, 0.0
    %v4184 = vmax.f32 %v4110, 0.0
    %v4185 = vmax.f32 %v4116, 0.0
    %v4186 = vmax.f32 %v4122, 0.0
    %v4187 = vmax.f32 %v4128, 0.0
    %v4188 = vmax.f32 %v4134, 0.0
    %v4189 = vmax.f32 %v4140, 0.0
    %v4190 = vmax.f32 %v4146, 0.0
    %v4191 = vmax.f32 %v4152, 0.0
    %v4192 = vmax.f32 %v4158, 0.0
    %v4193 = vld [vmem:[#allocation8] sm:$0xff]
    %v4194 = vld [vmem:[#allocation8 + $0x8] sm:$0xff]
    %v4195 = vld [vmem:[#allocation8 + $0x10] sm:$0xff]
    %v4196 = vld [vmem:[#allocation8 + $0x18] sm:$0xff]
    %v4197 = vld [vmem:[#allocation8 + $0x20] sm:$0xff]
    %v4198 = vld [vmem:[#allocation8 + $0x28] sm:$0xff]
    %v4199 = vld [vmem:[#allocation8 + $0x30] sm:$0xff]
    %v4200 = vld [vmem:[#allocation8 + $0x38] sm:$0xff]
    %v4201 = vld [vmem:[#allocation8 + $0x40] sm:$0xff]
    %v4202 = vld [vmem:[#allocation8 + $0x48] sm:$0xff]
    %v4203 = vld [vmem:[#allocation8 + $0x50] sm:$0xff]
    %v4204 = vld [vmem:[#allocation8 + $0x58] sm:$0xff]
    %v4205 = vld [vmem:[#allocation8 + $0x60] sm:$0xff]
    %v4206 = vld [vmem:[#allocation8 + $0x68] sm:$0xff]
    %v4207 = vld [vmem:[#allocation8 + $0x70] sm:$0xff]
    %v4208 = vld [vmem:[#allocation8 + $0x78] sm:$0xff]
    %v4209 = vld [vmem:[%s6] sm:$0x1]
    %v4211 = vlaneseq
    %v4212 = vshrl.u32 %v4211, 7
    %v4213 = vsub.s32 0, %v4212
    %v4214 = vrot.slane %v4209, %v4213
    %4216 = vmatprep.subr.mxu0 0.0
    %v4217 = vand.u32 %v4193, 4294901760
    %4218 = vmatpush1.msra.mxu0 %v4217
    %4219 = vmatprep.subr.mxu0 0.0
    %v4220 = vand.u32 %v4194, 4294901760
    %4221 = vmatpush1.msra.mxu0 %v4220
    %4222 = vmatprep.subr.mxu0 0.0
    %v4223 = vand.u32 %v4195, 4294901760
    %4224 = vmatpush1.msra.mxu0 %v4223
    %4225 = vmatprep.subr.mxu0 0.0
    %v4226 = vand.u32 %v4196, 4294901760
    %4227 = vmatpush1.msra.mxu0 %v4226
    %4228 = vmatprep.subr.mxu0 0.0
    %v4229 = vand.u32 %v4197, 4294901760
    %4230 = vmatpush1.msra.mxu0 %v4229
    %4231 = vmatprep.subr.mxu0 0.0
    %v4232 = vand.u32 %v4198, 4294901760
    %4233 = vmatpush1.msra.mxu0 %v4232
    %4234 = vmatprep.subr.mxu0 0.0
    %v4235 = vand.u32 %v4199, 4294901760
    %4236 = vmatpush1.msra.mxu0 %v4235
    %4237 = vmatprep.subr.mxu0 0.0
    %v4238 = vand.u32 %v4200, 4294901760
    %4239 = vmatpush1.msra.mxu0 %v4238
    %4240 = vmatprep.subr.mxu0 0.0
    %v4241 = vand.u32 %v4201, 4294901760
    %4242 = vmatpush1.msra.mxu0 %v4241
    %4243 = vmatprep.subr.mxu0 0.0
    %v4244 = vand.u32 %v4202, 4294901760
    %4245 = vmatpush1.msra.mxu0 %v4244
    %4246 = vmatprep.subr.mxu0 0.0
    %v4247 = vand.u32 %v4203, 4294901760
    %4248 = vmatpush1.msra.mxu0 %v4247
    %4249 = vmatprep.subr.mxu0 0.0
    %v4250 = vand.u32 %v4204, 4294901760
    %4251 = vmatpush1.msra.mxu0 %v4250
    %4252 = vmatprep.subr.mxu0 0.0
    %v4253 = vand.u32 %v4205, 4294901760
    %4254 = vmatpush1.msra.mxu0 %v4253
    %4255 = vmatprep.subr.mxu0 0.0
    %v4256 = vand.u32 %v4206, 4294901760
    %4257 = vmatpush1.msra.mxu0 %v4256
    %4258 = vmatprep.subr.mxu0 0.0
    %v4259 = vand.u32 %v4207, 4294901760
    %4260 = vmatpush1.msra.mxu0 %v4259
    %4261 = vmatprep.subr.mxu0 0.0
    %v4262 = vand.u32 %v4208, 4294901760
    %4263 = vmatpush1.msra.mxu0 %v4262
    %4264 = vmatprep.subr.mxu0 0.0
    %4265 = vmatpush1.msra.mxu0 0.0
    %4266 = vmatprep.subr.mxu0 0.0
    %4267 = vmatpush1.msra.mxu0 0.0
    %4268 = vmatprep.subr.mxu0 0.0
    %4269 = vmatpush1.msra.mxu0 0.0
    %4270 = vmatprep.subr.mxu0 0.0
    %4271 = vmatpush1.msra.mxu0 0.0
    %4272 = vmatprep.subr.mxu0 0.0
    %4273 = vmatpush1.msra.mxu0 0.0
    %4274 = vmatprep.subr.mxu0 0.0
    %4275 = vmatpush1.msra.mxu0 0.0
    %4276 = vmatprep.subr.mxu0 0.0
    %4277 = vmatpush1.msra.mxu0 0.0
    %4278 = vmatprep.subr.mxu0 0.0
    %4279 = vmatpush1.msra.mxu0 0.0
    %4280 = vmatprep.subr.mxu0 0.0
    %4281 = vmatpush1.msra.mxu0 0.0
    %4282 = vmatprep.subr.mxu0 0.0
    %4283 = vmatpush1.msra.mxu0 0.0
    %4284 = vmatprep.subr.mxu0 0.0
    %4285 = vmatpush1.msra.mxu0 0.0
    %4286 = vmatprep.subr.mxu0 0.0
    %4287 = vmatpush1.msra.mxu0 0.0
    %4288 = vmatprep.subr.mxu0 0.0
    %4289 = vmatpush1.msra.mxu0 0.0
    %4290 = vmatprep.subr.mxu0 0.0
    %4291 = vmatpush1.msra.mxu0 0.0
    %4292 = vmatprep.subr.mxu0 0.0
    %4293 = vmatpush1.msra.mxu0 0.0
    %4294 = vmatprep.subr.mxu0 0.0
    %4295 = vmatpush1.msra.mxu0 0.0
    %4296 = vmatprep.mubr.f32.mxu0 0.0
    %v4297 = vand.u32 %v4161, 4294901760
    %v4298 = vsub.f32 %v4161, %v4297
    %v4299 = vand.u32 %v4298, 4294901760
    %v4300 = vsub.f32 %v4298, %v4299
    %v4301 = vand.u32 %v4300, 4294901760
    %4302 = vmatmul.mubr.f32.gmra.mrb[0].mxu0 %v4301
    %v4303 = vpop.f32.mrb[0].mxu0
    %v4304 = vadd.f32 %v4214, %v4303
    %v4305 = vpop.f32.mrb[0].mxu0
    %4306 = vmatprep.mubr.f32.mxu0 0.0
    %v4307 = vand.u32 %v4162, 4294901760
    %v4308 = vsub.f32 %v4162, %v4307
    %v4309 = vand.u32 %v4308, 4294901760
    %v4310 = vsub.f32 %v4308, %v4309
    %v4311 = vand.u32 %v4310, 4294901760
    %4312 = vmatmul.mubr.f32.gmra.mrb[0].mxu0 %v4311
    %v4313 = vpop.f32.mrb[0].mxu0
    %v4314 = vadd.f32 %v4214, %v4313
    %v4315 = vpop.f32.mrb[0].mxu0
    %4316 = vmatprep.mubr.f32.mxu0 0.0
    %v4317 = vand.u32 %v4163, 4294901760
    %v4318 = vsub.f32 %v4163, %v4317
    %v4319 = vand.u32 %v4318, 4294901760
    %v4320 = vsub.f32 %v4318, %v4319
    %v4321 = vand.u32 %v4320, 4294901760
    %4322 = vmatmul.mubr.f32.gmra.mrb[0].mxu0 %v4321
    %v4323 = vpop.f32.mrb[0].mxu0
    %v4324 = vadd.f32 %v4214, %v4323
    %v4325 = vpop.f32.mrb[0].mxu0
    %4326 = vmatprep.mubr.f32.mxu0 0.0
    %v4327 = vand.u32 %v4164, 4294901760
    %v4328 = vsub.f32 %v4164, %v4327
    %v4329 = vand.u32 %v4328, 4294901760
    %v4330 = vsub.f32 %v4328, %v4329
    %v4331 = vand.u32 %v4330, 4294901760
    %4332 = vmatmul.mubr.f32.gmra.mrb[0].mxu0 %v4331
    %v4333 = vpop.f32.mrb[0].mxu0
    %v4334 = vadd.f32 %v4214, %v4333
    %v4335 = vpop.f32.mrb[0].mxu0
    %4336 = vmatprep.mubr.f32.mxu0 0.0
    %v4337 = vand.u32 %v4165, 4294901760
    %v4338 = vsub.f32 %v4165, %v4337
    %v4339 = vand.u32 %v4338, 4294901760
    %v4340 = vsub.f32 %v4338, %v4339
    %v4341 = vand.u32 %v4340, 4294901760
    %4342 = vmatmul.mubr.f32.gmra.mrb[0].mxu0 %v4341
    %v4343 = vpop.f32.mrb[0].mxu0
    %v4344 = vadd.f32 %v4214, %v4343
    %v4345 = vpop.f32.mrb[0].mxu0
    %4346 = vmatprep.mubr.f32.mxu0 0.0
    %v4347 = vand.u32 %v4166, 4294901760
    %v4348 = vsub.f32 %v4166, %v4347
    %v4349 = vand.u32 %v4348, 4294901760
    %v4350 = vsub.f32 %v4348, %v4349
    %v4351 = vand.u32 %v4350, 4294901760
    %4352 = vmatmul.mubr.f32.gmra.mrb[0].mxu0 %v4351
    %v4353 = vpop.f32.mrb[0].mxu0
    %v4354 = vadd.f32 %v4214, %v4353
    %v4355 = vpop.f32.mrb[0].mxu0
    %4356 = vmatprep.mubr.f32.mxu0 0.0
    %v4357 = vand.u32 %v4167, 4294901760
    %v4358 = vsub.f32 %v4167, %v4357
    %v4359 = vand.u32 %v4358, 4294901760
    %v4360 = vsub.f32 %v4358, %v4359
    %v4361 = vand.u32 %v4360, 4294901760
    %4362 = vmatmul.mubr.f32.gmra.mrb[0].mxu0 %v4361
    %v4363 = vpop.f32.mrb[0].mxu0
    %v4364 = vadd.f32 %v4214, %v4363
    %v4365 = vpop.f32.mrb[0].mxu0
    %4366 = vmatprep.mubr.f32.mxu0 0.0
    %v4367 = vand.u32 %v4168, 4294901760
    %v4368 = vsub.f32 %v4168, %v4367
    %v4369 = vand.u32 %v4368, 4294901760
    %v4370 = vsub.f32 %v4368, %v4369
    %v4371 = vand.u32 %v4370, 4294901760
    %4372 = vmatmul.mubr.f32.gmra.mrb[0].mxu0 %v4371
    %v4373 = vpop.f32.mrb[0].mxu0
    %v4374 = vadd.f32 %v4214, %v4373
    %v4375 = vpop.f32.mrb[0].mxu0
    %4376 = vmatprep.mubr.f32.mxu0 0.0
    %v4377 = vand.u32 %v4169, 4294901760
    %v4378 = vsub.f32 %v4169, %v4377
    %v4379 = vand.u32 %v4378, 4294901760
    %v4380 = vsub.f32 %v4378, %v4379
    %v4381 = vand.u32 %v4380, 4294901760
    %4382 = vmatmul.mubr.f32.gmra.mrb[0].mxu0 %v4381
    %v4383 = vpop.f32.mrb[0].mxu0
    %v4384 = vadd.f32 %v4214, %v4383
    %v4385 = vpop.f32.mrb[0].mxu0
    %4386 = vmatprep.mubr.f32.mxu0 0.0
    %v4387 = vand.u32 %v4170, 4294901760
    %v4388 = vsub.f32 %v4170, %v4387
    %v4389 = vand.u32 %v4388, 4294901760
    %v4390 = vsub.f32 %v4388, %v4389
    %v4391 = vand.u32 %v4390, 4294901760
    %4392 = vmatmul.mubr.f32.gmra.mrb[0].mxu0 %v4391
    %v4393 = vpop.f32.mrb[0].mxu0
    %v4394 = vadd.f32 %v4214, %v4393
    %v4395 = vpop.f32.mrb[0].mxu0
    %4396 = vmatprep.mubr.f32.mxu0 0.0
    %v4397 = vand.u32 %v4171, 4294901760
    %v4398 = vsub.f32 %v4171, %v4397
    %v4399 = vand.u32 %v4398, 4294901760
    %v4400 = vsub.f32 %v4398, %v4399
    %v4401 = vand.u32 %v4400, 4294901760
    %4402 = vmatmul.mubr.f32.gmra.mrb[0].mxu0 %v4401
    %v4403 = vpop.f32.mrb[0].mxu0
    %v4404 = vadd.f32 %v4214, %v4403
    %v4405 = vpop.f32.mrb[0].mxu0
    %4406 = vmatprep.mubr.f32.mxu0 0.0
    %v4407 = vand.u32 %v4172, 4294901760
    %v4408 = vsub.f32 %v4172, %v4407
    %v4409 = vand.u32 %v4408, 4294901760
    %v4410 = vsub.f32 %v4408, %v4409
    %v4411 = vand.u32 %v4410, 4294901760
    %4412 = vmatmul.mubr.f32.gmra.mrb[0].mxu0 %v4411
    %v4413 = vpop.f32.mrb[0].mxu0
    %v4414 = vadd.f32 %v4214, %v4413
    %v4415 = vpop.f32.mrb[0].mxu0
    %4416 = vmatprep.mubr.f32.mxu0 0.0
    %v4417 = vand.u32 %v4173, 4294901760
    %v4418 = vsub.f32 %v4173, %v4417
    %v4419 = vand.u32 %v4418, 4294901760
    %v4420 = vsub.f32 %v4418, %v4419
    %v4421 = vand.u32 %v4420, 4294901760
    %4422 = vmatmul.mubr.f32.gmra.mrb[0].mxu0 %v4421
    %v4423 = vpop.f32.mrb[0].mxu0
    %v4424 = vadd.f32 %v4214, %v4423
    %v4425 = vpop.f32.mrb[0].mxu0
    %4426 = vmatprep.mubr.f32.mxu0 0.0
    %v4427 = vand.u32 %v4174, 4294901760
    %v4428 = vsub.f32 %v4174, %v4427
    %v4429 = vand.u32 %v4428, 4294901760
    %v4430 = vsub.f32 %v4428, %v4429
    %v4431 = vand.u32 %v4430, 4294901760
    %4432 = vmatmul.mubr.f32.gmra.mrb[0].mxu0 %v4431
    %v4433 = vpop.f32.mrb[0].mxu0
    %v4434 = vadd.f32 %v4214, %v4433
    %v4435 = vpop.f32.mrb[0].mxu0
    %4436 = vmatprep.mubr.f32.mxu0 0.0
    %v4437 = vand.u32 %v4175, 4294901760
    %v4438 = vsub.f32 %v4175, %v4437
    %v4439 = vand.u32 %v4438, 4294901760
    %v4440 = vsub.f32 %v4438, %v4439
    %v4441 = vand.u32 %v4440, 4294901760
    %4442 = vmatmul.mubr.f32.gmra.mrb[0].mxu0 %v4441
    %v4443 = vpop.f32.mrb[0].mxu0
    %v4444 = vadd.f32 %v4214, %v4443
    %v4445 = vpop.f32.mrb[0].mxu0
    %4446 = vmatprep.mubr.f32.mxu0 0.0
    %v4447 = vand.u32 %v4176, 4294901760
    %v4448 = vsub.f32 %v4176, %v4447
    %v4449 = vand.u32 %v4448, 4294901760
    %v4450 = vsub.f32 %v4448, %v4449
    %v4451 = vand.u32 %v4450, 4294901760
    %4452 = vmatmul.mubr.f32.gmra.mrb[0].mxu0 %v4451
    %v4453 = vpop.f32.mrb[0].mxu0
    %v4454 = vadd.f32 %v4214, %v4453
    %v4455 = vpop.f32.mrb[0].mxu0
    %4456 = vmatprep.mubr.f32.mxu0 0.0
    %v4457 = vand.u32 %v4177, 4294901760
    %v4458 = vsub.f32 %v4177, %v4457
    %v4459 = vand.u32 %v4458, 4294901760
    %v4460 = vsub.f32 %v4458, %v4459
    %v4461 = vand.u32 %v4460, 4294901760
    %4462 = vmatmul.mubr.f32.gmra.mrb[0].mxu0 %v4461
    %v4463 = vpop.f32.mrb[0].mxu0
    %v4464 = vadd.f32 %v4214, %v4463
    %v4465 = vpop.f32.mrb[0].mxu0
    %4466 = vmatprep.mubr.f32.mxu0 0.0
    %v4467 = vand.u32 %v4178, 4294901760
    %v4468 = vsub.f32 %v4178, %v4467
    %v4469 = vand.u32 %v4468, 4294901760
    %v4470 = vsub.f32 %v4468, %v4469
    %v4471 = vand.u32 %v4470, 4294901760
    %4472 = vmatmul.mubr.f32.gmra.mrb[0].mxu0 %v4471
    %v4473 = vpop.f32.mrb[0].mxu0
    %v4474 = vadd.f32 %v4214, %v4473
    %v4475 = vpop.f32.mrb[0].mxu0
    %4476 = vmatprep.mubr.f32.mxu0 0.0
    %v4477 = vand.u32 %v4179, 4294901760
    %v4478 = vsub.f32 %v4179, %v4477
    %v4479 = vand.u32 %v4478, 4294901760
    %v4480 = vsub.f32 %v4478, %v4479
    %v4481 = vand.u32 %v4480, 4294901760
    %4482 = vmatmul.mubr.f32.gmra.mrb[0].mxu0 %v4481
    %v4483 = vpop.f32.mrb[0].mxu0
    %v4484 = vadd.f32 %v4214, %v4483
    %v4485 = vpop.f32.mrb[0].mxu0
    %4486 = vmatprep.mubr.f32.mxu0 0.0
    %v4487 = vand.u32 %v4180, 4294901760
    %v4488 = vsub.f32 %v4180, %v4487
    %v4489 = vand.u32 %v4488, 4294901760
    %v4490 = vsub.f32 %v4488, %v4489
    %v4491 = vand.u32 %v4490, 4294901760
    %4492 = vmatmul.mubr.f32.gmra.mrb[0].mxu0 %v4491
    %v4493 = vpop.f32.mrb[0].mxu0
    %v4494 = vadd.f32 %v4214, %v4493
    %v4495 = vpop.f32.mrb[0].mxu0
    %4496 = vmatprep.mubr.f32.mxu0 0.0
    %v4497 = vand.u32 %v4181, 4294901760
    %v4498 = vsub.f32 %v4181, %v4497
    %v4499 = vand.u32 %v4498, 4294901760
    %v4500 = vsub.f32 %v4498, %v4499
    %v4501 = vand.u32 %v4500, 4294901760
    %4502 = vmatmul.mubr.f32.gmra.mrb[0].mxu0 %v4501
    %v4503 = vpop.f32.mrb[0].mxu0
    %v4504 = vadd.f32 %v4214, %v4503
    %v4505 = vpop.f32.mrb[0].mxu0
    %4506 = vmatprep.mubr.f32.mxu0 0.0
    %v4507 = vand.u32 %v4182, 4294901760
    %v4508 = vsub.f32 %v4182, %v4507
    %v4509 = vand.u32 %v4508, 4294901760
    %v4510 = vsub.f32 %v4508, %v4509
    %v4511 = vand.u32 %v4510, 4294901760
    %4512 = vmatmul.mubr.f32.gmra.mrb[0].mxu0 %v4511
    %v4513 = vpop.f32.mrb[0].mxu0
    %v4514 = vadd.f32 %v4214, %v4513
    %v4515 = vpop.f32.mrb[0].mxu0
    %4516 = vmatprep.mubr.f32.mxu0 0.0
    %v4517 = vand.u32 %v4183, 4294901760
    %v4518 = vsub.f32 %v4183, %v4517
    %v4519 = vand.u32 %v4518, 4294901760
    %v4520 = vsub.f32 %v4518, %v4519
    %v4521 = vand.u32 %v4520, 4294901760
    %4522 = vmatmul.mubr.f32.gmra.mrb[0].mxu0 %v4521
    %v4523 = vpop.f32.mrb[0].mxu0
    %v4524 = vadd.f32 %v4214, %v4523
    %v4525 = vpop.f32.mrb[0].mxu0
    %4526 = vmatprep.mubr.f32.mxu0 0.0
    %v4527 = vand.u32 %v4184, 4294901760
    %v4528 = vsub.f32 %v4184, %v4527
    %v4529 = vand.u32 %v4528, 4294901760
    %v4530 = vsub.f32 %v4528, %v4529
    %v4531 = vand.u32 %v4530, 4294901760
    %4532 = vmatmul.mubr.f32.gmra.mrb[0].mxu0 %v4531
    %v4533 = vpop.f32.mrb[0].mxu0
    %v4534 = vadd.f32 %v4214, %v4533
    %v4535 = vpop.f32.mrb[0].mxu0
    %4536 = vmatprep.mubr.f32.mxu0 0.0
    %v4537 = vand.u32 %v4185, 4294901760
    %v4538 = vsub.f32 %v4185, %v4537
    %v4539 = vand.u32 %v4538, 4294901760
    %v4540 = vsub.f32 %v4538, %v4539
    %v4541 = vand.u32 %v4540, 4294901760
    %4542 = vmatmul.mubr.f32.gmra.mrb[0].mxu0 %v4541
    %v4543 = vpop.f32.mrb[0].mxu0
    %v4544 = vadd.f32 %v4214, %v4543
    %v4545 = vpop.f32.mrb[0].mxu0
    %4546 = vmatprep.mubr.f32.mxu0 0.0
    %v4547 = vand.u32 %v4186, 4294901760
    %v4548 = vsub.f32 %v4186, %v4547
    %v4549 = vand.u32 %v4548, 4294901760
    %v4550 = vsub.f32 %v4548, %v4549
    %v4551 = vand.u32 %v4550, 4294901760
    %4552 = vmatmul.mubr.f32.gmra.mrb[0].mxu0 %v4551
    %v4553 = vpop.f32.mrb[0].mxu0
    %v4554 = vadd.f32 %v4214, %v4553
    %v4555 = vpop.f32.mrb[0].mxu0
    %4556 = vmatprep.mubr.f32.mxu0 0.0
    %v4557 = vand.u32 %v4187, 4294901760
    %v4558 = vsub.f32 %v4187, %v4557
    %v4559 = vand.u32 %v4558, 4294901760
    %v4560 = vsub.f32 %v4558, %v4559
    %v4561 = vand.u32 %v4560, 4294901760
    %4562 = vmatmul.mubr.f32.gmra.mrb[0].mxu0 %v4561
    %v4563 = vpop.f32.mrb[0].mxu0
    %v4564 = vadd.f32 %v4214, %v4563
    %v4565 = vpop.f32.mrb[0].mxu0
    %4566 = vmatprep.mubr.f32.mxu0 0.0
    %v4567 = vand.u32 %v4188, 4294901760
    %v4568 = vsub.f32 %v4188, %v4567
    %v4569 = vand.u32 %v4568, 4294901760
    %v4570 = vsub.f32 %v4568, %v4569
    %v4571 = vand.u32 %v4570, 4294901760
    %4572 = vmatmul.mubr.f32.gmra.mrb[0].mxu0 %v4571
    %v4573 = vpop.f32.mrb[0].mxu0
    %v4574 = vadd.f32 %v4214, %v4573
    %v4575 = vpop.f32.mrb[0].mxu0
    %4576 = vmatprep.mubr.f32.mxu0 0.0
    %v4577 = vand.u32 %v4189, 4294901760
    %v4578 = vsub.f32 %v4189, %v4577
    %v4579 = vand.u32 %v4578, 4294901760
    %v4580 = vsub.f32 %v4578, %v4579
    %v4581 = vand.u32 %v4580, 4294901760
    %4582 = vmatmul.mubr.f32.gmra.mrb[0].mxu0 %v4581
    %v4583 = vpop.f32.mrb[0].mxu0
    %v4584 = vadd.f32 %v4214, %v4583
    %v4585 = vpop.f32.mrb[0].mxu0
    %4586 = vmatprep.mubr.f32.mxu0 0.0
    %v4587 = vand.u32 %v4190, 4294901760
    %v4588 = vsub.f32 %v4190, %v4587
    %v4589 = vand.u32 %v4588, 4294901760
    %v4590 = vsub.f32 %v4588, %v4589
    %v4591 = vand.u32 %v4590, 4294901760
    %4592 = vmatmul.mubr.f32.gmra.mrb[0].mxu0 %v4591
    %v4593 = vpop.f32.mrb[0].mxu0
    %v4594 = vadd.f32 %v4214, %v4593
    %v4595 = vpop.f32.mrb[0].mxu0
    %4596 = vmatprep.mubr.f32.mxu0 0.0
    %v4597 = vand.u32 %v4191, 4294901760
    %v4598 = vsub.f32 %v4191, %v4597
    %v4599 = vand.u32 %v4598, 4294901760
    %v4600 = vsub.f32 %v4598, %v4599
    %v4601 = vand.u32 %v4600, 4294901760
    %4602 = vmatmul.mubr.f32.gmra.mrb[0].mxu0 %v4601
    %v4603 = vpop.f32.mrb[0].mxu0
    %v4604 = vadd.f32 %v4214, %v4603
    %v4605 = vpop.f32.mrb[0].mxu0
    %4606 = vmatprep.mubr.f32.mxu0 0.0
    %v4607 = vand.u32 %v4192, 4294901760
    %v4608 = vsub.f32 %v4192, %v4607
    %v4609 = vand.u32 %v4608, 4294901760
    %v4610 = vsub.f32 %v4608, %v4609
    %v4611 = vand.u32 %v4610, 4294901760
    %4612 = vmatmul.mubr.f32.gmra.mrb[0].mxu0 %v4611
    %v4613 = vpop.f32.mrb[0].mxu0
    %v4614 = vadd.f32 %v4214, %v4613
    %v4615 = vpop.f32.mrb[0].mxu0
    %4616 = vdwg.mxu0
    %4617 = vmatprep.subr.mxu0 0.0
    %v4618 = vand.u32 %v4193, 4294901760
    %v4619 = vsub.f32 %v4193, %v4618
    %v4620 = vand.u32 %v4619, 4294901760
    %v4621 = vsub.f32 %v4619, %v4620
    %v4622 = vand.u32 %v4621, 4294901760
    %4623 = vmatpush1.msra.mxu0 %v4622
    %4624 = vmatprep.subr.mxu0 0.0
    %v4625 = vand.u32 %v4194, 4294901760
    %v4626 = vsub.f32 %v4194, %v4625
    %v4627 = vand.u32 %v4626, 4294901760
    %v4628 = vsub.f32 %v4626, %v4627
    %v4629 = vand.u32 %v4628, 4294901760
    %4630 = vmatpush1.msra.mxu0 %v4629
    %4631 = vmatprep.subr.mxu0 0.0
    %v4632 = vand.u32 %v4195, 4294901760
    %v4633 = vsub.f32 %v4195, %v4632
    %v4634 = vand.u32 %v4633, 4294901760
    %v4635 = vsub.f32 %v4633, %v4634
    %v4636 = vand.u32 %v4635, 4294901760
    %4637 = vmatpush1.msra.mxu0 %v4636
    %4638 = vmatprep.subr.mxu0 0.0
    %v4639 = vand.u32 %v4196, 4294901760
    %v4640 = vsub.f32 %v4196, %v4639
    %v4641 = vand.u32 %v4640, 4294901760
    %v4642 = vsub.f32 %v4640, %v4641
    %v4643 = vand.u32 %v4642, 4294901760
    %4644 = vmatpush1.msra.mxu0 %v4643
    %4645 = vmatprep.subr.mxu0 0.0
    %v4646 = vand.u32 %v4197, 4294901760
    %v4647 = vsub.f32 %v4197, %v4646
    %v4648 = vand.u32 %v4647, 4294901760
    %v4649 = vsub.f32 %v4647, %v4648
    %v4650 = vand.u32 %v4649, 4294901760
    %4651 = vmatpush1.msra.mxu0 %v4650
    %4652 = vmatprep.subr.mxu0 0.0
    %v4653 = vand.u32 %v4198, 4294901760
    %v4654 = vsub.f32 %v4198, %v4653
    %v4655 = vand.u32 %v4654, 4294901760
    %v4656 = vsub.f32 %v4654, %v4655
    %v4657 = vand.u32 %v4656, 4294901760
    %4658 = vmatpush1.msra.mxu0 %v4657
    %4659 = vmatprep.subr.mxu0 0.0
    %v4660 = vand.u32 %v4199, 4294901760
    %v4661 = vsub.f32 %v4199, %v4660
    %v4662 = vand.u32 %v4661, 4294901760
    %v4663 = vsub.f32 %v4661, %v4662
    %v4664 = vand.u32 %v4663, 4294901760
    %4665 = vmatpush1.msra.mxu0 %v4664
    %4666 = vmatprep.subr.mxu0 0.0
    %v4667 = vand.u32 %v4200, 4294901760
    %v4668 = vsub.f32 %v4200, %v4667
    %v4669 = vand.u32 %v4668, 4294901760
    %v4670 = vsub.f32 %v4668, %v4669
    %v4671 = vand.u32 %v4670, 4294901760
    %4672 = vmatpush1.msra.mxu0 %v4671
    %4673 = vmatprep.subr.mxu0 0.0
    %v4674 = vand.u32 %v4201, 4294901760
    %v4675 = vsub.f32 %v4201, %v4674
    %v4676 = vand.u32 %v4675, 4294901760
    %v4677 = vsub.f32 %v4675, %v4676
    %v4678 = vand.u32 %v4677, 4294901760
    %4679 = vmatpush1.msra.mxu0 %v4678
    %4680 = vmatprep.subr.mxu0 0.0
    %v4681 = vand.u32 %v4202, 4294901760
    %v4682 = vsub.f32 %v4202, %v4681
    %v4683 = vand.u32 %v4682, 4294901760
    %v4684 = vsub.f32 %v4682, %v4683
    %v4685 = vand.u32 %v4684, 4294901760
    %4686 = vmatpush1.msra.mxu0 %v4685
    %4687 = vmatprep.subr.mxu0 0.0
    %v4688 = vand.u32 %v4203, 4294901760
    %v4689 = vsub.f32 %v4203, %v4688
    %v4690 = vand.u32 %v4689, 4294901760
    %v4691 = vsub.f32 %v4689, %v4690
    %v4692 = vand.u32 %v4691, 4294901760
    %4693 = vmatpush1.msra.mxu0 %v4692
    %4694 = vmatprep.subr.mxu0 0.0
    %v4695 = vand.u32 %v4204, 4294901760
    %v4696 = vsub.f32 %v4204, %v4695
    %v4697 = vand.u32 %v4696, 4294901760
    %v4698 = vsub.f32 %v4696, %v4697
    %v4699 = vand.u32 %v4698, 4294901760
    %4700 = vmatpush1.msra.mxu0 %v4699
    %4701 = vmatprep.subr.mxu0 0.0
    %v4702 = vand.u32 %v4205, 4294901760
    %v4703 = vsub.f32 %v4205, %v4702
    %v4704 = vand.u32 %v4703, 4294901760
    %v4705 = vsub.f32 %v4703, %v4704
    %v4706 = vand.u32 %v4705, 4294901760
    %4707 = vmatpush1.msra.mxu0 %v4706
    %4708 = vmatprep.subr.mxu0 0.0
    %v4709 = vand.u32 %v4206, 4294901760
    %v4710 = vsub.f32 %v4206, %v4709
    %v4711 = vand.u32 %v4710, 4294901760
    %v4712 = vsub.f32 %v4710, %v4711
    %v4713 = vand.u32 %v4712, 4294901760
    %4714 = vmatpush1.msra.mxu0 %v4713
    %4715 = vmatprep.subr.mxu0 0.0
    %v4716 = vand.u32 %v4207, 4294901760
    %v4717 = vsub.f32 %v4207, %v4716
    %v4718 = vand.u32 %v4717, 4294901760
    %v4719 = vsub.f32 %v4717, %v4718
    %v4720 = vand.u32 %v4719, 4294901760
    %4721 = vmatpush1.msra.mxu0 %v4720
    %4722 = vmatprep.subr.mxu0 0.0
    %v4723 = vand.u32 %v4208, 4294901760
    %v4724 = vsub.f32 %v4208, %v4723
    %v4725 = vand.u32 %v4724, 4294901760
    %v4726 = vsub.f32 %v4724, %v4725
    %v4727 = vand.u32 %v4726, 4294901760
    %4728 = vmatpush1.msra.mxu0 %v4727
    %4729 = vmatprep.subr.mxu0 0.0
    %4730 = vmatpush1.msra.mxu0 0.0
    %4731 = vmatprep.subr.mxu0 0.0
    %4732 = vmatpush1.msra.mxu0 0.0
    %4733 = vmatprep.subr.mxu0 0.0
    %4734 = vmatpush1.msra.mxu0 0.0
    %4735 = vmatprep.subr.mxu0 0.0
    %4736 = vmatpush1.msra.mxu0 0.0
    %4737 = vmatprep.subr.mxu0 0.0
    %4738 = vmatpush1.msra.mxu0 0.0
    %4739 = vmatprep.subr.mxu0 0.0
    %4740 = vmatpush1.msra.mxu0 0.0
    %4741 = vmatprep.subr.mxu0 0.0
    %4742 = vmatpush1.msra.mxu0 0.0
    %4743 = vmatprep.subr.mxu0 0.0
    %4744 = vmatpush1.msra.mxu0 0.0
    %4745 = vmatprep.subr.mxu0 0.0
    %4746 = vmatpush1.msra.mxu0 0.0
    %4747 = vmatprep.subr.mxu0 0.0
    %4748 = vmatpush1.msra.mxu0 0.0
    %4749 = vmatprep.subr.mxu0 0.0
    %4750 = vmatpush1.msra.mxu0 0.0
    %4751 = vmatprep.subr.mxu0 0.0
    %4752 = vmatpush1.msra.mxu0 0.0
    %4753 = vmatprep.subr.mxu0 0.0
    %4754 = vmatpush1.msra.mxu0 0.0
    %4755 = vmatprep.subr.mxu0 0.0
    %4756 = vmatpush1.msra.mxu0 0.0
    %4757 = vmatprep.subr.mxu0 0.0
    %4758 = vmatpush1.msra.mxu0 0.0
    %4759 = vmatprep.subr.mxu0 0.0
    %4760 = vmatpush1.msra.mxu0 0.0
    %4761 = vmatprep.mubr.f32.mxu0 0.0
    %v4762 = vand.u32 %v4161, 4294901760
    %4763 = vmatmul.mubr.f32.gmra.mrb[0].mxu0 %v4762
    %v4764 = vpop.f32.mrb[0].mxu0
    %v4765 = vadd.f32 %v4304, %v4764
    %v4766 = vpop.f32.mrb[0].mxu0
    %4767 = vmatprep.mubr.f32.mxu0 0.0
    %v4768 = vand.u32 %v4162, 4294901760
    %4769 = vmatmul.mubr.f32.gmra.mrb[0].mxu0 %v4768
    %v4770 = vpop.f32.mrb[0].mxu0
    %v4771 = vadd.f32 %v4314, %v4770
    %v4772 = vpop.f32.mrb[0].mxu0
    %4773 = vmatprep.mubr.f32.mxu0 0.0
    %v4774 = vand.u32 %v4163, 4294901760
    %4775 = vmatmul.mubr.f32.gmra.mrb[0].mxu0 %v4774
    %v4776 = vpop.f32.mrb[0].mxu0
    %v4777 = vadd.f32 %v4324, %v4776
    %v4778 = vpop.f32.mrb[0].mxu0
    %4779 = vmatprep.mubr.f32.mxu0 0.0
    %v4780 = vand.u32 %v4164, 4294901760
    %4781 = vmatmul.mubr.f32.gmra.mrb[0].mxu0 %v4780
    %v4782 = vpop.f32.mrb[0].mxu0
    %v4783 = vadd.f32 %v4334, %v4782
    %v4784 = vpop.f32.mrb[0].mxu0
    %4785 = vmatprep.mubr.f32.mxu0 0.0
    %v4786 = vand.u32 %v4165, 4294901760
    %4787 = vmatmul.mubr.f32.gmra.mrb[0].mxu0 %v4786
    %v4788 = vpop.f32.mrb[0].mxu0
    %v4789 = vadd.f32 %v4344, %v4788
    %v4790 = vpop.f32.mrb[0].mxu0
    %4791 = vmatprep.mubr.f32.mxu0 0.0
    %v4792 = vand.u32 %v4166, 4294901760
    %4793 = vmatmul.mubr.f32.gmra.mrb[0].mxu0 %v4792
    %v4794 = vpop.f32.mrb[0].mxu0
    %v4795 = vadd.f32 %v4354, %v4794
    %v4796 = vpop.f32.mrb[0].mxu0
    %4797 = vmatprep.mubr.f32.mxu0 0.0
    %v4798 = vand.u32 %v4167, 4294901760
    %4799 = vmatmul.mubr.f32.gmra.mrb[0].mxu0 %v4798
    %v4800 = vpop.f32.mrb[0].mxu0
    %v4801 = vadd.f32 %v4364, %v4800
    %v4802 = vpop.f32.mrb[0].mxu0
    %4803 = vmatprep.mubr.f32.mxu0 0.0
    %v4804 = vand.u32 %v4168, 4294901760
    %4805 = vmatmul.mubr.f32.gmra.mrb[0].mxu0 %v4804
    %v4806 = vpop.f32.mrb[0].mxu0
    %v4807 = vadd.f32 %v4374, %v4806
    %v4808 = vpop.f32.mrb[0].mxu0
    %4809 = vmatprep.mubr.f32.mxu0 0.0
    %v4810 = vand.u32 %v4169, 4294901760
    %4811 = vmatmul.mubr.f32.gmra.mrb[0].mxu0 %v4810
    %v4812 = vpop.f32.mrb[0].mxu0
    %v4813 = vadd.f32 %v4384, %v4812
    %v4814 = vpop.f32.mrb[0].mxu0
    %4815 = vmatprep.mubr.f32.mxu0 0.0
    %v4816 = vand.u32 %v4170, 4294901760
    %4817 = vmatmul.mubr.f32.gmra.mrb[0].mxu0 %v4816
    %v4818 = vpop.f32.mrb[0].mxu0
    %v4819 = vadd.f32 %v4394, %v4818
    %v4820 = vpop.f32.mrb[0].mxu0
    %4821 = vmatprep.mubr.f32.mxu0 0.0
    %v4822 = vand.u32 %v4171, 4294901760
    %4823 = vmatmul.mubr.f32.gmra.mrb[0].mxu0 %v4822
    %v4824 = vpop.f32.mrb[0].mxu0
    %v4825 = vadd.f32 %v4404, %v4824
    %v4826 = vpop.f32.mrb[0].mxu0
    %4827 = vmatprep.mubr.f32.mxu0 0.0
    %v4828 = vand.u32 %v4172, 4294901760
    %4829 = vmatmul.mubr.f32.gmra.mrb[0].mxu0 %v4828
    %v4830 = vpop.f32.mrb[0].mxu0
    %v4831 = vadd.f32 %v4414, %v4830
    %v4832 = vpop.f32.mrb[0].mxu0
    %4833 = vmatprep.mubr.f32.mxu0 0.0
    %v4834 = vand.u32 %v4173, 4294901760
    %4835 = vmatmul.mubr.f32.gmra.mrb[0].mxu0 %v4834
    %v4836 = vpop.f32.mrb[0].mxu0
    %v4837 = vadd.f32 %v4424, %v4836
    %v4838 = vpop.f32.mrb[0].mxu0
    %4839 = vmatprep.mubr.f32.mxu0 0.0
    %v4840 = vand.u32 %v4174, 4294901760
    %4841 = vmatmul.mubr.f32.gmra.mrb[0].mxu0 %v4840
    %v4842 = vpop.f32.mrb[0].mxu0
    %v4843 = vadd.f32 %v4434, %v4842
    %v4844 = vpop.f32.mrb[0].mxu0
    %4845 = vmatprep.mubr.f32.mxu0 0.0
    %v4846 = vand.u32 %v4175, 4294901760
    %4847 = vmatmul.mubr.f32.gmra.mrb[0].mxu0 %v4846
    %v4848 = vpop.f32.mrb[0].mxu0
    %v4849 = vadd.f32 %v4444, %v4848
    %v4850 = vpop.f32.mrb[0].mxu0
    %4851 = vmatprep.mubr.f32.mxu0 0.0
    %v4852 = vand.u32 %v4176, 4294901760
    %4853 = vmatmul.mubr.f32.gmra.mrb[0].mxu0 %v4852
    %v4854 = vpop.f32.mrb[0].mxu0
    %v4855 = vadd.f32 %v4454, %v4854
    %v4856 = vpop.f32.mrb[0].mxu0
    %4857 = vmatprep.mubr.f32.mxu0 0.0
    %v4858 = vand.u32 %v4177, 4294901760
    %4859 = vmatmul.mubr.f32.gmra.mrb[0].mxu0 %v4858
    %v4860 = vpop.f32.mrb[0].mxu0
    %v4861 = vadd.f32 %v4464, %v4860
    %v4862 = vpop.f32.mrb[0].mxu0
    %4863 = vmatprep.mubr.f32.mxu0 0.0
    %v4864 = vand.u32 %v4178, 4294901760
    %4865 = vmatmul.mubr.f32.gmra.mrb[0].mxu0 %v4864
    %v4866 = vpop.f32.mrb[0].mxu0
    %v4867 = vadd.f32 %v4474, %v4866
    %v4868 = vpop.f32.mrb[0].mxu0
    %4869 = vmatprep.mubr.f32.mxu0 0.0
    %v4870 = vand.u32 %v4179, 4294901760
    %4871 = vmatmul.mubr.f32.gmra.mrb[0].mxu0 %v4870
    %v4872 = vpop.f32.mrb[0].mxu0
    %v4873 = vadd.f32 %v4484, %v4872
    %v4874 = vpop.f32.mrb[0].mxu0
    %4875 = vmatprep.mubr.f32.mxu0 0.0
    %v4876 = vand.u32 %v4180, 4294901760
    %4877 = vmatmul.mubr.f32.gmra.mrb[0].mxu0 %v4876
    %v4878 = vpop.f32.mrb[0].mxu0
    %v4879 = vadd.f32 %v4494, %v4878
    %v4880 = vpop.f32.mrb[0].mxu0
    %4881 = vmatprep.mubr.f32.mxu0 0.0
    %v4882 = vand.u32 %v4181, 4294901760
    %4883 = vmatmul.mubr.f32.gmra.mrb[0].mxu0 %v4882
    %v4884 = vpop.f32.mrb[0].mxu0
    %v4885 = vadd.f32 %v4504, %v4884
    %v4886 = vpop.f32.mrb[0].mxu0
    %4887 = vmatprep.mubr.f32.mxu0 0.0
    %v4888 = vand.u32 %v4182, 4294901760
    %4889 = vmatmul.mubr.f32.gmra.mrb[0].mxu0 %v4888
    %v4890 = vpop.f32.mrb[0].mxu0
    %v4891 = vadd.f32 %v4514, %v4890
    %v4892 = vpop.f32.mrb[0].mxu0
    %4893 = vmatprep.mubr.f32.mxu0 0.0
    %v4894 = vand.u32 %v4183, 4294901760
    %4895 = vmatmul.mubr.f32.gmra.mrb[0].mxu0 %v4894
    %v4896 = vpop.f32.mrb[0].mxu0
    %v4897 = vadd.f32 %v4524, %v4896
    %v4898 = vpop.f32.mrb[0].mxu0
    %4899 = vmatprep.mubr.f32.mxu0 0.0
    %v4900 = vand.u32 %v4184, 4294901760
    %4901 = vmatmul.mubr.f32.gmra.mrb[0].mxu0 %v4900
    %v4902 = vpop.f32.mrb[0].mxu0
    %v4903 = vadd.f32 %v4534, %v4902
    %v4904 = vpop.f32.mrb[0].mxu0
    %4905 = vmatprep.mubr.f32.mxu0 0.0
    %v4906 = vand.u32 %v4185, 4294901760
    %4907 = vmatmul.mubr.f32.gmra.mrb[0].mxu0 %v4906
    %v4908 = vpop.f32.mrb[0].mxu0
    %v4909 = vadd.f32 %v4544, %v4908
    %v4910 = vpop.f32.mrb[0].mxu0
    %4911 = vmatprep.mubr.f32.mxu0 0.0
    %v4912 = vand.u32 %v4186, 4294901760
    %4913 = vmatmul.mubr.f32.gmra.mrb[0].mxu0 %v4912
    %v4914 = vpop.f32.mrb[0].mxu0
    %v4915 = vadd.f32 %v4554, %v4914
    %v4916 = vpop.f32.mrb[0].mxu0
    %4917 = vmatprep.mubr.f32.mxu0 0.0
    %v4918 = vand.u32 %v4187, 4294901760
    %4919 = vmatmul.mubr.f32.gmra.mrb[0].mxu0 %v4918
    %v4920 = vpop.f32.mrb[0].mxu0
    %v4921 = vadd.f32 %v4564, %v4920
    %v4922 = vpop.f32.mrb[0].mxu0
    %4923 = vmatprep.mubr.f32.mxu0 0.0
    %v4924 = vand.u32 %v4188, 4294901760
    %4925 = vmatmul.mubr.f32.gmra.mrb[0].mxu0 %v4924
    %v4926 = vpop.f32.mrb[0].mxu0
    %v4927 = vadd.f32 %v4574, %v4926
    %v4928 = vpop.f32.mrb[0].mxu0
    %4929 = vmatprep.mubr.f32.mxu0 0.0
    %v4930 = vand.u32 %v4189, 4294901760
    %4931 = vmatmul.mubr.f32.gmra.mrb[0].mxu0 %v4930
    %v4932 = vpop.f32.mrb[0].mxu0
    %v4933 = vadd.f32 %v4584, %v4932
    %v4934 = vpop.f32.mrb[0].mxu0
    %4935 = vmatprep.mubr.f32.mxu0 0.0
    %v4936 = vand.u32 %v4190, 4294901760
    %4937 = vmatmul.mubr.f32.gmra.mrb[0].mxu0 %v4936
    %v4938 = vpop.f32.mrb[0].mxu0
    %v4939 = vadd.f32 %v4594, %v4938
    %v4940 = vpop.f32.mrb[0].mxu0
    %4941 = vmatprep.mubr.f32.mxu0 0.0
    %v4942 = vand.u32 %v4191, 4294901760
    %4943 = vmatmul.mubr.f32.gmra.mrb[0].mxu0 %v4942
    %v4944 = vpop.f32.mrb[0].mxu0
    %v4945 = vadd.f32 %v4604, %v4944
    %v4946 = vpop.f32.mrb[0].mxu0
    %4947 = vmatprep.mubr.f32.mxu0 0.0
    %v4948 = vand.u32 %v4192, 4294901760
    %4949 = vmatmul.mubr.f32.gmra.mrb[0].mxu0 %v4948
    %v4950 = vpop.f32.mrb[0].mxu0
    %v4951 = vadd.f32 %v4614, %v4950
    %v4952 = vpop.f32.mrb[0].mxu0
    %4953 = vdwg.mxu0
    %4954 = vmatprep.subr.mxu0 0.0
    %v4955 = vand.u32 %v4193, 4294901760
    %v4956 = vsub.f32 %v4193, %v4955
    %4957 = vmatpush1.msra.mxu0 %v4956
    %4958 = vmatprep.subr.mxu0 0.0
    %v4959 = vand.u32 %v4194, 4294901760
    %v4960 = vsub.f32 %v4194, %v4959
    %4961 = vmatpush1.msra.mxu0 %v4960
    %4962 = vmatprep.subr.mxu0 0.0
    %v4963 = vand.u32 %v4195, 4294901760
    %v4964 = vsub.f32 %v4195, %v4963
    %4965 = vmatpush1.msra.mxu0 %v4964
    %4966 = vmatprep.subr.mxu0 0.0
    %v4967 = vand.u32 %v4196, 4294901760
    %v4968 = vsub.f32 %v4196, %v4967
    %4969 = vmatpush1.msra.mxu0 %v4968
    %4970 = vmatprep.subr.mxu0 0.0
    %v4971 = vand.u32 %v4197, 4294901760
    %v4972 = vsub.f32 %v4197, %v4971
    %4973 = vmatpush1.msra.mxu0 %v4972
    %4974 = vmatprep.subr.mxu0 0.0
    %v4975 = vand.u32 %v4198, 4294901760
    %v4976 = vsub.f32 %v4198, %v4975
    %4977 = vmatpush1.msra.mxu0 %v4976
    %4978 = vmatprep.subr.mxu0 0.0
    %v4979 = vand.u32 %v4199, 4294901760
    %v4980 = vsub.f32 %v4199, %v4979
    %4981 = vmatpush1.msra.mxu0 %v4980
    %4982 = vmatprep.subr.mxu0 0.0
    %v4983 = vand.u32 %v4200, 4294901760
    %v4984 = vsub.f32 %v4200, %v4983
    %4985 = vmatpush1.msra.mxu0 %v4984
    %4986 = vmatprep.subr.mxu0 0.0
    %v4987 = vand.u32 %v4201, 4294901760
    %v4988 = vsub.f32 %v4201, %v4987
    %4989 = vmatpush1.msra.mxu0 %v4988
    %4990 = vmatprep.subr.mxu0 0.0
    %v4991 = vand.u32 %v4202, 4294901760
    %v4992 = vsub.f32 %v4202, %v4991
    %4993 = vmatpush1.msra.mxu0 %v4992
    %4994 = vmatprep.subr.mxu0 0.0
    %v4995 = vand.u32 %v4203, 4294901760
    %v4996 = vsub.f32 %v4203, %v4995
    %4997 = vmatpush1.msra.mxu0 %v4996
    %4998 = vmatprep.subr.mxu0 0.0
    %v4999 = vand.u32 %v4204, 4294901760
    %v5000 = vsub.f32 %v4204, %v4999
    %5001 = vmatpush1.msra.mxu0 %v5000
    %5002 = vmatprep.subr.mxu0 0.0
    %v5003 = vand.u32 %v4205, 4294901760
    %v5004 = vsub.f32 %v4205, %v5003
    %5005 = vmatpush1.msra.mxu0 %v5004
    %5006 = vmatprep.subr.mxu0 0.0
    %v5007 = vand.u32 %v4206, 4294901760
    %v5008 = vsub.f32 %v4206, %v5007
    %5009 = vmatpush1.msra.mxu0 %v5008
    %5010 = vmatprep.subr.mxu0 0.0
    %v5011 = vand.u32 %v4207, 4294901760
    %v5012 = vsub.f32 %v4207, %v5011
    %5013 = vmatpush1.msra.mxu0 %v5012
    %5014 = vmatprep.subr.mxu0 0.0
    %v5015 = vand.u32 %v4208, 4294901760
    %v5016 = vsub.f32 %v4208, %v5015
    %5017 = vmatpush1.msra.mxu0 %v5016
    %5018 = vmatprep.subr.mxu0 0.0
    %5019 = vmatpush1.msra.mxu0 0.0
    %5020 = vmatprep.subr.mxu0 0.0
    %5021 = vmatpush1.msra.mxu0 0.0
    %5022 = vmatprep.subr.mxu0 0.0
    %5023 = vmatpush1.msra.mxu0 0.0
    %5024 = vmatprep.subr.mxu0 0.0
    %5025 = vmatpush1.msra.mxu0 0.0
    %5026 = vmatprep.subr.mxu0 0.0
    %5027 = vmatpush1.msra.mxu0 0.0
    %5028 = vmatprep.subr.mxu0 0.0
    %5029 = vmatpush1.msra.mxu0 0.0
    %5030 = vmatprep.subr.mxu0 0.0
    %5031 = vmatpush1.msra.mxu0 0.0
    %5032 = vmatprep.subr.mxu0 0.0
    %5033 = vmatpush1.msra.mxu0 0.0
    %5034 = vmatprep.subr.mxu0 0.0
    %5035 = vmatpush1.msra.mxu0 0.0
    %5036 = vmatprep.subr.mxu0 0.0
    %5037 = vmatpush1.msra.mxu0 0.0
    %5038 = vmatprep.subr.mxu0 0.0
    %5039 = vmatpush1.msra.mxu0 0.0
    %5040 = vmatprep.subr.mxu0 0.0
    %5041 = vmatpush1.msra.mxu0 0.0
    %5042 = vmatprep.subr.mxu0 0.0
    %5043 = vmatpush1.msra.mxu0 0.0
    %5044 = vmatprep.subr.mxu0 0.0
    %5045 = vmatpush1.msra.mxu0 0.0
    %5046 = vmatprep.subr.mxu0 0.0
    %5047 = vmatpush1.msra.mxu0 0.0
    %5048 = vmatprep.subr.mxu0 0.0
    %5049 = vmatpush1.msra.mxu0 0.0
    %5050 = vmatprep.mubr.f32.mxu0 0.0
    %v5051 = vand.u32 %v4161, 4294901760
    %v5052 = vsub.f32 %v4161, %v5051
    %5053 = vmatmul.mubr.f32.gmra.mrb[0].mxu0 %v5052
    %v5054 = vpop.f32.mrb[0].mxu0
    %v5055 = vadd.f32 %v4765, %v5054
    %v5056 = vpop.f32.mrb[0].mxu0
    %5057 = vmatprep.mubr.f32.mxu0 0.0
    %v5058 = vand.u32 %v4162, 4294901760
    %v5059 = vsub.f32 %v4162, %v5058
    %5060 = vmatmul.mubr.f32.gmra.mrb[0].mxu0 %v5059
    %v5061 = vpop.f32.mrb[0].mxu0
    %v5062 = vadd.f32 %v4771, %v5061
    %v5063 = vpop.f32.mrb[0].mxu0
    %5064 = vmatprep.mubr.f32.mxu0 0.0
    %v5065 = vand.u32 %v4163, 4294901760
    %v5066 = vsub.f32 %v4163, %v5065
    %5067 = vmatmul.mubr.f32.gmra.mrb[0].mxu0 %v5066
    %v5068 = vpop.f32.mrb[0].mxu0
    %v5069 = vadd.f32 %v4777, %v5068
    %v5070 = vpop.f32.mrb[0].mxu0
    %5071 = vmatprep.mubr.f32.mxu0 0.0
    %v5072 = vand.u32 %v4164, 4294901760
    %v5073 = vsub.f32 %v4164, %v5072
    %5074 = vmatmul.mubr.f32.gmra.mrb[0].mxu0 %v5073
    %v5075 = vpop.f32.mrb[0].mxu0
    %v5076 = vadd.f32 %v4783, %v5075
    %v5077 = vpop.f32.mrb[0].mxu0
    %5078 = vmatprep.mubr.f32.mxu0 0.0
    %v5079 = vand.u32 %v4165, 4294901760
    %v5080 = vsub.f32 %v4165, %v5079
    %5081 = vmatmul.mubr.f32.gmra.mrb[0].mxu0 %v5080
    %v5082 = vpop.f32.mrb[0].mxu0
    %v5083 = vadd.f32 %v4789, %v5082
    %v5084 = vpop.f32.mrb[0].mxu0
    %5085 = vmatprep.mubr.f32.mxu0 0.0
    %v5086 = vand.u32 %v4166, 4294901760
    %v5087 = vsub.f32 %v4166, %v5086
    %5088 = vmatmul.mubr.f32.gmra.mrb[0].mxu0 %v5087
    %v5089 = vpop.f32.mrb[0].mxu0
    %v5090 = vadd.f32 %v4795, %v5089
    %v5091 = vpop.f32.mrb[0].mxu0
    %5092 = vmatprep.mubr.f32.mxu0 0.0
    %v5093 = vand.u32 %v4167, 4294901760
    %v5094 = vsub.f32 %v4167, %v5093
    %5095 = vmatmul.mubr.f32.gmra.mrb[0].mxu0 %v5094
    %v5096 = vpop.f32.mrb[0].mxu0
    %v5097 = vadd.f32 %v4801, %v5096
    %v5098 = vpop.f32.mrb[0].mxu0
    %5099 = vmatprep.mubr.f32.mxu0 0.0
    %v5100 = vand.u32 %v4168, 4294901760
    %v5101 = vsub.f32 %v4168, %v5100
    %5102 = vmatmul.mubr.f32.gmra.mrb[0].mxu0 %v5101
    %v5103 = vpop.f32.mrb[0].mxu0
    %v5104 = vadd.f32 %v4807, %v5103
    %v5105 = vpop.f32.mrb[0].mxu0
    %5106 = vmatprep.mubr.f32.mxu0 0.0
    %v5107 = vand.u32 %v4169, 4294901760
    %v5108 = vsub.f32 %v4169, %v5107
    %5109 = vmatmul.mubr.f32.gmra.mrb[0].mxu0 %v5108
    %v5110 = vpop.f32.mrb[0].mxu0
    %v5111 = vadd.f32 %v4813, %v5110
    %v5112 = vpop.f32.mrb[0].mxu0
    %5113 = vmatprep.mubr.f32.mxu0 0.0
    %v5114 = vand.u32 %v4170, 4294901760
    %v5115 = vsub.f32 %v4170, %v5114
    %5116 = vmatmul.mubr.f32.gmra.mrb[0].mxu0 %v5115
    %v5117 = vpop.f32.mrb[0].mxu0
    %v5118 = vadd.f32 %v4819, %v5117
    %v5119 = vpop.f32.mrb[0].mxu0
    %5120 = vmatprep.mubr.f32.mxu0 0.0
    %v5121 = vand.u32 %v4171, 4294901760
    %v5122 = vsub.f32 %v4171, %v5121
    %5123 = vmatmul.mubr.f32.gmra.mrb[0].mxu0 %v5122
    %v5124 = vpop.f32.mrb[0].mxu0
    %v5125 = vadd.f32 %v4825, %v5124
    %v5126 = vpop.f32.mrb[0].mxu0
    %5127 = vmatprep.mubr.f32.mxu0 0.0
    %v5128 = vand.u32 %v4172, 4294901760
    %v5129 = vsub.f32 %v4172, %v5128
    %5130 = vmatmul.mubr.f32.gmra.mrb[0].mxu0 %v5129
    %v5131 = vpop.f32.mrb[0].mxu0
    %v5132 = vadd.f32 %v4831, %v5131
    %v5133 = vpop.f32.mrb[0].mxu0
    %5134 = vmatprep.mubr.f32.mxu0 0.0
    %v5135 = vand.u32 %v4173, 4294901760
    %v5136 = vsub.f32 %v4173, %v5135
    %5137 = vmatmul.mubr.f32.gmra.mrb[0].mxu0 %v5136
    %v5138 = vpop.f32.mrb[0].mxu0
    %v5139 = vadd.f32 %v4837, %v5138
    %v5140 = vpop.f32.mrb[0].mxu0
    %5141 = vmatprep.mubr.f32.mxu0 0.0
    %v5142 = vand.u32 %v4174, 4294901760
    %v5143 = vsub.f32 %v4174, %v5142
    %5144 = vmatmul.mubr.f32.gmra.mrb[0].mxu0 %v5143
    %v5145 = vpop.f32.mrb[0].mxu0
    %v5146 = vadd.f32 %v4843, %v5145
    %v5147 = vpop.f32.mrb[0].mxu0
    %5148 = vmatprep.mubr.f32.mxu0 0.0
    %v5149 = vand.u32 %v4175, 4294901760
    %v5150 = vsub.f32 %v4175, %v5149
    %5151 = vmatmul.mubr.f32.gmra.mrb[0].mxu0 %v5150
    %v5152 = vpop.f32.mrb[0].mxu0
    %v5153 = vadd.f32 %v4849, %v5152
    %v5154 = vpop.f32.mrb[0].mxu0
    %5155 = vmatprep.mubr.f32.mxu0 0.0
    %v5156 = vand.u32 %v4176, 4294901760
    %v5157 = vsub.f32 %v4176, %v5156
    %5158 = vmatmul.mubr.f32.gmra.mrb[0].mxu0 %v5157
    %v5159 = vpop.f32.mrb[0].mxu0
    %v5160 = vadd.f32 %v4855, %v5159
    %v5161 = vpop.f32.mrb[0].mxu0
    %5162 = vmatprep.mubr.f32.mxu0 0.0
    %v5163 = vand.u32 %v4177, 4294901760
    %v5164 = vsub.f32 %v4177, %v5163
    %5165 = vmatmul.mubr.f32.gmra.mrb[0].mxu0 %v5164
    %v5166 = vpop.f32.mrb[0].mxu0
    %v5167 = vadd.f32 %v4861, %v5166
    %v5168 = vpop.f32.mrb[0].mxu0
    %5169 = vmatprep.mubr.f32.mxu0 0.0
    %v5170 = vand.u32 %v4178, 4294901760
    %v5171 = vsub.f32 %v4178, %v5170
    %5172 = vmatmul.mubr.f32.gmra.mrb[0].mxu0 %v5171
    %v5173 = vpop.f32.mrb[0].mxu0
    %v5174 = vadd.f32 %v4867, %v5173
    %v5175 = vpop.f32.mrb[0].mxu0
    %5176 = vmatprep.mubr.f32.mxu0 0.0
    %v5177 = vand.u32 %v4179, 4294901760
    %v5178 = vsub.f32 %v4179, %v5177
    %5179 = vmatmul.mubr.f32.gmra.mrb[0].mxu0 %v5178
    %v5180 = vpop.f32.mrb[0].mxu0
    %v5181 = vadd.f32 %v4873, %v5180
    %v5182 = vpop.f32.mrb[0].mxu0
    %5183 = vmatprep.mubr.f32.mxu0 0.0
    %v5184 = vand.u32 %v4180, 4294901760
    %v5185 = vsub.f32 %v4180, %v5184
    %5186 = vmatmul.mubr.f32.gmra.mrb[0].mxu0 %v5185
    %v5187 = vpop.f32.mrb[0].mxu0
    %v5188 = vadd.f32 %v4879, %v5187
    %v5189 = vpop.f32.mrb[0].mxu0
    %5190 = vmatprep.mubr.f32.mxu0 0.0
    %v5191 = vand.u32 %v4181, 4294901760
    %v5192 = vsub.f32 %v4181, %v5191
    %5193 = vmatmul.mubr.f32.gmra.mrb[0].mxu0 %v5192
    %v5194 = vpop.f32.mrb[0].mxu0
    %v5195 = vadd.f32 %v4885, %v5194
    %v5196 = vpop.f32.mrb[0].mxu0
    %5197 = vmatprep.mubr.f32.mxu0 0.0
    %v5198 = vand.u32 %v4182, 4294901760
    %v5199 = vsub.f32 %v4182, %v5198
    %5200 = vmatmul.mubr.f32.gmra.mrb[0].mxu0 %v5199
    %v5201 = vpop.f32.mrb[0].mxu0
    %v5202 = vadd.f32 %v4891, %v5201
    %v5203 = vpop.f32.mrb[0].mxu0
    %5204 = vmatprep.mubr.f32.mxu0 0.0
    %v5205 = vand.u32 %v4183, 4294901760
    %v5206 = vsub.f32 %v4183, %v5205
    %5207 = vmatmul.mubr.f32.gmra.mrb[0].mxu0 %v5206
    %v5208 = vpop.f32.mrb[0].mxu0
    %v5209 = vadd.f32 %v4897, %v5208
    %v5210 = vpop.f32.mrb[0].mxu0
    %5211 = vmatprep.mubr.f32.mxu0 0.0
    %v5212 = vand.u32 %v4184, 4294901760
    %v5213 = vsub.f32 %v4184, %v5212
    %5214 = vmatmul.mubr.f32.gmra.mrb[0].mxu0 %v5213
    %v5215 = vpop.f32.mrb[0].mxu0
    %v5216 = vadd.f32 %v4903, %v5215
    %v5217 = vpop.f32.mrb[0].mxu0
    %5218 = vmatprep.mubr.f32.mxu0 0.0
    %v5219 = vand.u32 %v4185, 4294901760
    %v5220 = vsub.f32 %v4185, %v5219
    %5221 = vmatmul.mubr.f32.gmra.mrb[0].mxu0 %v5220
    %v5222 = vpop.f32.mrb[0].mxu0
    %v5223 = vadd.f32 %v4909, %v5222
    %v5224 = vpop.f32.mrb[0].mxu0
    %5225 = vmatprep.mubr.f32.mxu0 0.0
    %v5226 = vand.u32 %v4186, 4294901760
    %v5227 = vsub.f32 %v4186, %v5226
    %5228 = vmatmul.mubr.f32.gmra.mrb[0].mxu0 %v5227
    %v5229 = vpop.f32.mrb[0].mxu0
    %v5230 = vadd.f32 %v4915, %v5229
    %v5231 = vpop.f32.mrb[0].mxu0
    %5232 = vmatprep.mubr.f32.mxu0 0.0
    %v5233 = vand.u32 %v4187, 4294901760
    %v5234 = vsub.f32 %v4187, %v5233
    %5235 = vmatmul.mubr.f32.gmra.mrb[0].mxu0 %v5234
    %v5236 = vpop.f32.mrb[0].mxu0
    %v5237 = vadd.f32 %v4921, %v5236
    %v5238 = vpop.f32.mrb[0].mxu0
    %5239 = vmatprep.mubr.f32.mxu0 0.0
    %v5240 = vand.u32 %v4188, 4294901760
    %v5241 = vsub.f32 %v4188, %v5240
    %5242 = vmatmul.mubr.f32.gmra.mrb[0].mxu0 %v5241
    %v5243 = vpop.f32.mrb[0].mxu0
    %v5244 = vadd.f32 %v4927, %v5243
    %v5245 = vpop.f32.mrb[0].mxu0
    %5246 = vmatprep.mubr.f32.mxu0 0.0
    %v5247 = vand.u32 %v4189, 4294901760
    %v5248 = vsub.f32 %v4189, %v5247
    %5249 = vmatmul.mubr.f32.gmra.mrb[0].mxu0 %v5248
    %v5250 = vpop.f32.mrb[0].mxu0
    %v5251 = vadd.f32 %v4933, %v5250
    %v5252 = vpop.f32.mrb[0].mxu0
    %5253 = vmatprep.mubr.f32.mxu0 0.0
    %v5254 = vand.u32 %v4190, 4294901760
    %v5255 = vsub.f32 %v4190, %v5254
    %5256 = vmatmul.mubr.f32.gmra.mrb[0].mxu0 %v5255
    %v5257 = vpop.f32.mrb[0].mxu0
    %v5258 = vadd.f32 %v4939, %v5257
    %v5259 = vpop.f32.mrb[0].mxu0
    %5260 = vmatprep.mubr.f32.mxu0 0.0
    %v5261 = vand.u32 %v4191, 4294901760
    %v5262 = vsub.f32 %v4191, %v5261
    %5263 = vmatmul.mubr.f32.gmra.mrb[0].mxu0 %v5262
    %v5264 = vpop.f32.mrb[0].mxu0
    %v5265 = vadd.f32 %v4945, %v5264
    %v5266 = vpop.f32.mrb[0].mxu0
    %5267 = vmatprep.mubr.f32.mxu0 0.0
    %v5268 = vand.u32 %v4192, 4294901760
    %v5269 = vsub.f32 %v4192, %v5268
    %5270 = vmatmul.mubr.f32.gmra.mrb[0].mxu0 %v5269
    %v5271 = vpop.f32.mrb[0].mxu0
    %v5272 = vadd.f32 %v4951, %v5271
    %v5273 = vpop.f32.mrb[0].mxu0
    %5274 = vdwg.mxu0
    %5275 = vmatprep.subr.mxu0 0.0
    %v5276 = vand.u32 %v4193, 4294901760
    %5277 = vmatpush1.msra.mxu0 %v5276
    %5278 = vmatprep.subr.mxu0 0.0
    %v5279 = vand.u32 %v4194, 4294901760
    %5280 = vmatpush1.msra.mxu0 %v5279
    %5281 = vmatprep.subr.mxu0 0.0
    %v5282 = vand.u32 %v4195, 4294901760
    %5283 = vmatpush1.msra.mxu0 %v5282
    %5284 = vmatprep.subr.mxu0 0.0
    %v5285 = vand.u32 %v4196, 4294901760
    %5286 = vmatpush1.msra.mxu0 %v5285
    %5287 = vmatprep.subr.mxu0 0.0
    %v5288 = vand.u32 %v4197, 4294901760
    %5289 = vmatpush1.msra.mxu0 %v5288
    %5290 = vmatprep.subr.mxu0 0.0
    %v5291 = vand.u32 %v4198, 4294901760
    %5292 = vmatpush1.msra.mxu0 %v5291
    %5293 = vmatprep.subr.mxu0 0.0
    %v5294 = vand.u32 %v4199, 4294901760
    %5295 = vmatpush1.msra.mxu0 %v5294
    %5296 = vmatprep.subr.mxu0 0.0
    %v5297 = vand.u32 %v4200, 4294901760
    %5298 = vmatpush1.msra.mxu0 %v5297
    %5299 = vmatprep.subr.mxu0 0.0
    %v5300 = vand.u32 %v4201, 4294901760
    %5301 = vmatpush1.msra.mxu0 %v5300
    %5302 = vmatprep.subr.mxu0 0.0
    %v5303 = vand.u32 %v4202, 4294901760
    %5304 = vmatpush1.msra.mxu0 %v5303
    %5305 = vmatprep.subr.mxu0 0.0
    %v5306 = vand.u32 %v4203, 4294901760
    %5307 = vmatpush1.msra.mxu0 %v5306
    %5308 = vmatprep.subr.mxu0 0.0
    %v5309 = vand.u32 %v4204, 4294901760
    %5310 = vmatpush1.msra.mxu0 %v5309
    %5311 = vmatprep.subr.mxu0 0.0
    %v5312 = vand.u32 %v4205, 4294901760
    %5313 = vmatpush1.msra.mxu0 %v5312
    %5314 = vmatprep.subr.mxu0 0.0
    %v5315 = vand.u32 %v4206, 4294901760
    %5316 = vmatpush1.msra.mxu0 %v5315
    %5317 = vmatprep.subr.mxu0 0.0
    %v5318 = vand.u32 %v4207, 4294901760
    %5319 = vmatpush1.msra.mxu0 %v5318
    %5320 = vmatprep.subr.mxu0 0.0
    %v5321 = vand.u32 %v4208, 4294901760
    %5322 = vmatpush1.msra.mxu0 %v5321
    %5323 = vmatprep.subr.mxu0 0.0
    %5324 = vmatpush1.msra.mxu0 0.0
    %5325 = vmatprep.subr.mxu0 0.0
    %5326 = vmatpush1.msra.mxu0 0.0
    %5327 = vmatprep.subr.mxu0 0.0
    %5328 = vmatpush1.msra.mxu0 0.0
    %5329 = vmatprep.subr.mxu0 0.0
    %5330 = vmatpush1.msra.mxu0 0.0
    %5331 = vmatprep.subr.mxu0 0.0
    %5332 = vmatpush1.msra.mxu0 0.0
    %5333 = vmatprep.subr.mxu0 0.0
    %5334 = vmatpush1.msra.mxu0 0.0
    %5335 = vmatprep.subr.mxu0 0.0
    %5336 = vmatpush1.msra.mxu0 0.0
    %5337 = vmatprep.subr.mxu0 0.0
    %5338 = vmatpush1.msra.mxu0 0.0
    %5339 = vmatprep.subr.mxu0 0.0
    %5340 = vmatpush1.msra.mxu0 0.0
    %5341 = vmatprep.subr.mxu0 0.0
    %5342 = vmatpush1.msra.mxu0 0.0
    %5343 = vmatprep.subr.mxu0 0.0
    %5344 = vmatpush1.msra.mxu0 0.0
    %5345 = vmatprep.subr.mxu0 0.0
    %5346 = vmatpush1.msra.mxu0 0.0
    %5347 = vmatprep.subr.mxu0 0.0
    %5348 = vmatpush1.msra.mxu0 0.0
    %5349 = vmatprep.subr.mxu0 0.0
    %5350 = vmatpush1.msra.mxu0 0.0
    %5351 = vmatprep.subr.mxu0 0.0
    %5352 = vmatpush1.msra.mxu0 0.0
    %5353 = vmatprep.subr.mxu0 0.0
    %5354 = vmatpush1.msra.mxu0 0.0
    %5355 = vmatprep.mubr.f32.mxu0 0.0
    %v5356 = vand.u32 %v4161, 4294901760
    %v5357 = vsub.f32 %v4161, %v5356
    %v5358 = vand.u32 %v5357, 4294901760
    %5359 = vmatmul.mubr.f32.gmra.mrb[0].mxu0 %v5358
    %v5360 = vpop.f32.mrb[0].mxu0
    %v5361 = vadd.f32 %v5055, %v5360
    %v5362 = vpop.f32.mrb[0].mxu0
    %5363 = vmatprep.mubr.f32.mxu0 0.0
    %v5364 = vand.u32 %v4162, 4294901760
    %v5365 = vsub.f32 %v4162, %v5364
    %v5366 = vand.u32 %v5365, 4294901760
    %5367 = vmatmul.mubr.f32.gmra.mrb[0].mxu0 %v5366
    %v5368 = vpop.f32.mrb[0].mxu0
    %v5369 = vadd.f32 %v5062, %v5368
    %v5370 = vpop.f32.mrb[0].mxu0
    %5371 = vmatprep.mubr.f32.mxu0 0.0
    %v5372 = vand.u32 %v4163, 4294901760
    %v5373 = vsub.f32 %v4163, %v5372
    %v5374 = vand.u32 %v5373, 4294901760
    %5375 = vmatmul.mubr.f32.gmra.mrb[0].mxu0 %v5374
    %v5376 = vpop.f32.mrb[0].mxu0
    %v5377 = vadd.f32 %v5069, %v5376
    %v5378 = vpop.f32.mrb[0].mxu0
    %5379 = vmatprep.mubr.f32.mxu0 0.0
    %v5380 = vand.u32 %v4164, 4294901760
    %v5381 = vsub.f32 %v4164, %v5380
    %v5382 = vand.u32 %v5381, 4294901760
    %5383 = vmatmul.mubr.f32.gmra.mrb[0].mxu0 %v5382
    %v5384 = vpop.f32.mrb[0].mxu0
    %v5385 = vadd.f32 %v5076, %v5384
    %v5386 = vpop.f32.mrb[0].mxu0
    %5387 = vmatprep.mubr.f32.mxu0 0.0
    %v5388 = vand.u32 %v4165, 4294901760
    %v5389 = vsub.f32 %v4165, %v5388
    %v5390 = vand.u32 %v5389, 4294901760
    %5391 = vmatmul.mubr.f32.gmra.mrb[0].mxu0 %v5390
    %v5392 = vpop.f32.mrb[0].mxu0
    %v5393 = vadd.f32 %v5083, %v5392
    %v5394 = vpop.f32.mrb[0].mxu0
    %5395 = vmatprep.mubr.f32.mxu0 0.0
    %v5396 = vand.u32 %v4166, 4294901760
    %v5397 = vsub.f32 %v4166, %v5396
    %v5398 = vand.u32 %v5397, 4294901760
    %5399 = vmatmul.mubr.f32.gmra.mrb[0].mxu0 %v5398
    %v5400 = vpop.f32.mrb[0].mxu0
    %v5401 = vadd.f32 %v5090, %v5400
    %v5402 = vpop.f32.mrb[0].mxu0
    %5403 = vmatprep.mubr.f32.mxu0 0.0
    %v5404 = vand.u32 %v4167, 4294901760
    %v5405 = vsub.f32 %v4167, %v5404
    %v5406 = vand.u32 %v5405, 4294901760
    %5407 = vmatmul.mubr.f32.gmra.mrb[0].mxu0 %v5406
    %v5408 = vpop.f32.mrb[0].mxu0
    %v5409 = vadd.f32 %v5097, %v5408
    %v5410 = vpop.f32.mrb[0].mxu0
    %5411 = vmatprep.mubr.f32.mxu0 0.0
    %v5412 = vand.u32 %v4168, 4294901760
    %v5413 = vsub.f32 %v4168, %v5412
    %v5414 = vand.u32 %v5413, 4294901760
    %5415 = vmatmul.mubr.f32.gmra.mrb[0].mxu0 %v5414
    %v5416 = vpop.f32.mrb[0].mxu0
    %v5417 = vadd.f32 %v5104, %v5416
    %v5418 = vpop.f32.mrb[0].mxu0
    %5419 = vmatprep.mubr.f32.mxu0 0.0
    %v5420 = vand.u32 %v4169, 4294901760
    %v5421 = vsub.f32 %v4169, %v5420
    %v5422 = vand.u32 %v5421, 4294901760
    %5423 = vmatmul.mubr.f32.gmra.mrb[0].mxu0 %v5422
    %v5424 = vpop.f32.mrb[0].mxu0
    %v5425 = vadd.f32 %v5111, %v5424
    %v5426 = vpop.f32.mrb[0].mxu0
    %5427 = vmatprep.mubr.f32.mxu0 0.0
    %v5428 = vand.u32 %v4170, 4294901760
    %v5429 = vsub.f32 %v4170, %v5428
    %v5430 = vand.u32 %v5429, 4294901760
    %5431 = vmatmul.mubr.f32.gmra.mrb[0].mxu0 %v5430
    %v5432 = vpop.f32.mrb[0].mxu0
    %v5433 = vadd.f32 %v5118, %v5432
    %v5434 = vpop.f32.mrb[0].mxu0
    %5435 = vmatprep.mubr.f32.mxu0 0.0
    %v5436 = vand.u32 %v4171, 4294901760
    %v5437 = vsub.f32 %v4171, %v5436
    %v5438 = vand.u32 %v5437, 4294901760
    %5439 = vmatmul.mubr.f32.gmra.mrb[0].mxu0 %v5438
    %v5440 = vpop.f32.mrb[0].mxu0
    %v5441 = vadd.f32 %v5125, %v5440
    %v5442 = vpop.f32.mrb[0].mxu0
    %5443 = vmatprep.mubr.f32.mxu0 0.0
    %v5444 = vand.u32 %v4172, 4294901760
    %v5445 = vsub.f32 %v4172, %v5444
    %v5446 = vand.u32 %v5445, 4294901760
    %5447 = vmatmul.mubr.f32.gmra.mrb[0].mxu0 %v5446
    %v5448 = vpop.f32.mrb[0].mxu0
    %v5449 = vadd.f32 %v5132, %v5448
    %v5450 = vpop.f32.mrb[0].mxu0
    %5451 = vmatprep.mubr.f32.mxu0 0.0
    %v5452 = vand.u32 %v4173, 4294901760
    %v5453 = vsub.f32 %v4173, %v5452
    %v5454 = vand.u32 %v5453, 4294901760
    %5455 = vmatmul.mubr.f32.gmra.mrb[0].mxu0 %v5454
    %v5456 = vpop.f32.mrb[0].mxu0
    %v5457 = vadd.f32 %v5139, %v5456
    %v5458 = vpop.f32.mrb[0].mxu0
    %5459 = vmatprep.mubr.f32.mxu0 0.0
    %v5460 = vand.u32 %v4174, 4294901760
    %v5461 = vsub.f32 %v4174, %v5460
    %v5462 = vand.u32 %v5461, 4294901760
    %5463 = vmatmul.mubr.f32.gmra.mrb[0].mxu0 %v5462
    %v5464 = vpop.f32.mrb[0].mxu0
    %v5465 = vadd.f32 %v5146, %v5464
    %v5466 = vpop.f32.mrb[0].mxu0
    %5467 = vmatprep.mubr.f32.mxu0 0.0
    %v5468 = vand.u32 %v4175, 4294901760
    %v5469 = vsub.f32 %v4175, %v5468
    %v5470 = vand.u32 %v5469, 4294901760
    %5471 = vmatmul.mubr.f32.gmra.mrb[0].mxu0 %v5470
    %v5472 = vpop.f32.mrb[0].mxu0
    %v5473 = vadd.f32 %v5153, %v5472
    %v5474 = vpop.f32.mrb[0].mxu0
    %5475 = vmatprep.mubr.f32.mxu0 0.0
    %v5476 = vand.u32 %v4176, 4294901760
    %v5477 = vsub.f32 %v4176, %v5476
    %v5478 = vand.u32 %v5477, 4294901760
    %5479 = vmatmul.mubr.f32.gmra.mrb[0].mxu0 %v5478
    %v5480 = vpop.f32.mrb[0].mxu0
    %v5481 = vadd.f32 %v5160, %v5480
    %v5482 = vpop.f32.mrb[0].mxu0
    %5483 = vmatprep.mubr.f32.mxu0 0.0
    %v5484 = vand.u32 %v4177, 4294901760
    %v5485 = vsub.f32 %v4177, %v5484
    %v5486 = vand.u32 %v5485, 4294901760
    %5487 = vmatmul.mubr.f32.gmra.mrb[0].mxu0 %v5486
    %v5488 = vpop.f32.mrb[0].mxu0
    %v5489 = vadd.f32 %v5167, %v5488
    %v5490 = vpop.f32.mrb[0].mxu0
    %5491 = vmatprep.mubr.f32.mxu0 0.0
    %v5492 = vand.u32 %v4178, 4294901760
    %v5493 = vsub.f32 %v4178, %v5492
    %v5494 = vand.u32 %v5493, 4294901760
    %5495 = vmatmul.mubr.f32.gmra.mrb[0].mxu0 %v5494
    %v5496 = vpop.f32.mrb[0].mxu0
    %v5497 = vadd.f32 %v5174, %v5496
    %v5498 = vpop.f32.mrb[0].mxu0
    %5499 = vmatprep.mubr.f32.mxu0 0.0
    %v5500 = vand.u32 %v4179, 4294901760
    %v5501 = vsub.f32 %v4179, %v5500
    %v5502 = vand.u32 %v5501, 4294901760
    %5503 = vmatmul.mubr.f32.gmra.mrb[0].mxu0 %v5502
    %v5504 = vpop.f32.mrb[0].mxu0
    %v5505 = vadd.f32 %v5181, %v5504
    %v5506 = vpop.f32.mrb[0].mxu0
    %5507 = vmatprep.mubr.f32.mxu0 0.0
    %v5508 = vand.u32 %v4180, 4294901760
    %v5509 = vsub.f32 %v4180, %v5508
    %v5510 = vand.u32 %v5509, 4294901760
    %5511 = vmatmul.mubr.f32.gmra.mrb[0].mxu0 %v5510
    %v5512 = vpop.f32.mrb[0].mxu0
    %v5513 = vadd.f32 %v5188, %v5512
    %v5514 = vpop.f32.mrb[0].mxu0
    %5515 = vmatprep.mubr.f32.mxu0 0.0
    %v5516 = vand.u32 %v4181, 4294901760
    %v5517 = vsub.f32 %v4181, %v5516
    %v5518 = vand.u32 %v5517, 4294901760
    %5519 = vmatmul.mubr.f32.gmra.mrb[0].mxu0 %v5518
    %v5520 = vpop.f32.mrb[0].mxu0
    %v5521 = vadd.f32 %v5195, %v5520
    %v5522 = vpop.f32.mrb[0].mxu0
    %5523 = vmatprep.mubr.f32.mxu0 0.0
    %v5524 = vand.u32 %v4182, 4294901760
    %v5525 = vsub.f32 %v4182, %v5524
    %v5526 = vand.u32 %v5525, 4294901760
    %5527 = vmatmul.mubr.f32.gmra.mrb[0].mxu0 %v5526
    %v5528 = vpop.f32.mrb[0].mxu0
    %v5529 = vadd.f32 %v5202, %v5528
    %v5530 = vpop.f32.mrb[0].mxu0
    %5531 = vmatprep.mubr.f32.mxu0 0.0
    %v5532 = vand.u32 %v4183, 4294901760
    %v5533 = vsub.f32 %v4183, %v5532
    %v5534 = vand.u32 %v5533, 4294901760
    %5535 = vmatmul.mubr.f32.gmra.mrb[0].mxu0 %v5534
    %v5536 = vpop.f32.mrb[0].mxu0
    %v5537 = vadd.f32 %v5209, %v5536
    %v5538 = vpop.f32.mrb[0].mxu0
    %5539 = vmatprep.mubr.f32.mxu0 0.0
    %v5540 = vand.u32 %v4184, 4294901760
    %v5541 = vsub.f32 %v4184, %v5540
    %v5542 = vand.u32 %v5541, 4294901760
    %5543 = vmatmul.mubr.f32.gmra.mrb[0].mxu0 %v5542
    %v5544 = vpop.f32.mrb[0].mxu0
    %v5545 = vadd.f32 %v5216, %v5544
    %v5546 = vpop.f32.mrb[0].mxu0
    %5547 = vmatprep.mubr.f32.mxu0 0.0
    %v5548 = vand.u32 %v4185, 4294901760
    %v5549 = vsub.f32 %v4185, %v5548
    %v5550 = vand.u32 %v5549, 4294901760
    %5551 = vmatmul.mubr.f32.gmra.mrb[0].mxu0 %v5550
    %v5552 = vpop.f32.mrb[0].mxu0
    %v5553 = vadd.f32 %v5223, %v5552
    %v5554 = vpop.f32.mrb[0].mxu0
    %5555 = vmatprep.mubr.f32.mxu0 0.0
    %v5556 = vand.u32 %v4186, 4294901760
    %v5557 = vsub.f32 %v4186, %v5556
    %v5558 = vand.u32 %v5557, 4294901760
    %5559 = vmatmul.mubr.f32.gmra.mrb[0].mxu0 %v5558
    %v5560 = vpop.f32.mrb[0].mxu0
    %v5561 = vadd.f32 %v5230, %v5560
    %v5562 = vpop.f32.mrb[0].mxu0
    %5563 = vmatprep.mubr.f32.mxu0 0.0
    %v5564 = vand.u32 %v4187, 4294901760
    %v5565 = vsub.f32 %v4187, %v5564
    %v5566 = vand.u32 %v5565, 4294901760
    %5567 = vmatmul.mubr.f32.gmra.mrb[0].mxu0 %v5566
    %v5568 = vpop.f32.mrb[0].mxu0
    %v5569 = vadd.f32 %v5237, %v5568
    %v5570 = vpop.f32.mrb[0].mxu0
    %5571 = vmatprep.mubr.f32.mxu0 0.0
    %v5572 = vand.u32 %v4188, 4294901760
    %v5573 = vsub.f32 %v4188, %v5572
    %v5574 = vand.u32 %v5573, 4294901760
    %5575 = vmatmul.mubr.f32.gmra.mrb[0].mxu0 %v5574
    %v5576 = vpop.f32.mrb[0].mxu0
    %v5577 = vadd.f32 %v5244, %v5576
    %v5578 = vpop.f32.mrb[0].mxu0
    %5579 = vmatprep.mubr.f32.mxu0 0.0
    %v5580 = vand.u32 %v4189, 4294901760
    %v5581 = vsub.f32 %v4189, %v5580
    %v5582 = vand.u32 %v5581, 4294901760
    %5583 = vmatmul.mubr.f32.gmra.mrb[0].mxu0 %v5582
    %v5584 = vpop.f32.mrb[0].mxu0
    %v5585 = vadd.f32 %v5251, %v5584
    %v5586 = vpop.f32.mrb[0].mxu0
    %5587 = vmatprep.mubr.f32.mxu0 0.0
    %v5588 = vand.u32 %v4190, 4294901760
    %v5589 = vsub.f32 %v4190, %v5588
    %v5590 = vand.u32 %v5589, 4294901760
    %5591 = vmatmul.mubr.f32.gmra.mrb[0].mxu0 %v5590
    %v5592 = vpop.f32.mrb[0].mxu0
    %v5593 = vadd.f32 %v5258, %v5592
    %v5594 = vpop.f32.mrb[0].mxu0
    %5595 = vmatprep.mubr.f32.mxu0 0.0
    %v5596 = vand.u32 %v4191, 4294901760
    %v5597 = vsub.f32 %v4191, %v5596
    %v5598 = vand.u32 %v5597, 4294901760
    %5599 = vmatmul.mubr.f32.gmra.mrb[0].mxu0 %v5598
    %v5600 = vpop.f32.mrb[0].mxu0
    %v5601 = vadd.f32 %v5265, %v5600
    %v5602 = vpop.f32.mrb[0].mxu0
    %5603 = vmatprep.mubr.f32.mxu0 0.0
    %v5604 = vand.u32 %v4192, 4294901760
    %v5605 = vsub.f32 %v4192, %v5604
    %v5606 = vand.u32 %v5605, 4294901760
    %5607 = vmatmul.mubr.f32.gmra.mrb[0].mxu0 %v5606
    %v5608 = vpop.f32.mrb[0].mxu0
    %v5609 = vadd.f32 %v5272, %v5608
    %v5610 = vpop.f32.mrb[0].mxu0
    %5611 = vdwg.mxu0
    %5612 = vmatprep.subr.mxu0 0.0
    %v5613 = vand.u32 %v4193, 4294901760
    %v5614 = vsub.f32 %v4193, %v5613
    %v5615 = vand.u32 %v5614, 4294901760
    %5616 = vmatpush1.msra.mxu0 %v5615
    %5617 = vmatprep.subr.mxu0 0.0
    %v5618 = vand.u32 %v4194, 4294901760
    %v5619 = vsub.f32 %v4194, %v5618
    %v5620 = vand.u32 %v5619, 4294901760
    %5621 = vmatpush1.msra.mxu0 %v5620
    %5622 = vmatprep.subr.mxu0 0.0
    %v5623 = vand.u32 %v4195, 4294901760
    %v5624 = vsub.f32 %v4195, %v5623
    %v5625 = vand.u32 %v5624, 4294901760
    %5626 = vmatpush1.msra.mxu0 %v5625
    %5627 = vmatprep.subr.mxu0 0.0
    %v5628 = vand.u32 %v4196, 4294901760
    %v5629 = vsub.f32 %v4196, %v5628
    %v5630 = vand.u32 %v5629, 4294901760
    %5631 = vmatpush1.msra.mxu0 %v5630
    %5632 = vmatprep.subr.mxu0 0.0
    %v5633 = vand.u32 %v4197, 4294901760
    %v5634 = vsub.f32 %v4197, %v5633
    %v5635 = vand.u32 %v5634, 4294901760
    %5636 = vmatpush1.msra.mxu0 %v5635
    %5637 = vmatprep.subr.mxu0 0.0
    %v5638 = vand.u32 %v4198, 4294901760
    %v5639 = vsub.f32 %v4198, %v5638
    %v5640 = vand.u32 %v5639, 4294901760
    %5641 = vmatpush1.msra.mxu0 %v5640
    %5642 = vmatprep.subr.mxu0 0.0
    %v5643 = vand.u32 %v4199, 4294901760
    %v5644 = vsub.f32 %v4199, %v5643
    %v5645 = vand.u32 %v5644, 4294901760
    %5646 = vmatpush1.msra.mxu0 %v5645
    %5647 = vmatprep.subr.mxu0 0.0
    %v5648 = vand.u32 %v4200, 4294901760
    %v5649 = vsub.f32 %v4200, %v5648
    %v5650 = vand.u32 %v5649, 4294901760
    %5651 = vmatpush1.msra.mxu0 %v5650
    %5652 = vmatprep.subr.mxu0 0.0
    %v5653 = vand.u32 %v4201, 4294901760
    %v5654 = vsub.f32 %v4201, %v5653
    %v5655 = vand.u32 %v5654, 4294901760
    %5656 = vmatpush1.msra.mxu0 %v5655
    %5657 = vmatprep.subr.mxu0 0.0
    %v5658 = vand.u32 %v4202, 4294901760
    %v5659 = vsub.f32 %v4202, %v5658
    %v5660 = vand.u32 %v5659, 4294901760
    %5661 = vmatpush1.msra.mxu0 %v5660
    %5662 = vmatprep.subr.mxu0 0.0
    %v5663 = vand.u32 %v4203, 4294901760
    %v5664 = vsub.f32 %v4203, %v5663
    %v5665 = vand.u32 %v5664, 4294901760
    %5666 = vmatpush1.msra.mxu0 %v5665
    %5667 = vmatprep.subr.mxu0 0.0
    %v5668 = vand.u32 %v4204, 4294901760
    %v5669 = vsub.f32 %v4204, %v5668
    %v5670 = vand.u32 %v5669, 4294901760
    %5671 = vmatpush1.msra.mxu0 %v5670
    %5672 = vmatprep.subr.mxu0 0.0
    %v5673 = vand.u32 %v4205, 4294901760
    %v5674 = vsub.f32 %v4205, %v5673
    %v5675 = vand.u32 %v5674, 4294901760
    %5676 = vmatpush1.msra.mxu0 %v5675
    %5677 = vmatprep.subr.mxu0 0.0
    %v5678 = vand.u32 %v4206, 4294901760
    %v5679 = vsub.f32 %v4206, %v5678
    %v5680 = vand.u32 %v5679, 4294901760
    %5681 = vmatpush1.msra.mxu0 %v5680
    %5682 = vmatprep.subr.mxu0 0.0
    %v5683 = vand.u32 %v4207, 4294901760
    %v5684 = vsub.f32 %v4207, %v5683
    %v5685 = vand.u32 %v5684, 4294901760
    %5686 = vmatpush1.msra.mxu0 %v5685
    %5687 = vmatprep.subr.mxu0 0.0
    %v5688 = vand.u32 %v4208, 4294901760
    %v5689 = vsub.f32 %v4208, %v5688
    %v5690 = vand.u32 %v5689, 4294901760
    %5691 = vmatpush1.msra.mxu0 %v5690
    %5692 = vmatprep.subr.mxu0 0.0
    %5693 = vmatpush1.msra.mxu0 0.0
    %5694 = vmatprep.subr.mxu0 0.0
    %5695 = vmatpush1.msra.mxu0 0.0
    %5696 = vmatprep.subr.mxu0 0.0
    %5697 = vmatpush1.msra.mxu0 0.0
    %5698 = vmatprep.subr.mxu0 0.0
    %5699 = vmatpush1.msra.mxu0 0.0
    %5700 = vmatprep.subr.mxu0 0.0
    %5701 = vmatpush1.msra.mxu0 0.0
    %5702 = vmatprep.subr.mxu0 0.0
    %5703 = vmatpush1.msra.mxu0 0.0
    %5704 = vmatprep.subr.mxu0 0.0
    %5705 = vmatpush1.msra.mxu0 0.0
    %5706 = vmatprep.subr.mxu0 0.0
    %5707 = vmatpush1.msra.mxu0 0.0
    %5708 = vmatprep.subr.mxu0 0.0
    %5709 = vmatpush1.msra.mxu0 0.0
    %5710 = vmatprep.subr.mxu0 0.0
    %5711 = vmatpush1.msra.mxu0 0.0
    %5712 = vmatprep.subr.mxu0 0.0
    %5713 = vmatpush1.msra.mxu0 0.0
    %5714 = vmatprep.subr.mxu0 0.0
    %5715 = vmatpush1.msra.mxu0 0.0
    %5716 = vmatprep.subr.mxu0 0.0
    %5717 = vmatpush1.msra.mxu0 0.0
    %5718 = vmatprep.subr.mxu0 0.0
    %5719 = vmatpush1.msra.mxu0 0.0
    %5720 = vmatprep.subr.mxu0 0.0
    %5721 = vmatpush1.msra.mxu0 0.0
    %5722 = vmatprep.subr.mxu0 0.0
    %5723 = vmatpush1.msra.mxu0 0.0
    %5724 = vmatprep.mubr.f32.mxu0 0.0
    %v5725 = vand.u32 %v4161, 4294901760
    %5726 = vmatmul.mubr.f32.gmra.mrb[0].mxu0 %v5725
    %v5727 = vpop.f32.mrb[0].mxu0
    %v5728 = vadd.f32 %v5361, %v5727
    %v5729 = vpop.f32.mrb[0].mxu0
    %5730 = vmatprep.mubr.f32.mxu0 0.0
    %v5731 = vand.u32 %v4162, 4294901760
    %5732 = vmatmul.mubr.f32.gmra.mrb[0].mxu0 %v5731
    %v5733 = vpop.f32.mrb[0].mxu0
    %v5734 = vadd.f32 %v5369, %v5733
    %v5735 = vpop.f32.mrb[0].mxu0
    %5736 = vmatprep.mubr.f32.mxu0 0.0
    %v5737 = vand.u32 %v4163, 4294901760
    %5738 = vmatmul.mubr.f32.gmra.mrb[0].mxu0 %v5737
    %v5739 = vpop.f32.mrb[0].mxu0
    %v5740 = vadd.f32 %v5377, %v5739
    %v5741 = vpop.f32.mrb[0].mxu0
    %5742 = vmatprep.mubr.f32.mxu0 0.0
    %v5743 = vand.u32 %v4164, 4294901760
    %5744 = vmatmul.mubr.f32.gmra.mrb[0].mxu0 %v5743
    %v5745 = vpop.f32.mrb[0].mxu0
    %v5746 = vadd.f32 %v5385, %v5745
    %v5747 = vpop.f32.mrb[0].mxu0
    %5748 = vmatprep.mubr.f32.mxu0 0.0
    %v5749 = vand.u32 %v4165, 4294901760
    %5750 = vmatmul.mubr.f32.gmra.mrb[0].mxu0 %v5749
    %v5751 = vpop.f32.mrb[0].mxu0
    %v5752 = vadd.f32 %v5393, %v5751
    %v5753 = vpop.f32.mrb[0].mxu0
    %5754 = vmatprep.mubr.f32.mxu0 0.0
    %v5755 = vand.u32 %v4166, 4294901760
    %5756 = vmatmul.mubr.f32.gmra.mrb[0].mxu0 %v5755
    %v5757 = vpop.f32.mrb[0].mxu0
    %v5758 = vadd.f32 %v5401, %v5757
    %v5759 = vpop.f32.mrb[0].mxu0
    %5760 = vmatprep.mubr.f32.mxu0 0.0
    %v5761 = vand.u32 %v4167, 4294901760
    %5762 = vmatmul.mubr.f32.gmra.mrb[0].mxu0 %v5761
    %v5763 = vpop.f32.mrb[0].mxu0
    %v5764 = vadd.f32 %v5409, %v5763
    %v5765 = vpop.f32.mrb[0].mxu0
    %5766 = vmatprep.mubr.f32.mxu0 0.0
    %v5767 = vand.u32 %v4168, 4294901760
    %5768 = vmatmul.mubr.f32.gmra.mrb[0].mxu0 %v5767
    %v5769 = vpop.f32.mrb[0].mxu0
    %v5770 = vadd.f32 %v5417, %v5769
    %v5771 = vpop.f32.mrb[0].mxu0
    %5772 = vmatprep.mubr.f32.mxu0 0.0
    %v5773 = vand.u32 %v4169, 4294901760
    %5774 = vmatmul.mubr.f32.gmra.mrb[0].mxu0 %v5773
    %v5775 = vpop.f32.mrb[0].mxu0
    %v5776 = vadd.f32 %v5425, %v5775
    %v5777 = vpop.f32.mrb[0].mxu0
    %5778 = vmatprep.mubr.f32.mxu0 0.0
    %v5779 = vand.u32 %v4170, 4294901760
    %5780 = vmatmul.mubr.f32.gmra.mrb[0].mxu0 %v5779
    %v5781 = vpop.f32.mrb[0].mxu0
    %v5782 = vadd.f32 %v5433, %v5781
    %v5783 = vpop.f32.mrb[0].mxu0
    %5784 = vmatprep.mubr.f32.mxu0 0.0
    %v5785 = vand.u32 %v4171, 4294901760
    %5786 = vmatmul.mubr.f32.gmra.mrb[0].mxu0 %v5785
    %v5787 = vpop.f32.mrb[0].mxu0
    %v5788 = vadd.f32 %v5441, %v5787
    %v5789 = vpop.f32.mrb[0].mxu0
    %5790 = vmatprep.mubr.f32.mxu0 0.0
    %v5791 = vand.u32 %v4172, 4294901760
    %5792 = vmatmul.mubr.f32.gmra.mrb[0].mxu0 %v5791
    %v5793 = vpop.f32.mrb[0].mxu0
    %v5794 = vadd.f32 %v5449, %v5793
    %v5795 = vpop.f32.mrb[0].mxu0
    %5796 = vmatprep.mubr.f32.mxu0 0.0
    %v5797 = vand.u32 %v4173, 4294901760
    %5798 = vmatmul.mubr.f32.gmra.mrb[0].mxu0 %v5797
    %v5799 = vpop.f32.mrb[0].mxu0
    %v5800 = vadd.f32 %v5457, %v5799
    %v5801 = vpop.f32.mrb[0].mxu0
    %5802 = vmatprep.mubr.f32.mxu0 0.0
    %v5803 = vand.u32 %v4174, 4294901760
    %5804 = vmatmul.mubr.f32.gmra.mrb[0].mxu0 %v5803
    %v5805 = vpop.f32.mrb[0].mxu0
    %v5806 = vadd.f32 %v5465, %v5805
    %v5807 = vpop.f32.mrb[0].mxu0
    %5808 = vmatprep.mubr.f32.mxu0 0.0
    %v5809 = vand.u32 %v4175, 4294901760
    %5810 = vmatmul.mubr.f32.gmra.mrb[0].mxu0 %v5809
    %v5811 = vpop.f32.mrb[0].mxu0
    %v5812 = vadd.f32 %v5473, %v5811
    %v5813 = vpop.f32.mrb[0].mxu0
    %5814 = vmatprep.mubr.f32.mxu0 0.0
    %v5815 = vand.u32 %v4176, 4294901760
    %5816 = vmatmul.mubr.f32.gmra.mrb[0].mxu0 %v5815
    %v5817 = vpop.f32.mrb[0].mxu0
    %v5818 = vadd.f32 %v5481, %v5817
    %v5819 = vpop.f32.mrb[0].mxu0
    %5820 = vmatprep.mubr.f32.mxu0 0.0
    %v5821 = vand.u32 %v4177, 4294901760
    %5822 = vmatmul.mubr.f32.gmra.mrb[0].mxu0 %v5821
    %v5823 = vpop.f32.mrb[0].mxu0
    %v5824 = vadd.f32 %v5489, %v5823
    %v5825 = vpop.f32.mrb[0].mxu0
    %5826 = vmatprep.mubr.f32.mxu0 0.0
    %v5827 = vand.u32 %v4178, 4294901760
    %5828 = vmatmul.mubr.f32.gmra.mrb[0].mxu0 %v5827
    %v5829 = vpop.f32.mrb[0].mxu0
    %v5830 = vadd.f32 %v5497, %v5829
    %v5831 = vpop.f32.mrb[0].mxu0
    %5832 = vmatprep.mubr.f32.mxu0 0.0
    %v5833 = vand.u32 %v4179, 4294901760
    %5834 = vmatmul.mubr.f32.gmra.mrb[0].mxu0 %v5833
    %v5835 = vpop.f32.mrb[0].mxu0
    %v5836 = vadd.f32 %v5505, %v5835
    %v5837 = vpop.f32.mrb[0].mxu0
    %5838 = vmatprep.mubr.f32.mxu0 0.0
    %v5839 = vand.u32 %v4180, 4294901760
    %5840 = vmatmul.mubr.f32.gmra.mrb[0].mxu0 %v5839
    %v5841 = vpop.f32.mrb[0].mxu0
    %v5842 = vadd.f32 %v5513, %v5841
    %v5843 = vpop.f32.mrb[0].mxu0
    %5844 = vmatprep.mubr.f32.mxu0 0.0
    %v5845 = vand.u32 %v4181, 4294901760
    %5846 = vmatmul.mubr.f32.gmra.mrb[0].mxu0 %v5845
    %v5847 = vpop.f32.mrb[0].mxu0
    %v5848 = vadd.f32 %v5521, %v5847
    %v5849 = vpop.f32.mrb[0].mxu0
    %5850 = vmatprep.mubr.f32.mxu0 0.0
    %v5851 = vand.u32 %v4182, 4294901760
    %5852 = vmatmul.mubr.f32.gmra.mrb[0].mxu0 %v5851
    %v5853 = vpop.f32.mrb[0].mxu0
    %v5854 = vadd.f32 %v5529, %v5853
    %v5855 = vpop.f32.mrb[0].mxu0
    %5856 = vmatprep.mubr.f32.mxu0 0.0
    %v5857 = vand.u32 %v4183, 4294901760
    %5858 = vmatmul.mubr.f32.gmra.mrb[0].mxu0 %v5857
    %v5859 = vpop.f32.mrb[0].mxu0
    %v5860 = vadd.f32 %v5537, %v5859
    %v5861 = vpop.f32.mrb[0].mxu0
    %5862 = vmatprep.mubr.f32.mxu0 0.0
    %v5863 = vand.u32 %v4184, 4294901760
    %5864 = vmatmul.mubr.f32.gmra.mrb[0].mxu0 %v5863
    %v5865 = vpop.f32.mrb[0].mxu0
    %v5866 = vadd.f32 %v5545, %v5865
    %v5867 = vpop.f32.mrb[0].mxu0
    %5868 = vmatprep.mubr.f32.mxu0 0.0
    %v5869 = vand.u32 %v4185, 4294901760
    %5870 = vmatmul.mubr.f32.gmra.mrb[0].mxu0 %v5869
    %v5871 = vpop.f32.mrb[0].mxu0
    %v5872 = vadd.f32 %v5553, %v5871
    %v5873 = vpop.f32.mrb[0].mxu0
    %5874 = vmatprep.mubr.f32.mxu0 0.0
    %v5875 = vand.u32 %v4186, 4294901760
    %5876 = vmatmul.mubr.f32.gmra.mrb[0].mxu0 %v5875
    %v5877 = vpop.f32.mrb[0].mxu0
    %v5878 = vadd.f32 %v5561, %v5877
    %v5879 = vpop.f32.mrb[0].mxu0
    %5880 = vmatprep.mubr.f32.mxu0 0.0
    %v5881 = vand.u32 %v4187, 4294901760
    %5882 = vmatmul.mubr.f32.gmra.mrb[0].mxu0 %v5881
    %v5883 = vpop.f32.mrb[0].mxu0
    %v5884 = vadd.f32 %v5569, %v5883
    %v5885 = vpop.f32.mrb[0].mxu0
    %5886 = vmatprep.mubr.f32.mxu0 0.0
    %v5887 = vand.u32 %v4188, 4294901760
    %5888 = vmatmul.mubr.f32.gmra.mrb[0].mxu0 %v5887
    %v5889 = vpop.f32.mrb[0].mxu0
    %v5890 = vadd.f32 %v5577, %v5889
    %v5891 = vpop.f32.mrb[0].mxu0
    %5892 = vmatprep.mubr.f32.mxu0 0.0
    %v5893 = vand.u32 %v4189, 4294901760
    %5894 = vmatmul.mubr.f32.gmra.mrb[0].mxu0 %v5893
    %v5895 = vpop.f32.mrb[0].mxu0
    %v5896 = vadd.f32 %v5585, %v5895
    %v5897 = vpop.f32.mrb[0].mxu0
    %5898 = vmatprep.mubr.f32.mxu0 0.0
    %v5899 = vand.u32 %v4190, 4294901760
    %5900 = vmatmul.mubr.f32.gmra.mrb[0].mxu0 %v5899
    %v5901 = vpop.f32.mrb[0].mxu0
    %v5902 = vadd.f32 %v5593, %v5901
    %v5903 = vpop.f32.mrb[0].mxu0
    %5904 = vmatprep.mubr.f32.mxu0 0.0
    %v5905 = vand.u32 %v4191, 4294901760
    %5906 = vmatmul.mubr.f32.gmra.mrb[0].mxu0 %v5905
    %v5907 = vpop.f32.mrb[0].mxu0
    %v5908 = vadd.f32 %v5601, %v5907
    %v5909 = vpop.f32.mrb[0].mxu0
    %5910 = vmatprep.mubr.f32.mxu0 0.0
    %v5911 = vand.u32 %v4192, 4294901760
    %5912 = vmatmul.mubr.f32.gmra.mrb[0].mxu0 %v5911
    %v5913 = vpop.f32.mrb[0].mxu0
    %v5914 = vadd.f32 %v5609, %v5913
    %v5915 = vpop.f32.mrb[0].mxu0
    %5916 = vdwg.mxu0
    %5917 = vmatprep.subr.mxu0 0.0
    %v5918 = vand.u32 %v4193, 4294901760
    %5919 = vmatpush1.msra.mxu0 %v5918
    %5920 = vmatprep.subr.mxu0 0.0
    %v5921 = vand.u32 %v4194, 4294901760
    %5922 = vmatpush1.msra.mxu0 %v5921
    %5923 = vmatprep.subr.mxu0 0.0
    %v5924 = vand.u32 %v4195, 4294901760
    %5925 = vmatpush1.msra.mxu0 %v5924
    %5926 = vmatprep.subr.mxu0 0.0
    %v5927 = vand.u32 %v4196, 4294901760
    %5928 = vmatpush1.msra.mxu0 %v5927
    %5929 = vmatprep.subr.mxu0 0.0
    %v5930 = vand.u32 %v4197, 4294901760
    %5931 = vmatpush1.msra.mxu0 %v5930
    %5932 = vmatprep.subr.mxu0 0.0
    %v5933 = vand.u32 %v4198, 4294901760
    %5934 = vmatpush1.msra.mxu0 %v5933
    %5935 = vmatprep.subr.mxu0 0.0
    %v5936 = vand.u32 %v4199, 4294901760
    %5937 = vmatpush1.msra.mxu0 %v5936
    %5938 = vmatprep.subr.mxu0 0.0
    %v5939 = vand.u32 %v4200, 4294901760
    %5940 = vmatpush1.msra.mxu0 %v5939
    %5941 = vmatprep.subr.mxu0 0.0
    %v5942 = vand.u32 %v4201, 4294901760
    %5943 = vmatpush1.msra.mxu0 %v5942
    %5944 = vmatprep.subr.mxu0 0.0
    %v5945 = vand.u32 %v4202, 4294901760
    %5946 = vmatpush1.msra.mxu0 %v5945
    %5947 = vmatprep.subr.mxu0 0.0
    %v5948 = vand.u32 %v4203, 4294901760
    %5949 = vmatpush1.msra.mxu0 %v5948
    %5950 = vmatprep.subr.mxu0 0.0
    %v5951 = vand.u32 %v4204, 4294901760
    %5952 = vmatpush1.msra.mxu0 %v5951
    %5953 = vmatprep.subr.mxu0 0.0
    %v5954 = vand.u32 %v4205, 4294901760
    %5955 = vmatpush1.msra.mxu0 %v5954
    %5956 = vmatprep.subr.mxu0 0.0
    %v5957 = vand.u32 %v4206, 4294901760
    %5958 = vmatpush1.msra.mxu0 %v5957
    %5959 = vmatprep.subr.mxu0 0.0
    %v5960 = vand.u32 %v4207, 4294901760
    %5961 = vmatpush1.msra.mxu0 %v5960
    %5962 = vmatprep.subr.mxu0 0.0
    %v5963 = vand.u32 %v4208, 4294901760
    %5964 = vmatpush1.msra.mxu0 %v5963
    %5965 = vmatprep.subr.mxu0 0.0
    %5966 = vmatpush1.msra.mxu0 0.0
    %5967 = vmatprep.subr.mxu0 0.0
    %5968 = vmatpush1.msra.mxu0 0.0
    %5969 = vmatprep.subr.mxu0 0.0
    %5970 = vmatpush1.msra.mxu0 0.0
    %5971 = vmatprep.subr.mxu0 0.0
    %5972 = vmatpush1.msra.mxu0 0.0
    %5973 = vmatprep.subr.mxu0 0.0
    %5974 = vmatpush1.msra.mxu0 0.0
    %5975 = vmatprep.subr.mxu0 0.0
    %5976 = vmatpush1.msra.mxu0 0.0
    %5977 = vmatprep.subr.mxu0 0.0
    %5978 = vmatpush1.msra.mxu0 0.0
    %5979 = vmatprep.subr.mxu0 0.0
    %5980 = vmatpush1.msra.mxu0 0.0
    %5981 = vmatprep.subr.mxu0 0.0
    %5982 = vmatpush1.msra.mxu0 0.0
    %5983 = vmatprep.subr.mxu0 0.0
    %5984 = vmatpush1.msra.mxu0 0.0
    %5985 = vmatprep.subr.mxu0 0.0
    %5986 = vmatpush1.msra.mxu0 0.0
    %5987 = vmatprep.subr.mxu0 0.0
    %5988 = vmatpush1.msra.mxu0 0.0
    %5989 = vmatprep.subr.mxu0 0.0
    %5990 = vmatpush1.msra.mxu0 0.0
    %5991 = vmatprep.subr.mxu0 0.0
    %5992 = vmatpush1.msra.mxu0 0.0
    %5993 = vmatprep.subr.mxu0 0.0
    %5994 = vmatpush1.msra.mxu0 0.0
    %5995 = vmatprep.subr.mxu0 0.0
    %5996 = vmatpush1.msra.mxu0 0.0
    %5997 = vmatprep.mubr.f32.mxu0 0.0
    %v5998 = vand.u32 %v4161, 4294901760
    %5999 = vmatmul.mubr.f32.gmra.mrb[0].mxu0 %v5998
    %v6000 = vpop.f32.mrb[0].mxu0
    %v6001 = vadd.f32 %v5728, %v6000
    %v6002 = vpop.f32.mrb[0].mxu0
    %6003 = vmatprep.mubr.f32.mxu0 0.0
    %v6004 = vand.u32 %v4162, 4294901760
    %6005 = vmatmul.mubr.f32.gmra.mrb[0].mxu0 %v6004
    %v6006 = vpop.f32.mrb[0].mxu0
    %v6007 = vadd.f32 %v5734, %v6006
    %v6008 = vpop.f32.mrb[0].mxu0
    %6009 = vmatprep.mubr.f32.mxu0 0.0
    %v6010 = vand.u32 %v4163, 4294901760
    %6011 = vmatmul.mubr.f32.gmra.mrb[0].mxu0 %v6010
    %v6012 = vpop.f32.mrb[0].mxu0
    %v6013 = vadd.f32 %v5740, %v6012
    %v6014 = vpop.f32.mrb[0].mxu0
    %6015 = vmatprep.mubr.f32.mxu0 0.0
    %v6016 = vand.u32 %v4164, 4294901760
    %6017 = vmatmul.mubr.f32.gmra.mrb[0].mxu0 %v6016
    %v6018 = vpop.f32.mrb[0].mxu0
    %v6019 = vadd.f32 %v5746, %v6018
    %v6020 = vpop.f32.mrb[0].mxu0
    %6021 = vmatprep.mubr.f32.mxu0 0.0
    %v6022 = vand.u32 %v4165, 4294901760
    %6023 = vmatmul.mubr.f32.gmra.mrb[0].mxu0 %v6022
    %v6024 = vpop.f32.mrb[0].mxu0
    %v6025 = vadd.f32 %v5752, %v6024
    %v6026 = vpop.f32.mrb[0].mxu0
    %6027 = vmatprep.mubr.f32.mxu0 0.0
    %v6028 = vand.u32 %v4166, 4294901760
    %6029 = vmatmul.mubr.f32.gmra.mrb[0].mxu0 %v6028
    %v6030 = vpop.f32.mrb[0].mxu0
    %v6031 = vadd.f32 %v5758, %v6030
    %v6032 = vpop.f32.mrb[0].mxu0
    %6033 = vmatprep.mubr.f32.mxu0 0.0
    %v6034 = vand.u32 %v4167, 4294901760
    %6035 = vmatmul.mubr.f32.gmra.mrb[0].mxu0 %v6034
    %v6036 = vpop.f32.mrb[0].mxu0
    %v6037 = vadd.f32 %v5764, %v6036
    %v6038 = vpop.f32.mrb[0].mxu0
    %6039 = vmatprep.mubr.f32.mxu0 0.0
    %v6040 = vand.u32 %v4168, 4294901760
    %6041 = vmatmul.mubr.f32.gmra.mrb[0].mxu0 %v6040
    %v6042 = vpop.f32.mrb[0].mxu0
    %v6043 = vadd.f32 %v5770, %v6042
    %v6044 = vpop.f32.mrb[0].mxu0
    %6045 = vmatprep.mubr.f32.mxu0 0.0
    %v6046 = vand.u32 %v4169, 4294901760
    %6047 = vmatmul.mubr.f32.gmra.mrb[0].mxu0 %v6046
    %v6048 = vpop.f32.mrb[0].mxu0
    %v6049 = vadd.f32 %v5776, %v6048
    %v6050 = vpop.f32.mrb[0].mxu0
    %6051 = vmatprep.mubr.f32.mxu0 0.0
    %v6052 = vand.u32 %v4170, 4294901760
    %6053 = vmatmul.mubr.f32.gmra.mrb[0].mxu0 %v6052
    %v6054 = vpop.f32.mrb[0].mxu0
    %v6055 = vadd.f32 %v5782, %v6054
    %v6056 = vpop.f32.mrb[0].mxu0
    %6057 = vmatprep.mubr.f32.mxu0 0.0
    %v6058 = vand.u32 %v4171, 4294901760
    %6059 = vmatmul.mubr.f32.gmra.mrb[0].mxu0 %v6058
    %v6060 = vpop.f32.mrb[0].mxu0
    %v6061 = vadd.f32 %v5788, %v6060
    %v6062 = vpop.f32.mrb[0].mxu0
    %6063 = vmatprep.mubr.f32.mxu0 0.0
    %v6064 = vand.u32 %v4172, 4294901760
    %6065 = vmatmul.mubr.f32.gmra.mrb[0].mxu0 %v6064
    %v6066 = vpop.f32.mrb[0].mxu0
    %v6067 = vadd.f32 %v5794, %v6066
    %v6068 = vpop.f32.mrb[0].mxu0
    %6069 = vmatprep.mubr.f32.mxu0 0.0
    %v6070 = vand.u32 %v4173, 4294901760
    %6071 = vmatmul.mubr.f32.gmra.mrb[0].mxu0 %v6070
    %v6072 = vpop.f32.mrb[0].mxu0
    %v6073 = vadd.f32 %v5800, %v6072
    %v6074 = vpop.f32.mrb[0].mxu0
    %6075 = vmatprep.mubr.f32.mxu0 0.0
    %v6076 = vand.u32 %v4174, 4294901760
    %6077 = vmatmul.mubr.f32.gmra.mrb[0].mxu0 %v6076
    %v6078 = vpop.f32.mrb[0].mxu0
    %v6079 = vadd.f32 %v5806, %v6078
    %v6080 = vpop.f32.mrb[0].mxu0
    %6081 = vmatprep.mubr.f32.mxu0 0.0
    %v6082 = vand.u32 %v4175, 4294901760
    %6083 = vmatmul.mubr.f32.gmra.mrb[0].mxu0 %v6082
    %v6084 = vpop.f32.mrb[0].mxu0
    %v6085 = vadd.f32 %v5812, %v6084
    %v6086 = vpop.f32.mrb[0].mxu0
    %6087 = vmatprep.mubr.f32.mxu0 0.0
    %v6088 = vand.u32 %v4176, 4294901760
    %6089 = vmatmul.mubr.f32.gmra.mrb[0].mxu0 %v6088
    %v6090 = vpop.f32.mrb[0].mxu0
    %v6091 = vadd.f32 %v5818, %v6090
    %v6092 = vpop.f32.mrb[0].mxu0
    %6093 = vmatprep.mubr.f32.mxu0 0.0
    %v6094 = vand.u32 %v4177, 4294901760
    %6095 = vmatmul.mubr.f32.gmra.mrb[0].mxu0 %v6094
    %v6096 = vpop.f32.mrb[0].mxu0
    %v6097 = vadd.f32 %v5824, %v6096
    %v6098 = vpop.f32.mrb[0].mxu0
    %6099 = vmatprep.mubr.f32.mxu0 0.0
    %v6100 = vand.u32 %v4178, 4294901760
    %6101 = vmatmul.mubr.f32.gmra.mrb[0].mxu0 %v6100
    %v6102 = vpop.f32.mrb[0].mxu0
    %v6103 = vadd.f32 %v5830, %v6102
    %v6104 = vpop.f32.mrb[0].mxu0
    %6105 = vmatprep.mubr.f32.mxu0 0.0
    %v6106 = vand.u32 %v4179, 4294901760
    %6107 = vmatmul.mubr.f32.gmra.mrb[0].mxu0 %v6106
    %v6108 = vpop.f32.mrb[0].mxu0
    %v6109 = vadd.f32 %v5836, %v6108
    %v6110 = vpop.f32.mrb[0].mxu0
    %6111 = vmatprep.mubr.f32.mxu0 0.0
    %v6112 = vand.u32 %v4180, 4294901760
    %6113 = vmatmul.mubr.f32.gmra.mrb[0].mxu0 %v6112
    %v6114 = vpop.f32.mrb[0].mxu0
    %v6115 = vadd.f32 %v5842, %v6114
    %v6116 = vpop.f32.mrb[0].mxu0
    %6117 = vmatprep.mubr.f32.mxu0 0.0
    %v6118 = vand.u32 %v4181, 4294901760
    %6119 = vmatmul.mubr.f32.gmra.mrb[0].mxu0 %v6118
    %v6120 = vpop.f32.mrb[0].mxu0
    %v6121 = vadd.f32 %v5848, %v6120
    %v6122 = vpop.f32.mrb[0].mxu0
    %6123 = vmatprep.mubr.f32.mxu0 0.0
    %v6124 = vand.u32 %v4182, 4294901760
    %6125 = vmatmul.mubr.f32.gmra.mrb[0].mxu0 %v6124
    %v6126 = vpop.f32.mrb[0].mxu0
    %v6127 = vadd.f32 %v5854, %v6126
    %v6128 = vpop.f32.mrb[0].mxu0
    %6129 = vmatprep.mubr.f32.mxu0 0.0
    %v6130 = vand.u32 %v4183, 4294901760
    %6131 = vmatmul.mubr.f32.gmra.mrb[0].mxu0 %v6130
    %v6132 = vpop.f32.mrb[0].mxu0
    %v6133 = vadd.f32 %v5860, %v6132
    %v6134 = vpop.f32.mrb[0].mxu0
    %6135 = vmatprep.mubr.f32.mxu0 0.0
    %v6136 = vand.u32 %v4184, 4294901760
    %6137 = vmatmul.mubr.f32.gmra.mrb[0].mxu0 %v6136
    %v6138 = vpop.f32.mrb[0].mxu0
    %v6139 = vadd.f32 %v5866, %v6138
    %v6140 = vpop.f32.mrb[0].mxu0
    %6141 = vmatprep.mubr.f32.mxu0 0.0
    %v6142 = vand.u32 %v4185, 4294901760
    %6143 = vmatmul.mubr.f32.gmra.mrb[0].mxu0 %v6142
    %v6144 = vpop.f32.mrb[0].mxu0
    %v6145 = vadd.f32 %v5872, %v6144
    %v6146 = vpop.f32.mrb[0].mxu0
    %6147 = vmatprep.mubr.f32.mxu0 0.0
    %v6148 = vand.u32 %v4186, 4294901760
    %6149 = vmatmul.mubr.f32.gmra.mrb[0].mxu0 %v6148
    %v6150 = vpop.f32.mrb[0].mxu0
    %v6151 = vadd.f32 %v5878, %v6150
    %v6152 = vpop.f32.mrb[0].mxu0
    %6153 = vmatprep.mubr.f32.mxu0 0.0
    %v6154 = vand.u32 %v4187, 4294901760
    %6155 = vmatmul.mubr.f32.gmra.mrb[0].mxu0 %v6154
    %v6156 = vpop.f32.mrb[0].mxu0
    %v6157 = vadd.f32 %v5884, %v6156
    %v6158 = vpop.f32.mrb[0].mxu0
    %6159 = vmatprep.mubr.f32.mxu0 0.0
    %v6160 = vand.u32 %v4188, 4294901760
    %6161 = vmatmul.mubr.f32.gmra.mrb[0].mxu0 %v6160
    %v6162 = vpop.f32.mrb[0].mxu0
    %v6163 = vadd.f32 %v5890, %v6162
    %v6164 = vpop.f32.mrb[0].mxu0
    %6165 = vmatprep.mubr.f32.mxu0 0.0
    %v6166 = vand.u32 %v4189, 4294901760
    %6167 = vmatmul.mubr.f32.gmra.mrb[0].mxu0 %v6166
    %v6168 = vpop.f32.mrb[0].mxu0
    %v6169 = vadd.f32 %v5896, %v6168
    %v6170 = vpop.f32.mrb[0].mxu0
    %6171 = vmatprep.mubr.f32.mxu0 0.0
    %v6172 = vand.u32 %v4190, 4294901760
    %6173 = vmatmul.mubr.f32.gmra.mrb[0].mxu0 %v6172
    %v6174 = vpop.f32.mrb[0].mxu0
    %v6175 = vadd.f32 %v5902, %v6174
    %v6176 = vpop.f32.mrb[0].mxu0
    %6177 = vmatprep.mubr.f32.mxu0 0.0
    %v6178 = vand.u32 %v4191, 4294901760
    %6179 = vmatmul.mubr.f32.gmra.mrb[0].mxu0 %v6178
    %v6180 = vpop.f32.mrb[0].mxu0
    %v6181 = vadd.f32 %v5908, %v6180
    %v6182 = vpop.f32.mrb[0].mxu0
    %6183 = vmatprep.mubr.f32.mxu0 0.0
    %v6184 = vand.u32 %v4192, 4294901760
    %6185 = vmatmul.mubr.f32.gmra.mrb[0].mxu0 %v6184
    %v6186 = vpop.f32.mrb[0].mxu0
    %v6187 = vadd.f32 %v5914, %v6186
    %v6188 = vpop.f32.mrb[0].mxu0
    %6189 = vdwg.mxu0
    %v6190 = vadd.f32 %v6001, 2.220446e-16
    %v6191 = vadd.f32 %v6007, 2.220446e-16
    %v6192 = vadd.f32 %v6013, 2.220446e-16
    %v6193 = vadd.f32 %v6019, 2.220446e-16
    %v6194 = vadd.f32 %v6025, 2.220446e-16
    %v6195 = vadd.f32 %v6031, 2.220446e-16
    %v6196 = vadd.f32 %v6037, 2.220446e-16
    %v6197 = vadd.f32 %v6043, 2.220446e-16
    %v6198 = vadd.f32 %v6049, 2.220446e-16
    %v6199 = vadd.f32 %v6055, 2.220446e-16
    %v6200 = vadd.f32 %v6061, 2.220446e-16
    %v6201 = vadd.f32 %v6067, 2.220446e-16
    %v6202 = vadd.f32 %v6073, 2.220446e-16
    %v6203 = vadd.f32 %v6079, 2.220446e-16
    %v6204 = vadd.f32 %v6085, 2.220446e-16
    %v6205 = vadd.f32 %v6091, 2.220446e-16
    %v6206 = vadd.f32 %v6097, 2.220446e-16
    %v6207 = vadd.f32 %v6103, 2.220446e-16
    %v6208 = vadd.f32 %v6109, 2.220446e-16
    %v6209 = vadd.f32 %v6115, 2.220446e-16
    %v6210 = vadd.f32 %v6121, 2.220446e-16
    %v6211 = vadd.f32 %v6127, 2.220446e-16
    %v6212 = vadd.f32 %v6133, 2.220446e-16
    %v6213 = vadd.f32 %v6139, 2.220446e-16
    %v6214 = vadd.f32 %v6145, 2.220446e-16
    %v6215 = vadd.f32 %v6151, 2.220446e-16
    %v6216 = vadd.f32 %v6157, 2.220446e-16
    %v6217 = vadd.f32 %v6163, 2.220446e-16
    %v6218 = vadd.f32 %v6169, 2.220446e-16
    %v6219 = vadd.f32 %v6175, 2.220446e-16
    %v6220 = vadd.f32 %v6181, 2.220446e-16
    %v6221 = vadd.f32 %v6187, 2.220446e-16
    %6223 = vset.pattern.permute.xlu0 0
    %6224 = vperm.xlu0 %6223, %v6190
    %v6225 = vpop.permute.xlu0 %6224
    %6228 = vset.pattern.permute.xlu0 0
    %6229 = vperm.xlu0 %6228, %v6191
    %v6230 = vpop.permute.xlu0 %6229
    %6233 = vset.pattern.permute.xlu0 0
    %6234 = vperm.xlu0 %6233, %v6192
    %v6235 = vpop.permute.xlu0 %6234
    %6238 = vset.pattern.permute.xlu0 0
    %6239 = vperm.xlu0 %6238, %v6193
    %v6240 = vpop.permute.xlu0 %6239
    %6243 = vset.pattern.permute.xlu0 0
    %6244 = vperm.xlu0 %6243, %v6194
    %v6245 = vpop.permute.xlu0 %6244
    %6248 = vset.pattern.permute.xlu0 0
    %6249 = vperm.xlu0 %6248, %v6195
    %v6250 = vpop.permute.xlu0 %6249
    %6253 = vset.pattern.permute.xlu0 0
    %6254 = vperm.xlu0 %6253, %v6196
    %v6255 = vpop.permute.xlu0 %6254
    %6258 = vset.pattern.permute.xlu0 0
    %6259 = vperm.xlu0 %6258, %v6197
    %v6260 = vpop.permute.xlu0 %6259
    %6263 = vset.pattern.permute.xlu0 0
    %6264 = vperm.xlu0 %6263, %v6198
    %v6265 = vpop.permute.xlu0 %6264
    %6268 = vset.pattern.permute.xlu0 0
    %6269 = vperm.xlu0 %6268, %v6199
    %v6270 = vpop.permute.xlu0 %6269
    %6273 = vset.pattern.permute.xlu0 0
    %6274 = vperm.xlu0 %6273, %v6200
    %v6275 = vpop.permute.xlu0 %6274
    %6278 = vset.pattern.permute.xlu0 0
    %6279 = vperm.xlu0 %6278, %v6201
    %v6280 = vpop.permute.xlu0 %6279
    %6283 = vset.pattern.permute.xlu0 0
    %6284 = vperm.xlu0 %6283, %v6202
    %v6285 = vpop.permute.xlu0 %6284
    %6288 = vset.pattern.permute.xlu0 0
    %6289 = vperm.xlu0 %6288, %v6203
    %v6290 = vpop.permute.xlu0 %6289
    %6293 = vset.pattern.permute.xlu0 0
    %6294 = vperm.xlu0 %6293, %v6204
    %v6295 = vpop.permute.xlu0 %6294
    %6298 = vset.pattern.permute.xlu0 0
    %6299 = vperm.xlu0 %6298, %v6205
    %v6300 = vpop.permute.xlu0 %6299
    %6303 = vset.pattern.permute.xlu0 0
    %6304 = vperm.xlu0 %6303, %v6206
    %v6305 = vpop.permute.xlu0 %6304
    %6308 = vset.pattern.permute.xlu0 0
    %6309 = vperm.xlu0 %6308, %v6207
    %v6310 = vpop.permute.xlu0 %6309
    %6313 = vset.pattern.permute.xlu0 0
    %6314 = vperm.xlu0 %6313, %v6208
    %v6315 = vpop.permute.xlu0 %6314
    %6318 = vset.pattern.permute.xlu0 0
    %6319 = vperm.xlu0 %6318, %v6209
    %v6320 = vpop.permute.xlu0 %6319
    %6323 = vset.pattern.permute.xlu0 0
    %6324 = vperm.xlu0 %6323, %v6210
    %v6325 = vpop.permute.xlu0 %6324
    %6328 = vset.pattern.permute.xlu0 0
    %6329 = vperm.xlu0 %6328, %v6211
    %v6330 = vpop.permute.xlu0 %6329
    %6333 = vset.pattern.permute.xlu0 0
    %6334 = vperm.xlu0 %6333, %v6212
    %v6335 = vpop.permute.xlu0 %6334
    %6338 = vset.pattern.permute.xlu0 0
    %6339 = vperm.xlu0 %6338, %v6213
    %v6340 = vpop.permute.xlu0 %6339
    %6343 = vset.pattern.permute.xlu0 0
    %6344 = vperm.xlu0 %6343, %v6214
    %v6345 = vpop.permute.xlu0 %6344
    %6348 = vset.pattern.permute.xlu0 0
    %6349 = vperm.xlu0 %6348, %v6215
    %v6350 = vpop.permute.xlu0 %6349
    %6353 = vset.pattern.permute.xlu0 0
    %6354 = vperm.xlu0 %6353, %v6216
    %v6355 = vpop.permute.xlu0 %6354
    %6358 = vset.pattern.permute.xlu0 0
    %6359 = vperm.xlu0 %6358, %v6217
    %v6360 = vpop.permute.xlu0 %6359
    %6363 = vset.pattern.permute.xlu0 0
    %6364 = vperm.xlu0 %6363, %v6218
    %v6365 = vpop.permute.xlu0 %6364
    %6368 = vset.pattern.permute.xlu0 0
    %6369 = vperm.xlu0 %6368, %v6219
    %v6370 = vpop.permute.xlu0 %6369
    %6373 = vset.pattern.permute.xlu0 0
    %6374 = vperm.xlu0 %6373, %v6220
    %v6375 = vpop.permute.xlu0 %6374
    %6378 = vset.pattern.permute.xlu0 0
    %6379 = vperm.xlu0 %6378, %v6221
    %v6380 = vpop.permute.xlu0 %6379
    %v6382 = vrcp.pop %v6225
    %v6383 = vmul.f32 %v103, %v6382
    %v6384 = vrcp.pop %v6230
    %v6385 = vmul.f32 %v104, %v6384
    %v6386 = vrcp.pop %v6235
    %v6387 = vmul.f32 %v105, %v6386
    %v6388 = vrcp.pop %v6240
    %v6389 = vmul.f32 %v106, %v6388
    %v6390 = vrcp.pop %v6245
    %v6391 = vmul.f32 %v107, %v6390
    %v6392 = vrcp.pop %v6250
    %v6393 = vmul.f32 %v108, %v6392
    %v6394 = vrcp.pop %v6255
    %v6395 = vmul.f32 %v109, %v6394
    %v6396 = vrcp.pop %v6260
    %v6397 = vmul.f32 %v110, %v6396
    %v6398 = vrcp.pop %v6265
    %v6399 = vmul.f32 %v111, %v6398
    %v6400 = vrcp.pop %v6270
    %v6401 = vmul.f32 %v112, %v6400
    %v6402 = vrcp.pop %v6275
    %v6403 = vmul.f32 %v113, %v6402
    %v6404 = vrcp.pop %v6280
    %v6405 = vmul.f32 %v114, %v6404
    %v6406 = vrcp.pop %v6285
    %v6407 = vmul.f32 %v115, %v6406
    %v6408 = vrcp.pop %v6290
    %v6409 = vmul.f32 %v116, %v6408
    %v6410 = vrcp.pop %v6295
    %v6411 = vmul.f32 %v117, %v6410
    %v6412 = vrcp.pop %v6300
    %v6413 = vmul.f32 %v118, %v6412
    %v6414 = vrcp.pop %v6305
    %v6415 = vmul.f32 %v119, %v6414
    %v6416 = vrcp.pop %v6310
    %v6417 = vmul.f32 %v120, %v6416
    %v6418 = vrcp.pop %v6315
    %v6419 = vmul.f32 %v121, %v6418
    %v6420 = vrcp.pop %v6320
    %v6421 = vmul.f32 %v122, %v6420
    %v6422 = vrcp.pop %v6325
    %v6423 = vmul.f32 %v123, %v6422
    %v6424 = vrcp.pop %v6330
    %v6425 = vmul.f32 %v124, %v6424
    %v6426 = vrcp.pop %v6335
    %v6427 = vmul.f32 %v125, %v6426
    %v6428 = vrcp.pop %v6340
    %v6429 = vmul.f32 %v126, %v6428
    %v6430 = vrcp.pop %v6345
    %v6431 = vmul.f32 %v127, %v6430
    %v6432 = vrcp.pop %v6350
    %v6433 = vmul.f32 %v128, %v6432
    %v6434 = vrcp.pop %v6355
    %v6435 = vmul.f32 %v129, %v6434
    %v6436 = vrcp.pop %v6360
    %v6437 = vmul.f32 %v130, %v6436
    %v6438 = vrcp.pop %v6365
    %v6439 = vmul.f32 %v131, %v6438
    %v6440 = vrcp.pop %v6370
    %v6441 = vmul.f32 %v132, %v6440
    %v6442 = vrcp.pop %v6375
    %v6443 = vmul.f32 %v133, %v6442
    %v6444 = vrcp.pop %v6380
    %v6445 = vmul.f32 %v134, %v6444
    %6446 = vst [vmem:[#allocation11] sm:$0xff] %v6383
    %6447 = vst [vmem:[#allocation11 + $0x8] sm:$0xff] %v6385
    %6448 = vst [vmem:[#allocation11 + $0x10] sm:$0xff] %v6387
    %6449 = vst [vmem:[#allocation11 + $0x18] sm:$0xff] %v6389
    %6450 = vst [vmem:[#allocation11 + $0x20] sm:$0xff] %v6391
    %6451 = vst [vmem:[#allocation11 + $0x28] sm:$0xff] %v6393
    %6452 = vst [vmem:[#allocation11 + $0x30] sm:$0xff] %v6395
    %6453 = vst [vmem:[#allocation11 + $0x38] sm:$0xff] %v6397
    %6454 = vst [vmem:[#allocation11 + $0x40] sm:$0xff] %v6399
    %6455 = vst [vmem:[#allocation11 + $0x48] sm:$0xff] %v6401
    %6456 = vst [vmem:[#allocation11 + $0x50] sm:$0xff] %v6403
    %6457 = vst [vmem:[#allocation11 + $0x58] sm:$0xff] %v6405
    %6458 = vst [vmem:[#allocation11 + $0x60] sm:$0xff] %v6407
    %6459 = vst [vmem:[#allocation11 + $0x68] sm:$0xff] %v6409
    %6460 = vst [vmem:[#allocation11 + $0x70] sm:$0xff] %v6411
    %6461 = vst [vmem:[#allocation11 + $0x78] sm:$0xff] %v6413
    %6462 = vst [vmem:[#allocation11 + $0x80] sm:$0xff] %v6415
    %6463 = vst [vmem:[#allocation11 + $0x88] sm:$0xff] %v6417
    %6464 = vst [vmem:[#allocation11 + $0x90] sm:$0xff] %v6419
    %6465 = vst [vmem:[#allocation11 + $0x98] sm:$0xff] %v6421
    %6466 = vst [vmem:[#allocation11 + $0xa0] sm:$0xff] %v6423
    %6467 = vst [vmem:[#allocation11 + $0xa8] sm:$0xff] %v6425
    %6468 = vst [vmem:[#allocation11 + $0xb0] sm:$0xff] %v6427
    %6469 = vst [vmem:[#allocation11 + $0xb8] sm:$0xff] %v6429
    %6470 = vst [vmem:[#allocation11 + $0xc0] sm:$0xff] %v6431
    %6471 = vst [vmem:[#allocation11 + $0xc8] sm:$0xff] %v6433
    %6472 = vst [vmem:[#allocation11 + $0xd0] sm:$0xff] %v6435
    %6473 = vst [vmem:[#allocation11 + $0xd8] sm:$0xff] %v6437
    %6474 = vst [vmem:[#allocation11 + $0xe0] sm:$0xff] %v6439
    %6475 = vst [vmem:[#allocation11 + $0xe8] sm:$0xff] %v6441
    %6476 = vst [vmem:[#allocation11 + $0xf0] sm:$0xff] %v6443
    %6477 = vst [vmem:[#allocation11 + $0xf8] sm:$0xff] %v6445
    %6478 = vxpose.xlu0.b32.start [1/16] %v6383, 128
    %6479 = vxpose.xlu0.b32.cont [2/16] %v6385, 128
    %6480 = vxpose.xlu0.b32.cont [3/16] %v6387, 128
    %6481 = vxpose.xlu0.b32.cont [4/16] %v6389, 128
    %6482 = vxpose.xlu0.b32.cont [5/16] %v6391, 128
    %6483 = vxpose.xlu0.b32.cont [6/16] %v6393, 128
    %6484 = vxpose.xlu0.b32.cont [7/16] %v6395, 128
    %6485 = vxpose.xlu0.b32.cont [8/16] %v6397, 128
    %6486 = vxpose.xlu0.b32.cont [9/16] %v6399, 128
    %6487 = vxpose.xlu0.b32.cont [10/16] %v6401, 128
    %6488 = vxpose.xlu0.b32.cont [11/16] %v6403, 128
    %6489 = vxpose.xlu0.b32.cont [12/16] %v6405, 128
    %6490 = vxpose.xlu0.b32.cont [13/16] %v6407, 128
    %6491 = vxpose.xlu0.b32.cont [14/16] %v6409, 128
    %6492 = vxpose.xlu0.b32.cont [15/16] %v6411, 128
    %6493 = vxpose.xlu0.b32.end [16/16] %v6413, 128
    %v6494 = vpop.trf.xlu0
    %v6495 = vpop.trf.xlu0
    %v6496 = vpop.trf.xlu0
    %v6497 = vpop.trf.xlu0
    %v6498 = vpop.trf.xlu0
    %v6499 = vpop.trf.xlu0
    %v6500 = vpop.trf.xlu0
    %v6501 = vpop.trf.xlu0
    %v6502 = vpop.trf.xlu0
    %v6503 = vpop.trf.xlu0
    %v6504 = vpop.trf.xlu0
    %v6505 = vpop.trf.xlu0
    %v6506 = vpop.trf.xlu0
    %v6507 = vpop.trf.xlu0
    %v6508 = vpop.trf.xlu0
    %v6509 = vpop.trf.xlu0
    %6510 = vxpose.xlu0.b32.start [1/16] %v6415, 128
    %6511 = vxpose.xlu0.b32.cont [2/16] %v6417, 128
    %6512 = vxpose.xlu0.b32.cont [3/16] %v6419, 128
    %6513 = vxpose.xlu0.b32.cont [4/16] %v6421, 128
    %6514 = vxpose.xlu0.b32.cont [5/16] %v6423, 128
    %6515 = vxpose.xlu0.b32.cont [6/16] %v6425, 128
    %6516 = vxpose.xlu0.b32.cont [7/16] %v6427, 128
    %6517 = vxpose.xlu0.b32.cont [8/16] %v6429, 128
    %6518 = vxpose.xlu0.b32.cont [9/16] %v6431, 128
    %6519 = vxpose.xlu0.b32.cont [10/16] %v6433, 128
    %6520 = vxpose.xlu0.b32.cont [11/16] %v6435, 128
    %6521 = vxpose.xlu0.b32.cont [12/16] %v6437, 128
    %6522 = vxpose.xlu0.b32.cont [13/16] %v6439, 128
    %6523 = vxpose.xlu0.b32.cont [14/16] %v6441, 128
    %6524 = vxpose.xlu0.b32.cont [15/16] %v6443, 128
    %6525 = vxpose.xlu0.b32.end [16/16] %v6445, 128
    %v6526 = vpop.trf.xlu0
    %v6527 = vpop.trf.xlu0
    %v6528 = vpop.trf.xlu0
    %v6529 = vpop.trf.xlu0
    %v6530 = vpop.trf.xlu0
    %v6531 = vpop.trf.xlu0
    %v6532 = vpop.trf.xlu0
    %v6533 = vpop.trf.xlu0
    %v6534 = vpop.trf.xlu0
    %v6535 = vpop.trf.xlu0
    %v6536 = vpop.trf.xlu0
    %v6537 = vpop.trf.xlu0
    %v6538 = vpop.trf.xlu0
    %v6539 = vpop.trf.xlu0
    %v6540 = vpop.trf.xlu0
    %v6541 = vpop.trf.xlu0
    %6542 = vst [vmem:[#allocation12] sm:$0xff] %v6494
    %6543 = vst [vmem:[#allocation12 + $0x8] sm:$0xff] %v6526
    %6544 = vst [vmem:[#allocation12 + $0x10] sm:$0xff] %v6495
    %6545 = vst [vmem:[#allocation12 + $0x18] sm:$0xff] %v6527
    %6546 = vst [vmem:[#allocation12 + $0x20] sm:$0xff] %v6496
    %6547 = vst [vmem:[#allocation12 + $0x28] sm:$0xff] %v6528
    %6548 = vst [vmem:[#allocation12 + $0x30] sm:$0xff] %v6497
    %6549 = vst [vmem:[#allocation12 + $0x38] sm:$0xff] %v6529
    %6550 = vst [vmem:[#allocation12 + $0x40] sm:$0xff] %v6498
    %6551 = vst [vmem:[#allocation12 + $0x48] sm:$0xff] %v6530
    %6552 = vst [vmem:[#allocation12 + $0x50] sm:$0xff] %v6499
    %6553 = vst [vmem:[#allocation12 + $0x58] sm:$0xff] %v6531
    %6554 = vst [vmem:[#allocation12 + $0x60] sm:$0xff] %v6500
    %6555 = vst [vmem:[#allocation12 + $0x68] sm:$0xff] %v6532
    %6556 = vst [vmem:[#allocation12 + $0x70] sm:$0xff] %v6501
    %6557 = vst [vmem:[#allocation12 + $0x78] sm:$0xff] %v6533
    %6558 = vst [vmem:[#allocation12 + $0x80] sm:$0xff] %v6502
    %6559 = vst [vmem:[#allocation12 + $0x88] sm:$0xff] %v6534
    %6560 = vst [vmem:[#allocation12 + $0x90] sm:$0xff] %v6503
    %6561 = vst [vmem:[#allocation12 + $0x98] sm:$0xff] %v6535
    %6562 = vst [vmem:[#allocation12 + $0xa0] sm:$0xff] %v6504
    %6563 = vst [vmem:[#allocation12 + $0xa8] sm:$0xff] %v6536
    %6564 = vst [vmem:[#allocation12 + $0xb0] sm:$0xff] %v6505
    %6565 = vst [vmem:[#allocation12 + $0xb8] sm:$0xff] %v6537
    %6566 = vst [vmem:[#allocation12 + $0xc0] sm:$0xff] %v6506
    %6567 = vst [vmem:[#allocation12 + $0xc8] sm:$0xff] %v6538
    %6568 = vst [vmem:[#allocation12 + $0xd0] sm:$0xff] %v6507
    %6569 = vst [vmem:[#allocation12 + $0xd8] sm:$0xff] %v6539
    %6570 = vst [vmem:[#allocation12 + $0xe0] sm:$0xff] %v6508
    %6571 = vst [vmem:[#allocation12 + $0xe8] sm:$0xff] %v6540
    %6572 = vst [vmem:[#allocation12 + $0xf0] sm:$0xff] %v6509
    %6573 = vst [vmem:[#allocation12 + $0xf8] sm:$0xff] %v6541
    %v6574 = vmul.f32 %v6383, %v6383
    %v6575 = vmul.f32 %v6385, %v6385
    %v6576 = vmul.f32 %v6387, %v6387
    %v6577 = vmul.f32 %v6389, %v6389
    %v6578 = vmul.f32 %v6391, %v6391
    %v6579 = vmul.f32 %v6393, %v6393
    %v6580 = vmul.f32 %v6395, %v6395
    %v6581 = vmul.f32 %v6397, %v6397
    %v6582 = vmul.f32 %v6399, %v6399
    %v6583 = vmul.f32 %v6401, %v6401
    %v6584 = vmul.f32 %v6403, %v6403
    %v6585 = vmul.f32 %v6405, %v6405
    %v6586 = vmul.f32 %v6407, %v6407
    %v6587 = vmul.f32 %v6409, %v6409
    %v6588 = vmul.f32 %v6411, %v6411
    %v6589 = vmul.f32 %v6413, %v6413
    %v6590 = vmul.f32 %v6415, %v6415
    %v6591 = vmul.f32 %v6417, %v6417
    %v6592 = vmul.f32 %v6419, %v6419
    %v6593 = vmul.f32 %v6421, %v6421
    %v6594 = vmul.f32 %v6423, %v6423
    %v6595 = vmul.f32 %v6425, %v6425
    %v6596 = vmul.f32 %v6427, %v6427
    %v6597 = vmul.f32 %v6429, %v6429
    %v6598 = vmul.f32 %v6431, %v6431
    %v6599 = vmul.f32 %v6433, %v6433
    %v6600 = vmul.f32 %v6435, %v6435
    %v6601 = vmul.f32 %v6437, %v6437
    %v6602 = vmul.f32 %v6439, %v6439
    %v6603 = vmul.f32 %v6441, %v6441
    %v6604 = vmul.f32 %v6443, %v6443
    %v6605 = vmul.f32 %v6445, %v6445
    %6606 = vadd.xlane.f32.xlu0 %v6574
    %v6607 = vpop.xlane.xlu0 %6606
    %6608 = vadd.xlane.f32.xlu0 %v6575
    %v6609 = vpop.xlane.xlu0 %6608
    %6610 = vadd.xlane.f32.xlu0 %v6576
    %v6611 = vpop.xlane.xlu0 %6610
    %6612 = vadd.xlane.f32.xlu0 %v6577
    %v6613 = vpop.xlane.xlu0 %6612
    %6614 = vadd.xlane.f32.xlu0 %v6578
    %v6615 = vpop.xlane.xlu0 %6614
    %6616 = vadd.xlane.f32.xlu0 %v6579
    %v6617 = vpop.xlane.xlu0 %6616
    %6618 = vadd.xlane.f32.xlu0 %v6580
    %v6619 = vpop.xlane.xlu0 %6618
    %6620 = vadd.xlane.f32.xlu0 %v6581
    %v6621 = vpop.xlane.xlu0 %6620
    %6622 = vadd.xlane.f32.xlu0 %v6582
    %v6623 = vpop.xlane.xlu0 %6622
    %6624 = vadd.xlane.f32.xlu0 %v6583
    %v6625 = vpop.xlane.xlu0 %6624
    %6626 = vadd.xlane.f32.xlu0 %v6584
    %v6627 = vpop.xlane.xlu0 %6626
    %6628 = vadd.xlane.f32.xlu0 %v6585
    %v6629 = vpop.xlane.xlu0 %6628
    %6630 = vadd.xlane.f32.xlu0 %v6586
    %v6631 = vpop.xlane.xlu0 %6630
    %6632 = vadd.xlane.f32.xlu0 %v6587
    %v6633 = vpop.xlane.xlu0 %6632
    %6634 = vadd.xlane.f32.xlu0 %v6588
    %v6635 = vpop.xlane.xlu0 %6634
    %6636 = vadd.xlane.f32.xlu0 %v6589
    %v6637 = vpop.xlane.xlu0 %6636
    %6638 = vadd.xlane.f32.xlu0 %v6590
    %v6639 = vpop.xlane.xlu0 %6638
    %6640 = vadd.xlane.f32.xlu0 %v6591
    %v6641 = vpop.xlane.xlu0 %6640
    %6642 = vadd.xlane.f32.xlu0 %v6592
    %v6643 = vpop.xlane.xlu0 %6642
    %6644 = vadd.xlane.f32.xlu0 %v6593
    %v6645 = vpop.xlane.xlu0 %6644
    %6646 = vadd.xlane.f32.xlu0 %v6594
    %v6647 = vpop.xlane.xlu0 %6646
    %6648 = vadd.xlane.f32.xlu0 %v6595
    %v6649 = vpop.xlane.xlu0 %6648
    %6650 = vadd.xlane.f32.xlu0 %v6596
    %v6651 = vpop.xlane.xlu0 %6650
    %6652 = vadd.xlane.f32.xlu0 %v6597
    %v6653 = vpop.xlane.xlu0 %6652
    %6654 = vadd.xlane.f32.xlu0 %v6598
    %v6655 = vpop.xlane.xlu0 %6654
    %6656 = vadd.xlane.f32.xlu0 %v6599
    %v6657 = vpop.xlane.xlu0 %6656
    %6658 = vadd.xlane.f32.xlu0 %v6600
    %v6659 = vpop.xlane.xlu0 %6658
    %6660 = vadd.xlane.f32.xlu0 %v6601
    %v6661 = vpop.xlane.xlu0 %6660
    %6662 = vadd.xlane.f32.xlu0 %v6602
    %v6663 = vpop.xlane.xlu0 %6662
    %6664 = vadd.xlane.f32.xlu0 %v6603
    %v6665 = vpop.xlane.xlu0 %6664
    %6666 = vadd.xlane.f32.xlu0 %v6604
    %v6667 = vpop.xlane.xlu0 %6666
    %6668 = vadd.xlane.f32.xlu0 %v6605
    %v6669 = vpop.xlane.xlu0 %6668
    %vm6670 = vcmask 7168
    %6671 = vst.msk [vmem:[%s11] sm:$0xff] %vm6670, %v6607
    %6672 = vst.msk [vmem:[%s11 + $0x8] sm:$0xff] %vm6670, %v6609
    %6673 = vst.msk [vmem:[%s11 + $0x10] sm:$0xff] %vm6670, %v6611
    %6674 = vst.msk [vmem:[%s11 + $0x18] sm:$0xff] %vm6670, %v6613
    %6675 = vst.msk [vmem:[%s11 + $0x20] sm:$0xff] %vm6670, %v6615
    %6676 = vst.msk [vmem:[%s11 + $0x28] sm:$0xff] %vm6670, %v6617
    %6677 = vst.msk [vmem:[%s11 + $0x30] sm:$0xff] %vm6670, %v6619
    %6678 = vst.msk [vmem:[%s11 + $0x38] sm:$0xff] %vm6670, %v6621
    %6679 = vst.msk [vmem:[%s11 + $0x40] sm:$0xff] %vm6670, %v6623
    %6680 = vst.msk [vmem:[%s11 + $0x48] sm:$0xff] %vm6670, %v6625
    %6681 = vst.msk [vmem:[%s11 + $0x50] sm:$0xff] %vm6670, %v6627
    %6682 = vst.msk [vmem:[%s11 + $0x58] sm:$0xff] %vm6670, %v6629
    %6683 = vst.msk [vmem:[%s11 + $0x60] sm:$0xff] %vm6670, %v6631
    %6684 = vst.msk [vmem:[%s11 + $0x68] sm:$0xff] %vm6670, %v6633
    %6685 = vst.msk [vmem:[%s11 + $0x70] sm:$0xff] %vm6670, %v6635
    %6686 = vst.msk [vmem:[%s11 + $0x78] sm:$0xff] %vm6670, %v6637
    %6687 = vst.msk [vmem:[%s11 + $0x80] sm:$0xff] %vm6670, %v6639
    %6688 = vst.msk [vmem:[%s11 + $0x88] sm:$0xff] %vm6670, %v6641
    %6689 = vst.msk [vmem:[%s11 + $0x90] sm:$0xff] %vm6670, %v6643
    %6690 = vst.msk [vmem:[%s11 + $0x98] sm:$0xff] %vm6670, %v6645
    %6691 = vst.msk [vmem:[%s11 + $0xa0] sm:$0xff] %vm6670, %v6647
    %6692 = vst.msk [vmem:[%s11 + $0xa8] sm:$0xff] %vm6670, %v6649
    %6693 = vst.msk [vmem:[%s11 + $0xb0] sm:$0xff] %vm6670, %v6651
    %6694 = vst.msk [vmem:[%s11 + $0xb8] sm:$0xff] %vm6670, %v6653
    %6695 = vst.msk [vmem:[%s11 + $0xc0] sm:$0xff] %vm6670, %v6655
    %6696 = vst.msk [vmem:[%s11 + $0xc8] sm:$0xff] %vm6670, %v6657
    %6697 = vst.msk [vmem:[%s11 + $0xd0] sm:$0xff] %vm6670, %v6659
    %6698 = vst.msk [vmem:[%s11 + $0xd8] sm:$0xff] %vm6670, %v6661
    %6699 = vst.msk [vmem:[%s11 + $0xe0] sm:$0xff] %vm6670, %v6663
    %6700 = vst.msk [vmem:[%s11 + $0xe8] sm:$0xff] %vm6670, %v6665
    %6701 = vst.msk [vmem:[%s11 + $0xf0] sm:$0xff] %vm6670, %v6667
    %6702 = vst.msk [vmem:[%s11 + $0xf8] sm:$0xff] %vm6670, %v6669
    %v6703 = vld [vmem:[#allocation10] sm:$0xff]
    %v6704 = vld [vmem:[#allocation10 + $0x8] sm:$0xff]
    %v6705 = vld [vmem:[#allocation10 + $0x10] sm:$0xff]
    %v6706 = vld [vmem:[#allocation10 + $0x18] sm:$0xff]
    %v6707 = vld [vmem:[#allocation10 + $0x20] sm:$0xff]
    %v6708 = vld [vmem:[#allocation10 + $0x28] sm:$0xff]
    %v6709 = vld [vmem:[#allocation10 + $0x30] sm:$0xff]
    %v6710 = vld [vmem:[#allocation10 + $0x38] sm:$0xff]
    %v6711 = vld [vmem:[#allocation10 + $0x40] sm:$0xff]
    %v6712 = vld [vmem:[#allocation10 + $0x48] sm:$0xff]
    %v6713 = vld [vmem:[#allocation10 + $0x50] sm:$0xff]
    %v6714 = vld [vmem:[#allocation10 + $0x58] sm:$0xff]
    %v6715 = vld [vmem:[#allocation10 + $0x60] sm:$0xff]
    %v6716 = vld [vmem:[#allocation10 + $0x68] sm:$0xff]
    %v6717 = vld [vmem:[#allocation10 + $0x70] sm:$0xff]
    %v6718 = vld [vmem:[#allocation10 + $0x78] sm:$0xff]
    %6719 = vmatprep.subr.mxu0 0.0
    %6720 = vmatpush1.msra.mxu0 %v6703
    %6721 = vmatprep.subr.mxu0 0.0
    %6722 = vmatpush1.msra.mxu0 %v6704
    %6723 = vmatprep.subr.mxu0 0.0
    %6724 = vmatpush1.msra.mxu0 %v6705
    %6725 = vmatprep.subr.mxu0 0.0
    %6726 = vmatpush1.msra.mxu0 %v6706
    %6727 = vmatprep.subr.mxu0 0.0
    %6728 = vmatpush1.msra.mxu0 %v6707
    %6729 = vmatprep.subr.mxu0 0.0
    %6730 = vmatpush1.msra.mxu0 %v6708
    %6731 = vmatprep.subr.mxu0 0.0
    %6732 = vmatpush1.msra.mxu0 %v6709
    %6733 = vmatprep.subr.mxu0 0.0
    %6734 = vmatpush1.msra.mxu0 %v6710
    %6735 = vmatprep.subr.mxu0 0.0
    %6736 = vmatpush1.msra.mxu0 %v6711
    %6737 = vmatprep.subr.mxu0 0.0
    %6738 = vmatpush1.msra.mxu0 %v6712
    %6739 = vmatprep.subr.mxu0 0.0
    %6740 = vmatpush1.msra.mxu0 %v6713
    %6741 = vmatprep.subr.mxu0 0.0
    %6742 = vmatpush1.msra.mxu0 %v6714
    %6743 = vmatprep.subr.mxu0 0.0
    %6744 = vmatpush1.msra.mxu0 %v6715
    %6745 = vmatprep.subr.mxu0 0.0
    %6746 = vmatpush1.msra.mxu0 %v6716
    %6747 = vmatprep.subr.mxu0 0.0
    %6748 = vmatpush1.msra.mxu0 %v6717
    %6749 = vmatprep.subr.mxu0 0.0
    %6750 = vmatpush1.msra.mxu0 %v6718
    %6751 = vmatprep.subr.mxu0 0.0
    %6752 = vmatpush1.msra.mxu0 0.0
    %6753 = vmatprep.subr.mxu0 0.0
    %6754 = vmatpush1.msra.mxu0 0.0
    %6755 = vmatprep.subr.mxu0 0.0
    %6756 = vmatpush1.msra.mxu0 0.0
    %6757 = vmatprep.subr.mxu0 0.0
    %6758 = vmatpush1.msra.mxu0 0.0
    %6759 = vmatprep.subr.mxu0 0.0
    %6760 = vmatpush1.msra.mxu0 0.0
    %6761 = vmatprep.subr.mxu0 0.0
    %6762 = vmatpush1.msra.mxu0 0.0
    %6763 = vmatprep.subr.mxu0 0.0
    %6764 = vmatpush1.msra.mxu0 0.0
    %6765 = vmatprep.subr.mxu0 0.0
    %6766 = vmatpush1.msra.mxu0 0.0
    %6767 = vmatprep.subr.mxu0 0.0
    %6768 = vmatpush1.msra.mxu0 0.0
    %6769 = vmatprep.subr.mxu0 0.0
    %6770 = vmatpush1.msra.mxu0 0.0
    %6771 = vmatprep.subr.mxu0 0.0
    %6772 = vmatpush1.msra.mxu0 0.0
    %6773 = vmatprep.subr.mxu0 0.0
    %6774 = vmatpush1.msra.mxu0 0.0
    %6775 = vmatprep.subr.mxu0 0.0
    %6776 = vmatpush1.msra.mxu0 0.0
    %6777 = vmatprep.subr.mxu0 0.0
    %6778 = vmatpush1.msra.mxu0 0.0
    %6779 = vmatprep.subr.mxu0 0.0
    %6780 = vmatpush1.msra.mxu0 0.0
    %6781 = vmatprep.subr.mxu0 0.0
    %6782 = vmatpush1.msra.mxu0 0.0
    %6783 = vmatprep.mubr.f32.mxu0 0.0
    %6784 = vmatmul.mubr.f32.gmra.mrb[0].mxu0 %v103
    %v6785 = vpop.f32.mrb[0].mxu0
    %v6786 = vadd.f32 0.0, %v6785
    %v6787 = vpop.f32.mrb[0].mxu0
    %6788 = vmatprep.mubr.f32.mxu0 0.0
    %6789 = vmatmul.mubr.f32.gmra.mrb[0].mxu0 %v104
    %v6790 = vpop.f32.mrb[0].mxu0
    %v6791 = vadd.f32 0.0, %v6790
    %v6792 = vpop.f32.mrb[0].mxu0
    %6793 = vmatprep.mubr.f32.mxu0 0.0
    %6794 = vmatmul.mubr.f32.gmra.mrb[0].mxu0 %v105
    %v6795 = vpop.f32.mrb[0].mxu0
    %v6796 = vadd.f32 0.0, %v6795
    %v6797 = vpop.f32.mrb[0].mxu0
    %6798 = vmatprep.mubr.f32.mxu0 0.0
    %6799 = vmatmul.mubr.f32.gmra.mrb[0].mxu0 %v106
    %v6800 = vpop.f32.mrb[0].mxu0
    %v6801 = vadd.f32 0.0, %v6800
    %v6802 = vpop.f32.mrb[0].mxu0
    %6803 = vmatprep.mubr.f32.mxu0 0.0
    %6804 = vmatmul.mubr.f32.gmra.mrb[0].mxu0 %v107
    %v6805 = vpop.f32.mrb[0].mxu0
    %v6806 = vadd.f32 0.0, %v6805
    %v6807 = vpop.f32.mrb[0].mxu0
    %6808 = vmatprep.mubr.f32.mxu0 0.0
    %6809 = vmatmul.mubr.f32.gmra.mrb[0].mxu0 %v108
    %v6810 = vpop.f32.mrb[0].mxu0
    %v6811 = vadd.f32 0.0, %v6810
    %v6812 = vpop.f32.mrb[0].mxu0
    %6813 = vmatprep.mubr.f32.mxu0 0.0
    %6814 = vmatmul.mubr.f32.gmra.mrb[0].mxu0 %v109
    %v6815 = vpop.f32.mrb[0].mxu0
    %v6816 = vadd.f32 0.0, %v6815
    %v6817 = vpop.f32.mrb[0].mxu0
    %6818 = vmatprep.mubr.f32.mxu0 0.0
    %6819 = vmatmul.mubr.f32.gmra.mrb[0].mxu0 %v110
    %v6820 = vpop.f32.mrb[0].mxu0
    %v6821 = vadd.f32 0.0, %v6820
    %v6822 = vpop.f32.mrb[0].mxu0
    %6823 = vmatprep.mubr.f32.mxu0 0.0
    %6824 = vmatmul.mubr.f32.gmra.mrb[0].mxu0 %v111
    %v6825 = vpop.f32.mrb[0].mxu0
    %v6826 = vadd.f32 0.0, %v6825
    %v6827 = vpop.f32.mrb[0].mxu0
    %6828 = vmatprep.mubr.f32.mxu0 0.0
    %6829 = vmatmul.mubr.f32.gmra.mrb[0].mxu0 %v112
    %v6830 = vpop.f32.mrb[0].mxu0
    %v6831 = vadd.f32 0.0, %v6830
    %v6832 = vpop.f32.mrb[0].mxu0
    %6833 = vmatprep.mubr.f32.mxu0 0.0
    %6834 = vmatmul.mubr.f32.gmra.mrb[0].mxu0 %v113
    %v6835 = vpop.f32.mrb[0].mxu0
    %v6836 = vadd.f32 0.0, %v6835
    %v6837 = vpop.f32.mrb[0].mxu0
    %6838 = vmatprep.mubr.f32.mxu0 0.0
    %6839 = vmatmul.mubr.f32.gmra.mrb[0].mxu0 %v114
    %v6840 = vpop.f32.mrb[0].mxu0
    %v6841 = vadd.f32 0.0, %v6840
    %v6842 = vpop.f32.mrb[0].mxu0
    %6843 = vmatprep.mubr.f32.mxu0 0.0
    %6844 = vmatmul.mubr.f32.gmra.mrb[0].mxu0 %v115
    %v6845 = vpop.f32.mrb[0].mxu0
    %v6846 = vadd.f32 0.0, %v6845
    %v6847 = vpop.f32.mrb[0].mxu0
    %6848 = vmatprep.mubr.f32.mxu0 0.0
    %6849 = vmatmul.mubr.f32.gmra.mrb[0].mxu0 %v116
    %v6850 = vpop.f32.mrb[0].mxu0
    %v6851 = vadd.f32 0.0, %v6850
    %v6852 = vpop.f32.mrb[0].mxu0
    %6853 = vmatprep.mubr.f32.mxu0 0.0
    %6854 = vmatmul.mubr.f32.gmra.mrb[0].mxu0 %v117
    %v6855 = vpop.f32.mrb[0].mxu0
    %v6856 = vadd.f32 0.0, %v6855
    %v6857 = vpop.f32.mrb[0].mxu0
    %6858 = vmatprep.mubr.f32.mxu0 0.0
    %6859 = vmatmul.mubr.f32.gmra.mrb[0].mxu0 %v118
    %v6860 = vpop.f32.mrb[0].mxu0
    %v6861 = vadd.f32 0.0, %v6860
    %v6862 = vpop.f32.mrb[0].mxu0
    %6863 = vmatprep.mubr.f32.mxu0 0.0
    %6864 = vmatmul.mubr.f32.gmra.mrb[0].mxu0 %v119
    %v6865 = vpop.f32.mrb[0].mxu0
    %v6866 = vadd.f32 0.0, %v6865
    %v6867 = vpop.f32.mrb[0].mxu0
    %6868 = vmatprep.mubr.f32.mxu0 0.0
    %6869 = vmatmul.mubr.f32.gmra.mrb[0].mxu0 %v120
    %v6870 = vpop.f32.mrb[0].mxu0
    %v6871 = vadd.f32 0.0, %v6870
    %v6872 = vpop.f32.mrb[0].mxu0
    %6873 = vmatprep.mubr.f32.mxu0 0.0
    %6874 = vmatmul.mubr.f32.gmra.mrb[0].mxu0 %v121
    %v6875 = vpop.f32.mrb[0].mxu0
    %v6876 = vadd.f32 0.0, %v6875
    %v6877 = vpop.f32.mrb[0].mxu0
    %6878 = vmatprep.mubr.f32.mxu0 0.0
    %6879 = vmatmul.mubr.f32.gmra.mrb[0].mxu0 %v122
    %v6880 = vpop.f32.mrb[0].mxu0
    %v6881 = vadd.f32 0.0, %v6880
    %v6882 = vpop.f32.mrb[0].mxu0
    %6883 = vmatprep.mubr.f32.mxu0 0.0
    %6884 = vmatmul.mubr.f32.gmra.mrb[0].mxu0 %v123
    %v6885 = vpop.f32.mrb[0].mxu0
    %v6886 = vadd.f32 0.0, %v6885
    %v6887 = vpop.f32.mrb[0].mxu0
    %6888 = vmatprep.mubr.f32.mxu0 0.0
    %6889 = vmatmul.mubr.f32.gmra.mrb[0].mxu0 %v124
    %v6890 = vpop.f32.mrb[0].mxu0
    %v6891 = vadd.f32 0.0, %v6890
    %v6892 = vpop.f32.mrb[0].mxu0
    %6893 = vmatprep.mubr.f32.mxu0 0.0
    %6894 = vmatmul.mubr.f32.gmra.mrb[0].mxu0 %v125
    %v6895 = vpop.f32.mrb[0].mxu0
    %v6896 = vadd.f32 0.0, %v6895
    %v6897 = vpop.f32.mrb[0].mxu0
    %6898 = vmatprep.mubr.f32.mxu0 0.0
    %6899 = vmatmul.mubr.f32.gmra.mrb[0].mxu0 %v126
    %v6900 = vpop.f32.mrb[0].mxu0
    %v6901 = vadd.f32 0.0, %v6900
    %v6902 = vpop.f32.mrb[0].mxu0
    %6903 = vmatprep.mubr.f32.mxu0 0.0
    %6904 = vmatmul.mubr.f32.gmra.mrb[0].mxu0 %v127
    %v6905 = vpop.f32.mrb[0].mxu0
    %v6906 = vadd.f32 0.0, %v6905
    %v6907 = vpop.f32.mrb[0].mxu0
    %6908 = vmatprep.mubr.f32.mxu0 0.0
    %6909 = vmatmul.mubr.f32.gmra.mrb[0].mxu0 %v128
    %v6910 = vpop.f32.mrb[0].mxu0
    %v6911 = vadd.f32 0.0, %v6910
    %v6912 = vpop.f32.mrb[0].mxu0
    %6913 = vmatprep.mubr.f32.mxu0 0.0
    %6914 = vmatmul.mubr.f32.gmra.mrb[0].mxu0 %v129
    %v6915 = vpop.f32.mrb[0].mxu0
    %v6916 = vadd.f32 0.0, %v6915
    %v6917 = vpop.f32.mrb[0].mxu0
    %6918 = vmatprep.mubr.f32.mxu0 0.0
    %6919 = vmatmul.mubr.f32.gmra.mrb[0].mxu0 %v130
    %v6920 = vpop.f32.mrb[0].mxu0
    %v6921 = vadd.f32 0.0, %v6920
    %v6922 = vpop.f32.mrb[0].mxu0
    %6923 = vmatprep.mubr.f32.mxu0 0.0
    %6924 = vmatmul.mubr.f32.gmra.mrb[0].mxu0 %v131
    %v6925 = vpop.f32.mrb[0].mxu0
    %v6926 = vadd.f32 0.0, %v6925
    %v6927 = vpop.f32.mrb[0].mxu0
    %6928 = vmatprep.mubr.f32.mxu0 0.0
    %6929 = vmatmul.mubr.f32.gmra.mrb[0].mxu0 %v132
    %v6930 = vpop.f32.mrb[0].mxu0
    %v6931 = vadd.f32 0.0, %v6930
    %v6932 = vpop.f32.mrb[0].mxu0
    %6933 = vmatprep.mubr.f32.mxu0 0.0
    %6934 = vmatmul.mubr.f32.gmra.mrb[0].mxu0 %v133
    %v6935 = vpop.f32.mrb[0].mxu0
    %v6936 = vadd.f32 0.0, %v6935
    %v6937 = vpop.f32.mrb[0].mxu0
    %6938 = vmatprep.mubr.f32.mxu0 0.0
    %6939 = vmatmul.mubr.f32.gmra.mrb[0].mxu0 %v134
    %v6940 = vpop.f32.mrb[0].mxu0
    %v6941 = vadd.f32 0.0, %v6940
    %v6942 = vpop.f32.mrb[0].mxu0
    %6943 = vdwg.mxu0
    %6944 = vst [vmem:[#allocation14] sm:$0xff] %v6786
    %6945 = vst [vmem:[#allocation14 + $0x8] sm:$0xff] %v6791
    %6946 = vst [vmem:[#allocation14 + $0x10] sm:$0xff] %v6796
    %6947 = vst [vmem:[#allocation14 + $0x18] sm:$0xff] %v6801
    %6948 = vst [vmem:[#allocation14 + $0x20] sm:$0xff] %v6806
    %6949 = vst [vmem:[#allocation14 + $0x28] sm:$0xff] %v6811
    %6950 = vst [vmem:[#allocation14 + $0x30] sm:$0xff] %v6816
    %6951 = vst [vmem:[#allocation14 + $0x38] sm:$0xff] %v6821
    %6952 = vst [vmem:[#allocation14 + $0x40] sm:$0xff] %v6826
    %6953 = vst [vmem:[#allocation14 + $0x48] sm:$0xff] %v6831
    %6954 = vst [vmem:[#allocation14 + $0x50] sm:$0xff] %v6836
    %6955 = vst [vmem:[#allocation14 + $0x58] sm:$0xff] %v6841
    %6956 = vst [vmem:[#allocation14 + $0x60] sm:$0xff] %v6846
    %6957 = vst [vmem:[#allocation14 + $0x68] sm:$0xff] %v6851
    %6958 = vst [vmem:[#allocation14 + $0x70] sm:$0xff] %v6856
    %6959 = vst [vmem:[#allocation14 + $0x78] sm:$0xff] %v6861
    %6960 = vst [vmem:[#allocation14 + $0x80] sm:$0xff] %v6866
    %6961 = vst [vmem:[#allocation14 + $0x88] sm:$0xff] %v6871
    %6962 = vst [vmem:[#allocation14 + $0x90] sm:$0xff] %v6876
    %6963 = vst [vmem:[#allocation14 + $0x98] sm:$0xff] %v6881
    %6964 = vst [vmem:[#allocation14 + $0xa0] sm:$0xff] %v6886
    %6965 = vst [vmem:[#allocation14 + $0xa8] sm:$0xff] %v6891
    %6966 = vst [vmem:[#allocation14 + $0xb0] sm:$0xff] %v6896
    %6967 = vst [vmem:[#allocation14 + $0xb8] sm:$0xff] %v6901
    %6968 = vst [vmem:[#allocation14 + $0xc0] sm:$0xff] %v6906
    %6969 = vst [vmem:[#allocation14 + $0xc8] sm:$0xff] %v6911
    %6970 = vst [vmem:[#allocation14 + $0xd0] sm:$0xff] %v6916
    %6971 = vst [vmem:[#allocation14 + $0xd8] sm:$0xff] %v6921
    %6972 = vst [vmem:[#allocation14 + $0xe0] sm:$0xff] %v6926
    %6973 = vst [vmem:[#allocation14 + $0xe8] sm:$0xff] %v6931
    %6974 = vst [vmem:[#allocation14 + $0xf0] sm:$0xff] %v6936
    %6975 = vst [vmem:[#allocation14 + $0xf8] sm:$0xff] %v6941
    // Predicated region
    $region54: #{tpu_custom_call.1} parent=1 // pred_check
      _
    $region55: #{tpu_custom_call.1} parent=1 // pred_check_branch
      %6977 = sbr.rel (0) target = $region57
    $region56: #{tpu_custom_call.1} parent=1 // pred_region
      %s6979 = ssub.s32 4096, 4096
      %6980 = vsyncadd [#allocation4], %s6979
      %s6981 = sshll.u32 [#allocation11], 4
      %s6982 = int_to_ptr.vmem [resolvable:$true] %s6981
      %6987 = dma.vmem_to_hbm [thread:$0]  %s6982, 4096, %s8, [#allocation4], 128, 128, 8
    $region57: #{tpu_custom_call.1} parent=1 // pred_fallthru
      _
    // Predicated region
    $region58: #{tpu_custom_call.1} parent=1 // pred_check
      _
    $region59: #{tpu_custom_call.1} parent=1 // pred_check_branch
      %6989 = sbr.rel (0) target = $region61
    $region60: #{tpu_custom_call.1} parent=1 // pred_region
      %s6991 = ssub.s32 4096, 4096
      %6992 = vsyncadd [#allocation13], %s6991
      %s6993 = sshll.u32 [#allocation12], 4
      %s6994 = int_to_ptr.vmem [resolvable:$true] %s6993
      %6999 = dma.vmem_to_hbm [thread:$0]  %s6994, 4096, %s9, [#allocation13], 256, 256, 16
    $region61: #{tpu_custom_call.1} parent=1 // pred_fallthru
      _
    // Predicated region
    $region62: #{tpu_custom_call.1} parent=1 // pred_check
      _
    $region63: #{tpu_custom_call.1} parent=1 // pred_check_branch
      %7001 = sbr.rel (0) target = $region65
    $region64: #{tpu_custom_call.1} parent=1 // pred_region
      %s7003 = ssub.s32 4096, 4096
      %7004 = vsyncadd [#allocation13], %s7003
      %s7005 = sshll.u32 [#allocation14], 4
      %s7006 = int_to_ptr.vmem [resolvable:$true] %s7005
      %7011 = dma.vmem_to_hbm [thread:$0]  %s7006, 4096, %s10, [#allocation13], 128, 128, 8
    $region65: #{tpu_custom_call.1} parent=1 // pred_fallthru
      _
    // Predicated region
    $region66: #{tpu_custom_call.1} parent=1 // pred_check
      _
    $region67: #{tpu_custom_call.1} parent=1 // pred_check_branch
      %7013 = sbr.rel (0) target = $region69
    $region68: #{tpu_custom_call.1} parent=1 // pred_region
      _
    $region69: #{tpu_custom_call.1} parent=1 // pred_fallthru
      _
    // Predicated region
    $region70: #{tpu_custom_call.1} parent=1 // pred_check
      _
    $region71: #{tpu_custom_call.1} parent=1 // pred_check_branch
      %7015 = sbr.rel (0) target = $region73
    $region72: #{tpu_custom_call.1} parent=1 // pred_region
      %7016 = dma.done [#allocation4], 4096
    $region73: #{tpu_custom_call.1} parent=1 // pred_fallthru
      _
    // Predicated region
    $region74: #{tpu_custom_call.1} parent=1 // pred_check
      _
    $region75: #{tpu_custom_call.1} parent=1 // pred_check_branch
      %7018 = sbr.rel (0) target = $region77
    $region76: #{tpu_custom_call.1} parent=1 // pred_region
      %7019 = dma.done [#allocation13], 4096
    $region77: #{tpu_custom_call.1} parent=1 // pred_fallthru
      _
    // Predicated region
    $region78: #{tpu_custom_call.1} parent=1 // pred_check
      _
    $region79: #{tpu_custom_call.1} parent=1 // pred_check_branch
      %7021 = sbr.rel (0) target = $region81
    $region80: #{tpu_custom_call.1} parent=1 // pred_region
      %7022 = dma.done [#allocation13], 4096
    $region81: #{tpu_custom_call.1} parent=1 // pred_fallthru
      _
    // Predicated region
    $region82: #{tpu_custom_call.1} parent=1 // pred_check
      _
    $region83: #{tpu_custom_call.1} parent=1 // pred_check_branch
      %7024 = sbr.rel (0) target = $region85
    $region84: #{tpu_custom_call.1} parent=1 // pred_region
      _
    $region85: #{tpu_custom_call.1} parent=1 // pred_fallthru
      _
    %7025 = vsyncpa [#allocation3], 1
    %7026 = vsyncpa [#allocation6], 1
    %7027 = vsyncpa [#allocation9], 1
    %7028 = vsyncpa [#allocation4], 1
    %7029 = vsyncpa [#allocation13], 1

</llo_original>
